<compile_context>
chip_gen: v7x
topology: tpu7x:2x2x1
jax: 0.10.0
libtpu: 0.0.40
codegen_flags: <defaults>
</compile_context>

<pallas_src>
import functools

import jax
import jax.numpy as jnp
import numpy as np
from jax import lax
from jax.experimental import pallas as pl
from jax.experimental.pallas import tpu as pltpu


def _round_up(x, m):
    return ((x + m - 1) // m) * m


# -----------------------------------------------------------------------------
# Pallas kernel: one (batch, row-tile) step of the fused forward pass.
# -----------------------------------------------------------------------------
def _illum_kernel(prev_ref, cur_ref, next_ref,      # (1,3,HB,Wp)/(1,3,TH,Wp)/(1,3,HB,Wp) f32
                  w1_ref,                           # (M, 3)   f32 (channel-mean folded)
                  b1_ref,                           # (M, 1)   f32
                  wd_ref,                           # (n_stages, MR, tps*M) bf16 fused weight
                  bf_ref,                           # (MR, 1)  f32 fused bias
                  fea_ref,                          # (1, M, TH*Wp) f32
                  map_ref,                          # (1, 3, TH*Wp) f32
                  x1_ref,                           # VMEM (M, (TH+4)*Wp + 128) bf16
                  xs_ref,                           # VMEM (tps*M, TH*Wp) bf16
                  acc_ref,                          # VMEM (MR, TH*Wp) f32
                  *, TH, HB, Wp, W, M, n_stages, tps):
    t = pl.program_id(1)
    h_img = pl.num_programs(1) * TH
    p_out = TH * Wp

    # Valid image columns of a padded row are [2, W + 2).  Padded input columns
    # are already zero, so only the bias needs the column mask (hoisted here,
    # outside the per-row loop).
    lane = lax.broadcasted_iota(jnp.int32, (1, Wp), 1)
    bias1m = jnp.where(jnp.logical_and(lane >= 2, lane < W + 2), b1_ref[...], 0.0)

    w1r = w1_ref[:, 0:1]
    w1g = w1_ref[:, 1:2]
    w1b = w1_ref[:, 2:3]

    # ---- conv1 (1x1, mean folded) over the (TH+4)-row halo'd tile, written ----
    # ---- straight into the flattened (stride Wp) VMEM scratch.             ----
    for r in range(TH + 4):
        if r < 2:                               # top halo: last rows of prev block
            src = prev_ref[0, :, HB - 2 + r, :]
        elif r < TH + 2:                        # body rows
            src = cur_ref[0, :, r - 2, :]
        else:                                   # bottom halo: first rows of next
            src = next_ref[0, :, r - TH - 2, :]
        x1r = (bias1m
               + w1r * src[0:1, :]
               + w1g * src[1:2, :]
               + w1b * src[2:3, :])                                   # (M, Wp) f32
        if r < 2 or r >= TH + 2:                # halo rows may fall off the image
            grow = t * TH + (r - 2)
            ok = jnp.logical_and(grow >= 0, grow < h_img)
            x1r = x1r * ok.astype(x1r.dtype)
        x1_ref[:, r * Wp:(r + 1) * Wp] = x1r.astype(jnp.bfloat16)
    # Zero the small tail read by the widest taps of the last body row.
    tail = x1_ref.shape[1] - (TH + 4) * Wp
    x1_ref[:, (TH + 4) * Wp:] = jnp.zeros((M, tail), jnp.bfloat16)

    # ---- depth_conv (5x5, groups=4) + fused conv2: stage tap-shifted views ----
    # ---- along K and contract on the MXU (1 or 5 stages).                  ----
    for st in range(n_stages):
        for j in range(tps):
            tap = st * tps + j
            ky, kx = tap // 5, tap % 5
            s = ky * Wp + kx                    # row offset aligned, + kx <= 4 lanes
            xs_ref[j * M:(j + 1) * M, :] = x1_ref[:, s:s + p_out]
        contrib = jnp.dot(wd_ref[st], xs_ref[...],
                          preferred_element_type=jnp.float32)          # (MR, p_out)
        if st == 0:
            acc_ref[...] = bf_ref[...] + contrib
        else:
            acc_ref[...] = acc_ref[...] + contrib

    # ---- lane-dense stores: the whole tile in one unmasked store per output ----
    fea_ref[0, :, :] = acc_ref[:M, :]
    map_ref[0, :, :] = acc_ref[M:M + 3, :]


# -----------------------------------------------------------------------------
# VMEM footprint estimate + tile / staging selection.
# -----------------------------------------------------------------------------
def _footprint_bytes(th, hb, wp, m, mr, n_stages):
    tps = 25 // n_stages
    p_out = th * wp
    x1w = (th + 4) * wp + 128
    fp = 2 * 3 * th * wp * 4            # body block (double buffered)
    fp += 2 * 2 * 3 * hb * wp * 4       # prev + next halo blocks (double buffered)
    fp += 2 * (m + 3) * p_out * 4       # fea + map output blocks (double buffered)
    fp += m * x1w * 2                   # x1 scratch (bf16)
    fp += tps * m * p_out * 2           # tap staging scratch (bf16)
    fp += mr * p_out * 4                # f32 accumulator scratch
    fp += 25 * mr * m * 2 + 4 * (4 * m + mr)   # weights / biases
    return fp


def _choose_config(h, wp, m, mr, tile_h, n_stages, budget=28 << 20):
    if tile_h is not None:
        th_cands = [tile_h]
    elif h % 8 == 0:
        th_cands = [t for t in (64, 32, 16, 8) if h % t == 0]
    else:
        th_cands = [h]
    ns_cands = [n_stages] if n_stages is not None else [1, 5]

    def halo(th):
        return 8 if (th % 8 == 0 and h % 8 == 0) else th

    for th in th_cands:
        for ns in ns_cands:
            if _footprint_bytes(th, halo(th), wp, m, mr, ns) <= budget:
                return th, halo(th), ns
    th = th_cands[-1]
    return th, halo(th), ns_cands[-1]


# -----------------------------------------------------------------------------
# Wrapper: parameter re-layout + pallas_call.
# -----------------------------------------------------------------------------
def illumination_estimator(img_nchw, params, *, tile_h=None, n_stages=None):
    """img_nchw: (B, 3, H, W) f32 -> (illu_fea (B, M, H, W), illu_map (B, 3, H, W))."""
    W1, b1, Wd, bd, W2, b2 = params
    B, Cin, H, Wimg = img_nchw.shape
    assert Cin == 3, "Illumination_Estimator expects a 3-channel image"
    assert H >= 2 and Wimg >= 2
    M = W1.shape[0]
    groups = 4
    assert M % groups == 0 and M % 8 == 0
    Cg = M // groups
    MR = _round_up(M + 3, 8)

    Wp = _round_up(Wimg + 4, 128)
    TH, HB, n_stages = _choose_config(H, Wp, M, MR, tile_h, n_stages)
    assert H % TH == 0 and TH % HB == 0 and H % HB == 0
    tps = 25 // n_stages
    nT = H // TH
    nHB = H // HB
    R = TH // HB
    Pout = TH * Wp
    X1W = (TH + 4) * Wp + 128

    # Width padding only (2 valid-pixel borders + lane alignment); row halos
    # come from the prev/next blocks + in-kernel row masking.
    img_pad = jnp.pad(img_nchw.astype(jnp.float32),
                      ((0, 0), (0, 0), (0, 0), (2, Wp - Wimg - 2)))

    # conv1: fold the channel-mean term into a 3-channel weight (exact algebra).
    w1m = W1[:, :, 0, 0].astype(jnp.float32)                  # (M, 4)
    w1e = w1m[:, :3] + w1m[:, 3:4] / 3.0                      # (M, 3)
    b1k = b1.reshape(M, 1).astype(jnp.float32)

    # Grouped 5x5 weight -> tap-stacked (M, 25, M); conv2 fused on top
    # (exact algebra: map = (W2 @ Wd) * x + (W2 @ bd + b2)).
    wd_stack = jnp.zeros((M, 25, M), jnp.float32)
    for g in range(groups):
        sl = slice(g * Cg, (g + 1) * Cg)
        blk = jnp.transpose(Wd[sl].astype(jnp.float32), (0, 2, 3, 1)).reshape(Cg, 25, Cg)
        wd_stack = wd_stack.at[sl, :, sl].set(blk)
    w2m = W2[:, :, 0, 0].astype(jnp.float32)                  # (3, M)
    wc = jnp.einsum("pm,mtc->ptc", w2m, wd_stack)             # (3, 25, M)
    wfull = jnp.concatenate([wd_stack, wc], axis=0)           # (M+3, 25, M)
    wfull = jnp.pad(wfull, ((0, MR - (M + 3)), (0, 0), (0, 0)))
    wfused = (wfull.reshape(MR, n_stages, tps, M)
                   .transpose(1, 0, 2, 3)
                   .reshape(n_stages, MR, tps * M)
                   .astype(jnp.bfloat16))
    bc = w2m @ bd.astype(jnp.float32) + b2.astype(jnp.float32)
    bfull = jnp.pad(jnp.concatenate([bd.astype(jnp.float32), bc]),
                    (0, MR - (M + 3))).reshape(MR, 1)

    kern = functools.partial(_illum_kernel, TH=TH, HB=HB, Wp=Wp, W=Wimg, M=M,
                             n_stages=n_stages, tps=tps)

    grid_spec = pltpu.PrefetchScalarGridSpec(
        num_scalar_prefetch=0,
        grid=(B, nT),
        in_specs=[
            pl.BlockSpec((1, 3, HB, Wp),
                         lambda b, t: (b, 0, jnp.maximum(t * R - 1, 0), 0)),        # prev halo
            pl.BlockSpec((1, 3, TH, Wp), lambda b, t: (b, 0, t, 0)),                # body
            pl.BlockSpec((1, 3, HB, Wp),
                         lambda b, t: (b, 0, jnp.minimum(t * R + R, nHB - 1), 0)),  # next halo
            pl.BlockSpec((M, 3), lambda b, t: (0, 0)),
            pl.BlockSpec((M, 1), lambda b, t: (0, 0)),
            pl.BlockSpec((n_stages, MR, tps * M), lambda b, t: (0, 0, 0)),
            pl.BlockSpec((MR, 1), lambda b, t: (0, 0)),
        ],
        out_specs=[
            pl.BlockSpec((1, M, Pout), lambda b, t: (b, 0, t)),
            pl.BlockSpec((1, 3, Pout), lambda b, t: (b, 0, t)),
        ],
        scratch_shapes=[
            pltpu.VMEM((M, X1W), jnp.bfloat16),
            pltpu.VMEM((tps * M, Pout), jnp.bfloat16),
            pltpu.VMEM((MR, Pout), jnp.float32),
        ],
    )

    fp = _footprint_bytes(TH, HB, Wp, M, MR, n_stages)
    vmem_limit = int(min(max(fp * 5 // 4 + (4 << 20), 32 << 20), 48 << 20))

    fea_flat, map_flat = pl.pallas_call(
        kern,
        out_shape=(jax.ShapeDtypeStruct((B, M, H * Wp), jnp.float32),
                   jax.ShapeDtypeStruct((B, 3, H * Wp), jnp.float32)),
        grid_spec=grid_spec,
        compiler_params=pltpu.CompilerParams(
            dimension_semantics=("parallel", "parallel"),
            vmem_limit_bytes=vmem_limit),
    )(img_pad, img_pad, img_pad, w1e, b1k, wfused, bfull)

    # Row-major reshape (free) + crop of the lane-alignment columns.
    fea = fea_flat.reshape(B, M, H, Wp)[:, :, :, :Wimg]
    imap = map_flat.reshape(B, 3, H, Wp)[:, :, :, :Wimg]
    return fea, imap


# -----------------------------------------------------------------------------
# Pure-JAX reference (mirrors the PyTorch forward) for a correctness check.
# -----------------------------------------------------------------------------
def reference_forward(img_nchw, params):
    W1, b1, Wd, bd, W2, b2 = params
    dn = ("NCHW", "OIHW", "NCHW")
    mean_c = jnp.mean(img_nchw, axis=1, keepdims=True)
    x = jnp.concatenate([img_nchw, mean_c], axis=1)
    y = lax.conv_general_dilated(x, W1, (1, 1), "VALID",
                                 dimension_numbers=dn) + b1[None, :, None, None]
    fea = lax.conv_general_dilated(y, Wd, (1, 1), ((2, 2), (2, 2)),
                                   dimension_numbers=dn,
                                   feature_group_count=4) + bd[None, :, None, None]
    imap = lax.conv_general_dilated(fea, W2, (1, 1), "VALID",
                                    dimension_numbers=dn) + b2[None, :, None, None]
    return fea, imap


# -----------------------------------------------------------------------------
# Deterministic parameter init (synthetic; shapes follow the module __init__).
# -----------------------------------------------------------------------------
def make_params(key, n_fea_middle=16, n_fea_in=4, n_fea_out=3):
    M = n_fea_middle
    k1, k2, k3, k4, k5, k6 = jax.random.split(key, 6)
    W1 = 0.3 * jax.random.normal(k1, (M, n_fea_in, 1, 1), jnp.float32)
    b1 = 0.1 * jax.random.normal(k2, (M,), jnp.float32)
    Wd = 0.15 * jax.random.normal(k3, (M, M // n_fea_in, 5, 5), jnp.float32)
    bd = 0.1 * jax.random.normal(k4, (M,), jnp.float32)
    W2 = 0.2 * jax.random.normal(k5, (n_fea_out, M, 1, 1), jnp.float32)
    b2 = 0.1 * jax.random.normal(k6, (n_fea_out,), jnp.float32)
    return (W1, b1, Wd, bd, W2, b2)


if __name__ == "__main__":
    key = jax.random.PRNGKey(0)
    kp, kx = jax.random.split(key)

    B, C, H, W = 2, 3, 16, 16
    n_fea_middle = 16

    params = make_params(kp, n_fea_middle=n_fea_middle)
    img = jax.random.normal(kx, (B, C, H, W), jnp.float32)

    ref_fea, ref_map = reference_forward(img, params)

    # Auto config: single full-height tile, single 25-tap contraction stage.
    run = jax.jit(functools.partial(illumination_estimator, params=params))
    illu_fea, illu_map = run(img)
    jax.block_until_ready((illu_fea, illu_map))
    np.testing.assert_allclose(np.asarray(illu_fea), np.asarray(ref_fea),
                               rtol=5e-2, atol=5e-2)
    np.testing.assert_allclose(np.asarray(illu_map), np.asarray(ref_map),
                               rtol=5e-2, atol=5e-2)

    # Forced multi-tile + per-ky staged path: exercises the inter-tile halo
    # exchange and the 5-stage accumulator used for large images on v7x.
    run2 = jax.jit(functools.partial(illumination_estimator, params=params,
                                     tile_h=8, n_stages=5))
    fea2, map2 = run2(img)
    jax.block_until_ready((fea2, map2))
    np.testing.assert_allclose(np.asarray(fea2), np.asarray(ref_fea),
                               rtol=5e-2, atol=5e-2)
    np.testing.assert_allclose(np.asarray(map2), np.asarray(ref_map),
                               rtol=5e-2, atol=5e-2)

    assert illu_fea.shape == (B, n_fea_middle, H, W)
    assert illu_map.shape == (B, 3, H, W)
    print("KERNEL_OK")
</pallas_src>

<mosaic_0001>
module attributes {stable_mosaic.version = 11 : i64} {
  func.func @_illum_kernel(%arg0: i32, %arg1: i32, %arg2: memref<1x3x8x128xf32, #tpu.memory_space<vmem>>, %arg3: memref<1x3x16x128xf32, #tpu.memory_space<vmem>>, %arg4: memref<1x3x8x128xf32, #tpu.memory_space<vmem>>, %arg5: memref<16x3xf32, #tpu.memory_space<vmem>>, %arg6: memref<16x1xf32, #tpu.memory_space<vmem>>, %arg7: memref<1x24x400xbf16, #tpu.memory_space<vmem>>, %arg8: memref<24x1xf32, #tpu.memory_space<vmem>>, %arg9: memref<1x16x2048xf32, #tpu.memory_space<vmem>>, %arg10: memref<1x3x2048xf32, #tpu.memory_space<vmem>>, %arg11: memref<16x2688xbf16, #tpu.memory_space<vmem>>, %arg12: memref<400x2048xbf16, #tpu.memory_space<vmem>>, %arg13: memref<24x2048xf32, #tpu.memory_space<vmem>>) attributes {dimension_semantics = [#tpu.dimension_semantics<parallel>, #tpu.dimension_semantics<parallel>], iteration_bounds = array<i64: 2, 1>, scalar_prefetch = 0 : i64, scratch_operands = 3 : i64, tpu.core_type = #tpu.core_type<tc>, window_params = [{transform_indices = @transform_0, window_bounds = array<i64: 1, 3, 8, 128>}, {transform_indices = @transform_1, window_bounds = array<i64: 1, 3, 16, 128>}, {transform_indices = @transform_2, window_bounds = array<i64: 1, 3, 8, 128>}, {pipeline_mode = #tpu.pipeline_mode<synchronous>, transform_indices = @transform_3, window_bounds = array<i64: 16, 3>}, {pipeline_mode = #tpu.pipeline_mode<synchronous>, transform_indices = @transform_4, window_bounds = array<i64: 16, 1>}, {pipeline_mode = #tpu.pipeline_mode<synchronous>, transform_indices = @transform_5, window_bounds = array<i64: 1, 24, 400>}, {pipeline_mode = #tpu.pipeline_mode<synchronous>, transform_indices = @transform_6, window_bounds = array<i64: 24, 1>}, {transform_indices = @transform_7, window_bounds = array<i64: 1, 16, 2048>}, {transform_indices = @transform_8, window_bounds = array<i64: 1, 3, 2048>}]} {
    %0 = tpu.iota {dimensions = array<i32: 1>} : vector<1x128xi32>
    %c2_i32 = arith.constant 2 : i32
    %1 = vector.broadcast %c2_i32 : i32 to vector<1x128xi32>
    %2 = arith.cmpi sge, %0, %1 : vector<1x128xi32>
    %c18_i32 = arith.constant 18 : i32
    %3 = vector.broadcast %c18_i32 : i32 to vector<1x128xi32>
    %4 = arith.cmpi slt, %0, %3 : vector<1x128xi32>
    %5 = arith.andi %2, %4 : vector<1x128xi1>
    %c0 = arith.constant 0 : index
    %c0_0 = arith.constant 0 : index
    %6 = vector.load %arg6[%c0, %c0_0] : memref<16x1xf32, #tpu.memory_space<vmem>>, vector<16x1xf32>
    %cst = arith.constant 0.000000e+00 : f32
    %7 = vector.shape_cast %5 : vector<1x128xi1> to vector<1x128xi1>
    %8 = vector.broadcast %7 : vector<1x128xi1> to vector<16x128xi1>
    %9 = vector.shape_cast %6 : vector<16x1xf32> to vector<16x1xf32>
    %10 = vector.broadcast %9 : vector<16x1xf32> to vector<16x128xf32>
    %11 = vector.broadcast %cst : f32 to vector<16x128xf32>
    %12 = arith.select %8, %10, %11 : vector<16x128xi1>, vector<16x128xf32>
    %c0_1 = arith.constant 0 : index
    %c0_2 = arith.constant 0 : index
    %13 = vector.load %arg5[%c0_1, %c0_2] : memref<16x3xf32, #tpu.memory_space<vmem>>, vector<16x1xf32>
    %c0_3 = arith.constant 0 : index
    %c1 = arith.constant 1 : index
    %14 = vector.load %arg5[%c0_3, %c1] : memref<16x3xf32, #tpu.memory_space<vmem>>, vector<16x1xf32>
    %c0_4 = arith.constant 0 : index
    %c2 = arith.constant 2 : index
    %15 = vector.load %arg5[%c0_4, %c2] : memref<16x3xf32, #tpu.memory_space<vmem>>, vector<16x1xf32>
    %c0_5 = arith.constant 0 : index
    %c0_6 = arith.constant 0 : index
    %c6 = arith.constant 6 : index
    %c0_7 = arith.constant 0 : index
    %16 = vector.load %arg2[%c0_5, %c0_6, %c6, %c0_7] : memref<1x3x8x128xf32, #tpu.memory_space<vmem>>, vector<1x3x1x128xf32>
    %17 = vector.shape_cast %16 : vector<1x3x1x128xf32> to vector<3x128xf32>
    %18 = vector.extract_strided_slice %17 {offsets = [0, 0], sizes = [1, 128], strides = [1, 1]} : vector<3x128xf32> to vector<1x128xf32>
    %19 = vector.broadcast %13 : vector<16x1xf32> to vector<16x128xf32>
    %20 = vector.broadcast %18 : vector<1x128xf32> to vector<16x128xf32>
    %21 = arith.mulf %19, %20 : vector<16x128xf32>
    %22 = arith.addf %12, %21 : vector<16x128xf32>
    %23 = vector.extract_strided_slice %17 {offsets = [1, 0], sizes = [1, 128], strides = [1, 1]} : vector<3x128xf32> to vector<1x128xf32>
    %24 = vector.broadcast %14 : vector<16x1xf32> to vector<16x128xf32>
    %25 = vector.broadcast %23 : vector<1x128xf32> to vector<16x128xf32>
    %26 = arith.mulf %24, %25 : vector<16x128xf32>
    %27 = arith.addf %22, %26 : vector<16x128xf32>
    %28 = vector.extract_strided_slice %17 {offsets = [2, 0], sizes = [1, 128], strides = [1, 1]} : vector<3x128xf32> to vector<1x128xf32>
    %29 = vector.broadcast %15 : vector<16x1xf32> to vector<16x128xf32>
    %30 = vector.broadcast %28 : vector<1x128xf32> to vector<16x128xf32>
    %31 = arith.mulf %29, %30 : vector<16x128xf32>
    %32 = arith.addf %27, %31 : vector<16x128xf32>
    %c16_i32 = arith.constant 16 : i32
    %33 = arith.muli %arg1, %c16_i32 : i32
    %c-2_i32 = arith.constant -2 : i32
    %34 = arith.addi %33, %c-2_i32 : i32
    %c0_i32 = arith.constant 0 : i32
    %35 = arith.cmpi sge, %34, %c0_i32 : i32
    %c16_i32_8 = arith.constant 16 : i32
    %36 = arith.cmpi slt, %34, %c16_i32_8 : i32
    %37 = arith.andi %35, %36 : i1
    %38 = arith.extui %37 : i1 to i32
    %39 = arith.sitofp %38 : i32 to f32
    %40 = vector.broadcast %39 : f32 to vector<16x128xf32>
    %41 = arith.mulf %32, %40 : vector<16x128xf32>
    %42 = arith.truncf %41 : vector<16x128xf32> to vector<16x128xbf16>
    %c0_9 = arith.constant 0 : index
    %c0_10 = arith.constant 0 : index
    %43 = vector.load %arg11[%c0_9, %c0_10] : memref<16x2688xbf16, #tpu.memory_space<vmem>>, vector<16x128xbf16>
    tpu.vector_store %arg11[%c0_9, %c0_10], %42 {strides = array<i32>} : memref<16x2688xbf16, #tpu.memory_space<vmem>>, vector<16x128xbf16>,
    %c0_11 = arith.constant 0 : index
    %c0_12 = arith.constant 0 : index
    %c7 = arith.constant 7 : index
    %c0_13 = arith.constant 0 : index
    %44 = vector.load %arg2[%c0_11, %c0_12, %c7, %c0_13] : memref<1x3x8x128xf32, #tpu.memory_space<vmem>>, vector<1x3x1x128xf32>
    %45 = vector.shape_cast %44 : vector<1x3x1x128xf32> to vector<3x128xf32>
    %46 = vector.extract_strided_slice %45 {offsets = [0, 0], sizes = [1, 128], strides = [1, 1]} : vector<3x128xf32> to vector<1x128xf32>
    %47 = vector.broadcast %13 : vector<16x1xf32> to vector<16x128xf32>
    %48 = vector.broadcast %46 : vector<1x128xf32> to vector<16x128xf32>
    %49 = arith.mulf %47, %48 : vector<16x128xf32>
    %50 = arith.addf %12, %49 : vector<16x128xf32>
    %51 = vector.extract_strided_slice %45 {offsets = [1, 0], sizes = [1, 128], strides = [1, 1]} : vector<3x128xf32> to vector<1x128xf32>
    %52 = vector.broadcast %14 : vector<16x1xf32> to vector<16x128xf32>
    %53 = vector.broadcast %51 : vector<1x128xf32> to vector<16x128xf32>
    %54 = arith.mulf %52, %53 : vector<16x128xf32>
    %55 = arith.addf %50, %54 : vector<16x128xf32>
    %56 = vector.extract_strided_slice %45 {offsets = [2, 0], sizes = [1, 128], strides = [1, 1]} : vector<3x128xf32> to vector<1x128xf32>
    %57 = vector.broadcast %15 : vector<16x1xf32> to vector<16x128xf32>
    %58 = vector.broadcast %56 : vector<1x128xf32> to vector<16x128xf32>
    %59 = arith.mulf %57, %58 : vector<16x128xf32>
    %60 = arith.addf %55, %59 : vector<16x128xf32>
    %c16_i32_14 = arith.constant 16 : i32
    %61 = arith.muli %arg1, %c16_i32_14 : i32
    %c-1_i32 = arith.constant -1 : i32
    %62 = arith.addi %61, %c-1_i32 : i32
    %c0_i32_15 = arith.constant 0 : i32
    %63 = arith.cmpi sge, %62, %c0_i32_15 : i32
    %c16_i32_16 = arith.constant 16 : i32
    %64 = arith.cmpi slt, %62, %c16_i32_16 : i32
    %65 = arith.andi %63, %64 : i1
    %66 = arith.extui %65 : i1 to i32
    %67 = arith.sitofp %66 : i32 to f32
    %68 = vector.broadcast %67 : f32 to vector<16x128xf32>
    %69 = arith.mulf %60, %68 : vector<16x128xf32>
    %70 = arith.truncf %69 : vector<16x128xf32> to vector<16x128xbf16>
    %c0_17 = arith.constant 0 : index
    %c128 = arith.constant 128 : index
    %71 = vector.load %arg11[%c0_17, %c128] : memref<16x2688xbf16, #tpu.memory_space<vmem>>, vector<16x128xbf16>
    tpu.vector_store %arg11[%c0_17, %c128], %70 {strides = array<i32>} : memref<16x2688xbf16, #tpu.memory_space<vmem>>, vector<16x128xbf16>,
    %c0_18 = arith.constant 0 : index
    %c0_19 = arith.constant 0 : index
    %c0_20 = arith.constant 0 : index
    %c0_21 = arith.constant 0 : index
    %72 = vector.load %arg3[%c0_18, %c0_19, %c0_20, %c0_21] : memref<1x3x16x128xf32, #tpu.memory_space<vmem>>, vector<1x3x1x128xf32>
    %73 = vector.shape_cast %72 : vector<1x3x1x128xf32> to vector<3x128xf32>
    %74 = vector.extract_strided_slice %73 {offsets = [0, 0], sizes = [1, 128], strides = [1, 1]} : vector<3x128xf32> to vector<1x128xf32>
    %75 = vector.broadcast %13 : vector<16x1xf32> to vector<16x128xf32>
    %76 = vector.broadcast %74 : vector<1x128xf32> to vector<16x128xf32>
    %77 = arith.mulf %75, %76 : vector<16x128xf32>
    %78 = arith.addf %12, %77 : vector<16x128xf32>
    %79 = vector.extract_strided_slice %73 {offsets = [1, 0], sizes = [1, 128], strides = [1, 1]} : vector<3x128xf32> to vector<1x128xf32>
    %80 = vector.broadcast %14 : vector<16x1xf32> to vector<16x128xf32>
    %81 = vector.broadcast %79 : vector<1x128xf32> to vector<16x128xf32>
    %82 = arith.mulf %80, %81 : vector<16x128xf32>
    %83 = arith.addf %78, %82 : vector<16x128xf32>
    %84 = vector.extract_strided_slice %73 {offsets = [2, 0], sizes = [1, 128], strides = [1, 1]} : vector<3x128xf32> to vector<1x128xf32>
    %85 = vector.broadcast %15 : vector<16x1xf32> to vector<16x128xf32>
    %86 = vector.broadcast %84 : vector<1x128xf32> to vector<16x128xf32>
    %87 = arith.mulf %85, %86 : vector<16x128xf32>
    %88 = arith.addf %83, %87 : vector<16x128xf32>
    %89 = arith.truncf %88 : vector<16x128xf32> to vector<16x128xbf16>
    %c0_22 = arith.constant 0 : index
    %c256 = arith.constant 256 : index
    %90 = vector.load %arg11[%c0_22, %c256] : memref<16x2688xbf16, #tpu.memory_space<vmem>>, vector<16x128xbf16>
    tpu.vector_store %arg11[%c0_22, %c256], %89 {strides = array<i32>} : memref<16x2688xbf16, #tpu.memory_space<vmem>>, vector<16x128xbf16>,
    %c0_23 = arith.constant 0 : index
    %c0_24 = arith.constant 0 : index
    %c1_25 = arith.constant 1 : index
    %c0_26 = arith.constant 0 : index
    %91 = vector.load %arg3[%c0_23, %c0_24, %c1_25, %c0_26] : memref<1x3x16x128xf32, #tpu.memory_space<vmem>>, vector<1x3x1x128xf32>
    %92 = vector.shape_cast %91 : vector<1x3x1x128xf32> to vector<3x128xf32>
    %93 = vector.extract_strided_slice %92 {offsets = [0, 0], sizes = [1, 128], strides = [1, 1]} : vector<3x128xf32> to vector<1x128xf32>
    %94 = vector.broadcast %13 : vector<16x1xf32> to vector<16x128xf32>
    %95 = vector.broadcast %93 : vector<1x128xf32> to vector<16x128xf32>
    %96 = arith.mulf %94, %95 : vector<16x128xf32>
    %97 = arith.addf %12, %96 : vector<16x128xf32>
    %98 = vector.extract_strided_slice %92 {offsets = [1, 0], sizes = [1, 128], strides = [1, 1]} : vector<3x128xf32> to vector<1x128xf32>
    %99 = vector.broadcast %14 : vector<16x1xf32> to vector<16x128xf32>
    %100 = vector.broadcast %98 : vector<1x128xf32> to vector<16x128xf32>
    %101 = arith.mulf %99, %100 : vector<16x128xf32>
    %102 = arith.addf %97, %101 : vector<16x128xf32>
    %103 = vector.extract_strided_slice %92 {offsets = [2, 0], sizes = [1, 128], strides = [1, 1]} : vector<3x128xf32> to vector<1x128xf32>
    %104 = vector.broadcast %15 : vector<16x1xf32> to vector<16x128xf32>
    %105 = vector.broadcast %103 : vector<1x128xf32> to vector<16x128xf32>
    %106 = arith.mulf %104, %105 : vector<16x128xf32>
    %107 = arith.addf %102, %106 : vector<16x128xf32>
    %108 = arith.truncf %107 : vector<16x128xf32> to vector<16x128xbf16>
    %c0_27 = arith.constant 0 : index
    %c384 = arith.constant 384 : index
    %109 = vector.load %arg11[%c0_27, %c384] : memref<16x2688xbf16, #tpu.memory_space<vmem>>, vector<16x128xbf16>
    tpu.vector_store %arg11[%c0_27, %c384], %108 {strides = array<i32>} : memref<16x2688xbf16, #tpu.memory_space<vmem>>, vector<16x128xbf16>,
    %c0_28 = arith.constant 0 : index
    %c0_29 = arith.constant 0 : index
    %c2_30 = arith.constant 2 : index
    %c0_31 = arith.constant 0 : index
    %110 = vector.load %arg3[%c0_28, %c0_29, %c2_30, %c0_31] : memref<1x3x16x128xf32, #tpu.memory_space<vmem>>, vector<1x3x1x128xf32>
    %111 = vector.shape_cast %110 : vector<1x3x1x128xf32> to vector<3x128xf32>
    %112 = vector.extract_strided_slice %111 {offsets = [0, 0], sizes = [1, 128], strides = [1, 1]} : vector<3x128xf32> to vector<1x128xf32>
    %113 = vector.broadcast %13 : vector<16x1xf32> to vector<16x128xf32>
    %114 = vector.broadcast %112 : vector<1x128xf32> to vector<16x128xf32>
    %115 = arith.mulf %113, %114 : vector<16x128xf32>
    %116 = arith.addf %12, %115 : vector<16x128xf32>
    %117 = vector.extract_strided_slice %111 {offsets = [1, 0], sizes = [1, 128], strides = [1, 1]} : vector<3x128xf32> to vector<1x128xf32>
    %118 = vector.broadcast %14 : vector<16x1xf32> to vector<16x128xf32>
    %119 = vector.broadcast %117 : vector<1x128xf32> to vector<16x128xf32>
    %120 = arith.mulf %118, %119 : vector<16x128xf32>
    %121 = arith.addf %116, %120 : vector<16x128xf32>
    %122 = vector.extract_strided_slice %111 {offsets = [2, 0], sizes = [1, 128], strides = [1, 1]} : vector<3x128xf32> to vector<1x128xf32>
    %123 = vector.broadcast %15 : vector<16x1xf32> to vector<16x128xf32>
    %124 = vector.broadcast %122 : vector<1x128xf32> to vector<16x128xf32>
    %125 = arith.mulf %123, %124 : vector<16x128xf32>
    %126 = arith.addf %121, %125 : vector<16x128xf32>
    %127 = arith.truncf %126 : vector<16x128xf32> to vector<16x128xbf16>
    %c0_32 = arith.constant 0 : index
    %c512 = arith.constant 512 : index
    %128 = vector.load %arg11[%c0_32, %c512] : memref<16x2688xbf16, #tpu.memory_space<vmem>>, vector<16x128xbf16>
    tpu.vector_store %arg11[%c0_32, %c512], %127 {strides = array<i32>} : memref<16x2688xbf16, #tpu.memory_space<vmem>>, vector<16x128xbf16>,
    %c0_33 = arith.constant 0 : index
    %c0_34 = arith.constant 0 : index
    %c3 = arith.constant 3 : index
    %c0_35 = arith.constant 0 : index
    %129 = vector.load %arg3[%c0_33, %c0_34, %c3, %c0_35] : memref<1x3x16x128xf32, #tpu.memory_space<vmem>>, vector<1x3x1x128xf32>
    %130 = vector.shape_cast %129 : vector<1x3x1x128xf32> to vector<3x128xf32>
    %131 = vector.extract_strided_slice %130 {offsets = [0, 0], sizes = [1, 128], strides = [1, 1]} : vector<3x128xf32> to vector<1x128xf32>
    %132 = vector.broadcast %13 : vector<16x1xf32> to vector<16x128xf32>
    %133 = vector.broadcast %131 : vector<1x128xf32> to vector<16x128xf32>
    %134 = arith.mulf %132, %133 : vector<16x128xf32>
    %135 = arith.addf %12, %134 : vector<16x128xf32>
    %136 = vector.extract_strided_slice %130 {offsets = [1, 0], sizes = [1, 128], strides = [1, 1]} : vector<3x128xf32> to vector<1x128xf32>
    %137 = vector.broadcast %14 : vector<16x1xf32> to vector<16x128xf32>
    %138 = vector.broadcast %136 : vector<1x128xf32> to vector<16x128xf32>
    %139 = arith.mulf %137, %138 : vector<16x128xf32>
    %140 = arith.addf %135, %139 : vector<16x128xf32>
    %141 = vector.extract_strided_slice %130 {offsets = [2, 0], sizes = [1, 128], strides = [1, 1]} : vector<3x128xf32> to vector<1x128xf32>
    %142 = vector.broadcast %15 : vector<16x1xf32> to vector<16x128xf32>
    %143 = vector.broadcast %141 : vector<1x128xf32> to vector<16x128xf32>
    %144 = arith.mulf %142, %143 : vector<16x128xf32>
    %145 = arith.addf %140, %144 : vector<16x128xf32>
    %146 = arith.truncf %145 : vector<16x128xf32> to vector<16x128xbf16>
    %c0_36 = arith.constant 0 : index
    %c640 = arith.constant 640 : index
    %147 = vector.load %arg11[%c0_36, %c640] : memref<16x2688xbf16, #tpu.memory_space<vmem>>, vector<16x128xbf16>
    tpu.vector_store %arg11[%c0_36, %c640], %146 {strides = array<i32>} : memref<16x2688xbf16, #tpu.memory_space<vmem>>, vector<16x128xbf16>,
    %c0_37 = arith.constant 0 : index
    %c0_38 = arith.constant 0 : index
    %c4 = arith.constant 4 : index
    %c0_39 = arith.constant 0 : index
    %148 = vector.load %arg3[%c0_37, %c0_38, %c4, %c0_39] : memref<1x3x16x128xf32, #tpu.memory_space<vmem>>, vector<1x3x1x128xf32>
    %149 = vector.shape_cast %148 : vector<1x3x1x128xf32> to vector<3x128xf32>
    %150 = vector.extract_strided_slice %149 {offsets = [0, 0], sizes = [1, 128], strides = [1, 1]} : vector<3x128xf32> to vector<1x128xf32>
    %151 = vector.broadcast %13 : vector<16x1xf32> to vector<16x128xf32>
    %152 = vector.broadcast %150 : vector<1x128xf32> to vector<16x128xf32>
    %153 = arith.mulf %151, %152 : vector<16x128xf32>
    %154 = arith.addf %12, %153 : vector<16x128xf32>
    %155 = vector.extract_strided_slice %149 {offsets = [1, 0], sizes = [1, 128], strides = [1, 1]} : vector<3x128xf32> to vector<1x128xf32>
    %156 = vector.broadcast %14 : vector<16x1xf32> to vector<16x128xf32>
    %157 = vector.broadcast %155 : vector<1x128xf32> to vector<16x128xf32>
    %158 = arith.mulf %156, %157 : vector<16x128xf32>
    %159 = arith.addf %154, %158 : vector<16x128xf32>
    %160 = vector.extract_strided_slice %149 {offsets = [2, 0], sizes = [1, 128], strides = [1, 1]} : vector<3x128xf32> to vector<1x128xf32>
    %161 = vector.broadcast %15 : vector<16x1xf32> to vector<16x128xf32>
    %162 = vector.broadcast %160 : vector<1x128xf32> to vector<16x128xf32>
    %163 = arith.mulf %161, %162 : vector<16x128xf32>
    %164 = arith.addf %159, %163 : vector<16x128xf32>
    %165 = arith.truncf %164 : vector<16x128xf32> to vector<16x128xbf16>
    %c0_40 = arith.constant 0 : index
    %c768 = arith.constant 768 : index
    %166 = vector.load %arg11[%c0_40, %c768] : memref<16x2688xbf16, #tpu.memory_space<vmem>>, vector<16x128xbf16>
    tpu.vector_store %arg11[%c0_40, %c768], %165 {strides = array<i32>} : memref<16x2688xbf16, #tpu.memory_space<vmem>>, vector<16x128xbf16>,
    %c0_41 = arith.constant 0 : index
    %c0_42 = arith.constant 0 : index
    %c5 = arith.constant 5 : index
    %c0_43 = arith.constant 0 : index
    %167 = vector.load %arg3[%c0_41, %c0_42, %c5, %c0_43] : memref<1x3x16x128xf32, #tpu.memory_space<vmem>>, vector<1x3x1x128xf32>
    %168 = vector.shape_cast %167 : vector<1x3x1x128xf32> to vector<3x128xf32>
    %169 = vector.extract_strided_slice %168 {offsets = [0, 0], sizes = [1, 128], strides = [1, 1]} : vector<3x128xf32> to vector<1x128xf32>
    %170 = vector.broadcast %13 : vector<16x1xf32> to vector<16x128xf32>
    %171 = vector.broadcast %169 : vector<1x128xf32> to vector<16x128xf32>
    %172 = arith.mulf %170, %171 : vector<16x128xf32>
    %173 = arith.addf %12, %172 : vector<16x128xf32>
    %174 = vector.extract_strided_slice %168 {offsets = [1, 0], sizes = [1, 128], strides = [1, 1]} : vector<3x128xf32> to vector<1x128xf32>
    %175 = vector.broadcast %14 : vector<16x1xf32> to vector<16x128xf32>
    %176 = vector.broadcast %174 : vector<1x128xf32> to vector<16x128xf32>
    %177 = arith.mulf %175, %176 : vector<16x128xf32>
    %178 = arith.addf %173, %177 : vector<16x128xf32>
    %179 = vector.extract_strided_slice %168 {offsets = [2, 0], sizes = [1, 128], strides = [1, 1]} : vector<3x128xf32> to vector<1x128xf32>
    %180 = vector.broadcast %15 : vector<16x1xf32> to vector<16x128xf32>
    %181 = vector.broadcast %179 : vector<1x128xf32> to vector<16x128xf32>
    %182 = arith.mulf %180, %181 : vector<16x128xf32>
    %183 = arith.addf %178, %182 : vector<16x128xf32>
    %184 = arith.truncf %183 : vector<16x128xf32> to vector<16x128xbf16>
    %c0_44 = arith.constant 0 : index
    %c896 = arith.constant 896 : index
    %185 = vector.load %arg11[%c0_44, %c896] : memref<16x2688xbf16, #tpu.memory_space<vmem>>, vector<16x128xbf16>
    tpu.vector_store %arg11[%c0_44, %c896], %184 {strides = array<i32>} : memref<16x2688xbf16, #tpu.memory_space<vmem>>, vector<16x128xbf16>,
    %c0_45 = arith.constant 0 : index
    %c0_46 = arith.constant 0 : index
    %c6_47 = arith.constant 6 : index
    %c0_48 = arith.constant 0 : index
    %186 = vector.load %arg3[%c0_45, %c0_46, %c6_47, %c0_48] : memref<1x3x16x128xf32, #tpu.memory_space<vmem>>, vector<1x3x1x128xf32>
    %187 = vector.shape_cast %186 : vector<1x3x1x128xf32> to vector<3x128xf32>
    %188 = vector.extract_strided_slice %187 {offsets = [0, 0], sizes = [1, 128], strides = [1, 1]} : vector<3x128xf32> to vector<1x128xf32>
    %189 = vector.broadcast %13 : vector<16x1xf32> to vector<16x128xf32>
    %190 = vector.broadcast %188 : vector<1x128xf32> to vector<16x128xf32>
    %191 = arith.mulf %189, %190 : vector<16x128xf32>
    %192 = arith.addf %12, %191 : vector<16x128xf32>
    %193 = vector.extract_strided_slice %187 {offsets = [1, 0], sizes = [1, 128], strides = [1, 1]} : vector<3x128xf32> to vector<1x128xf32>
    %194 = vector.broadcast %14 : vector<16x1xf32> to vector<16x128xf32>
    %195 = vector.broadcast %193 : vector<1x128xf32> to vector<16x128xf32>
    %196 = arith.mulf %194, %195 : vector<16x128xf32>
    %197 = arith.addf %192, %196 : vector<16x128xf32>
    %198 = vector.extract_strided_slice %187 {offsets = [2, 0], sizes = [1, 128], strides = [1, 1]} : vector<3x128xf32> to vector<1x128xf32>
    %199 = vector.broadcast %15 : vector<16x1xf32> to vector<16x128xf32>
    %200 = vector.broadcast %198 : vector<1x128xf32> to vector<16x128xf32>
    %201 = arith.mulf %199, %200 : vector<16x128xf32>
    %202 = arith.addf %197, %201 : vector<16x128xf32>
    %203 = arith.truncf %202 : vector<16x128xf32> to vector<16x128xbf16>
    %c0_49 = arith.constant 0 : index
    %c1024 = arith.constant 1024 : index
    %204 = vector.load %arg11[%c0_49, %c1024] : memref<16x2688xbf16, #tpu.memory_space<vmem>>, vector<16x128xbf16>
    tpu.vector_store %arg11[%c0_49, %c1024], %203 {strides = array<i32>} : memref<16x2688xbf16, #tpu.memory_space<vmem>>, vector<16x128xbf16>,
    %c0_50 = arith.constant 0 : index
    %c0_51 = arith.constant 0 : index
    %c7_52 = arith.constant 7 : index
    %c0_53 = arith.constant 0 : index
    %205 = vector.load %arg3[%c0_50, %c0_51, %c7_52, %c0_53] : memref<1x3x16x128xf32, #tpu.memory_space<vmem>>, vector<1x3x1x128xf32>
    %206 = vector.shape_cast %205 : vector<1x3x1x128xf32> to vector<3x128xf32>
    %207 = vector.extract_strided_slice %206 {offsets = [0, 0], sizes = [1, 128], strides = [1, 1]} : vector<3x128xf32> to vector<1x128xf32>
    %208 = vector.broadcast %13 : vector<16x1xf32> to vector<16x128xf32>
    %209 = vector.broadcast %207 : vector<1x128xf32> to vector<16x128xf32>
    %210 = arith.mulf %208, %209 : vector<16x128xf32>
    %211 = arith.addf %12, %210 : vector<16x128xf32>
    %212 = vector.extract_strided_slice %206 {offsets = [1, 0], sizes = [1, 128], strides = [1, 1]} : vector<3x128xf32> to vector<1x128xf32>
    %213 = vector.broadcast %14 : vector<16x1xf32> to vector<16x128xf32>
    %214 = vector.broadcast %212 : vector<1x128xf32> to vector<16x128xf32>
    %215 = arith.mulf %213, %214 : vector<16x128xf32>
    %216 = arith.addf %211, %215 : vector<16x128xf32>
    %217 = vector.extract_strided_slice %206 {offsets = [2, 0], sizes = [1, 128], strides = [1, 1]} : vector<3x128xf32> to vector<1x128xf32>
    %218 = vector.broadcast %15 : vector<16x1xf32> to vector<16x128xf32>
    %219 = vector.broadcast %217 : vector<1x128xf32> to vector<16x128xf32>
    %220 = arith.mulf %218, %219 : vector<16x128xf32>
    %221 = arith.addf %216, %220 : vector<16x128xf32>
    %222 = arith.truncf %221 : vector<16x128xf32> to vector<16x128xbf16>
    %c0_54 = arith.constant 0 : index
    %c1152 = arith.constant 1152 : index
    %223 = vector.load %arg11[%c0_54, %c1152] : memref<16x2688xbf16, #tpu.memory_space<vmem>>, vector<16x128xbf16>
    tpu.vector_store %arg11[%c0_54, %c1152], %222 {strides = array<i32>} : memref<16x2688xbf16, #tpu.memory_space<vmem>>, vector<16x128xbf16>,
    %c0_55 = arith.constant 0 : index
    %c0_56 = arith.constant 0 : index
    %c8 = arith.constant 8 : index
    %c0_57 = arith.constant 0 : index
    %224 = vector.load %arg3[%c0_55, %c0_56, %c8, %c0_57] : memref<1x3x16x128xf32, #tpu.memory_space<vmem>>, vector<1x3x1x128xf32>
    %225 = vector.shape_cast %224 : vector<1x3x1x128xf32> to vector<3x128xf32>
    %226 = vector.extract_strided_slice %225 {offsets = [0, 0], sizes = [1, 128], strides = [1, 1]} : vector<3x128xf32> to vector<1x128xf32>
    %227 = vector.broadcast %13 : vector<16x1xf32> to vector<16x128xf32>
    %228 = vector.broadcast %226 : vector<1x128xf32> to vector<16x128xf32>
    %229 = arith.mulf %227, %228 : vector<16x128xf32>
    %230 = arith.addf %12, %229 : vector<16x128xf32>
    %231 = vector.extract_strided_slice %225 {offsets = [1, 0], sizes = [1, 128], strides = [1, 1]} : vector<3x128xf32> to vector<1x128xf32>
    %232 = vector.broadcast %14 : vector<16x1xf32> to vector<16x128xf32>
    %233 = vector.broadcast %231 : vector<1x128xf32> to vector<16x128xf32>
    %234 = arith.mulf %232, %233 : vector<16x128xf32>
    %235 = arith.addf %230, %234 : vector<16x128xf32>
    %236 = vector.extract_strided_slice %225 {offsets = [2, 0], sizes = [1, 128], strides = [1, 1]} : vector<3x128xf32> to vector<1x128xf32>
    %237 = vector.broadcast %15 : vector<16x1xf32> to vector<16x128xf32>
    %238 = vector.broadcast %236 : vector<1x128xf32> to vector<16x128xf32>
    %239 = arith.mulf %237, %238 : vector<16x128xf32>
    %240 = arith.addf %235, %239 : vector<16x128xf32>
    %241 = arith.truncf %240 : vector<16x128xf32> to vector<16x128xbf16>
    %c0_58 = arith.constant 0 : index
    %c1280 = arith.constant 1280 : index
    %242 = vector.load %arg11[%c0_58, %c1280] : memref<16x2688xbf16, #tpu.memory_space<vmem>>, vector<16x128xbf16>
    tpu.vector_store %arg11[%c0_58, %c1280], %241 {strides = array<i32>} : memref<16x2688xbf16, #tpu.memory_space<vmem>>, vector<16x128xbf16>,
    %c0_59 = arith.constant 0 : index
    %c0_60 = arith.constant 0 : index
    %c9 = arith.constant 9 : index
    %c0_61 = arith.constant 0 : index
    %243 = vector.load %arg3[%c0_59, %c0_60, %c9, %c0_61] : memref<1x3x16x128xf32, #tpu.memory_space<vmem>>, vector<1x3x1x128xf32>
    %244 = vector.shape_cast %243 : vector<1x3x1x128xf32> to vector<3x128xf32>
    %245 = vector.extract_strided_slice %244 {offsets = [0, 0], sizes = [1, 128], strides = [1, 1]} : vector<3x128xf32> to vector<1x128xf32>
    %246 = vector.broadcast %13 : vector<16x1xf32> to vector<16x128xf32>
    %247 = vector.broadcast %245 : vector<1x128xf32> to vector<16x128xf32>
    %248 = arith.mulf %246, %247 : vector<16x128xf32>
    %249 = arith.addf %12, %248 : vector<16x128xf32>
    %250 = vector.extract_strided_slice %244 {offsets = [1, 0], sizes = [1, 128], strides = [1, 1]} : vector<3x128xf32> to vector<1x128xf32>
    %251 = vector.broadcast %14 : vector<16x1xf32> to vector<16x128xf32>
    %252 = vector.broadcast %250 : vector<1x128xf32> to vector<16x128xf32>
    %253 = arith.mulf %251, %252 : vector<16x128xf32>
    %254 = arith.addf %249, %253 : vector<16x128xf32>
    %255 = vector.extract_strided_slice %244 {offsets = [2, 0], sizes = [1, 128], strides = [1, 1]} : vector<3x128xf32> to vector<1x128xf32>
    %256 = vector.broadcast %15 : vector<16x1xf32> to vector<16x128xf32>
    %257 = vector.broadcast %255 : vector<1x128xf32> to vector<16x128xf32>
    %258 = arith.mulf %256, %257 : vector<16x128xf32>
    %259 = arith.addf %254, %258 : vector<16x128xf32>
    %260 = arith.truncf %259 : vector<16x128xf32> to vector<16x128xbf16>
    %c0_62 = arith.constant 0 : index
    %c1408 = arith.constant 1408 : index
    %261 = vector.load %arg11[%c0_62, %c1408] : memref<16x2688xbf16, #tpu.memory_space<vmem>>, vector<16x128xbf16>
    tpu.vector_store %arg11[%c0_62, %c1408], %260 {strides = array<i32>} : memref<16x2688xbf16, #tpu.memory_space<vmem>>, vector<16x128xbf16>,
    %c0_63 = arith.constant 0 : index
    %c0_64 = arith.constant 0 : index
    %c10 = arith.constant 10 : index
    %c0_65 = arith.constant 0 : index
    %262 = vector.load %arg3[%c0_63, %c0_64, %c10, %c0_65] : memref<1x3x16x128xf32, #tpu.memory_space<vmem>>, vector<1x3x1x128xf32>
    %263 = vector.shape_cast %262 : vector<1x3x1x128xf32> to vector<3x128xf32>
    %264 = vector.extract_strided_slice %263 {offsets = [0, 0], sizes = [1, 128], strides = [1, 1]} : vector<3x128xf32> to vector<1x128xf32>
    %265 = vector.broadcast %13 : vector<16x1xf32> to vector<16x128xf32>
    %266 = vector.broadcast %264 : vector<1x128xf32> to vector<16x128xf32>
    %267 = arith.mulf %265, %266 : vector<16x128xf32>
    %268 = arith.addf %12, %267 : vector<16x128xf32>
    %269 = vector.extract_strided_slice %263 {offsets = [1, 0], sizes = [1, 128], strides = [1, 1]} : vector<3x128xf32> to vector<1x128xf32>
    %270 = vector.broadcast %14 : vector<16x1xf32> to vector<16x128xf32>
    %271 = vector.broadcast %269 : vector<1x128xf32> to vector<16x128xf32>
    %272 = arith.mulf %270, %271 : vector<16x128xf32>
    %273 = arith.addf %268, %272 : vector<16x128xf32>
    %274 = vector.extract_strided_slice %263 {offsets = [2, 0], sizes = [1, 128], strides = [1, 1]} : vector<3x128xf32> to vector<1x128xf32>
    %275 = vector.broadcast %15 : vector<16x1xf32> to vector<16x128xf32>
    %276 = vector.broadcast %274 : vector<1x128xf32> to vector<16x128xf32>
    %277 = arith.mulf %275, %276 : vector<16x128xf32>
    %278 = arith.addf %273, %277 : vector<16x128xf32>
    %279 = arith.truncf %278 : vector<16x128xf32> to vector<16x128xbf16>
    %c0_66 = arith.constant 0 : index
    %c1536 = arith.constant 1536 : index
    %280 = vector.load %arg11[%c0_66, %c1536] : memref<16x2688xbf16, #tpu.memory_space<vmem>>, vector<16x128xbf16>
    tpu.vector_store %arg11[%c0_66, %c1536], %279 {strides = array<i32>} : memref<16x2688xbf16, #tpu.memory_space<vmem>>, vector<16x128xbf16>,
    %c0_67 = arith.constant 0 : index
    %c0_68 = arith.constant 0 : index
    %c11 = arith.constant 11 : index
    %c0_69 = arith.constant 0 : index
    %281 = vector.load %arg3[%c0_67, %c0_68, %c11, %c0_69] : memref<1x3x16x128xf32, #tpu.memory_space<vmem>>, vector<1x3x1x128xf32>
    %282 = vector.shape_cast %281 : vector<1x3x1x128xf32> to vector<3x128xf32>
    %283 = vector.extract_strided_slice %282 {offsets = [0, 0], sizes = [1, 128], strides = [1, 1]} : vector<3x128xf32> to vector<1x128xf32>
    %284 = vector.broadcast %13 : vector<16x1xf32> to vector<16x128xf32>
    %285 = vector.broadcast %283 : vector<1x128xf32> to vector<16x128xf32>
    %286 = arith.mulf %284, %285 : vector<16x128xf32>
    %287 = arith.addf %12, %286 : vector<16x128xf32>
    %288 = vector.extract_strided_slice %282 {offsets = [1, 0], sizes = [1, 128], strides = [1, 1]} : vector<3x128xf32> to vector<1x128xf32>
    %289 = vector.broadcast %14 : vector<16x1xf32> to vector<16x128xf32>
    %290 = vector.broadcast %288 : vector<1x128xf32> to vector<16x128xf32>
    %291 = arith.mulf %289, %290 : vector<16x128xf32>
    %292 = arith.addf %287, %291 : vector<16x128xf32>
    %293 = vector.extract_strided_slice %282 {offsets = [2, 0], sizes = [1, 128], strides = [1, 1]} : vector<3x128xf32> to vector<1x128xf32>
    %294 = vector.broadcast %15 : vector<16x1xf32> to vector<16x128xf32>
    %295 = vector.broadcast %293 : vector<1x128xf32> to vector<16x128xf32>
    %296 = arith.mulf %294, %295 : vector<16x128xf32>
    %297 = arith.addf %292, %296 : vector<16x128xf32>
    %298 = arith.truncf %297 : vector<16x128xf32> to vector<16x128xbf16>
    %c0_70 = arith.constant 0 : index
    %c1664 = arith.constant 1664 : index
    %299 = vector.load %arg11[%c0_70, %c1664] : memref<16x2688xbf16, #tpu.memory_space<vmem>>, vector<16x128xbf16>
    tpu.vector_store %arg11[%c0_70, %c1664], %298 {strides = array<i32>} : memref<16x2688xbf16, #tpu.memory_space<vmem>>, vector<16x128xbf16>,
    %c0_71 = arith.constant 0 : index
    %c0_72 = arith.constant 0 : index
    %c12 = arith.constant 12 : index
    %c0_73 = arith.constant 0 : index
    %300 = vector.load %arg3[%c0_71, %c0_72, %c12, %c0_73] : memref<1x3x16x128xf32, #tpu.memory_space<vmem>>, vector<1x3x1x128xf32>
    %301 = vector.shape_cast %300 : vector<1x3x1x128xf32> to vector<3x128xf32>
    %302 = vector.extract_strided_slice %301 {offsets = [0, 0], sizes = [1, 128], strides = [1, 1]} : vector<3x128xf32> to vector<1x128xf32>
    %303 = vector.broadcast %13 : vector<16x1xf32> to vector<16x128xf32>
    %304 = vector.broadcast %302 : vector<1x128xf32> to vector<16x128xf32>
    %305 = arith.mulf %303, %304 : vector<16x128xf32>
    %306 = arith.addf %12, %305 : vector<16x128xf32>
    %307 = vector.extract_strided_slice %301 {offsets = [1, 0], sizes = [1, 128], strides = [1, 1]} : vector<3x128xf32> to vector<1x128xf32>
    %308 = vector.broadcast %14 : vector<16x1xf32> to vector<16x128xf32>
    %309 = vector.broadcast %307 : vector<1x128xf32> to vector<16x128xf32>
    %310 = arith.mulf %308, %309 : vector<16x128xf32>
    %311 = arith.addf %306, %310 : vector<16x128xf32>
    %312 = vector.extract_strided_slice %301 {offsets = [2, 0], sizes = [1, 128], strides = [1, 1]} : vector<3x128xf32> to vector<1x128xf32>
    %313 = vector.broadcast %15 : vector<16x1xf32> to vector<16x128xf32>
    %314 = vector.broadcast %312 : vector<1x128xf32> to vector<16x128xf32>
    %315 = arith.mulf %313, %314 : vector<16x128xf32>
    %316 = arith.addf %311, %315 : vector<16x128xf32>
    %317 = arith.truncf %316 : vector<16x128xf32> to vector<16x128xbf16>
    %c0_74 = arith.constant 0 : index
    %c1792 = arith.constant 1792 : index
    %318 = vector.load %arg11[%c0_74, %c1792] : memref<16x2688xbf16, #tpu.memory_space<vmem>>, vector<16x128xbf16>
    tpu.vector_store %arg11[%c0_74, %c1792], %317 {strides = array<i32>} : memref<16x2688xbf16, #tpu.memory_space<vmem>>, vector<16x128xbf16>,
    %c0_75 = arith.constant 0 : index
    %c0_76 = arith.constant 0 : index
    %c13 = arith.constant 13 : index
    %c0_77 = arith.constant 0 : index
    %319 = vector.load %arg3[%c0_75, %c0_76, %c13, %c0_77] : memref<1x3x16x128xf32, #tpu.memory_space<vmem>>, vector<1x3x1x128xf32>
    %320 = vector.shape_cast %319 : vector<1x3x1x128xf32> to vector<3x128xf32>
    %321 = vector.extract_strided_slice %320 {offsets = [0, 0], sizes = [1, 128], strides = [1, 1]} : vector<3x128xf32> to vector<1x128xf32>
    %322 = vector.broadcast %13 : vector<16x1xf32> to vector<16x128xf32>
    %323 = vector.broadcast %321 : vector<1x128xf32> to vector<16x128xf32>
    %324 = arith.mulf %322, %323 : vector<16x128xf32>
    %325 = arith.addf %12, %324 : vector<16x128xf32>
    %326 = vector.extract_strided_slice %320 {offsets = [1, 0], sizes = [1, 128], strides = [1, 1]} : vector<3x128xf32> to vector<1x128xf32>
    %327 = vector.broadcast %14 : vector<16x1xf32> to vector<16x128xf32>
    %328 = vector.broadcast %326 : vector<1x128xf32> to vector<16x128xf32>
    %329 = arith.mulf %327, %328 : vector<16x128xf32>
    %330 = arith.addf %325, %329 : vector<16x128xf32>
    %331 = vector.extract_strided_slice %320 {offsets = [2, 0], sizes = [1, 128], strides = [1, 1]} : vector<3x128xf32> to vector<1x128xf32>
    %332 = vector.broadcast %15 : vector<16x1xf32> to vector<16x128xf32>
    %333 = vector.broadcast %331 : vector<1x128xf32> to vector<16x128xf32>
    %334 = arith.mulf %332, %333 : vector<16x128xf32>
    %335 = arith.addf %330, %334 : vector<16x128xf32>
    %336 = arith.truncf %335 : vector<16x128xf32> to vector<16x128xbf16>
    %c0_78 = arith.constant 0 : index
    %c1920 = arith.constant 1920 : index
    %337 = vector.load %arg11[%c0_78, %c1920] : memref<16x2688xbf16, #tpu.memory_space<vmem>>, vector<16x128xbf16>
    tpu.vector_store %arg11[%c0_78, %c1920], %336 {strides = array<i32>} : memref<16x2688xbf16, #tpu.memory_space<vmem>>, vector<16x128xbf16>,
    %c0_79 = arith.constant 0 : index
    %c0_80 = arith.constant 0 : index
    %c14 = arith.constant 14 : index
    %c0_81 = arith.constant 0 : index
    %338 = vector.load %arg3[%c0_79, %c0_80, %c14, %c0_81] : memref<1x3x16x128xf32, #tpu.memory_space<vmem>>, vector<1x3x1x128xf32>
    %339 = vector.shape_cast %338 : vector<1x3x1x128xf32> to vector<3x128xf32>
    %340 = vector.extract_strided_slice %339 {offsets = [0, 0], sizes = [1, 128], strides = [1, 1]} : vector<3x128xf32> to vector<1x128xf32>
    %341 = vector.broadcast %13 : vector<16x1xf32> to vector<16x128xf32>
    %342 = vector.broadcast %340 : vector<1x128xf32> to vector<16x128xf32>
    %343 = arith.mulf %341, %342 : vector<16x128xf32>
    %344 = arith.addf %12, %343 : vector<16x128xf32>
    %345 = vector.extract_strided_slice %339 {offsets = [1, 0], sizes = [1, 128], strides = [1, 1]} : vector<3x128xf32> to vector<1x128xf32>
    %346 = vector.broadcast %14 : vector<16x1xf32> to vector<16x128xf32>
    %347 = vector.broadcast %345 : vector<1x128xf32> to vector<16x128xf32>
    %348 = arith.mulf %346, %347 : vector<16x128xf32>
    %349 = arith.addf %344, %348 : vector<16x128xf32>
    %350 = vector.extract_strided_slice %339 {offsets = [2, 0], sizes = [1, 128], strides = [1, 1]} : vector<3x128xf32> to vector<1x128xf32>
    %351 = vector.broadcast %15 : vector<16x1xf32> to vector<16x128xf32>
    %352 = vector.broadcast %350 : vector<1x128xf32> to vector<16x128xf32>
    %353 = arith.mulf %351, %352 : vector<16x128xf32>
    %354 = arith.addf %349, %353 : vector<16x128xf32>
    %355 = arith.truncf %354 : vector<16x128xf32> to vector<16x128xbf16>
    %c0_82 = arith.constant 0 : index
    %c2048 = arith.constant 2048 : index
    %356 = vector.load %arg11[%c0_82, %c2048] : memref<16x2688xbf16, #tpu.memory_space<vmem>>, vector<16x128xbf16>
    tpu.vector_store %arg11[%c0_82, %c2048], %355 {strides = array<i32>} : memref<16x2688xbf16, #tpu.memory_space<vmem>>, vector<16x128xbf16>,
    %c0_83 = arith.constant 0 : index
    %c0_84 = arith.constant 0 : index
    %c15 = arith.constant 15 : index
    %c0_85 = arith.constant 0 : index
    %357 = vector.load %arg3[%c0_83, %c0_84, %c15, %c0_85] : memref<1x3x16x128xf32, #tpu.memory_space<vmem>>, vector<1x3x1x128xf32>
    %358 = vector.shape_cast %357 : vector<1x3x1x128xf32> to vector<3x128xf32>
    %359 = vector.extract_strided_slice %358 {offsets = [0, 0], sizes = [1, 128], strides = [1, 1]} : vector<3x128xf32> to vector<1x128xf32>
    %360 = vector.broadcast %13 : vector<16x1xf32> to vector<16x128xf32>
    %361 = vector.broadcast %359 : vector<1x128xf32> to vector<16x128xf32>
    %362 = arith.mulf %360, %361 : vector<16x128xf32>
    %363 = arith.addf %12, %362 : vector<16x128xf32>
    %364 = vector.extract_strided_slice %358 {offsets = [1, 0], sizes = [1, 128], strides = [1, 1]} : vector<3x128xf32> to vector<1x128xf32>
    %365 = vector.broadcast %14 : vector<16x1xf32> to vector<16x128xf32>
    %366 = vector.broadcast %364 : vector<1x128xf32> to vector<16x128xf32>
    %367 = arith.mulf %365, %366 : vector<16x128xf32>
    %368 = arith.addf %363, %367 : vector<16x128xf32>
    %369 = vector.extract_strided_slice %358 {offsets = [2, 0], sizes = [1, 128], strides = [1, 1]} : vector<3x128xf32> to vector<1x128xf32>
    %370 = vector.broadcast %15 : vector<16x1xf32> to vector<16x128xf32>
    %371 = vector.broadcast %369 : vector<1x128xf32> to vector<16x128xf32>
    %372 = arith.mulf %370, %371 : vector<16x128xf32>
    %373 = arith.addf %368, %372 : vector<16x128xf32>
    %374 = arith.truncf %373 : vector<16x128xf32> to vector<16x128xbf16>
    %c0_86 = arith.constant 0 : index
    %c2176 = arith.constant 2176 : index
    %375 = vector.load %arg11[%c0_86, %c2176] : memref<16x2688xbf16, #tpu.memory_space<vmem>>, vector<16x128xbf16>
    tpu.vector_store %arg11[%c0_86, %c2176], %374 {strides = array<i32>} : memref<16x2688xbf16, #tpu.memory_space<vmem>>, vector<16x128xbf16>,
    %c0_87 = arith.constant 0 : index
    %c0_88 = arith.constant 0 : index
    %c0_89 = arith.constant 0 : index
    %c0_90 = arith.constant 0 : index
    %376 = vector.load %arg4[%c0_87, %c0_88, %c0_89, %c0_90] : memref<1x3x8x128xf32, #tpu.memory_space<vmem>>, vector<1x3x1x128xf32>
    %377 = vector.shape_cast %376 : vector<1x3x1x128xf32> to vector<3x128xf32>
    %378 = vector.extract_strided_slice %377 {offsets = [0, 0], sizes = [1, 128], strides = [1, 1]} : vector<3x128xf32> to vector<1x128xf32>
    %379 = vector.broadcast %13 : vector<16x1xf32> to vector<16x128xf32>
    %380 = vector.broadcast %378 : vector<1x128xf32> to vector<16x128xf32>
    %381 = arith.mulf %379, %380 : vector<16x128xf32>
    %382 = arith.addf %12, %381 : vector<16x128xf32>
    %383 = vector.extract_strided_slice %377 {offsets = [1, 0], sizes = [1, 128], strides = [1, 1]} : vector<3x128xf32> to vector<1x128xf32>
    %384 = vector.broadcast %14 : vector<16x1xf32> to vector<16x128xf32>
    %385 = vector.broadcast %383 : vector<1x128xf32> to vector<16x128xf32>
    %386 = arith.mulf %384, %385 : vector<16x128xf32>
    %387 = arith.addf %382, %386 : vector<16x128xf32>
    %388 = vector.extract_strided_slice %377 {offsets = [2, 0], sizes = [1, 128], strides = [1, 1]} : vector<3x128xf32> to vector<1x128xf32>
    %389 = vector.broadcast %15 : vector<16x1xf32> to vector<16x128xf32>
    %390 = vector.broadcast %388 : vector<1x128xf32> to vector<16x128xf32>
    %391 = arith.mulf %389, %390 : vector<16x128xf32>
    %392 = arith.addf %387, %391 : vector<16x128xf32>
    %c16_i32_91 = arith.constant 16 : i32
    %393 = arith.muli %arg1, %c16_i32_91 : i32
    %c16_i32_92 = arith.constant 16 : i32
    %394 = arith.addi %393, %c16_i32_92 : i32
    %c0_i32_93 = arith.constant 0 : i32
    %395 = arith.cmpi sge, %394, %c0_i32_93 : i32
    %c16_i32_94 = arith.constant 16 : i32
    %396 = arith.cmpi slt, %394, %c16_i32_94 : i32
    %397 = arith.andi %395, %396 : i1
    %398 = arith.extui %397 : i1 to i32
    %399 = arith.sitofp %398 : i32 to f32
    %400 = vector.broadcast %399 : f32 to vector<16x128xf32>
    %401 = arith.mulf %392, %400 : vector<16x128xf32>
    %402 = arith.truncf %401 : vector<16x128xf32> to vector<16x128xbf16>
    %c0_95 = arith.constant 0 : index
    %c2304 = arith.constant 2304 : index
    %403 = vector.load %arg11[%c0_95, %c2304] : memref<16x2688xbf16, #tpu.memory_space<vmem>>, vector<16x128xbf16>
    tpu.vector_store %arg11[%c0_95, %c2304], %402 {strides = array<i32>} : memref<16x2688xbf16, #tpu.memory_space<vmem>>, vector<16x128xbf16>,
    %c0_96 = arith.constant 0 : index
    %c0_97 = arith.constant 0 : index
    %c1_98 = arith.constant 1 : index
    %c0_99 = arith.constant 0 : index
    %404 = vector.load %arg4[%c0_96, %c0_97, %c1_98, %c0_99] : memref<1x3x8x128xf32, #tpu.memory_space<vmem>>, vector<1x3x1x128xf32>
    %405 = vector.shape_cast %404 : vector<1x3x1x128xf32> to vector<3x128xf32>
    %406 = vector.extract_strided_slice %405 {offsets = [0, 0], sizes = [1, 128], strides = [1, 1]} : vector<3x128xf32> to vector<1x128xf32>
    %407 = vector.broadcast %13 : vector<16x1xf32> to vector<16x128xf32>
    %408 = vector.broadcast %406 : vector<1x128xf32> to vector<16x128xf32>
    %409 = arith.mulf %407, %408 : vector<16x128xf32>
    %410 = arith.addf %12, %409 : vector<16x128xf32>
    %411 = vector.extract_strided_slice %405 {offsets = [1, 0], sizes = [1, 128], strides = [1, 1]} : vector<3x128xf32> to vector<1x128xf32>
    %412 = vector.broadcast %14 : vector<16x1xf32> to vector<16x128xf32>
    %413 = vector.broadcast %411 : vector<1x128xf32> to vector<16x128xf32>
    %414 = arith.mulf %412, %413 : vector<16x128xf32>
    %415 = arith.addf %410, %414 : vector<16x128xf32>
    %416 = vector.extract_strided_slice %405 {offsets = [2, 0], sizes = [1, 128], strides = [1, 1]} : vector<3x128xf32> to vector<1x128xf32>
    %417 = vector.broadcast %15 : vector<16x1xf32> to vector<16x128xf32>
    %418 = vector.broadcast %416 : vector<1x128xf32> to vector<16x128xf32>
    %419 = arith.mulf %417, %418 : vector<16x128xf32>
    %420 = arith.addf %415, %419 : vector<16x128xf32>
    %c16_i32_100 = arith.constant 16 : i32
    %421 = arith.muli %arg1, %c16_i32_100 : i32
    %c17_i32 = arith.constant 17 : i32
    %422 = arith.addi %421, %c17_i32 : i32
    %c0_i32_101 = arith.constant 0 : i32
    %423 = arith.cmpi sge, %422, %c0_i32_101 : i32
    %c16_i32_102 = arith.constant 16 : i32
    %424 = arith.cmpi slt, %422, %c16_i32_102 : i32
    %425 = arith.andi %423, %424 : i1
    %426 = arith.extui %425 : i1 to i32
    %427 = arith.sitofp %426 : i32 to f32
    %428 = vector.broadcast %427 : f32 to vector<16x128xf32>
    %429 = arith.mulf %420, %428 : vector<16x128xf32>
    %430 = arith.truncf %429 : vector<16x128xf32> to vector<16x128xbf16>
    %c0_103 = arith.constant 0 : index
    %c2432 = arith.constant 2432 : index
    %431 = vector.load %arg11[%c0_103, %c2432] : memref<16x2688xbf16, #tpu.memory_space<vmem>>, vector<16x128xbf16>
    tpu.vector_store %arg11[%c0_103, %c2432], %430 {strides = array<i32>} : memref<16x2688xbf16, #tpu.memory_space<vmem>>, vector<16x128xbf16>,
    %cst_104 = arith.constant 0.000000e+00 : bf16
    %432 = vector.broadcast %cst_104 : bf16 to vector<16x128xbf16>
    %c0_105 = arith.constant 0 : index
    %c2560 = arith.constant 2560 : index
    %433 = vector.load %arg11[%c0_105, %c2560] : memref<16x2688xbf16, #tpu.memory_space<vmem>>, vector<16x128xbf16>
    tpu.vector_store %arg11[%c0_105, %c2560], %432 {strides = array<i32>} : memref<16x2688xbf16, #tpu.memory_space<vmem>>, vector<16x128xbf16>,
    %c0_106 = arith.constant 0 : index
    %c0_107 = arith.constant 0 : index
    %434 = vector.load %arg11[%c0_106, %c0_107] : memref<16x2688xbf16, #tpu.memory_space<vmem>>, vector<16x2048xbf16>
    %c0_108 = arith.constant 0 : index
    %c0_109 = arith.constant 0 : index
    %435 = vector.load %arg12[%c0_108, %c0_109] : memref<400x2048xbf16, #tpu.memory_space<vmem>>, vector<16x2048xbf16>
    tpu.vector_store %arg12[%c0_108, %c0_109], %434 {strides = array<i32>} : memref<400x2048xbf16, #tpu.memory_space<vmem>>, vector<16x2048xbf16>,
    %c0_110 = arith.constant 0 : index
    %c1_111 = arith.constant 1 : index
    %436 = vector.load %arg11[%c0_110, %c1_111] : memref<16x2688xbf16, #tpu.memory_space<vmem>>, vector<16x2048xbf16>
    %c16 = arith.constant 16 : index
    %c0_112 = arith.constant 0 : index
    %437 = vector.load %arg12[%c16, %c0_112] : memref<400x2048xbf16, #tpu.memory_space<vmem>>, vector<16x2048xbf16>
    tpu.vector_store %arg12[%c16, %c0_112], %436 {strides = array<i32>} : memref<400x2048xbf16, #tpu.memory_space<vmem>>, vector<16x2048xbf16>,
    %c0_113 = arith.constant 0 : index
    %c2_114 = arith.constant 2 : index
    %438 = vector.load %arg11[%c0_113, %c2_114] : memref<16x2688xbf16, #tpu.memory_space<vmem>>, vector<16x2048xbf16>
    %c32 = arith.constant 32 : index
    %c0_115 = arith.constant 0 : index
    %439 = vector.load %arg12[%c32, %c0_115] : memref<400x2048xbf16, #tpu.memory_space<vmem>>, vector<16x2048xbf16>
    tpu.vector_store %arg12[%c32, %c0_115], %438 {strides = array<i32>} : memref<400x2048xbf16, #tpu.memory_space<vmem>>, vector<16x2048xbf16>,
    %c0_116 = arith.constant 0 : index
    %c3_117 = arith.constant 3 : index
    %440 = vector.load %arg11[%c0_116, %c3_117] : memref<16x2688xbf16, #tpu.memory_space<vmem>>, vector<16x2048xbf16>
    %c48 = arith.constant 48 : index
    %c0_118 = arith.constant 0 : index
    %441 = vector.load %arg12[%c48, %c0_118] : memref<400x2048xbf16, #tpu.memory_space<vmem>>, vector<16x2048xbf16>
    tpu.vector_store %arg12[%c48, %c0_118], %440 {strides = array<i32>} : memref<400x2048xbf16, #tpu.memory_space<vmem>>, vector<16x2048xbf16>,
    %c0_119 = arith.constant 0 : index
    %c4_120 = arith.constant 4 : index
    %442 = vector.load %arg11[%c0_119, %c4_120] : memref<16x2688xbf16, #tpu.memory_space<vmem>>, vector<16x2048xbf16>
    %c64 = arith.constant 64 : index
    %c0_121 = arith.constant 0 : index
    %443 = vector.load %arg12[%c64, %c0_121] : memref<400x2048xbf16, #tpu.memory_space<vmem>>, vector<16x2048xbf16>
    tpu.vector_store %arg12[%c64, %c0_121], %442 {strides = array<i32>} : memref<400x2048xbf16, #tpu.memory_space<vmem>>, vector<16x2048xbf16>,
    %c0_122 = arith.constant 0 : index
    %c128_123 = arith.constant 128 : index
    %444 = vector.load %arg11[%c0_122, %c128_123] : memref<16x2688xbf16, #tpu.memory_space<vmem>>, vector<16x2048xbf16>
    %c80 = arith.constant 80 : index
    %c0_124 = arith.constant 0 : index
    %445 = vector.load %arg12[%c80, %c0_124] : memref<400x2048xbf16, #tpu.memory_space<vmem>>, vector<16x2048xbf16>
    tpu.vector_store %arg12[%c80, %c0_124], %444 {strides = array<i32>} : memref<400x2048xbf16, #tpu.memory_space<vmem>>, vector<16x2048xbf16>,
    %c0_125 = arith.constant 0 : index
    %c129 = arith.constant 129 : index
    %446 = vector.load %arg11[%c0_125, %c129] : memref<16x2688xbf16, #tpu.memory_space<vmem>>, vector<16x2048xbf16>
    %c96 = arith.constant 96 : index
    %c0_126 = arith.constant 0 : index
    %447 = vector.load %arg12[%c96, %c0_126] : memref<400x2048xbf16, #tpu.memory_space<vmem>>, vector<16x2048xbf16>
    tpu.vector_store %arg12[%c96, %c0_126], %446 {strides = array<i32>} : memref<400x2048xbf16, #tpu.memory_space<vmem>>, vector<16x2048xbf16>,
    %c0_127 = arith.constant 0 : index
    %c130 = arith.constant 130 : index
    %448 = vector.load %arg11[%c0_127, %c130] : memref<16x2688xbf16, #tpu.memory_space<vmem>>, vector<16x2048xbf16>
    %c112 = arith.constant 112 : index
    %c0_128 = arith.constant 0 : index
    %449 = vector.load %arg12[%c112, %c0_128] : memref<400x2048xbf16, #tpu.memory_space<vmem>>, vector<16x2048xbf16>
    tpu.vector_store %arg12[%c112, %c0_128], %448 {strides = array<i32>} : memref<400x2048xbf16, #tpu.memory_space<vmem>>, vector<16x2048xbf16>,
    %c0_129 = arith.constant 0 : index
    %c131 = arith.constant 131 : index
    %450 = vector.load %arg11[%c0_129, %c131] : memref<16x2688xbf16, #tpu.memory_space<vmem>>, vector<16x2048xbf16>
    %c128_130 = arith.constant 128 : index
    %c0_131 = arith.constant 0 : index
    %451 = vector.load %arg12[%c128_130, %c0_131] : memref<400x2048xbf16, #tpu.memory_space<vmem>>, vector<16x2048xbf16>
    tpu.vector_store %arg12[%c128_130, %c0_131], %450 {strides = array<i32>} : memref<400x2048xbf16, #tpu.memory_space<vmem>>, vector<16x2048xbf16>,
    %c0_132 = arith.constant 0 : index
    %c132 = arith.constant 132 : index
    %452 = vector.load %arg11[%c0_132, %c132] : memref<16x2688xbf16, #tpu.memory_space<vmem>>, vector<16x2048xbf16>
    %c144 = arith.constant 144 : index
    %c0_133 = arith.constant 0 : index
    %453 = vector.load %arg12[%c144, %c0_133] : memref<400x2048xbf16, #tpu.memory_space<vmem>>, vector<16x2048xbf16>
    tpu.vector_store %arg12[%c144, %c0_133], %452 {strides = array<i32>} : memref<400x2048xbf16, #tpu.memory_space<vmem>>, vector<16x2048xbf16>,
    %c0_134 = arith.constant 0 : index
    %c256_135 = arith.constant 256 : index
    %454 = vector.load %arg11[%c0_134, %c256_135] : memref<16x2688xbf16, #tpu.memory_space<vmem>>, vector<16x2048xbf16>
    %c160 = arith.constant 160 : index
    %c0_136 = arith.constant 0 : index
    %455 = vector.load %arg12[%c160, %c0_136] : memref<400x2048xbf16, #tpu.memory_space<vmem>>, vector<16x2048xbf16>
    tpu.vector_store %arg12[%c160, %c0_136], %454 {strides = array<i32>} : memref<400x2048xbf16, #tpu.memory_space<vmem>>, vector<16x2048xbf16>,
    %c0_137 = arith.constant 0 : index
    %c257 = arith.constant 257 : index
    %456 = vector.load %arg11[%c0_137, %c257] : memref<16x2688xbf16, #tpu.memory_space<vmem>>, vector<16x2048xbf16>
    %c176 = arith.constant 176 : index
    %c0_138 = arith.constant 0 : index
    %457 = vector.load %arg12[%c176, %c0_138] : memref<400x2048xbf16, #tpu.memory_space<vmem>>, vector<16x2048xbf16>
    tpu.vector_store %arg12[%c176, %c0_138], %456 {strides = array<i32>} : memref<400x2048xbf16, #tpu.memory_space<vmem>>, vector<16x2048xbf16>,
    %c0_139 = arith.constant 0 : index
    %c258 = arith.constant 258 : index
    %458 = vector.load %arg11[%c0_139, %c258] : memref<16x2688xbf16, #tpu.memory_space<vmem>>, vector<16x2048xbf16>
    %c192 = arith.constant 192 : index
    %c0_140 = arith.constant 0 : index
    %459 = vector.load %arg12[%c192, %c0_140] : memref<400x2048xbf16, #tpu.memory_space<vmem>>, vector<16x2048xbf16>
    tpu.vector_store %arg12[%c192, %c0_140], %458 {strides = array<i32>} : memref<400x2048xbf16, #tpu.memory_space<vmem>>, vector<16x2048xbf16>,
    %c0_141 = arith.constant 0 : index
    %c259 = arith.constant 259 : index
    %460 = vector.load %arg11[%c0_141, %c259] : memref<16x2688xbf16, #tpu.memory_space<vmem>>, vector<16x2048xbf16>
    %c208 = arith.constant 208 : index
    %c0_142 = arith.constant 0 : index
    %461 = vector.load %arg12[%c208, %c0_142] : memref<400x2048xbf16, #tpu.memory_space<vmem>>, vector<16x2048xbf16>
    tpu.vector_store %arg12[%c208, %c0_142], %460 {strides = array<i32>} : memref<400x2048xbf16, #tpu.memory_space<vmem>>, vector<16x2048xbf16>,
    %c0_143 = arith.constant 0 : index
    %c260 = arith.constant 260 : index
    %462 = vector.load %arg11[%c0_143, %c260] : memref<16x2688xbf16, #tpu.memory_space<vmem>>, vector<16x2048xbf16>
    %c224 = arith.constant 224 : index
    %c0_144 = arith.constant 0 : index
    %463 = vector.load %arg12[%c224, %c0_144] : memref<400x2048xbf16, #tpu.memory_space<vmem>>, vector<16x2048xbf16>
    tpu.vector_store %arg12[%c224, %c0_144], %462 {strides = array<i32>} : memref<400x2048xbf16, #tpu.memory_space<vmem>>, vector<16x2048xbf16>,
    %c0_145 = arith.constant 0 : index
    %c384_146 = arith.constant 384 : index
    %464 = vector.load %arg11[%c0_145, %c384_146] : memref<16x2688xbf16, #tpu.memory_space<vmem>>, vector<16x2048xbf16>
    %c240 = arith.constant 240 : index
    %c0_147 = arith.constant 0 : index
    %465 = vector.load %arg12[%c240, %c0_147] : memref<400x2048xbf16, #tpu.memory_space<vmem>>, vector<16x2048xbf16>
    tpu.vector_store %arg12[%c240, %c0_147], %464 {strides = array<i32>} : memref<400x2048xbf16, #tpu.memory_space<vmem>>, vector<16x2048xbf16>,
    %c0_148 = arith.constant 0 : index
    %c385 = arith.constant 385 : index
    %466 = vector.load %arg11[%c0_148, %c385] : memref<16x2688xbf16, #tpu.memory_space<vmem>>, vector<16x2048xbf16>
    %c256_149 = arith.constant 256 : index
    %c0_150 = arith.constant 0 : index
    %467 = vector.load %arg12[%c256_149, %c0_150] : memref<400x2048xbf16, #tpu.memory_space<vmem>>, vector<16x2048xbf16>
    tpu.vector_store %arg12[%c256_149, %c0_150], %466 {strides = array<i32>} : memref<400x2048xbf16, #tpu.memory_space<vmem>>, vector<16x2048xbf16>,
    %c0_151 = arith.constant 0 : index
    %c386 = arith.constant 386 : index
    %468 = vector.load %arg11[%c0_151, %c386] : memref<16x2688xbf16, #tpu.memory_space<vmem>>, vector<16x2048xbf16>
    %c272 = arith.constant 272 : index
    %c0_152 = arith.constant 0 : index
    %469 = vector.load %arg12[%c272, %c0_152] : memref<400x2048xbf16, #tpu.memory_space<vmem>>, vector<16x2048xbf16>
    tpu.vector_store %arg12[%c272, %c0_152], %468 {strides = array<i32>} : memref<400x2048xbf16, #tpu.memory_space<vmem>>, vector<16x2048xbf16>,
    %c0_153 = arith.constant 0 : index
    %c387 = arith.constant 387 : index
    %470 = vector.load %arg11[%c0_153, %c387] : memref<16x2688xbf16, #tpu.memory_space<vmem>>, vector<16x2048xbf16>
    %c288 = arith.constant 288 : index
    %c0_154 = arith.constant 0 : index
    %471 = vector.load %arg12[%c288, %c0_154] : memref<400x2048xbf16, #tpu.memory_space<vmem>>, vector<16x2048xbf16>
    tpu.vector_store %arg12[%c288, %c0_154], %470 {strides = array<i32>} : memref<400x2048xbf16, #tpu.memory_space<vmem>>, vector<16x2048xbf16>,
    %c0_155 = arith.constant 0 : index
    %c388 = arith.constant 388 : index
    %472 = vector.load %arg11[%c0_155, %c388] : memref<16x2688xbf16, #tpu.memory_space<vmem>>, vector<16x2048xbf16>
    %c304 = arith.constant 304 : index
    %c0_156 = arith.constant 0 : index
    %473 = vector.load %arg12[%c304, %c0_156] : memref<400x2048xbf16, #tpu.memory_space<vmem>>, vector<16x2048xbf16>
    tpu.vector_store %arg12[%c304, %c0_156], %472 {strides = array<i32>} : memref<400x2048xbf16, #tpu.memory_space<vmem>>, vector<16x2048xbf16>,
    %c0_157 = arith.constant 0 : index
    %c512_158 = arith.constant 512 : index
    %474 = vector.load %arg11[%c0_157, %c512_158] : memref<16x2688xbf16, #tpu.memory_space<vmem>>, vector<16x2048xbf16>
    %c320 = arith.constant 320 : index
    %c0_159 = arith.constant 0 : index
    %475 = vector.load %arg12[%c320, %c0_159] : memref<400x2048xbf16, #tpu.memory_space<vmem>>, vector<16x2048xbf16>
    tpu.vector_store %arg12[%c320, %c0_159], %474 {strides = array<i32>} : memref<400x2048xbf16, #tpu.memory_space<vmem>>, vector<16x2048xbf16>,
    %c0_160 = arith.constant 0 : index
    %c513 = arith.constant 513 : index
    %476 = vector.load %arg11[%c0_160, %c513] : memref<16x2688xbf16, #tpu.memory_space<vmem>>, vector<16x2048xbf16>
    %c336 = arith.constant 336 : index
    %c0_161 = arith.constant 0 : index
    %477 = vector.load %arg12[%c336, %c0_161] : memref<400x2048xbf16, #tpu.memory_space<vmem>>, vector<16x2048xbf16>
    tpu.vector_store %arg12[%c336, %c0_161], %476 {strides = array<i32>} : memref<400x2048xbf16, #tpu.memory_space<vmem>>, vector<16x2048xbf16>,
    %c0_162 = arith.constant 0 : index
    %c514 = arith.constant 514 : index
    %478 = vector.load %arg11[%c0_162, %c514] : memref<16x2688xbf16, #tpu.memory_space<vmem>>, vector<16x2048xbf16>
    %c352 = arith.constant 352 : index
    %c0_163 = arith.constant 0 : index
    %479 = vector.load %arg12[%c352, %c0_163] : memref<400x2048xbf16, #tpu.memory_space<vmem>>, vector<16x2048xbf16>
    tpu.vector_store %arg12[%c352, %c0_163], %478 {strides = array<i32>} : memref<400x2048xbf16, #tpu.memory_space<vmem>>, vector<16x2048xbf16>,
    %c0_164 = arith.constant 0 : index
    %c515 = arith.constant 515 : index
    %480 = vector.load %arg11[%c0_164, %c515] : memref<16x2688xbf16, #tpu.memory_space<vmem>>, vector<16x2048xbf16>
    %c368 = arith.constant 368 : index
    %c0_165 = arith.constant 0 : index
    %481 = vector.load %arg12[%c368, %c0_165] : memref<400x2048xbf16, #tpu.memory_space<vmem>>, vector<16x2048xbf16>
    tpu.vector_store %arg12[%c368, %c0_165], %480 {strides = array<i32>} : memref<400x2048xbf16, #tpu.memory_space<vmem>>, vector<16x2048xbf16>,
    %c0_166 = arith.constant 0 : index
    %c516 = arith.constant 516 : index
    %482 = vector.load %arg11[%c0_166, %c516] : memref<16x2688xbf16, #tpu.memory_space<vmem>>, vector<16x2048xbf16>
    %c384_167 = arith.constant 384 : index
    %c0_168 = arith.constant 0 : index
    %483 = vector.load %arg12[%c384_167, %c0_168] : memref<400x2048xbf16, #tpu.memory_space<vmem>>, vector<16x2048xbf16>
    tpu.vector_store %arg12[%c384_167, %c0_168], %482 {strides = array<i32>} : memref<400x2048xbf16, #tpu.memory_space<vmem>>, vector<16x2048xbf16>,
    %c0_169 = arith.constant 0 : index
    %c0_170 = arith.constant 0 : index
    %c0_171 = arith.constant 0 : index
    %484 = vector.load %arg7[%c0_169, %c0_170, %c0_171] : memref<1x24x400xbf16, #tpu.memory_space<vmem>>, vector<1x24x400xbf16>
    %485 = vector.shape_cast %484 : vector<1x24x400xbf16> to vector<24x400xbf16>
    %c0_172 = arith.constant 0 : index
    %c0_173 = arith.constant 0 : index
    %486 = vector.load %arg12[%c0_172, %c0_173] : memref<400x2048xbf16, #tpu.memory_space<vmem>>, vector<400x2048xbf16>
    %cst_174 = arith.constant dense<0.000000e+00> : vector<24x2048xf32>
    %487 = tpu.matmul %485, %486, %cst_174 {dimension_numbers = #tpu.dot_dimension_numbers<[1], [0], [0], [1], [0, 0, 1, 1], [], []>} : vector<24x400xbf16>, vector<400x2048xbf16>, vector<24x2048xf32> -> vector<24x2048xf32>
    %c0_175 = arith.constant 0 : index
    %c0_176 = arith.constant 0 : index
    %488 = vector.load %arg8[%c0_175, %c0_176] : memref<24x1xf32, #tpu.memory_space<vmem>>, vector<24x1xf32>
    %489 = vector.broadcast %488 : vector<24x1xf32> to vector<24x2048xf32>
    %490 = arith.addf %489, %487 : vector<24x2048xf32>
    %c0_177 = arith.constant 0 : index
    %c0_178 = arith.constant 0 : index
    %491 = vector.load %arg13[%c0_177, %c0_178] : memref<24x2048xf32, #tpu.memory_space<vmem>>, vector<24x2048xf32>
    tpu.vector_store %arg13[%c0_177, %c0_178], %490 {strides = array<i32>} : memref<24x2048xf32, #tpu.memory_space<vmem>>, vector<24x2048xf32>,
    %c0_179 = arith.constant 0 : index
    %c0_180 = arith.constant 0 : index
    %492 = vector.load %arg13[%c0_179, %c0_180] : memref<24x2048xf32, #tpu.memory_space<vmem>>, vector<16x2048xf32>
    %c0_181 = arith.constant 0 : index
    %c0_182 = arith.constant 0 : index
    %c0_183 = arith.constant 0 : index
    %493 = vector.load %arg9[%c0_181, %c0_182, %c0_183] : memref<1x16x2048xf32, #tpu.memory_space<vmem>>, vector<1x16x2048xf32>
    %494 = vector.shape_cast %493 : vector<1x16x2048xf32> to vector<16x2048xf32>
    %495 = vector.shape_cast %492 : vector<16x2048xf32> to vector<1x16x2048xf32>
    tpu.vector_store %arg9[%c0_181, %c0_182, %c0_183], %495 {strides = array<i32>} : memref<1x16x2048xf32, #tpu.memory_space<vmem>>, vector<1x16x2048xf32>,
    %c16_184 = arith.constant 16 : index
    %c0_185 = arith.constant 0 : index
    %496 = vector.load %arg13[%c16_184, %c0_185] : memref<24x2048xf32, #tpu.memory_space<vmem>>, vector<3x2048xf32>
    %c0_186 = arith.constant 0 : index
    %c0_187 = arith.constant 0 : index
    %c0_188 = arith.constant 0 : index
    %497 = vector.load %arg10[%c0_186, %c0_187, %c0_188] : memref<1x3x2048xf32, #tpu.memory_space<vmem>>, vector<1x3x2048xf32>
    %498 = vector.shape_cast %497 : vector<1x3x2048xf32> to vector<3x2048xf32>
    %499 = vector.shape_cast %496 : vector<3x2048xf32> to vector<1x3x2048xf32>
    tpu.vector_store %arg10[%c0_186, %c0_187, %c0_188], %499 {strides = array<i32>} : memref<1x3x2048xf32, #tpu.memory_space<vmem>>, vector<1x3x2048xf32>,
    return
  }
  func.func @transform_0(%arg0: i32, %arg1: i32) -> (i32, i32, i32, i32) {
    %c2_i32 = arith.constant 2 : i32
    %0 = arith.muli %arg1, %c2_i32 : i32
    %c1_i32 = arith.constant 1 : i32
    %1 = arith.subi %0, %c1_i32 : i32
    %c0_i32 = arith.constant 0 : i32
    %2 = arith.maxsi %1, %c0_i32 : i32
    %c0_i32_0 = arith.constant 0 : i32
    %c0_i32_1 = arith.constant 0 : i32
    %c0_i32_2 = arith.constant 0 : i32
    return %arg0, %c0_i32_0, %2, %c0_i32_1 : i32, i32, i32, i32
  }
  func.func @transform_1(%arg0: i32, %arg1: i32) -> (i32, i32, i32, i32) {
    %c0_i32 = arith.constant 0 : i32
    %c0_i32_0 = arith.constant 0 : i32
    %c0_i32_1 = arith.constant 0 : i32
    return %arg0, %c0_i32, %arg1, %c0_i32_0 : i32, i32, i32, i32
  }
  func.func @transform_2(%arg0: i32, %arg1: i32) -> (i32, i32, i32, i32) {
    %c2_i32 = arith.constant 2 : i32
    %0 = arith.muli %arg1, %c2_i32 : i32
    %c2_i32_0 = arith.constant 2 : i32
    %1 = arith.addi %0, %c2_i32_0 : i32
    %c1_i32 = arith.constant 1 : i32
    %2 = arith.minsi %1, %c1_i32 : i32
    %c0_i32 = arith.constant 0 : i32
    %c0_i32_1 = arith.constant 0 : i32
    %c0_i32_2 = arith.constant 0 : i32
    return %arg0, %c0_i32, %2, %c0_i32_1 : i32, i32, i32, i32
  }
  func.func @transform_3(%arg0: i32, %arg1: i32) -> (i32, i32) {
    %c0_i32 = arith.constant 0 : i32
    %c0_i32_0 = arith.constant 0 : i32
    %c0_i32_1 = arith.constant 0 : i32
    return %c0_i32, %c0_i32_0 : i32, i32
  }
  func.func @transform_4(%arg0: i32, %arg1: i32) -> (i32, i32) {
    %c0_i32 = arith.constant 0 : i32
    %c0_i32_0 = arith.constant 0 : i32
    %c0_i32_1 = arith.constant 0 : i32
    return %c0_i32, %c0_i32_0 : i32, i32
  }
  func.func @transform_5(%arg0: i32, %arg1: i32) -> (i32, i32, i32) {
    %c0_i32 = arith.constant 0 : i32
    %c0_i32_0 = arith.constant 0 : i32
    %c0_i32_1 = arith.constant 0 : i32
    %c0_i32_2 = arith.constant 0 : i32
    return %c0_i32, %c0_i32_0, %c0_i32_1 : i32, i32, i32
  }
  func.func @transform_6(%arg0: i32, %arg1: i32) -> (i32, i32) {
    %c0_i32 = arith.constant 0 : i32
    %c0_i32_0 = arith.constant 0 : i32
    %c0_i32_1 = arith.constant 0 : i32
    return %c0_i32, %c0_i32_0 : i32, i32
  }
  func.func @transform_7(%arg0: i32, %arg1: i32) -> (i32, i32, i32) {
    %c0_i32 = arith.constant 0 : i32
    %c0_i32_0 = arith.constant 0 : i32
    return %arg0, %c0_i32, %arg1 : i32, i32, i32
  }
  func.func @transform_8(%arg0: i32, %arg1: i32) -> (i32, i32, i32) {
    %c0_i32 = arith.constant 0 : i32
    %c0_i32_0 = arith.constant 0 : i32
    return %arg0, %c0_i32, %arg1 : i32, i32, i32
  }
}

</mosaic_0001>

<llo_original>
// kernel: illumination_estimator.1
$region0: #{illumination_estimator.1}
  #allocation0 [shape = 'u32[]', space=smem, size = 0x4, offset = 0x4, fixed_abs, tag = 'smem constant byte address 0x4 - core index']
  #allocation1 [shape = 'u32[144,128]{1,0:T(1,128)}', space=vmem, size = 0x12000, scoped, tag = 'internal scratch']
  #allocation2 [shape = 'bf16[16,2688]{1,0:T(16,128)(2,1)}', space=vmem, size = 0x15000, scoped, tag = 'scratch operand']
  #allocation3 [shape = 'bf16[400,2048]{1,0:T(16,128)(2,1)}', space=vmem, size = 0x190000, scoped, tag = 'scratch operand']
  #allocation4 [shape = 'f32[24,2048]{1,0:T(8,128)}', space=vmem, size = 0x30000, scoped, tag = 'scratch operand']
  %s0 = inlined_call_operand.vmem [shape: f32[2,3,16,128], index: 0, kind: input, shape index: {}, may-alias: {0,1,2}]
  %s1 = inlined_call_operand.vmem [shape: f32[2,3,16,128], index: 1, kind: input, shape index: {}, may-alias: {0,1,2}]
  %s2 = inlined_call_operand.vmem [shape: f32[2,3,16,128], index: 2, kind: input, shape index: {}, may-alias: {0,1,2}]
  %s3 = inlined_call_operand.vmem [shape: f32[16,3], index: 3, kind: input, shape index: {}]
  %s4 = inlined_call_operand.vmem [shape: f32[16,1], index: 4, kind: input, shape index: {}]
  %s5 = inlined_call_operand.vmem [shape: bf16[1,24,400], index: 5, kind: input, shape index: {}]
  %s6 = inlined_call_operand.vmem [shape: f32[24,1], index: 6, kind: input, shape index: {}]
  %s7 = inlined_call_operand.vmem [shape: f32[2,16,2048], index: 7, kind: output, shape index: {0}]
  %s8 = inlined_call_operand.vmem [shape: f32[2,3,2048], index: 8, kind: output, shape index: {1}]
  %9 = xla_tuple %s7, %s8
  %s10 = sld [smem:[#allocation0]]
  $region145: #{illumination_estimator.1} parent=0
    _
  %s12 = ssub.s32 1, %s10
  %s13 = scalar_select 0, %s12, %s10
  $region1: #{illumination_estimator.1} parent=0
    #allocation5 [shape = 'u8[24576]{0}', space=vmem, size = 0x6000, scoped, tag = 'input window, operand 0']
    #allocation6 [shape = 'u8[24576]{0}', space=vmem, size = 0x6000, scoped, tag = 'input window, operand 2']
    loop: start=0, step=1, limit=4
    $region2: #{illumination_estimator.1} parent=1 // loop_pre_header
      _
    $region3: #{illumination_estimator.1} parent=1 // loop_header
      %s15 = sphi 0, %s19
      %p16 = scmp.ge.s32.totalorder %s15, 4
      %s22 = sphi 0, %s34
      %s23 = sphi 0, %s30
      %s24 = sphi 0, %s22
      %s25 = sphi 0, %s23
      %s26 = sphi 0, %s24
      %s27 = sphi 0, %s25
      %s47 = sphi 0, %s49
      %s50 = sphi 0, %s47
      %s51 = sphi 0, %s50
      %s67 = sphi 0, %s51
      %s75 = sphi 0, %s77
      %s78 = sphi 0, %s75
      %s79 = sphi 0, %s78
      %s95 = sphi 0, %s79
      %s111 = sphi 0, %s113
      %s114 = sphi 0, %s111
      %s115 = sphi 0, %s114
      %s131 = sphi 0, %s115
      %s135 = sphi 0, %s135
      %s137 = sphi 0, %s135
      %s138 = sphi 0, %s137
      %s152 = sphi 0, %s138
      %s156 = sphi 0, %s156
      %s158 = sphi 0, %s156
      %s159 = sphi 0, %s158
      %s173 = sphi 0, %s159
      %s177 = sphi 0, %s177
      %s179 = sphi 0, %s177
      %s180 = sphi 0, %s179
      %s194 = sphi 0, %s180
      %s198 = sphi 0, %s198
      %s200 = sphi 0, %s198
      %s201 = sphi 0, %s200
      %s215 = sphi 0, %s201
      %s223 = sphi 0, %s225
      %s226 = sphi 0, %s223
      %s227 = sphi 0, %s226
      %s243 = sphi 0, %s227
      %s251 = sphi 0, %s253
      %s254 = sphi 0, %s251
      %s255 = sphi 0, %s254
      %s271 = sphi 0, %s255
    $region4: #{illumination_estimator.1} parent=1 // loop_header_branch
      %18 = sbr.rel (%p16) target = $region8
    $region5: #{illumination_estimator.1} parent=1 // loop_body
      %s20 = ssub.s32 %s15, 1
      %s21 = ssub.s32 %s15, 2
      %s28 = sadd.s32 1, %s23
      %p29 = scmp.ge.s32.totalorder %s28, 1
      %s30 = scalar_select %p29, 0, %s28
      %s31 = sadd.s32 1, %s22
      %s32 = scalar_select %p29, %s31, %s22
      %p33 = scmp.ge.s32.totalorder %s32, 2
      %s34 = scalar_select %p33, 0, %s32
      %s35 = smul.u32 %s23, 2
      %s36 = ssub.s32 %s35, 1
      %p37 = scmp.gt.s32.totalorder %s36, 0
      %s38 = scalar_select %p37, %s36, 0
      %s39 = smul.u32 %s30, 2
      %s40 = ssub.s32 %s39, 1
      %p41 = scmp.gt.s32.totalorder %s40, 0
      %s42 = scalar_select %p41, %s40, 0
      %s43 = ssub.s32 %s22, %s34
      %s44 = ssub.s32 %s38, %s42
      %s45 = sor.u32 %s43, %s44
      %p46 = scmp.eq.s32.totalorder %s45, 0
      %s48 = sadd.s32 %s47, 1
      %s49 = scalar_select %p46, %s47, %s48
      %p52 = pneg %p46
      %p53 = scmp.eq.s32.totalorder %s15, 1
      %p54 = por %p52, %p53
      %p55 = scmp.ne.s32.totalorder %s47, %s50
      %p56 = scmp.eq.s32.totalorder %s15, 0
      %p57 = por %p55, %p56
      %p58 = scmp.ne.s32.totalorder %s47, %s50
      %p59 = scmp.eq.s32.totalorder %s20, 1
      %p60 = por %p58, %p59
      %p61 = scmp.ne.s32.totalorder %s50, %s51
      %p62 = scmp.eq.s32.totalorder %s20, 0
      %p63 = por %p61, %p62
      %p64 = scmp.ne.s32.totalorder %s50, %s51
      %p65 = scmp.eq.s32.totalorder %s21, 1
      %p66 = por %p64, %p65
      %p68 = scmp.ne.s32.totalorder %s51, %s67
      %p69 = scmp.eq.s32.totalorder %s21, 0
      %p70 = por %p68, %p69
      %s71 = ssub.s32 %s22, %s34
      %s72 = ssub.s32 %s23, %s30
      %s73 = sor.u32 %s71, %s72
      %p74 = scmp.eq.s32.totalorder %s73, 0
      %s76 = sadd.s32 %s75, 1
      %s77 = scalar_select %p74, %s75, %s76
      %p80 = pneg %p74
      %p81 = scmp.eq.s32.totalorder %s15, 1
      %p82 = por %p80, %p81
      %p83 = scmp.ne.s32.totalorder %s75, %s78
      %p84 = scmp.eq.s32.totalorder %s15, 0
      %p85 = por %p83, %p84
      %p86 = scmp.ne.s32.totalorder %s75, %s78
      %p87 = scmp.eq.s32.totalorder %s20, 1
      %p88 = por %p86, %p87
      %p89 = scmp.ne.s32.totalorder %s78, %s79
      %p90 = scmp.eq.s32.totalorder %s20, 0
      %p91 = por %p89, %p90
      %p92 = scmp.ne.s32.totalorder %s78, %s79
      %p93 = scmp.eq.s32.totalorder %s21, 1
      %p94 = por %p92, %p93
      %p96 = scmp.ne.s32.totalorder %s79, %s95
      %p97 = scmp.eq.s32.totalorder %s21, 0
      %p98 = por %p96, %p97
      %s99 = smul.u32 %s23, 2
      %s100 = sadd.s32 %s99, 2
      %p101 = scmp.lt.s32.totalorder %s100, 1
      %s102 = scalar_select %p101, %s100, 1
      %s103 = smul.u32 %s30, 2
      %s104 = sadd.s32 %s103, 2
      %p105 = scmp.lt.s32.totalorder %s104, 1
      %s106 = scalar_select %p105, %s104, 1
      %s107 = ssub.s32 %s22, %s34
      %s108 = ssub.s32 %s102, %s106
      %s109 = sor.u32 %s107, %s108
      %p110 = scmp.eq.s32.totalorder %s109, 0
      %s112 = sadd.s32 %s111, 1
      %s113 = scalar_select %p110, %s111, %s112
      %p116 = pneg %p110
      %p117 = scmp.eq.s32.totalorder %s15, 1
      %p118 = por %p116, %p117
      %p119 = scmp.ne.s32.totalorder %s111, %s114
      %p120 = scmp.eq.s32.totalorder %s15, 0
      %p121 = por %p119, %p120
      %p122 = scmp.ne.s32.totalorder %s111, %s114
      %p123 = scmp.eq.s32.totalorder %s20, 1
      %p124 = por %p122, %p123
      %p125 = scmp.ne.s32.totalorder %s114, %s115
      %p126 = scmp.eq.s32.totalorder %s20, 0
      %p127 = por %p125, %p126
      %p128 = scmp.ne.s32.totalorder %s114, %s115
      %p129 = scmp.eq.s32.totalorder %s21, 1
      %p130 = por %p128, %p129
      %p132 = scmp.ne.s32.totalorder %s115, %s131
      %p133 = scmp.eq.s32.totalorder %s21, 0
      %p134 = por %p132, %p133
      %s136 = sadd.s32 %s135, 1
      %p139 = scmp.eq.s32.totalorder %s15, 1
      %p140 = scmp.ne.s32.totalorder %s135, %s137
      %p141 = scmp.eq.s32.totalorder %s15, 0
      %p142 = por %p140, %p141
      %p143 = scmp.ne.s32.totalorder %s135, %s137
      %p144 = scmp.eq.s32.totalorder %s20, 1
      %p145 = por %p143, %p144
      %p146 = scmp.ne.s32.totalorder %s137, %s138
      %p147 = scmp.eq.s32.totalorder %s20, 0
      %p148 = por %p146, %p147
      %p149 = scmp.ne.s32.totalorder %s137, %s138
      %p150 = scmp.eq.s32.totalorder %s21, 1
      %p151 = por %p149, %p150
      %p153 = scmp.ne.s32.totalorder %s138, %s152
      %p154 = scmp.eq.s32.totalorder %s21, 0
      %p155 = por %p153, %p154
      %s157 = sadd.s32 %s156, 1
      %p160 = scmp.eq.s32.totalorder %s15, 1
      %p161 = scmp.ne.s32.totalorder %s156, %s158
      %p162 = scmp.eq.s32.totalorder %s15, 0
      %p163 = por %p161, %p162
      %p164 = scmp.ne.s32.totalorder %s156, %s158
      %p165 = scmp.eq.s32.totalorder %s20, 1
      %p166 = por %p164, %p165
      %p167 = scmp.ne.s32.totalorder %s158, %s159
      %p168 = scmp.eq.s32.totalorder %s20, 0
      %p169 = por %p167, %p168
      %p170 = scmp.ne.s32.totalorder %s158, %s159
      %p171 = scmp.eq.s32.totalorder %s21, 1
      %p172 = por %p170, %p171
      %p174 = scmp.ne.s32.totalorder %s159, %s173
      %p175 = scmp.eq.s32.totalorder %s21, 0
      %p176 = por %p174, %p175
      %s178 = sadd.s32 %s177, 1
      %p181 = scmp.eq.s32.totalorder %s15, 1
      %p182 = scmp.ne.s32.totalorder %s177, %s179
      %p183 = scmp.eq.s32.totalorder %s15, 0
      %p184 = por %p182, %p183
      %p185 = scmp.ne.s32.totalorder %s177, %s179
      %p186 = scmp.eq.s32.totalorder %s20, 1
      %p187 = por %p185, %p186
      %p188 = scmp.ne.s32.totalorder %s179, %s180
      %p189 = scmp.eq.s32.totalorder %s20, 0
      %p190 = por %p188, %p189
      %p191 = scmp.ne.s32.totalorder %s179, %s180
      %p192 = scmp.eq.s32.totalorder %s21, 1
      %p193 = por %p191, %p192
      %p195 = scmp.ne.s32.totalorder %s180, %s194
      %p196 = scmp.eq.s32.totalorder %s21, 0
      %p197 = por %p195, %p196
      %s199 = sadd.s32 %s198, 1
      %p202 = scmp.eq.s32.totalorder %s15, 1
      %p203 = scmp.ne.s32.totalorder %s198, %s200
      %p204 = scmp.eq.s32.totalorder %s15, 0
      %p205 = por %p203, %p204
      %p206 = scmp.ne.s32.totalorder %s198, %s200
      %p207 = scmp.eq.s32.totalorder %s20, 1
      %p208 = por %p206, %p207
      %p209 = scmp.ne.s32.totalorder %s200, %s201
      %p210 = scmp.eq.s32.totalorder %s20, 0
      %p211 = por %p209, %p210
      %p212 = scmp.ne.s32.totalorder %s200, %s201
      %p213 = scmp.eq.s32.totalorder %s21, 1
      %p214 = por %p212, %p213
      %p216 = scmp.ne.s32.totalorder %s201, %s215
      %p217 = scmp.eq.s32.totalorder %s21, 0
      %p218 = por %p216, %p217
      %s219 = ssub.s32 %s22, %s34
      %s220 = ssub.s32 %s23, %s30
      %s221 = sor.u32 %s219, %s220
      %p222 = scmp.eq.s32.totalorder %s221, 0
      %s224 = sadd.s32 %s223, 1
      %s225 = scalar_select %p222, %s223, %s224
      %p228 = pneg %p222
      %p229 = scmp.eq.s32.totalorder %s15, 1
      %p230 = por %p228, %p229
      %p231 = scmp.ne.s32.totalorder %s223, %s226
      %p232 = scmp.eq.s32.totalorder %s15, 0
      %p233 = por %p231, %p232
      %p234 = scmp.ne.s32.totalorder %s223, %s226
      %p235 = scmp.eq.s32.totalorder %s20, 1
      %p236 = por %p234, %p235
      %p237 = scmp.ne.s32.totalorder %s226, %s227
      %p238 = scmp.eq.s32.totalorder %s20, 0
      %p239 = por %p237, %p238
      %p240 = scmp.ne.s32.totalorder %s226, %s227
      %p241 = scmp.eq.s32.totalorder %s21, 1
      %p242 = por %p240, %p241
      %p244 = scmp.ne.s32.totalorder %s227, %s243
      %p245 = scmp.eq.s32.totalorder %s21, 0
      %p246 = por %p244, %p245
      %s247 = ssub.s32 %s22, %s34
      %s248 = ssub.s32 %s23, %s30
      %s249 = sor.u32 %s247, %s248
      %p250 = scmp.eq.s32.totalorder %s249, 0
      %s252 = sadd.s32 %s251, 1
      %s253 = scalar_select %p250, %s251, %s252
      %p256 = pneg %p250
      %p257 = scmp.eq.s32.totalorder %s15, 1
      %p258 = por %p256, %p257
      %p259 = scmp.ne.s32.totalorder %s251, %s254
      %p260 = scmp.eq.s32.totalorder %s15, 0
      %p261 = por %p259, %p260
      %p262 = scmp.ne.s32.totalorder %s251, %s254
      %p263 = scmp.eq.s32.totalorder %s20, 1
      %p264 = por %p262, %p263
      %p265 = scmp.ne.s32.totalorder %s254, %s255
      %p266 = scmp.eq.s32.totalorder %s20, 0
      %p267 = por %p265, %p266
      %p268 = scmp.ne.s32.totalorder %s254, %s255
      %p269 = scmp.eq.s32.totalorder %s21, 1
      %p270 = por %p268, %p269
      %p272 = scmp.ne.s32.totalorder %s255, %s271
      %p273 = scmp.eq.s32.totalorder %s21, 0
      %p274 = por %p272, %p273
      %p275 = scmp.le.s32.totalorder 1, %s15
      %p276 = scmp.lt.s32.totalorder %s15, 3
      %p277 = pnand %p275, %p276
      %p278 = pneg %p277
      // Predicated region
      $region9: #{illumination_estimator.1} parent=5 // pred_check
        _
      $region10: #{illumination_estimator.1} parent=5 // pred_check_branch
        %280 = sbr.rel (%p277) target = $region12
      $region11: #{illumination_estimator.1} parent=5 // pred_region
        %s281 = ssub.s32 %s15, 1
        // Predicated region
        $region13: #{illumination_estimator.1} parent=11 // pred_check
          %p282 = pneg %p148
        $region14: #{illumination_estimator.1} parent=11 // pred_check_branch
          %284 = sbr.rel (%p282) target = $region16
        $region15: #{illumination_estimator.1} parent=11 // pred_region
          _
        $region16: #{illumination_estimator.1} parent=11 // pred_fallthru
          _
        // Predicated region
        $region17: #{illumination_estimator.1} parent=11 // pred_check
          %p285 = pneg %p169
        $region18: #{illumination_estimator.1} parent=11 // pred_check_branch
          %287 = sbr.rel (%p285) target = $region20
        $region19: #{illumination_estimator.1} parent=11 // pred_region
          _
        $region20: #{illumination_estimator.1} parent=11 // pred_fallthru
          _
        // Predicated region
        $region21: #{illumination_estimator.1} parent=11 // pred_check
          %p288 = pneg %p190
        $region22: #{illumination_estimator.1} parent=11 // pred_check_branch
          %290 = sbr.rel (%p288) target = $region24
        $region23: #{illumination_estimator.1} parent=11 // pred_region
          _
        $region24: #{illumination_estimator.1} parent=11 // pred_fallthru
          _
        // Predicated region
        $region25: #{illumination_estimator.1} parent=11 // pred_check
          %p291 = pneg %p211
        $region26: #{illumination_estimator.1} parent=11 // pred_check_branch
          %293 = sbr.rel (%p291) target = $region28
        $region27: #{illumination_estimator.1} parent=11 // pred_region
          _
        $region28: #{illumination_estimator.1} parent=11 // pred_fallthru
          _
      $region12: #{illumination_estimator.1} parent=5 // pred_fallthru
        _
      %p294 = scmp.lt.s32.totalorder %s15, 2
      // Predicated region
      $region29: #{illumination_estimator.1} parent=5 // pred_check
        %p295 = pneg %p294
      $region30: #{illumination_estimator.1} parent=5 // pred_check_branch
        %297 = sbr.rel (%p295) target = $region32
      $region31: #{illumination_estimator.1} parent=5 // pred_region
        // Predicated region
        $region33: #{illumination_estimator.1} parent=31 // pred_check
          %p298 = pneg %p57
        $region34: #{illumination_estimator.1} parent=31 // pred_check_branch
          %300 = sbr.rel (%p298) target = $region36
        $region35: #{illumination_estimator.1} parent=31 // pred_region
          %s301 = sand.u32 %s47, 1
          %s302 = sand.u32 %s47, 1
          %s303 = smul.addr %s302, 24
          %s304 = scalar_lea.vmem [#allocation5], %s303
          %s305 = smul.u32 %s23, 2
          %s306 = ssub.s32 %s305, 1
          %p307 = scmp.gt.s32.totalorder %s306, 0
          %s308 = scalar_select %p307, %s306, 0
          %s309 = smul.addr %s22, 6
          %s310 = sadd.s32 %s308, %s309
          %s311 = smul.addr %s310, 8
          %s312 = scalar_lea.vmem %s0, %s311
          // Predicated region
          $region37: #{illumination_estimator.1} parent=35 // pred_check
            _
          $region38: #{illumination_estimator.1} parent=35 // pred_check_branch
            %314 = sbr.rel (0) target = $region40
          $region39: #{illumination_estimator.1} parent=35 // pred_region
            // Predicated region
            $region41: #{illumination_estimator.1} parent=39 // pred_check
              _
            $region42: #{illumination_estimator.1} parent=39 // pred_check_branch
              %316 = sbr.rel (0) target = $region44
            $region43: #{illumination_estimator.1} parent=39 // pred_region
              // Predicated region
              $region56: #{illumination_estimator.1} parent=43 // pred_check
                _
              $region57: #{illumination_estimator.1} parent=43 // pred_check_branch
                %335 = sbr.rel (0) target = $region59
              $region58: #{illumination_estimator.1} parent=43 // pred_region
                loop: start=0, step=1, limit=1
                $region60: #{illumination_estimator.1} parent=58 // loop_pre_header
                  _
                $region61: #{illumination_estimator.1} parent=58 // loop_header
                  %s337 = sphi 0, %s341
                  %p338 = scmp.ge.s32.totalorder %s337, 1
                  %s342 = sphi %s312, %s312
                  %s343 = sphi %s304, %s304
                $region62: #{illumination_estimator.1} parent=58 // loop_header_branch
                  %340 = sbr.rel (%p338) target = $region66
                $region63: #{illumination_estimator.1} parent=58 // loop_body
                  %v344 = vld [vmem:[%s342] sm:$0xff]
                  %345 = vst [vmem:[%s343] sm:$0xff] %v344
                  %v346 = vld [vmem:[%s342 + $0x10] sm:$0xff]
                  %347 = vst [vmem:[%s343 + $0x8] sm:$0xff] %v346
                  %v348 = vld [vmem:[%s342 + $0x20] sm:$0xff]
                  %349 = vst [vmem:[%s343 + $0x10] sm:$0xff] %v348
                $region64: #{illumination_estimator.1} parent=58 // loop_footer
                  %s341 = sadd.s32 1, %s337
                $region65: #{illumination_estimator.1} parent=58 // loop_footer_branch
                  %336 = sbr.rel target = $region61
                $region66: #{illumination_estimator.1} parent=58 // loop_exit
                  _
              $region59: #{illumination_estimator.1} parent=43 // pred_fallthru
                _
              // Predicated region
              $region67: #{illumination_estimator.1} parent=43 // pred_check
                _
              $region68: #{illumination_estimator.1} parent=43 // pred_check_branch
                %351 = sbr.rel target = $region70
              $region69: #{illumination_estimator.1} parent=43 // pred_region
                _
              $region70: #{illumination_estimator.1} parent=43 // pred_fallthru
                _
            $region44: #{illumination_estimator.1} parent=39 // pred_fallthru
              _
            // Predicated region
            $region45: #{illumination_estimator.1} parent=39 // pred_check
              _
            $region46: #{illumination_estimator.1} parent=39 // pred_check_branch
              %318 = sbr.rel target = $region48
            $region47: #{illumination_estimator.1} parent=39 // pred_region
              loop: start=0, step=1, limit=1
              $region49: #{illumination_estimator.1} parent=47 // loop_pre_header
                _
              $region50: #{illumination_estimator.1} parent=47 // loop_header
                %s321 = sphi 0, %s325
                %p322 = scmp.ge.s32.totalorder %s321, 1
                %s326 = sphi %s312, %s312
                %s327 = sphi %s304, %s304
              $region51: #{illumination_estimator.1} parent=47 // loop_header_branch
                %324 = sbr.rel (%p322) target = $region55
              $region52: #{illumination_estimator.1} parent=47 // loop_body
                %v328 = vld [vmem:[%s326] sm:$0xff]
                %329 = vst [vmem:[%s327] sm:$0xff] %v328
                %v330 = vld [vmem:[%s326 + $0x10] sm:$0xff]
                %331 = vst [vmem:[%s327 + $0x8] sm:$0xff] %v330
                %v332 = vld [vmem:[%s326 + $0x20] sm:$0xff]
                %333 = vst [vmem:[%s327 + $0x10] sm:$0xff] %v332
              $region53: #{illumination_estimator.1} parent=47 // loop_footer
                %s325 = sadd.s32 1, %s321
              $region54: #{illumination_estimator.1} parent=47 // loop_footer_branch
                %320 = sbr.rel target = $region50
              $region55: #{illumination_estimator.1} parent=47 // loop_exit
                _
            $region48: #{illumination_estimator.1} parent=39 // pred_fallthru
              _
          $region40: #{illumination_estimator.1} parent=35 // pred_fallthru
            _
          %352 = vnop
        $region36: #{illumination_estimator.1} parent=31 // pred_fallthru
          _
        // Predicated region
        $region71: #{illumination_estimator.1} parent=31 // pred_check
          %p353 = pneg %p85
        $region72: #{illumination_estimator.1} parent=31 // pred_check_branch
          %355 = sbr.rel (%p353) target = $region74
        $region73: #{illumination_estimator.1} parent=31 // pred_region
          %s356 = smul.u32 2, %s23
          %p357 = scmp.lt.s32.totalorder %s22, 1
          %s358 = scalar_select %p357, %s22, 1
          %p359 = scmp.lt.s32.totalorder %s356, 1
          %s360 = scalar_select %p359, %s356, 1
          %s361 = smul.addr %s358, 6
          %s362 = sadd.s32 %s360, %s361
          %s363 = smul.addr %s362, 8
          %s364 = scalar_lea.vmem %s1, %s363
          %s365 = smul.u32 2, %s23
        $region74: #{illumination_estimator.1} parent=31 // pred_fallthru
          _
        // Predicated region
        $region75: #{illumination_estimator.1} parent=31 // pred_check
          %p366 = pneg %p121
        $region76: #{illumination_estimator.1} parent=31 // pred_check_branch
          %368 = sbr.rel (%p366) target = $region78
        $region77: #{illumination_estimator.1} parent=31 // pred_region
          %s369 = sand.u32 %s111, 1
          %s370 = sand.u32 %s111, 1
          %s371 = smul.addr %s370, 24
          %s372 = scalar_lea.vmem [#allocation6], %s371
          %s373 = smul.u32 %s23, 2
          %s374 = sadd.s32 %s373, 2
          %p375 = scmp.lt.s32.totalorder %s374, 1
          %s376 = scalar_select %p375, %s374, 1
          %s377 = smul.addr %s22, 6
          %s378 = sadd.s32 %s376, %s377
          %s379 = smul.addr %s378, 8
          %s380 = scalar_lea.vmem %s2, %s379
          // Predicated region
          $region79: #{illumination_estimator.1} parent=77 // pred_check
            _
          $region80: #{illumination_estimator.1} parent=77 // pred_check_branch
            %382 = sbr.rel (0) target = $region82
          $region81: #{illumination_estimator.1} parent=77 // pred_region
            // Predicated region
            $region83: #{illumination_estimator.1} parent=81 // pred_check
              _
            $region84: #{illumination_estimator.1} parent=81 // pred_check_branch
              %384 = sbr.rel (0) target = $region86
            $region85: #{illumination_estimator.1} parent=81 // pred_region
              // Predicated region
              $region98: #{illumination_estimator.1} parent=85 // pred_check
                _
              $region99: #{illumination_estimator.1} parent=85 // pred_check_branch
                %403 = sbr.rel (0) target = $region101
              $region100: #{illumination_estimator.1} parent=85 // pred_region
                loop: start=0, step=1, limit=1
                $region102: #{illumination_estimator.1} parent=100 // loop_pre_header
                  _
                $region103: #{illumination_estimator.1} parent=100 // loop_header
                  %s405 = sphi 0, %s409
                  %p406 = scmp.ge.s32.totalorder %s405, 1
                  %s410 = sphi %s380, %s380
                  %s411 = sphi %s372, %s372
                $region104: #{illumination_estimator.1} parent=100 // loop_header_branch
                  %408 = sbr.rel (%p406) target = $region108
                $region105: #{illumination_estimator.1} parent=100 // loop_body
                  %v412 = vld [vmem:[%s410] sm:$0xff]
                  %413 = vst [vmem:[%s411] sm:$0xff] %v412
                  %v414 = vld [vmem:[%s410 + $0x10] sm:$0xff]
                  %415 = vst [vmem:[%s411 + $0x8] sm:$0xff] %v414
                  %v416 = vld [vmem:[%s410 + $0x20] sm:$0xff]
                  %417 = vst [vmem:[%s411 + $0x10] sm:$0xff] %v416
                $region106: #{illumination_estimator.1} parent=100 // loop_footer
                  %s409 = sadd.s32 1, %s405
                $region107: #{illumination_estimator.1} parent=100 // loop_footer_branch
                  %404 = sbr.rel target = $region103
                $region108: #{illumination_estimator.1} parent=100 // loop_exit
                  _
              $region101: #{illumination_estimator.1} parent=85 // pred_fallthru
                _
              // Predicated region
              $region109: #{illumination_estimator.1} parent=85 // pred_check
                _
              $region110: #{illumination_estimator.1} parent=85 // pred_check_branch
                %419 = sbr.rel target = $region112
              $region111: #{illumination_estimator.1} parent=85 // pred_region
                _
              $region112: #{illumination_estimator.1} parent=85 // pred_fallthru
                _
            $region86: #{illumination_estimator.1} parent=81 // pred_fallthru
              _
            // Predicated region
            $region87: #{illumination_estimator.1} parent=81 // pred_check
              _
            $region88: #{illumination_estimator.1} parent=81 // pred_check_branch
              %386 = sbr.rel target = $region90
            $region89: #{illumination_estimator.1} parent=81 // pred_region
              loop: start=0, step=1, limit=1
              $region91: #{illumination_estimator.1} parent=89 // loop_pre_header
                _
              $region92: #{illumination_estimator.1} parent=89 // loop_header
                %s389 = sphi 0, %s393
                %p390 = scmp.ge.s32.totalorder %s389, 1
                %s394 = sphi %s380, %s380
                %s395 = sphi %s372, %s372
              $region93: #{illumination_estimator.1} parent=89 // loop_header_branch
                %392 = sbr.rel (%p390) target = $region97
              $region94: #{illumination_estimator.1} parent=89 // loop_body
                %v396 = vld [vmem:[%s394] sm:$0xff]
                %397 = vst [vmem:[%s395] sm:$0xff] %v396
                %v398 = vld [vmem:[%s394 + $0x10] sm:$0xff]
                %399 = vst [vmem:[%s395 + $0x8] sm:$0xff] %v398
                %v400 = vld [vmem:[%s394 + $0x20] sm:$0xff]
                %401 = vst [vmem:[%s395 + $0x10] sm:$0xff] %v400
              $region95: #{illumination_estimator.1} parent=89 // loop_footer
                %s393 = sadd.s32 1, %s389
              $region96: #{illumination_estimator.1} parent=89 // loop_footer_branch
                %388 = sbr.rel target = $region92
              $region97: #{illumination_estimator.1} parent=89 // loop_exit
                _
            $region90: #{illumination_estimator.1} parent=81 // pred_fallthru
              _
          $region82: #{illumination_estimator.1} parent=77 // pred_fallthru
            _
          %420 = vnop
        $region78: #{illumination_estimator.1} parent=31 // pred_fallthru
          _
      $region32: #{illumination_estimator.1} parent=5 // pred_fallthru
        _
      %p421 = scmp.le.s32.totalorder 1, %s15
      %p422 = scmp.lt.s32.totalorder %s15, 3
      %p423 = pnand %p421, %p422
      %p424 = pneg %p423
      // Predicated region
      $region113: #{illumination_estimator.1} parent=5 // pred_check
        _
      $region114: #{illumination_estimator.1} parent=5 // pred_check_branch
        %426 = sbr.rel (%p423) target = $region116
      $region115: #{illumination_estimator.1} parent=5 // pred_region
        %s427 = ssub.s32 %s15, 1
        %s428 = sand.u32 %s50, 1
        %s429 = sand.u32 %s50, 1
        %s430 = smul.addr %s429, 24
        %s431 = scalar_lea.vmem [#allocation5], %s430
        // Predicated region
        $region117: #{illumination_estimator.1} parent=115 // pred_check
          %p432 = pneg %p63
        $region118: #{illumination_estimator.1} parent=115 // pred_check_branch
          %434 = sbr.rel (%p432) target = $region120
        $region119: #{illumination_estimator.1} parent=115 // pred_region
          _
        $region120: #{illumination_estimator.1} parent=115 // pred_fallthru
          _
        %s435 = sand.u32 %s114, 1
        %s436 = sand.u32 %s114, 1
        %s437 = smul.addr %s436, 24
        %s438 = scalar_lea.vmem [#allocation6], %s437
        // Predicated region
        $region121: #{illumination_estimator.1} parent=115 // pred_check
          %p439 = pneg %p127
        $region122: #{illumination_estimator.1} parent=115 // pred_check_branch
          %441 = sbr.rel (%p439) target = $region124
        $region123: #{illumination_estimator.1} parent=115 // pred_region
          _
        $region124: #{illumination_estimator.1} parent=115 // pred_fallthru
          _
        %s442 = sand.u32 %s50, 1
        %s443 = sand.u32 %s50, 1
        %s444 = smul.addr %s443, 24
        %s445 = scalar_lea.vmem [#allocation5], %s444
        %p446 = pneg %p63
        %p447 = pneg %p60
        %s448 = smul.u32 2, %s25
        %p449 = scmp.lt.s32.totalorder %s24, 1
        %s450 = scalar_select %p449, %s24, 1
        %p451 = scmp.lt.s32.totalorder %s448, 1
        %s452 = scalar_select %p451, %s448, 1
        %s453 = smul.addr %s450, 6
        %s454 = sadd.s32 %s452, %s453
        %s455 = smul.addr %s454, 8
        %s456 = scalar_lea.vmem %s1, %s455
        %p457 = pneg %p91
        %p458 = pneg %p88
        %s459 = sand.u32 %s114, 1
        %s460 = sand.u32 %s114, 1
        %s461 = smul.addr %s460, 24
        %s462 = scalar_lea.vmem [#allocation6], %s461
        %p463 = pneg %p127
        %p464 = pneg %p124
        %p465 = pneg %p148
        %p466 = pneg %p145
        %p467 = pneg %p169
        %p468 = pneg %p166
        %p469 = pneg %p190
        %p470 = pneg %p187
        %p471 = pneg %p211
        %p472 = pneg %p208
        %p473 = pneg %p239
        %p474 = pneg %p236
        %s475 = smul.u32 16, %s25
        %p476 = scmp.lt.s32.totalorder %s24, 1
        %s477 = scalar_select %p476, %s24, 1
        %p478 = scmp.lt.s32.totalorder %s475, 15
        %s479 = scalar_select %p478, %s475, 15
        %s480 = smul.addr %s477, 32
        %s481 = sadd.s32 %s479, %s480
        %s482 = smul.addr %s481, 8
        %s483 = scalar_lea.vmem %s7, %s482
        %p484 = pneg %p267
        %p485 = pneg %p264
        %s486 = smul.u32 16, %s25
        %p487 = scmp.lt.s32.totalorder %s24, 1
        %s488 = scalar_select %p487, %s24, 1
        %p489 = scmp.lt.s32.totalorder %s486, 15
        %s490 = scalar_select %p489, %s486, 15
        %s491 = smul.addr %s488, 16
        %s492 = sadd.s32 %s490, %s491
        %s493 = smul.addr %s492, 4
        %s494 = scalar_lea.vmem %s8, %s493
        %s495 = smul.u32 %s25, 2
        %s496 = ssub.s32 %s495, 1
        %p497 = scmp.gt.s32.totalorder %s496, 0
        %s498 = scalar_select %p497, %s496, 0
        %s499 = smul.u32 2, %s25
        %p500 = scmp.lt.s32.totalorder %s24, 1
        %s501 = scalar_select %p500, %s24, 1
        %p502 = scmp.lt.s32.totalorder %s499, 1
        %s503 = scalar_select %p502, %s499, 1
        %s504 = smul.addr %s501, 6
        %s505 = sadd.s32 %s503, %s504
        %s506 = smul.addr %s505, 8
        %s507 = scalar_lea.vmem %s1, %s506
        %s508 = smul.u32 2, %s25
        %s509 = smul.u32 %s25, 2
        %s510 = sadd.s32 %s509, 2
        %p511 = scmp.lt.s32.totalorder %s510, 1
        %s512 = scalar_select %p511, %s510, 1
        %s513 = smul.u32 16, %s25
        %p514 = scmp.lt.s32.totalorder %s24, 1
        %s515 = scalar_select %p514, %s24, 1
        %p516 = scmp.lt.s32.totalorder %s513, 15
        %s517 = scalar_select %p516, %s513, 15
        %s518 = smul.addr %s515, 32
        %s519 = sadd.s32 %s517, %s518
        %s520 = smul.addr %s519, 8
        %s521 = scalar_lea.vmem %s7, %s520
        %s522 = smul.u32 16, %s25
        %s523 = smul.u32 16, %s25
        %p524 = scmp.lt.s32.totalorder %s24, 1
        %s525 = scalar_select %p524, %s24, 1
        %p526 = scmp.lt.s32.totalorder %s523, 15
        %s527 = scalar_select %p526, %s523, 15
        %s528 = smul.addr %s525, 16
        %s529 = sadd.s32 %s527, %s528
        %s530 = smul.addr %s529, 4
        %s531 = scalar_lea.vmem %s8, %s530
        %s532 = smul.u32 16, %s25
        %v534 = vlaneseq
        %v535 = vand.u32 %v534, 127
        %vm536 = vcmp.ge.s32.totalorder %v535, 2
        %vm537 = vcmp.lt.s32.totalorder %v535, 18
        %vm538 = vmand %vm536, %vm537
        %v539 = vld [vmem:[%s4] sm:$0xff]
        %v540 = vld [vmem:[%s4 + $0x8] sm:$0xff]
        %v541 = vsel %vm538, 1, 0
        %vm542 = vcmp.eq.s32.totalorder %v541, 1
        %544 = vset.pattern.permute.xlu0 0
        %545 = vperm.xlu0 %544, %v539
        %v546 = vpop.permute.xlu0 %545
        %549 = vset.pattern.permute.xlu0 0
        %550 = vperm.xlu0 %549, %v540
        %v551 = vpop.permute.xlu0 %550
        %v553 = vsel %vm542, %v546, 0.0
        %v554 = vsel %vm542, %v551, 0.0
        %v555 = vld [vmem:[%s3] sm:$0xff]
        %v556 = vld [vmem:[%s3 + $0x8] sm:$0xff]
        %v557 = vld [vmem:[%s431 + $0x6] sm:$0x1]
        %v558 = vld [vmem:[%s431 + $0xe] sm:$0x1]
        %v559 = vld [vmem:[%s431 + $0x16] sm:$0x1]
        %561 = vset.pattern.permute.xlu0 0
        %562 = vperm.xlu0 %561, %v555
        %v563 = vpop.permute.xlu0 %562
        %566 = vset.pattern.permute.xlu0 0
        %567 = vperm.xlu0 %566, %v556
        %v568 = vpop.permute.xlu0 %567
        %v570 = vlaneseq
        %v571 = vshrl.u32 %v570, 7
        %v572 = vsub.s32 0, %v571
        %v573 = vrot.slane %v557, %v572
        %v574 = vmul.f32 %v563, %v573
        %v575 = vmul.f32 %v568, %v573
        %v576 = vadd.f32 %v553, %v574
        %v577 = vadd.f32 %v554, %v575
        %578 = vset.pattern.permute.xlu0 1
        %579 = vperm.xlu0 %578, %v555
        %v580 = vpop.permute.xlu0 %579
        %582 = vset.pattern.permute.xlu0 1
        %583 = vperm.xlu0 %582, %v556
        %v584 = vpop.permute.xlu0 %583
        %v586 = vlaneseq
        %v587 = vshrl.u32 %v586, 7
        %v588 = vsub.s32 0, %v587
        %v589 = vrot.slane %v558, %v588
        %v590 = vmul.f32 %v580, %v589
        %v591 = vmul.f32 %v584, %v589
        %v592 = vadd.f32 %v576, %v590
        %v593 = vadd.f32 %v577, %v591
        %594 = vset.pattern.permute.xlu0 2
        %595 = vperm.xlu0 %594, %v555
        %v596 = vpop.permute.xlu0 %595
        %598 = vset.pattern.permute.xlu0 2
        %599 = vperm.xlu0 %598, %v556
        %v600 = vpop.permute.xlu0 %599
        %v602 = vlaneseq
        %v603 = vshrl.u32 %v602, 7
        %v604 = vsub.s32 0, %v603
        %v605 = vrot.slane %v559, %v604
        %v606 = vmul.f32 %v596, %v605
        %v607 = vmul.f32 %v600, %v605
        %v608 = vadd.f32 %v592, %v606
        %v609 = vadd.f32 %v593, %v607
        %s610 = smul.u32 %s25, 16
        %s611 = sadd.s32 %s610, 4294967294
        %p612 = scmp.ge.s32.totalorder %s611, 0
        %p613 = scmp.lt.s32.totalorder %s611, 16
        %p614 = pnand %p612, %p613
        %p615 = pneg %p614
        %s616 = scalar_select %p615, 1, 0
        %s617 = scvt.s32.f32 %s616
        %v618 = vstv %s617
        %v619 = vmul.f32 %v608, %v618
        %v620 = vmul.f32 %v609, %v618
        %v621 = vpack.c.bf16 %v620, %v619
        %622 = vst [vmem:[#allocation2] sm:$0xff] %v621
        %v623 = vld [vmem:[%s431 + $0x7] sm:$0x1]
        %v624 = vld [vmem:[%s431 + $0xf] sm:$0x1]
        %v625 = vld [vmem:[%s431 + $0x17] sm:$0x1]
        %v626 = vlaneseq
        %v627 = vshrl.u32 %v626, 7
        %v628 = vsub.s32 0, %v627
        %v629 = vrot.slane %v623, %v628
        %v630 = vmul.f32 %v563, %v629
        %v631 = vmul.f32 %v568, %v629
        %v632 = vadd.f32 %v553, %v630
        %v633 = vadd.f32 %v554, %v631
        %v634 = vlaneseq
        %v635 = vshrl.u32 %v634, 7
        %v636 = vsub.s32 0, %v635
        %v637 = vrot.slane %v624, %v636
        %v638 = vmul.f32 %v580, %v637
        %v639 = vmul.f32 %v584, %v637
        %v640 = vadd.f32 %v632, %v638
        %v641 = vadd.f32 %v633, %v639
        %v642 = vlaneseq
        %v643 = vshrl.u32 %v642, 7
        %v644 = vsub.s32 0, %v643
        %v645 = vrot.slane %v625, %v644
        %v646 = vmul.f32 %v596, %v645
        %v647 = vmul.f32 %v600, %v645
        %v648 = vadd.f32 %v640, %v646
        %v649 = vadd.f32 %v641, %v647
        %s650 = sadd.s32 %s610, 4294967295
        %p651 = scmp.ge.s32.totalorder %s650, 0
        %p652 = scmp.lt.s32.totalorder %s650, 16
        %p653 = pnand %p651, %p652
        %p654 = pneg %p653
        %s655 = scalar_select %p654, 1, 0
        %s656 = scvt.s32.f32 %s655
        %v657 = vstv %s656
        %v658 = vmul.f32 %v648, %v657
        %v659 = vmul.f32 %v649, %v657
        %v660 = vpack.c.bf16 %v659, %v658
        %661 = vst [vmem:[#allocation2 + $0x8] sm:$0xff] %v660
        %v662 = vld [vmem:[%s507] sm:$0x1]
        %v663 = vld [vmem:[%s507 + $0x10] sm:$0x1]
        %v664 = vld [vmem:[%s507 + $0x20] sm:$0x1]
        %v665 = vlaneseq
        %v666 = vshrl.u32 %v665, 7
        %v667 = vsub.s32 0, %v666
        %v668 = vrot.slane %v662, %v667
        %v669 = vmul.f32 %v563, %v668
        %v670 = vmul.f32 %v568, %v668
        %v671 = vadd.f32 %v553, %v669
        %v672 = vadd.f32 %v554, %v670
        %v673 = vlaneseq
        %v674 = vshrl.u32 %v673, 7
        %v675 = vsub.s32 0, %v674
        %v676 = vrot.slane %v663, %v675
        %v677 = vmul.f32 %v580, %v676
        %v678 = vmul.f32 %v584, %v676
        %v679 = vadd.f32 %v671, %v677
        %v680 = vadd.f32 %v672, %v678
        %v681 = vlaneseq
        %v682 = vshrl.u32 %v681, 7
        %v683 = vsub.s32 0, %v682
        %v684 = vrot.slane %v664, %v683
        %v685 = vmul.f32 %v596, %v684
        %v686 = vmul.f32 %v600, %v684
        %v687 = vadd.f32 %v679, %v685
        %v688 = vadd.f32 %v680, %v686
        %v689 = vpack.c.bf16 %v688, %v687
        %690 = vst [vmem:[#allocation2 + $0x10] sm:$0xff] %v689
        %v691 = vld [vmem:[%s507 + $0x1] sm:$0x1]
        %v692 = vld [vmem:[%s507 + $0x11] sm:$0x1]
        %v693 = vld [vmem:[%s507 + $0x21] sm:$0x1]
        %v694 = vlaneseq
        %v695 = vshrl.u32 %v694, 7
        %v696 = vsub.s32 0, %v695
        %v697 = vrot.slane %v691, %v696
        %v698 = vmul.f32 %v563, %v697
        %v699 = vmul.f32 %v568, %v697
        %v700 = vadd.f32 %v553, %v698
        %v701 = vadd.f32 %v554, %v699
        %v702 = vlaneseq
        %v703 = vshrl.u32 %v702, 7
        %v704 = vsub.s32 0, %v703
        %v705 = vrot.slane %v692, %v704
        %v706 = vmul.f32 %v580, %v705
        %v707 = vmul.f32 %v584, %v705
        %v708 = vadd.f32 %v700, %v706
        %v709 = vadd.f32 %v701, %v707
        %v710 = vlaneseq
        %v711 = vshrl.u32 %v710, 7
        %v712 = vsub.s32 0, %v711
        %v713 = vrot.slane %v693, %v712
        %v714 = vmul.f32 %v596, %v713
        %v715 = vmul.f32 %v600, %v713
        %v716 = vadd.f32 %v708, %v714
        %v717 = vadd.f32 %v709, %v715
        %v718 = vpack.c.bf16 %v717, %v716
        %719 = vst [vmem:[#allocation2 + $0x18] sm:$0xff] %v718
        %v720 = vld [vmem:[%s507 + $0x2] sm:$0x1]
        %v721 = vld [vmem:[%s507 + $0x12] sm:$0x1]
        %v722 = vld [vmem:[%s507 + $0x22] sm:$0x1]
        %v723 = vlaneseq
        %v724 = vshrl.u32 %v723, 7
        %v725 = vsub.s32 0, %v724
        %v726 = vrot.slane %v720, %v725
        %v727 = vmul.f32 %v563, %v726
        %v728 = vmul.f32 %v568, %v726
        %v729 = vadd.f32 %v553, %v727
        %v730 = vadd.f32 %v554, %v728
        %v731 = vlaneseq
        %v732 = vshrl.u32 %v731, 7
        %v733 = vsub.s32 0, %v732
        %v734 = vrot.slane %v721, %v733
        %v735 = vmul.f32 %v580, %v734
        %v736 = vmul.f32 %v584, %v734
        %v737 = vadd.f32 %v729, %v735
        %v738 = vadd.f32 %v730, %v736
        %v739 = vlaneseq
        %v740 = vshrl.u32 %v739, 7
        %v741 = vsub.s32 0, %v740
        %v742 = vrot.slane %v722, %v741
        %v743 = vmul.f32 %v596, %v742
        %v744 = vmul.f32 %v600, %v742
        %v745 = vadd.f32 %v737, %v743
        %v746 = vadd.f32 %v738, %v744
        %v747 = vpack.c.bf16 %v746, %v745
        %748 = vst [vmem:[#allocation2 + $0x20] sm:$0xff] %v747
        %v749 = vld [vmem:[%s507 + $0x3] sm:$0x1]
        %v750 = vld [vmem:[%s507 + $0x13] sm:$0x1]
        %v751 = vld [vmem:[%s507 + $0x23] sm:$0x1]
        %v752 = vlaneseq
        %v753 = vshrl.u32 %v752, 7
        %v754 = vsub.s32 0, %v753
        %v755 = vrot.slane %v749, %v754
        %v756 = vmul.f32 %v563, %v755
        %v757 = vmul.f32 %v568, %v755
        %v758 = vadd.f32 %v553, %v756
        %v759 = vadd.f32 %v554, %v757
        %v760 = vlaneseq
        %v761 = vshrl.u32 %v760, 7
        %v762 = vsub.s32 0, %v761
        %v763 = vrot.slane %v750, %v762
        %v764 = vmul.f32 %v580, %v763
        %v765 = vmul.f32 %v584, %v763
        %v766 = vadd.f32 %v758, %v764
        %v767 = vadd.f32 %v759, %v765
        %v768 = vlaneseq
        %v769 = vshrl.u32 %v768, 7
        %v770 = vsub.s32 0, %v769
        %v771 = vrot.slane %v751, %v770
        %v772 = vmul.f32 %v596, %v771
        %v773 = vmul.f32 %v600, %v771
        %v774 = vadd.f32 %v766, %v772
        %v775 = vadd.f32 %v767, %v773
        %v776 = vpack.c.bf16 %v775, %v774
        %777 = vst [vmem:[#allocation2 + $0x28] sm:$0xff] %v776
        %v778 = vld [vmem:[%s507 + $0x4] sm:$0x1]
        %v779 = vld [vmem:[%s507 + $0x14] sm:$0x1]
        %v780 = vld [vmem:[%s507 + $0x24] sm:$0x1]
        %v781 = vlaneseq
        %v782 = vshrl.u32 %v781, 7
        %v783 = vsub.s32 0, %v782
        %v784 = vrot.slane %v778, %v783
        %v785 = vmul.f32 %v563, %v784
        %v786 = vmul.f32 %v568, %v784
        %v787 = vadd.f32 %v553, %v785
        %v788 = vadd.f32 %v554, %v786
        %v789 = vlaneseq
        %v790 = vshrl.u32 %v789, 7
        %v791 = vsub.s32 0, %v790
        %v792 = vrot.slane %v779, %v791
        %v793 = vmul.f32 %v580, %v792
        %v794 = vmul.f32 %v584, %v792
        %v795 = vadd.f32 %v787, %v793
        %v796 = vadd.f32 %v788, %v794
        %v797 = vlaneseq
        %v798 = vshrl.u32 %v797, 7
        %v799 = vsub.s32 0, %v798
        %v800 = vrot.slane %v780, %v799
        %v801 = vmul.f32 %v596, %v800
        %v802 = vmul.f32 %v600, %v800
        %v803 = vadd.f32 %v795, %v801
        %v804 = vadd.f32 %v796, %v802
        %v805 = vpack.c.bf16 %v804, %v803
        %806 = vst [vmem:[#allocation2 + $0x30] sm:$0xff] %v805
        %v807 = vld [vmem:[%s507 + $0x5] sm:$0x1]
        %v808 = vld [vmem:[%s507 + $0x15] sm:$0x1]
        %v809 = vld [vmem:[%s507 + $0x25] sm:$0x1]
        %v810 = vlaneseq
        %v811 = vshrl.u32 %v810, 7
        %v812 = vsub.s32 0, %v811
        %v813 = vrot.slane %v807, %v812
        %v814 = vmul.f32 %v563, %v813
        %v815 = vmul.f32 %v568, %v813
        %v816 = vadd.f32 %v553, %v814
        %v817 = vadd.f32 %v554, %v815
        %v818 = vlaneseq
        %v819 = vshrl.u32 %v818, 7
        %v820 = vsub.s32 0, %v819
        %v821 = vrot.slane %v808, %v820
        %v822 = vmul.f32 %v580, %v821
        %v823 = vmul.f32 %v584, %v821
        %v824 = vadd.f32 %v816, %v822
        %v825 = vadd.f32 %v817, %v823
        %v826 = vlaneseq
        %v827 = vshrl.u32 %v826, 7
        %v828 = vsub.s32 0, %v827
        %v829 = vrot.slane %v809, %v828
        %v830 = vmul.f32 %v596, %v829
        %v831 = vmul.f32 %v600, %v829
        %v832 = vadd.f32 %v824, %v830
        %v833 = vadd.f32 %v825, %v831
        %v834 = vpack.c.bf16 %v833, %v832
        %835 = vst [vmem:[#allocation2 + $0x38] sm:$0xff] %v834
        %v836 = vld [vmem:[%s507 + $0x6] sm:$0x1]
        %v837 = vld [vmem:[%s507 + $0x16] sm:$0x1]
        %v838 = vld [vmem:[%s507 + $0x26] sm:$0x1]
        %v839 = vlaneseq
        %v840 = vshrl.u32 %v839, 7
        %v841 = vsub.s32 0, %v840
        %v842 = vrot.slane %v836, %v841
        %v843 = vmul.f32 %v563, %v842
        %v844 = vmul.f32 %v568, %v842
        %v845 = vadd.f32 %v553, %v843
        %v846 = vadd.f32 %v554, %v844
        %v847 = vlaneseq
        %v848 = vshrl.u32 %v847, 7
        %v849 = vsub.s32 0, %v848
        %v850 = vrot.slane %v837, %v849
        %v851 = vmul.f32 %v580, %v850
        %v852 = vmul.f32 %v584, %v850
        %v853 = vadd.f32 %v845, %v851
        %v854 = vadd.f32 %v846, %v852
        %v855 = vlaneseq
        %v856 = vshrl.u32 %v855, 7
        %v857 = vsub.s32 0, %v856
        %v858 = vrot.slane %v838, %v857
        %v859 = vmul.f32 %v596, %v858
        %v860 = vmul.f32 %v600, %v858
        %v861 = vadd.f32 %v853, %v859
        %v862 = vadd.f32 %v854, %v860
        %v863 = vpack.c.bf16 %v862, %v861
        %864 = vst [vmem:[#allocation2 + $0x40] sm:$0xff] %v863
        %v865 = vld [vmem:[%s507 + $0x7] sm:$0x1]
        %v866 = vld [vmem:[%s507 + $0x17] sm:$0x1]
        %v867 = vld [vmem:[%s507 + $0x27] sm:$0x1]
        %v868 = vlaneseq
        %v869 = vshrl.u32 %v868, 7
        %v870 = vsub.s32 0, %v869
        %v871 = vrot.slane %v865, %v870
        %v872 = vmul.f32 %v563, %v871
        %v873 = vmul.f32 %v568, %v871
        %v874 = vadd.f32 %v553, %v872
        %v875 = vadd.f32 %v554, %v873
        %v876 = vlaneseq
        %v877 = vshrl.u32 %v876, 7
        %v878 = vsub.s32 0, %v877
        %v879 = vrot.slane %v866, %v878
        %v880 = vmul.f32 %v580, %v879
        %v881 = vmul.f32 %v584, %v879
        %v882 = vadd.f32 %v874, %v880
        %v883 = vadd.f32 %v875, %v881
        %v884 = vlaneseq
        %v885 = vshrl.u32 %v884, 7
        %v886 = vsub.s32 0, %v885
        %v887 = vrot.slane %v867, %v886
        %v888 = vmul.f32 %v596, %v887
        %v889 = vmul.f32 %v600, %v887
        %v890 = vadd.f32 %v882, %v888
        %v891 = vadd.f32 %v883, %v889
        %v892 = vpack.c.bf16 %v891, %v890
        %893 = vst [vmem:[#allocation2 + $0x48] sm:$0xff] %v892
        %v894 = vld [vmem:[%s507 + $0x8] sm:$0x1]
        %v895 = vld [vmem:[%s507 + $0x18] sm:$0x1]
        %v896 = vld [vmem:[%s507 + $0x28] sm:$0x1]
        %v897 = vlaneseq
        %v898 = vshrl.u32 %v897, 7
        %v899 = vsub.s32 0, %v898
        %v900 = vrot.slane %v894, %v899
        %v901 = vmul.f32 %v563, %v900
        %v902 = vmul.f32 %v568, %v900
        %v903 = vadd.f32 %v553, %v901
        %v904 = vadd.f32 %v554, %v902
        %v905 = vlaneseq
        %v906 = vshrl.u32 %v905, 7
        %v907 = vsub.s32 0, %v906
        %v908 = vrot.slane %v895, %v907
        %v909 = vmul.f32 %v580, %v908
        %v910 = vmul.f32 %v584, %v908
        %v911 = vadd.f32 %v903, %v909
        %v912 = vadd.f32 %v904, %v910
        %v913 = vlaneseq
        %v914 = vshrl.u32 %v913, 7
        %v915 = vsub.s32 0, %v914
        %v916 = vrot.slane %v896, %v915
        %v917 = vmul.f32 %v596, %v916
        %v918 = vmul.f32 %v600, %v916
        %v919 = vadd.f32 %v911, %v917
        %v920 = vadd.f32 %v912, %v918
        %v921 = vpack.c.bf16 %v920, %v919
        %922 = vst [vmem:[#allocation2 + $0x50] sm:$0xff] %v921
        %v923 = vld [vmem:[%s507 + $0x9] sm:$0x1]
        %v924 = vld [vmem:[%s507 + $0x19] sm:$0x1]
        %v925 = vld [vmem:[%s507 + $0x29] sm:$0x1]
        %v926 = vlaneseq
        %v927 = vshrl.u32 %v926, 7
        %v928 = vsub.s32 0, %v927
        %v929 = vrot.slane %v923, %v928
        %v930 = vmul.f32 %v563, %v929
        %v931 = vmul.f32 %v568, %v929
        %v932 = vadd.f32 %v553, %v930
        %v933 = vadd.f32 %v554, %v931
        %v934 = vlaneseq
        %v935 = vshrl.u32 %v934, 7
        %v936 = vsub.s32 0, %v935
        %v937 = vrot.slane %v924, %v936
        %v938 = vmul.f32 %v580, %v937
        %v939 = vmul.f32 %v584, %v937
        %v940 = vadd.f32 %v932, %v938
        %v941 = vadd.f32 %v933, %v939
        %v942 = vlaneseq
        %v943 = vshrl.u32 %v942, 7
        %v944 = vsub.s32 0, %v943
        %v945 = vrot.slane %v925, %v944
        %v946 = vmul.f32 %v596, %v945
        %v947 = vmul.f32 %v600, %v945
        %v948 = vadd.f32 %v940, %v946
        %v949 = vadd.f32 %v941, %v947
        %v950 = vpack.c.bf16 %v949, %v948
        %951 = vst [vmem:[#allocation2 + $0x58] sm:$0xff] %v950
        %v952 = vld [vmem:[%s507 + $0xa] sm:$0x1]
        %v953 = vld [vmem:[%s507 + $0x1a] sm:$0x1]
        %v954 = vld [vmem:[%s507 + $0x2a] sm:$0x1]
        %v955 = vlaneseq
        %v956 = vshrl.u32 %v955, 7
        %v957 = vsub.s32 0, %v956
        %v958 = vrot.slane %v952, %v957
        %v959 = vmul.f32 %v563, %v958
        %v960 = vmul.f32 %v568, %v958
        %v961 = vadd.f32 %v553, %v959
        %v962 = vadd.f32 %v554, %v960
        %v963 = vlaneseq
        %v964 = vshrl.u32 %v963, 7
        %v965 = vsub.s32 0, %v964
        %v966 = vrot.slane %v953, %v965
        %v967 = vmul.f32 %v580, %v966
        %v968 = vmul.f32 %v584, %v966
        %v969 = vadd.f32 %v961, %v967
        %v970 = vadd.f32 %v962, %v968
        %v971 = vlaneseq
        %v972 = vshrl.u32 %v971, 7
        %v973 = vsub.s32 0, %v972
        %v974 = vrot.slane %v954, %v973
        %v975 = vmul.f32 %v596, %v974
        %v976 = vmul.f32 %v600, %v974
        %v977 = vadd.f32 %v969, %v975
        %v978 = vadd.f32 %v970, %v976
        %v979 = vpack.c.bf16 %v978, %v977
        %980 = vst [vmem:[#allocation2 + $0x60] sm:$0xff] %v979
        %v981 = vld [vmem:[%s507 + $0xb] sm:$0x1]
        %v982 = vld [vmem:[%s507 + $0x1b] sm:$0x1]
        %v983 = vld [vmem:[%s507 + $0x2b] sm:$0x1]
        %v984 = vlaneseq
        %v985 = vshrl.u32 %v984, 7
        %v986 = vsub.s32 0, %v985
        %v987 = vrot.slane %v981, %v986
        %v988 = vmul.f32 %v563, %v987
        %v989 = vmul.f32 %v568, %v987
        %v990 = vadd.f32 %v553, %v988
        %v991 = vadd.f32 %v554, %v989
        %v992 = vlaneseq
        %v993 = vshrl.u32 %v992, 7
        %v994 = vsub.s32 0, %v993
        %v995 = vrot.slane %v982, %v994
        %v996 = vmul.f32 %v580, %v995
        %v997 = vmul.f32 %v584, %v995
        %v998 = vadd.f32 %v990, %v996
        %v999 = vadd.f32 %v991, %v997
        %v1000 = vlaneseq
        %v1001 = vshrl.u32 %v1000, 7
        %v1002 = vsub.s32 0, %v1001
        %v1003 = vrot.slane %v983, %v1002
        %v1004 = vmul.f32 %v596, %v1003
        %v1005 = vmul.f32 %v600, %v1003
        %v1006 = vadd.f32 %v998, %v1004
        %v1007 = vadd.f32 %v999, %v1005
        %v1008 = vpack.c.bf16 %v1007, %v1006
        %1009 = vst [vmem:[#allocation2 + $0x68] sm:$0xff] %v1008
        %v1010 = vld [vmem:[%s507 + $0xc] sm:$0x1]
        %v1011 = vld [vmem:[%s507 + $0x1c] sm:$0x1]
        %v1012 = vld [vmem:[%s507 + $0x2c] sm:$0x1]
        %v1013 = vlaneseq
        %v1014 = vshrl.u32 %v1013, 7
        %v1015 = vsub.s32 0, %v1014
        %v1016 = vrot.slane %v1010, %v1015
        %v1017 = vmul.f32 %v563, %v1016
        %v1018 = vmul.f32 %v568, %v1016
        %v1019 = vadd.f32 %v553, %v1017
        %v1020 = vadd.f32 %v554, %v1018
        %v1021 = vlaneseq
        %v1022 = vshrl.u32 %v1021, 7
        %v1023 = vsub.s32 0, %v1022
        %v1024 = vrot.slane %v1011, %v1023
        %v1025 = vmul.f32 %v580, %v1024
        %v1026 = vmul.f32 %v584, %v1024
        %v1027 = vadd.f32 %v1019, %v1025
        %v1028 = vadd.f32 %v1020, %v1026
        %v1029 = vlaneseq
        %v1030 = vshrl.u32 %v1029, 7
        %v1031 = vsub.s32 0, %v1030
        %v1032 = vrot.slane %v1012, %v1031
        %v1033 = vmul.f32 %v596, %v1032
        %v1034 = vmul.f32 %v600, %v1032
        %v1035 = vadd.f32 %v1027, %v1033
        %v1036 = vadd.f32 %v1028, %v1034
        %v1037 = vpack.c.bf16 %v1036, %v1035
        %1038 = vst [vmem:[#allocation2 + $0x70] sm:$0xff] %v1037
        %v1039 = vld [vmem:[%s507 + $0xd] sm:$0x1]
        %v1040 = vld [vmem:[%s507 + $0x1d] sm:$0x1]
        %v1041 = vld [vmem:[%s507 + $0x2d] sm:$0x1]
        %v1042 = vlaneseq
        %v1043 = vshrl.u32 %v1042, 7
        %v1044 = vsub.s32 0, %v1043
        %v1045 = vrot.slane %v1039, %v1044
        %v1046 = vmul.f32 %v563, %v1045
        %v1047 = vmul.f32 %v568, %v1045
        %v1048 = vadd.f32 %v553, %v1046
        %v1049 = vadd.f32 %v554, %v1047
        %v1050 = vlaneseq
        %v1051 = vshrl.u32 %v1050, 7
        %v1052 = vsub.s32 0, %v1051
        %v1053 = vrot.slane %v1040, %v1052
        %v1054 = vmul.f32 %v580, %v1053
        %v1055 = vmul.f32 %v584, %v1053
        %v1056 = vadd.f32 %v1048, %v1054
        %v1057 = vadd.f32 %v1049, %v1055
        %v1058 = vlaneseq
        %v1059 = vshrl.u32 %v1058, 7
        %v1060 = vsub.s32 0, %v1059
        %v1061 = vrot.slane %v1041, %v1060
        %v1062 = vmul.f32 %v596, %v1061
        %v1063 = vmul.f32 %v600, %v1061
        %v1064 = vadd.f32 %v1056, %v1062
        %v1065 = vadd.f32 %v1057, %v1063
        %v1066 = vpack.c.bf16 %v1065, %v1064
        %1067 = vst [vmem:[#allocation2 + $0x78] sm:$0xff] %v1066
        %v1068 = vld [vmem:[%s507 + $0xe] sm:$0x1]
        %v1069 = vld [vmem:[%s507 + $0x1e] sm:$0x1]
        %v1070 = vld [vmem:[%s507 + $0x2e] sm:$0x1]
        %v1071 = vlaneseq
        %v1072 = vshrl.u32 %v1071, 7
        %v1073 = vsub.s32 0, %v1072
        %v1074 = vrot.slane %v1068, %v1073
        %v1075 = vmul.f32 %v563, %v1074
        %v1076 = vmul.f32 %v568, %v1074
        %v1077 = vadd.f32 %v553, %v1075
        %v1078 = vadd.f32 %v554, %v1076
        %v1079 = vlaneseq
        %v1080 = vshrl.u32 %v1079, 7
        %v1081 = vsub.s32 0, %v1080
        %v1082 = vrot.slane %v1069, %v1081
        %v1083 = vmul.f32 %v580, %v1082
        %v1084 = vmul.f32 %v584, %v1082
        %v1085 = vadd.f32 %v1077, %v1083
        %v1086 = vadd.f32 %v1078, %v1084
        %v1087 = vlaneseq
        %v1088 = vshrl.u32 %v1087, 7
        %v1089 = vsub.s32 0, %v1088
        %v1090 = vrot.slane %v1070, %v1089
        %v1091 = vmul.f32 %v596, %v1090
        %v1092 = vmul.f32 %v600, %v1090
        %v1093 = vadd.f32 %v1085, %v1091
        %v1094 = vadd.f32 %v1086, %v1092
        %v1095 = vpack.c.bf16 %v1094, %v1093
        %1096 = vst [vmem:[#allocation2 + $0x80] sm:$0xff] %v1095
        %v1097 = vld [vmem:[%s507 + $0xf] sm:$0x1]
        %v1098 = vld [vmem:[%s507 + $0x1f] sm:$0x1]
        %v1099 = vld [vmem:[%s507 + $0x2f] sm:$0x1]
        %v1100 = vlaneseq
        %v1101 = vshrl.u32 %v1100, 7
        %v1102 = vsub.s32 0, %v1101
        %v1103 = vrot.slane %v1097, %v1102
        %v1104 = vmul.f32 %v563, %v1103
        %v1105 = vmul.f32 %v568, %v1103
        %v1106 = vadd.f32 %v553, %v1104
        %v1107 = vadd.f32 %v554, %v1105
        %v1108 = vlaneseq
        %v1109 = vshrl.u32 %v1108, 7
        %v1110 = vsub.s32 0, %v1109
        %v1111 = vrot.slane %v1098, %v1110
        %v1112 = vmul.f32 %v580, %v1111
        %v1113 = vmul.f32 %v584, %v1111
        %v1114 = vadd.f32 %v1106, %v1112
        %v1115 = vadd.f32 %v1107, %v1113
        %v1116 = vlaneseq
        %v1117 = vshrl.u32 %v1116, 7
        %v1118 = vsub.s32 0, %v1117
        %v1119 = vrot.slane %v1099, %v1118
        %v1120 = vmul.f32 %v596, %v1119
        %v1121 = vmul.f32 %v600, %v1119
        %v1122 = vadd.f32 %v1114, %v1120
        %v1123 = vadd.f32 %v1115, %v1121
        %v1124 = vpack.c.bf16 %v1123, %v1122
        %1125 = vst [vmem:[#allocation2 + $0x88] sm:$0xff] %v1124
        %v1126 = vld [vmem:[%s438] sm:$0x1]
        %v1127 = vld [vmem:[%s438 + $0x8] sm:$0x1]
        %v1128 = vld [vmem:[%s438 + $0x10] sm:$0x1]
        %v1129 = vlaneseq
        %v1130 = vshrl.u32 %v1129, 7
        %v1131 = vsub.s32 0, %v1130
        %v1132 = vrot.slane %v1126, %v1131
        %v1133 = vmul.f32 %v563, %v1132
        %v1134 = vmul.f32 %v568, %v1132
        %v1135 = vadd.f32 %v553, %v1133
        %v1136 = vadd.f32 %v554, %v1134
        %v1137 = vlaneseq
        %v1138 = vshrl.u32 %v1137, 7
        %v1139 = vsub.s32 0, %v1138
        %v1140 = vrot.slane %v1127, %v1139
        %v1141 = vmul.f32 %v580, %v1140
        %v1142 = vmul.f32 %v584, %v1140
        %v1143 = vadd.f32 %v1135, %v1141
        %v1144 = vadd.f32 %v1136, %v1142
        %v1145 = vlaneseq
        %v1146 = vshrl.u32 %v1145, 7
        %v1147 = vsub.s32 0, %v1146
        %v1148 = vrot.slane %v1128, %v1147
        %v1149 = vmul.f32 %v596, %v1148
        %v1150 = vmul.f32 %v600, %v1148
        %v1151 = vadd.f32 %v1143, %v1149
        %v1152 = vadd.f32 %v1144, %v1150
        %s1153 = sadd.s32 %s610, 16
        %p1154 = scmp.ge.s32.totalorder %s1153, 0
        %p1155 = scmp.lt.s32.totalorder %s1153, 16
        %p1156 = pnand %p1154, %p1155
        %p1157 = pneg %p1156
        %s1158 = scalar_select %p1157, 1, 0
        %s1159 = scvt.s32.f32 %s1158
        %v1160 = vstv %s1159
        %v1161 = vmul.f32 %v1151, %v1160
        %v1162 = vmul.f32 %v1152, %v1160
        %v1163 = vpack.c.bf16 %v1162, %v1161
        %1164 = vst [vmem:[#allocation2 + $0x90] sm:$0xff] %v1163
        %v1165 = vld [vmem:[%s438 + $0x1] sm:$0x1]
        %v1166 = vld [vmem:[%s438 + $0x9] sm:$0x1]
        %v1167 = vld [vmem:[%s438 + $0x11] sm:$0x1]
        %v1168 = vlaneseq
        %v1169 = vshrl.u32 %v1168, 7
        %v1170 = vsub.s32 0, %v1169
        %v1171 = vrot.slane %v1165, %v1170
        %v1172 = vmul.f32 %v563, %v1171
        %v1173 = vmul.f32 %v568, %v1171
        %v1174 = vadd.f32 %v553, %v1172
        %v1175 = vadd.f32 %v554, %v1173
        %v1176 = vlaneseq
        %v1177 = vshrl.u32 %v1176, 7
        %v1178 = vsub.s32 0, %v1177
        %v1179 = vrot.slane %v1166, %v1178
        %v1180 = vmul.f32 %v580, %v1179
        %v1181 = vmul.f32 %v584, %v1179
        %v1182 = vadd.f32 %v1174, %v1180
        %v1183 = vadd.f32 %v1175, %v1181
        %v1184 = vlaneseq
        %v1185 = vshrl.u32 %v1184, 7
        %v1186 = vsub.s32 0, %v1185
        %v1187 = vrot.slane %v1167, %v1186
        %v1188 = vmul.f32 %v596, %v1187
        %v1189 = vmul.f32 %v600, %v1187
        %v1190 = vadd.f32 %v1182, %v1188
        %v1191 = vadd.f32 %v1183, %v1189
        %s1192 = sadd.s32 %s610, 17
        %p1193 = scmp.ge.s32.totalorder %s1192, 0
        %p1194 = scmp.lt.s32.totalorder %s1192, 16
        %p1195 = pnand %p1193, %p1194
        %p1196 = pneg %p1195
        %s1197 = scalar_select %p1196, 1, 0
        %s1198 = scvt.s32.f32 %s1197
        %v1199 = vstv %s1198
        %v1200 = vmul.f32 %v1190, %v1199
        %v1201 = vmul.f32 %v1191, %v1199
        %v1202 = vpack.c.bf16 %v1201, %v1200
        %1203 = vst [vmem:[#allocation2 + $0x98] sm:$0xff] %v1202
        %1204 = vst [vmem:[#allocation2 + $0xa0] sm:$0xff] 0
        %v1205 = vld [vmem:[#allocation2] sm:$0xff]
        %v1206 = vld [vmem:[#allocation2 + $0x8] sm:$0xff]
        %v1207 = vld [vmem:[#allocation2 + $0x10] sm:$0xff]
        %v1208 = vld [vmem:[#allocation2 + $0x18] sm:$0xff]
        %v1209 = vld [vmem:[#allocation2 + $0x20] sm:$0xff]
        %v1210 = vld [vmem:[#allocation2 + $0x28] sm:$0xff]
        %v1211 = vld [vmem:[#allocation2 + $0x30] sm:$0xff]
        %v1212 = vld [vmem:[#allocation2 + $0x38] sm:$0xff]
        %v1213 = vld [vmem:[#allocation2 + $0x40] sm:$0xff]
        %v1214 = vld [vmem:[#allocation2 + $0x48] sm:$0xff]
        %v1215 = vld [vmem:[#allocation2 + $0x50] sm:$0xff]
        %v1216 = vld [vmem:[#allocation2 + $0x58] sm:$0xff]
        %v1217 = vld [vmem:[#allocation2 + $0x60] sm:$0xff]
        %v1218 = vld [vmem:[#allocation2 + $0x68] sm:$0xff]
        %v1219 = vld [vmem:[#allocation2 + $0x70] sm:$0xff]
        %v1220 = vld [vmem:[#allocation2 + $0x78] sm:$0xff]
        %1221 = vst [vmem:[#allocation3] sm:$0xff] %v1205
        %1222 = vst [vmem:[#allocation3 + $0x8] sm:$0xff] %v1206
        %1223 = vst [vmem:[#allocation3 + $0x10] sm:$0xff] %v1207
        %1224 = vst [vmem:[#allocation3 + $0x18] sm:$0xff] %v1208
        %1225 = vst [vmem:[#allocation3 + $0x20] sm:$0xff] %v1209
        %1226 = vst [vmem:[#allocation3 + $0x28] sm:$0xff] %v1210
        %1227 = vst [vmem:[#allocation3 + $0x30] sm:$0xff] %v1211
        %1228 = vst [vmem:[#allocation3 + $0x38] sm:$0xff] %v1212
        %1229 = vst [vmem:[#allocation3 + $0x40] sm:$0xff] %v1213
        %1230 = vst [vmem:[#allocation3 + $0x48] sm:$0xff] %v1214
        %1231 = vst [vmem:[#allocation3 + $0x50] sm:$0xff] %v1215
        %1232 = vst [vmem:[#allocation3 + $0x58] sm:$0xff] %v1216
        %1233 = vst [vmem:[#allocation3 + $0x60] sm:$0xff] %v1217
        %1234 = vst [vmem:[#allocation3 + $0x68] sm:$0xff] %v1218
        %1235 = vst [vmem:[#allocation3 + $0x70] sm:$0xff] %v1219
        %1236 = vst [vmem:[#allocation3 + $0x78] sm:$0xff] %v1220
        %v1237 = vld [vmem:[#allocation2] sm:$0xff]
        %v1238 = vld [vmem:[#allocation2 + $0x8] sm:$0xff]
        %v1239 = vld [vmem:[#allocation2 + $0x10] sm:$0xff]
        %v1240 = vld [vmem:[#allocation2 + $0x18] sm:$0xff]
        %v1241 = vld [vmem:[#allocation2 + $0x20] sm:$0xff]
        %v1242 = vld [vmem:[#allocation2 + $0x28] sm:$0xff]
        %v1243 = vld [vmem:[#allocation2 + $0x30] sm:$0xff]
        %v1244 = vld [vmem:[#allocation2 + $0x38] sm:$0xff]
        %v1245 = vld [vmem:[#allocation2 + $0x40] sm:$0xff]
        %v1246 = vld [vmem:[#allocation2 + $0x48] sm:$0xff]
        %v1247 = vld [vmem:[#allocation2 + $0x50] sm:$0xff]
        %v1248 = vld [vmem:[#allocation2 + $0x58] sm:$0xff]
        %v1249 = vld [vmem:[#allocation2 + $0x60] sm:$0xff]
        %v1250 = vld [vmem:[#allocation2 + $0x68] sm:$0xff]
        %v1251 = vld [vmem:[#allocation2 + $0x70] sm:$0xff]
        %v1252 = vld [vmem:[#allocation2 + $0x78] sm:$0xff]
        %v1253 = vld [vmem:[#allocation2 + $0x80] sm:$0xff]
        %1271 = vrot.lane.b32.xlu0 %v1237, 127
        %v1272 = vpop.permute.xlu0 %1271
        %1273 = vrot.lane.b32.xlu0 %v1238, 127
        %v1274 = vpop.permute.xlu0 %1273
        %1275 = vrot.lane.b32.xlu0 %v1239, 127
        %v1276 = vpop.permute.xlu0 %1275
        %1277 = vrot.lane.b32.xlu0 %v1240, 127
        %v1278 = vpop.permute.xlu0 %1277
        %1279 = vrot.lane.b32.xlu0 %v1241, 127
        %v1280 = vpop.permute.xlu0 %1279
        %1281 = vrot.lane.b32.xlu0 %v1242, 127
        %v1282 = vpop.permute.xlu0 %1281
        %1283 = vrot.lane.b32.xlu0 %v1243, 127
        %v1284 = vpop.permute.xlu0 %1283
        %1285 = vrot.lane.b32.xlu0 %v1244, 127
        %v1286 = vpop.permute.xlu0 %1285
        %1287 = vrot.lane.b32.xlu0 %v1245, 127
        %v1288 = vpop.permute.xlu0 %1287
        %1289 = vrot.lane.b32.xlu0 %v1246, 127
        %v1290 = vpop.permute.xlu0 %1289
        %1291 = vrot.lane.b32.xlu0 %v1247, 127
        %v1292 = vpop.permute.xlu0 %1291
        %1293 = vrot.lane.b32.xlu0 %v1248, 127
        %v1294 = vpop.permute.xlu0 %1293
        %1295 = vrot.lane.b32.xlu0 %v1249, 127
        %v1296 = vpop.permute.xlu0 %1295
        %1297 = vrot.lane.b32.xlu0 %v1250, 127
        %v1298 = vpop.permute.xlu0 %1297
        %1299 = vrot.lane.b32.xlu0 %v1251, 127
        %v1300 = vpop.permute.xlu0 %1299
        %1301 = vrot.lane.b32.xlu0 %v1252, 127
        %v1302 = vpop.permute.xlu0 %1301
        %1303 = vrot.lane.b32.xlu0 %v1253, 127
        %v1304 = vpop.permute.xlu0 %1303
        %vm1305 = vcmask 1039360
        %v1306 = vsel %vm1305, %v1272, %v1274
        %v1307 = vsel %vm1305, %v1274, %v1276
        %v1308 = vsel %vm1305, %v1276, %v1278
        %v1309 = vsel %vm1305, %v1278, %v1280
        %v1310 = vsel %vm1305, %v1280, %v1282
        %v1311 = vsel %vm1305, %v1282, %v1284
        %v1312 = vsel %vm1305, %v1284, %v1286
        %v1313 = vsel %vm1305, %v1286, %v1288
        %v1314 = vsel %vm1305, %v1288, %v1290
        %v1315 = vsel %vm1305, %v1290, %v1292
        %v1316 = vsel %vm1305, %v1292, %v1294
        %v1317 = vsel %vm1305, %v1294, %v1296
        %v1318 = vsel %vm1305, %v1296, %v1298
        %v1319 = vsel %vm1305, %v1298, %v1300
        %v1320 = vsel %vm1305, %v1300, %v1302
        %v1321 = vsel %vm1305, %v1302, %v1304
        %1338 = vst [vmem:[#allocation3 + $0x80] sm:$0xff] %v1306
        %1339 = vst [vmem:[#allocation3 + $0x88] sm:$0xff] %v1307
        %1340 = vst [vmem:[#allocation3 + $0x90] sm:$0xff] %v1308
        %1341 = vst [vmem:[#allocation3 + $0x98] sm:$0xff] %v1309
        %1342 = vst [vmem:[#allocation3 + $0xa0] sm:$0xff] %v1310
        %1343 = vst [vmem:[#allocation3 + $0xa8] sm:$0xff] %v1311
        %1344 = vst [vmem:[#allocation3 + $0xb0] sm:$0xff] %v1312
        %1345 = vst [vmem:[#allocation3 + $0xb8] sm:$0xff] %v1313
        %1346 = vst [vmem:[#allocation3 + $0xc0] sm:$0xff] %v1314
        %1347 = vst [vmem:[#allocation3 + $0xc8] sm:$0xff] %v1315
        %1348 = vst [vmem:[#allocation3 + $0xd0] sm:$0xff] %v1316
        %1349 = vst [vmem:[#allocation3 + $0xd8] sm:$0xff] %v1317
        %1350 = vst [vmem:[#allocation3 + $0xe0] sm:$0xff] %v1318
        %1351 = vst [vmem:[#allocation3 + $0xe8] sm:$0xff] %v1319
        %1352 = vst [vmem:[#allocation3 + $0xf0] sm:$0xff] %v1320
        %1353 = vst [vmem:[#allocation3 + $0xf8] sm:$0xff] %v1321
        %v1354 = vld [vmem:[#allocation2] sm:$0xff]
        %v1355 = vld [vmem:[#allocation2 + $0x8] sm:$0xff]
        %v1356 = vld [vmem:[#allocation2 + $0x10] sm:$0xff]
        %v1357 = vld [vmem:[#allocation2 + $0x18] sm:$0xff]
        %v1358 = vld [vmem:[#allocation2 + $0x20] sm:$0xff]
        %v1359 = vld [vmem:[#allocation2 + $0x28] sm:$0xff]
        %v1360 = vld [vmem:[#allocation2 + $0x30] sm:$0xff]
        %v1361 = vld [vmem:[#allocation2 + $0x38] sm:$0xff]
        %v1362 = vld [vmem:[#allocation2 + $0x40] sm:$0xff]
        %v1363 = vld [vmem:[#allocation2 + $0x48] sm:$0xff]
        %v1364 = vld [vmem:[#allocation2 + $0x50] sm:$0xff]
        %v1365 = vld [vmem:[#allocation2 + $0x58] sm:$0xff]
        %v1366 = vld [vmem:[#allocation2 + $0x60] sm:$0xff]
        %v1367 = vld [vmem:[#allocation2 + $0x68] sm:$0xff]
        %v1368 = vld [vmem:[#allocation2 + $0x70] sm:$0xff]
        %v1369 = vld [vmem:[#allocation2 + $0x78] sm:$0xff]
        %v1370 = vld [vmem:[#allocation2 + $0x80] sm:$0xff]
        %1388 = vrot.lane.b32.xlu0 %v1354, 126
        %v1389 = vpop.permute.xlu0 %1388
        %1390 = vrot.lane.b32.xlu0 %v1355, 126
        %v1391 = vpop.permute.xlu0 %1390
        %1392 = vrot.lane.b32.xlu0 %v1356, 126
        %v1393 = vpop.permute.xlu0 %1392
        %1394 = vrot.lane.b32.xlu0 %v1357, 126
        %v1395 = vpop.permute.xlu0 %1394
        %1396 = vrot.lane.b32.xlu0 %v1358, 126
        %v1397 = vpop.permute.xlu0 %1396
        %1398 = vrot.lane.b32.xlu0 %v1359, 126
        %v1399 = vpop.permute.xlu0 %1398
        %1400 = vrot.lane.b32.xlu0 %v1360, 126
        %v1401 = vpop.permute.xlu0 %1400
        %1402 = vrot.lane.b32.xlu0 %v1361, 126
        %v1403 = vpop.permute.xlu0 %1402
        %1404 = vrot.lane.b32.xlu0 %v1362, 126
        %v1405 = vpop.permute.xlu0 %1404
        %1406 = vrot.lane.b32.xlu0 %v1363, 126
        %v1407 = vpop.permute.xlu0 %1406
        %1408 = vrot.lane.b32.xlu0 %v1364, 126
        %v1409 = vpop.permute.xlu0 %1408
        %1410 = vrot.lane.b32.xlu0 %v1365, 126
        %v1411 = vpop.permute.xlu0 %1410
        %1412 = vrot.lane.b32.xlu0 %v1366, 126
        %v1413 = vpop.permute.xlu0 %1412
        %1414 = vrot.lane.b32.xlu0 %v1367, 126
        %v1415 = vpop.permute.xlu0 %1414
        %1416 = vrot.lane.b32.xlu0 %v1368, 126
        %v1417 = vpop.permute.xlu0 %1416
        %1418 = vrot.lane.b32.xlu0 %v1369, 126
        %v1419 = vpop.permute.xlu0 %1418
        %1420 = vrot.lane.b32.xlu0 %v1370, 126
        %v1421 = vpop.permute.xlu0 %1420
        %vm1422 = vcmask 1031168
        %v1423 = vsel %vm1422, %v1389, %v1391
        %v1424 = vsel %vm1422, %v1391, %v1393
        %v1425 = vsel %vm1422, %v1393, %v1395
        %v1426 = vsel %vm1422, %v1395, %v1397
        %v1427 = vsel %vm1422, %v1397, %v1399
        %v1428 = vsel %vm1422, %v1399, %v1401
        %v1429 = vsel %vm1422, %v1401, %v1403
        %v1430 = vsel %vm1422, %v1403, %v1405
        %v1431 = vsel %vm1422, %v1405, %v1407
        %v1432 = vsel %vm1422, %v1407, %v1409
        %v1433 = vsel %vm1422, %v1409, %v1411
        %v1434 = vsel %vm1422, %v1411, %v1413
        %v1435 = vsel %vm1422, %v1413, %v1415
        %v1436 = vsel %vm1422, %v1415, %v1417
        %v1437 = vsel %vm1422, %v1417, %v1419
        %v1438 = vsel %vm1422, %v1419, %v1421
        %1455 = vst [vmem:[#allocation3 + $0x100] sm:$0xff] %v1423
        %1456 = vst [vmem:[#allocation3 + $0x108] sm:$0xff] %v1424
        %1457 = vst [vmem:[#allocation3 + $0x110] sm:$0xff] %v1425
        %1458 = vst [vmem:[#allocation3 + $0x118] sm:$0xff] %v1426
        %1459 = vst [vmem:[#allocation3 + $0x120] sm:$0xff] %v1427
        %1460 = vst [vmem:[#allocation3 + $0x128] sm:$0xff] %v1428
        %1461 = vst [vmem:[#allocation3 + $0x130] sm:$0xff] %v1429
        %1462 = vst [vmem:[#allocation3 + $0x138] sm:$0xff] %v1430
        %1463 = vst [vmem:[#allocation3 + $0x140] sm:$0xff] %v1431
        %1464 = vst [vmem:[#allocation3 + $0x148] sm:$0xff] %v1432
        %1465 = vst [vmem:[#allocation3 + $0x150] sm:$0xff] %v1433
        %1466 = vst [vmem:[#allocation3 + $0x158] sm:$0xff] %v1434
        %1467 = vst [vmem:[#allocation3 + $0x160] sm:$0xff] %v1435
        %1468 = vst [vmem:[#allocation3 + $0x168] sm:$0xff] %v1436
        %1469 = vst [vmem:[#allocation3 + $0x170] sm:$0xff] %v1437
        %1470 = vst [vmem:[#allocation3 + $0x178] sm:$0xff] %v1438
        %v1471 = vld [vmem:[#allocation2] sm:$0xff]
        %v1472 = vld [vmem:[#allocation2 + $0x8] sm:$0xff]
        %v1473 = vld [vmem:[#allocation2 + $0x10] sm:$0xff]
        %v1474 = vld [vmem:[#allocation2 + $0x18] sm:$0xff]
        %v1475 = vld [vmem:[#allocation2 + $0x20] sm:$0xff]
        %v1476 = vld [vmem:[#allocation2 + $0x28] sm:$0xff]
        %v1477 = vld [vmem:[#allocation2 + $0x30] sm:$0xff]
        %v1478 = vld [vmem:[#allocation2 + $0x38] sm:$0xff]
        %v1479 = vld [vmem:[#allocation2 + $0x40] sm:$0xff]
        %v1480 = vld [vmem:[#allocation2 + $0x48] sm:$0xff]
        %v1481 = vld [vmem:[#allocation2 + $0x50] sm:$0xff]
        %v1482 = vld [vmem:[#allocation2 + $0x58] sm:$0xff]
        %v1483 = vld [vmem:[#allocation2 + $0x60] sm:$0xff]
        %v1484 = vld [vmem:[#allocation2 + $0x68] sm:$0xff]
        %v1485 = vld [vmem:[#allocation2 + $0x70] sm:$0xff]
        %v1486 = vld [vmem:[#allocation2 + $0x78] sm:$0xff]
        %v1487 = vld [vmem:[#allocation2 + $0x80] sm:$0xff]
        %1505 = vrot.lane.b32.xlu0 %v1471, 125
        %v1506 = vpop.permute.xlu0 %1505
        %1507 = vrot.lane.b32.xlu0 %v1472, 125
        %v1508 = vpop.permute.xlu0 %1507
        %1509 = vrot.lane.b32.xlu0 %v1473, 125
        %v1510 = vpop.permute.xlu0 %1509
        %1511 = vrot.lane.b32.xlu0 %v1474, 125
        %v1512 = vpop.permute.xlu0 %1511
        %1513 = vrot.lane.b32.xlu0 %v1475, 125
        %v1514 = vpop.permute.xlu0 %1513
        %1515 = vrot.lane.b32.xlu0 %v1476, 125
        %v1516 = vpop.permute.xlu0 %1515
        %1517 = vrot.lane.b32.xlu0 %v1477, 125
        %v1518 = vpop.permute.xlu0 %1517
        %1519 = vrot.lane.b32.xlu0 %v1478, 125
        %v1520 = vpop.permute.xlu0 %1519
        %1521 = vrot.lane.b32.xlu0 %v1479, 125
        %v1522 = vpop.permute.xlu0 %1521
        %1523 = vrot.lane.b32.xlu0 %v1480, 125
        %v1524 = vpop.permute.xlu0 %1523
        %1525 = vrot.lane.b32.xlu0 %v1481, 125
        %v1526 = vpop.permute.xlu0 %1525
        %1527 = vrot.lane.b32.xlu0 %v1482, 125
        %v1528 = vpop.permute.xlu0 %1527
        %1529 = vrot.lane.b32.xlu0 %v1483, 125
        %v1530 = vpop.permute.xlu0 %1529
        %1531 = vrot.lane.b32.xlu0 %v1484, 125
        %v1532 = vpop.permute.xlu0 %1531
        %1533 = vrot.lane.b32.xlu0 %v1485, 125
        %v1534 = vpop.permute.xlu0 %1533
        %1535 = vrot.lane.b32.xlu0 %v1486, 125
        %v1536 = vpop.permute.xlu0 %1535
        %1537 = vrot.lane.b32.xlu0 %v1487, 125
        %v1538 = vpop.permute.xlu0 %1537
        %vm1539 = vcmask 1022976
        %v1540 = vsel %vm1539, %v1506, %v1508
        %v1541 = vsel %vm1539, %v1508, %v1510
        %v1542 = vsel %vm1539, %v1510, %v1512
        %v1543 = vsel %vm1539, %v1512, %v1514
        %v1544 = vsel %vm1539, %v1514, %v1516
        %v1545 = vsel %vm1539, %v1516, %v1518
        %v1546 = vsel %vm1539, %v1518, %v1520
        %v1547 = vsel %vm1539, %v1520, %v1522
        %v1548 = vsel %vm1539, %v1522, %v1524
        %v1549 = vsel %vm1539, %v1524, %v1526
        %v1550 = vsel %vm1539, %v1526, %v1528
        %v1551 = vsel %vm1539, %v1528, %v1530
        %v1552 = vsel %vm1539, %v1530, %v1532
        %v1553 = vsel %vm1539, %v1532, %v1534
        %v1554 = vsel %vm1539, %v1534, %v1536
        %v1555 = vsel %vm1539, %v1536, %v1538
        %1572 = vst [vmem:[#allocation3 + $0x180] sm:$0xff] %v1540
        %1573 = vst [vmem:[#allocation3 + $0x188] sm:$0xff] %v1541
        %1574 = vst [vmem:[#allocation3 + $0x190] sm:$0xff] %v1542
        %1575 = vst [vmem:[#allocation3 + $0x198] sm:$0xff] %v1543
        %1576 = vst [vmem:[#allocation3 + $0x1a0] sm:$0xff] %v1544
        %1577 = vst [vmem:[#allocation3 + $0x1a8] sm:$0xff] %v1545
        %1578 = vst [vmem:[#allocation3 + $0x1b0] sm:$0xff] %v1546
        %1579 = vst [vmem:[#allocation3 + $0x1b8] sm:$0xff] %v1547
        %1580 = vst [vmem:[#allocation3 + $0x1c0] sm:$0xff] %v1548
        %1581 = vst [vmem:[#allocation3 + $0x1c8] sm:$0xff] %v1549
        %1582 = vst [vmem:[#allocation3 + $0x1d0] sm:$0xff] %v1550
        %1583 = vst [vmem:[#allocation3 + $0x1d8] sm:$0xff] %v1551
        %1584 = vst [vmem:[#allocation3 + $0x1e0] sm:$0xff] %v1552
        %1585 = vst [vmem:[#allocation3 + $0x1e8] sm:$0xff] %v1553
        %1586 = vst [vmem:[#allocation3 + $0x1f0] sm:$0xff] %v1554
        %1587 = vst [vmem:[#allocation3 + $0x1f8] sm:$0xff] %v1555
        %v1588 = vld [vmem:[#allocation2] sm:$0xff]
        %v1589 = vld [vmem:[#allocation2 + $0x8] sm:$0xff]
        %v1590 = vld [vmem:[#allocation2 + $0x10] sm:$0xff]
        %v1591 = vld [vmem:[#allocation2 + $0x18] sm:$0xff]
        %v1592 = vld [vmem:[#allocation2 + $0x20] sm:$0xff]
        %v1593 = vld [vmem:[#allocation2 + $0x28] sm:$0xff]
        %v1594 = vld [vmem:[#allocation2 + $0x30] sm:$0xff]
        %v1595 = vld [vmem:[#allocation2 + $0x38] sm:$0xff]
        %v1596 = vld [vmem:[#allocation2 + $0x40] sm:$0xff]
        %v1597 = vld [vmem:[#allocation2 + $0x48] sm:$0xff]
        %v1598 = vld [vmem:[#allocation2 + $0x50] sm:$0xff]
        %v1599 = vld [vmem:[#allocation2 + $0x58] sm:$0xff]
        %v1600 = vld [vmem:[#allocation2 + $0x60] sm:$0xff]
        %v1601 = vld [vmem:[#allocation2 + $0x68] sm:$0xff]
        %v1602 = vld [vmem:[#allocation2 + $0x70] sm:$0xff]
        %v1603 = vld [vmem:[#allocation2 + $0x78] sm:$0xff]
        %v1604 = vld [vmem:[#allocation2 + $0x80] sm:$0xff]
        %1622 = vrot.lane.b32.xlu0 %v1588, 124
        %v1623 = vpop.permute.xlu0 %1622
        %1624 = vrot.lane.b32.xlu0 %v1589, 124
        %v1625 = vpop.permute.xlu0 %1624
        %1626 = vrot.lane.b32.xlu0 %v1590, 124
        %v1627 = vpop.permute.xlu0 %1626
        %1628 = vrot.lane.b32.xlu0 %v1591, 124
        %v1629 = vpop.permute.xlu0 %1628
        %1630 = vrot.lane.b32.xlu0 %v1592, 124
        %v1631 = vpop.permute.xlu0 %1630
        %1632 = vrot.lane.b32.xlu0 %v1593, 124
        %v1633 = vpop.permute.xlu0 %1632
        %1634 = vrot.lane.b32.xlu0 %v1594, 124
        %v1635 = vpop.permute.xlu0 %1634
        %1636 = vrot.lane.b32.xlu0 %v1595, 124
        %v1637 = vpop.permute.xlu0 %1636
        %1638 = vrot.lane.b32.xlu0 %v1596, 124
        %v1639 = vpop.permute.xlu0 %1638
        %1640 = vrot.lane.b32.xlu0 %v1597, 124
        %v1641 = vpop.permute.xlu0 %1640
        %1642 = vrot.lane.b32.xlu0 %v1598, 124
        %v1643 = vpop.permute.xlu0 %1642
        %1644 = vrot.lane.b32.xlu0 %v1599, 124
        %v1645 = vpop.permute.xlu0 %1644
        %1646 = vrot.lane.b32.xlu0 %v1600, 124
        %v1647 = vpop.permute.xlu0 %1646
        %1648 = vrot.lane.b32.xlu0 %v1601, 124
        %v1649 = vpop.permute.xlu0 %1648
        %1650 = vrot.lane.b32.xlu0 %v1602, 124
        %v1651 = vpop.permute.xlu0 %1650
        %1652 = vrot.lane.b32.xlu0 %v1603, 124
        %v1653 = vpop.permute.xlu0 %1652
        %1654 = vrot.lane.b32.xlu0 %v1604, 124
        %v1655 = vpop.permute.xlu0 %1654
        %vm1656 = vcmask 1014784
        %v1657 = vsel %vm1656, %v1623, %v1625
        %v1658 = vsel %vm1656, %v1625, %v1627
        %v1659 = vsel %vm1656, %v1627, %v1629
        %v1660 = vsel %vm1656, %v1629, %v1631
        %v1661 = vsel %vm1656, %v1631, %v1633
        %v1662 = vsel %vm1656, %v1633, %v1635
        %v1663 = vsel %vm1656, %v1635, %v1637
        %v1664 = vsel %vm1656, %v1637, %v1639
        %v1665 = vsel %vm1656, %v1639, %v1641
        %v1666 = vsel %vm1656, %v1641, %v1643
        %v1667 = vsel %vm1656, %v1643, %v1645
        %v1668 = vsel %vm1656, %v1645, %v1647
        %v1669 = vsel %vm1656, %v1647, %v1649
        %v1670 = vsel %vm1656, %v1649, %v1651
        %v1671 = vsel %vm1656, %v1651, %v1653
        %v1672 = vsel %vm1656, %v1653, %v1655
        %1689 = vst [vmem:[#allocation3 + $0x200] sm:$0xff] %v1657
        %1690 = vst [vmem:[#allocation3 + $0x208] sm:$0xff] %v1658
        %1691 = vst [vmem:[#allocation3 + $0x210] sm:$0xff] %v1659
        %1692 = vst [vmem:[#allocation3 + $0x218] sm:$0xff] %v1660
        %1693 = vst [vmem:[#allocation3 + $0x220] sm:$0xff] %v1661
        %1694 = vst [vmem:[#allocation3 + $0x228] sm:$0xff] %v1662
        %1695 = vst [vmem:[#allocation3 + $0x230] sm:$0xff] %v1663
        %1696 = vst [vmem:[#allocation3 + $0x238] sm:$0xff] %v1664
        %1697 = vst [vmem:[#allocation3 + $0x240] sm:$0xff] %v1665
        %1698 = vst [vmem:[#allocation3 + $0x248] sm:$0xff] %v1666
        %1699 = vst [vmem:[#allocation3 + $0x250] sm:$0xff] %v1667
        %1700 = vst [vmem:[#allocation3 + $0x258] sm:$0xff] %v1668
        %1701 = vst [vmem:[#allocation3 + $0x260] sm:$0xff] %v1669
        %1702 = vst [vmem:[#allocation3 + $0x268] sm:$0xff] %v1670
        %1703 = vst [vmem:[#allocation3 + $0x270] sm:$0xff] %v1671
        %1704 = vst [vmem:[#allocation3 + $0x278] sm:$0xff] %v1672
        %v1705 = vld [vmem:[#allocation2 + $0x8] sm:$0xff]
        %v1706 = vld [vmem:[#allocation2 + $0x10] sm:$0xff]
        %v1707 = vld [vmem:[#allocation2 + $0x18] sm:$0xff]
        %v1708 = vld [vmem:[#allocation2 + $0x20] sm:$0xff]
        %v1709 = vld [vmem:[#allocation2 + $0x28] sm:$0xff]
        %v1710 = vld [vmem:[#allocation2 + $0x30] sm:$0xff]
        %v1711 = vld [vmem:[#allocation2 + $0x38] sm:$0xff]
        %v1712 = vld [vmem:[#allocation2 + $0x40] sm:$0xff]
        %v1713 = vld [vmem:[#allocation2 + $0x48] sm:$0xff]
        %v1714 = vld [vmem:[#allocation2 + $0x50] sm:$0xff]
        %v1715 = vld [vmem:[#allocation2 + $0x58] sm:$0xff]
        %v1716 = vld [vmem:[#allocation2 + $0x60] sm:$0xff]
        %v1717 = vld [vmem:[#allocation2 + $0x68] sm:$0xff]
        %v1718 = vld [vmem:[#allocation2 + $0x70] sm:$0xff]
        %v1719 = vld [vmem:[#allocation2 + $0x78] sm:$0xff]
        %v1720 = vld [vmem:[#allocation2 + $0x80] sm:$0xff]
        %1721 = vst [vmem:[#allocation3 + $0x280] sm:$0xff] %v1705
        %1722 = vst [vmem:[#allocation3 + $0x288] sm:$0xff] %v1706
        %1723 = vst [vmem:[#allocation3 + $0x290] sm:$0xff] %v1707
        %1724 = vst [vmem:[#allocation3 + $0x298] sm:$0xff] %v1708
        %1725 = vst [vmem:[#allocation3 + $0x2a0] sm:$0xff] %v1709
        %1726 = vst [vmem:[#allocation3 + $0x2a8] sm:$0xff] %v1710
        %1727 = vst [vmem:[#allocation3 + $0x2b0] sm:$0xff] %v1711
        %1728 = vst [vmem:[#allocation3 + $0x2b8] sm:$0xff] %v1712
        %1729 = vst [vmem:[#allocation3 + $0x2c0] sm:$0xff] %v1713
        %1730 = vst [vmem:[#allocation3 + $0x2c8] sm:$0xff] %v1714
        %1731 = vst [vmem:[#allocation3 + $0x2d0] sm:$0xff] %v1715
        %1732 = vst [vmem:[#allocation3 + $0x2d8] sm:$0xff] %v1716
        %1733 = vst [vmem:[#allocation3 + $0x2e0] sm:$0xff] %v1717
        %1734 = vst [vmem:[#allocation3 + $0x2e8] sm:$0xff] %v1718
        %1735 = vst [vmem:[#allocation3 + $0x2f0] sm:$0xff] %v1719
        %1736 = vst [vmem:[#allocation3 + $0x2f8] sm:$0xff] %v1720
        %v1737 = vld [vmem:[#allocation2 + $0x8] sm:$0xff]
        %v1738 = vld [vmem:[#allocation2 + $0x10] sm:$0xff]
        %v1739 = vld [vmem:[#allocation2 + $0x18] sm:$0xff]
        %v1740 = vld [vmem:[#allocation2 + $0x20] sm:$0xff]
        %v1741 = vld [vmem:[#allocation2 + $0x28] sm:$0xff]
        %v1742 = vld [vmem:[#allocation2 + $0x30] sm:$0xff]
        %v1743 = vld [vmem:[#allocation2 + $0x38] sm:$0xff]
        %v1744 = vld [vmem:[#allocation2 + $0x40] sm:$0xff]
        %v1745 = vld [vmem:[#allocation2 + $0x48] sm:$0xff]
        %v1746 = vld [vmem:[#allocation2 + $0x50] sm:$0xff]
        %v1747 = vld [vmem:[#allocation2 + $0x58] sm:$0xff]
        %v1748 = vld [vmem:[#allocation2 + $0x60] sm:$0xff]
        %v1749 = vld [vmem:[#allocation2 + $0x68] sm:$0xff]
        %v1750 = vld [vmem:[#allocation2 + $0x70] sm:$0xff]
        %v1751 = vld [vmem:[#allocation2 + $0x78] sm:$0xff]
        %v1752 = vld [vmem:[#allocation2 + $0x80] sm:$0xff]
        %v1753 = vld [vmem:[#allocation2 + $0x88] sm:$0xff]
        %1771 = vrot.lane.b32.xlu0 %v1737, 127
        %v1772 = vpop.permute.xlu0 %1771
        %1773 = vrot.lane.b32.xlu0 %v1738, 127
        %v1774 = vpop.permute.xlu0 %1773
        %1775 = vrot.lane.b32.xlu0 %v1739, 127
        %v1776 = vpop.permute.xlu0 %1775
        %1777 = vrot.lane.b32.xlu0 %v1740, 127
        %v1778 = vpop.permute.xlu0 %1777
        %1779 = vrot.lane.b32.xlu0 %v1741, 127
        %v1780 = vpop.permute.xlu0 %1779
        %1781 = vrot.lane.b32.xlu0 %v1742, 127
        %v1782 = vpop.permute.xlu0 %1781
        %1783 = vrot.lane.b32.xlu0 %v1743, 127
        %v1784 = vpop.permute.xlu0 %1783
        %1785 = vrot.lane.b32.xlu0 %v1744, 127
        %v1786 = vpop.permute.xlu0 %1785
        %1787 = vrot.lane.b32.xlu0 %v1745, 127
        %v1788 = vpop.permute.xlu0 %1787
        %1789 = vrot.lane.b32.xlu0 %v1746, 127
        %v1790 = vpop.permute.xlu0 %1789
        %1791 = vrot.lane.b32.xlu0 %v1747, 127
        %v1792 = vpop.permute.xlu0 %1791
        %1793 = vrot.lane.b32.xlu0 %v1748, 127
        %v1794 = vpop.permute.xlu0 %1793
        %1795 = vrot.lane.b32.xlu0 %v1749, 127
        %v1796 = vpop.permute.xlu0 %1795
        %1797 = vrot.lane.b32.xlu0 %v1750, 127
        %v1798 = vpop.permute.xlu0 %1797
        %1799 = vrot.lane.b32.xlu0 %v1751, 127
        %v1800 = vpop.permute.xlu0 %1799
        %1801 = vrot.lane.b32.xlu0 %v1752, 127
        %v1802 = vpop.permute.xlu0 %1801
        %1803 = vrot.lane.b32.xlu0 %v1753, 127
        %v1804 = vpop.permute.xlu0 %1803
        %v1805 = vsel %vm1305, %v1772, %v1774
        %v1806 = vsel %vm1305, %v1774, %v1776
        %v1807 = vsel %vm1305, %v1776, %v1778
        %v1808 = vsel %vm1305, %v1778, %v1780
        %v1809 = vsel %vm1305, %v1780, %v1782
        %v1810 = vsel %vm1305, %v1782, %v1784
        %v1811 = vsel %vm1305, %v1784, %v1786
        %v1812 = vsel %vm1305, %v1786, %v1788
        %v1813 = vsel %vm1305, %v1788, %v1790
        %v1814 = vsel %vm1305, %v1790, %v1792
        %v1815 = vsel %vm1305, %v1792, %v1794
        %v1816 = vsel %vm1305, %v1794, %v1796
        %v1817 = vsel %vm1305, %v1796, %v1798
        %v1818 = vsel %vm1305, %v1798, %v1800
        %v1819 = vsel %vm1305, %v1800, %v1802
        %v1820 = vsel %vm1305, %v1802, %v1804
        %1837 = vst [vmem:[#allocation3 + $0x300] sm:$0xff] %v1805
        %1838 = vst [vmem:[#allocation3 + $0x308] sm:$0xff] %v1806
        %1839 = vst [vmem:[#allocation3 + $0x310] sm:$0xff] %v1807
        %1840 = vst [vmem:[#allocation3 + $0x318] sm:$0xff] %v1808
        %1841 = vst [vmem:[#allocation3 + $0x320] sm:$0xff] %v1809
        %1842 = vst [vmem:[#allocation3 + $0x328] sm:$0xff] %v1810
        %1843 = vst [vmem:[#allocation3 + $0x330] sm:$0xff] %v1811
        %1844 = vst [vmem:[#allocation3 + $0x338] sm:$0xff] %v1812
        %1845 = vst [vmem:[#allocation3 + $0x340] sm:$0xff] %v1813
        %1846 = vst [vmem:[#allocation3 + $0x348] sm:$0xff] %v1814
        %1847 = vst [vmem:[#allocation3 + $0x350] sm:$0xff] %v1815
        %1848 = vst [vmem:[#allocation3 + $0x358] sm:$0xff] %v1816
        %1849 = vst [vmem:[#allocation3 + $0x360] sm:$0xff] %v1817
        %1850 = vst [vmem:[#allocation3 + $0x368] sm:$0xff] %v1818
        %1851 = vst [vmem:[#allocation3 + $0x370] sm:$0xff] %v1819
        %1852 = vst [vmem:[#allocation3 + $0x378] sm:$0xff] %v1820
        %v1853 = vld [vmem:[#allocation2 + $0x8] sm:$0xff]
        %v1854 = vld [vmem:[#allocation2 + $0x10] sm:$0xff]
        %v1855 = vld [vmem:[#allocation2 + $0x18] sm:$0xff]
        %v1856 = vld [vmem:[#allocation2 + $0x20] sm:$0xff]
        %v1857 = vld [vmem:[#allocation2 + $0x28] sm:$0xff]
        %v1858 = vld [vmem:[#allocation2 + $0x30] sm:$0xff]
        %v1859 = vld [vmem:[#allocation2 + $0x38] sm:$0xff]
        %v1860 = vld [vmem:[#allocation2 + $0x40] sm:$0xff]
        %v1861 = vld [vmem:[#allocation2 + $0x48] sm:$0xff]
        %v1862 = vld [vmem:[#allocation2 + $0x50] sm:$0xff]
        %v1863 = vld [vmem:[#allocation2 + $0x58] sm:$0xff]
        %v1864 = vld [vmem:[#allocation2 + $0x60] sm:$0xff]
        %v1865 = vld [vmem:[#allocation2 + $0x68] sm:$0xff]
        %v1866 = vld [vmem:[#allocation2 + $0x70] sm:$0xff]
        %v1867 = vld [vmem:[#allocation2 + $0x78] sm:$0xff]
        %v1868 = vld [vmem:[#allocation2 + $0x80] sm:$0xff]
        %v1869 = vld [vmem:[#allocation2 + $0x88] sm:$0xff]
        %1887 = vrot.lane.b32.xlu0 %v1853, 126
        %v1888 = vpop.permute.xlu0 %1887
        %1889 = vrot.lane.b32.xlu0 %v1854, 126
        %v1890 = vpop.permute.xlu0 %1889
        %1891 = vrot.lane.b32.xlu0 %v1855, 126
        %v1892 = vpop.permute.xlu0 %1891
        %1893 = vrot.lane.b32.xlu0 %v1856, 126
        %v1894 = vpop.permute.xlu0 %1893
        %1895 = vrot.lane.b32.xlu0 %v1857, 126
        %v1896 = vpop.permute.xlu0 %1895
        %1897 = vrot.lane.b32.xlu0 %v1858, 126
        %v1898 = vpop.permute.xlu0 %1897
        %1899 = vrot.lane.b32.xlu0 %v1859, 126
        %v1900 = vpop.permute.xlu0 %1899
        %1901 = vrot.lane.b32.xlu0 %v1860, 126
        %v1902 = vpop.permute.xlu0 %1901
        %1903 = vrot.lane.b32.xlu0 %v1861, 126
        %v1904 = vpop.permute.xlu0 %1903
        %1905 = vrot.lane.b32.xlu0 %v1862, 126
        %v1906 = vpop.permute.xlu0 %1905
        %1907 = vrot.lane.b32.xlu0 %v1863, 126
        %v1908 = vpop.permute.xlu0 %1907
        %1909 = vrot.lane.b32.xlu0 %v1864, 126
        %v1910 = vpop.permute.xlu0 %1909
        %1911 = vrot.lane.b32.xlu0 %v1865, 126
        %v1912 = vpop.permute.xlu0 %1911
        %1913 = vrot.lane.b32.xlu0 %v1866, 126
        %v1914 = vpop.permute.xlu0 %1913
        %1915 = vrot.lane.b32.xlu0 %v1867, 126
        %v1916 = vpop.permute.xlu0 %1915
        %1917 = vrot.lane.b32.xlu0 %v1868, 126
        %v1918 = vpop.permute.xlu0 %1917
        %1919 = vrot.lane.b32.xlu0 %v1869, 126
        %v1920 = vpop.permute.xlu0 %1919
        %v1921 = vsel %vm1422, %v1888, %v1890
        %v1922 = vsel %vm1422, %v1890, %v1892
        %v1923 = vsel %vm1422, %v1892, %v1894
        %v1924 = vsel %vm1422, %v1894, %v1896
        %v1925 = vsel %vm1422, %v1896, %v1898
        %v1926 = vsel %vm1422, %v1898, %v1900
        %v1927 = vsel %vm1422, %v1900, %v1902
        %v1928 = vsel %vm1422, %v1902, %v1904
        %v1929 = vsel %vm1422, %v1904, %v1906
        %v1930 = vsel %vm1422, %v1906, %v1908
        %v1931 = vsel %vm1422, %v1908, %v1910
        %v1932 = vsel %vm1422, %v1910, %v1912
        %v1933 = vsel %vm1422, %v1912, %v1914
        %v1934 = vsel %vm1422, %v1914, %v1916
        %v1935 = vsel %vm1422, %v1916, %v1918
        %v1936 = vsel %vm1422, %v1918, %v1920
        %1953 = vst [vmem:[#allocation3 + $0x380] sm:$0xff] %v1921
        %1954 = vst [vmem:[#allocation3 + $0x388] sm:$0xff] %v1922
        %1955 = vst [vmem:[#allocation3 + $0x390] sm:$0xff] %v1923
        %1956 = vst [vmem:[#allocation3 + $0x398] sm:$0xff] %v1924
        %1957 = vst [vmem:[#allocation3 + $0x3a0] sm:$0xff] %v1925
        %1958 = vst [vmem:[#allocation3 + $0x3a8] sm:$0xff] %v1926
        %1959 = vst [vmem:[#allocation3 + $0x3b0] sm:$0xff] %v1927
        %1960 = vst [vmem:[#allocation3 + $0x3b8] sm:$0xff] %v1928
        %1961 = vst [vmem:[#allocation3 + $0x3c0] sm:$0xff] %v1929
        %1962 = vst [vmem:[#allocation3 + $0x3c8] sm:$0xff] %v1930
        %1963 = vst [vmem:[#allocation3 + $0x3d0] sm:$0xff] %v1931
        %1964 = vst [vmem:[#allocation3 + $0x3d8] sm:$0xff] %v1932
        %1965 = vst [vmem:[#allocation3 + $0x3e0] sm:$0xff] %v1933
        %1966 = vst [vmem:[#allocation3 + $0x3e8] sm:$0xff] %v1934
        %1967 = vst [vmem:[#allocation3 + $0x3f0] sm:$0xff] %v1935
        %1968 = vst [vmem:[#allocation3 + $0x3f8] sm:$0xff] %v1936
        %v1969 = vld [vmem:[#allocation2 + $0x8] sm:$0xff]
        %v1970 = vld [vmem:[#allocation2 + $0x10] sm:$0xff]
        %v1971 = vld [vmem:[#allocation2 + $0x18] sm:$0xff]
        %v1972 = vld [vmem:[#allocation2 + $0x20] sm:$0xff]
        %v1973 = vld [vmem:[#allocation2 + $0x28] sm:$0xff]
        %v1974 = vld [vmem:[#allocation2 + $0x30] sm:$0xff]
        %v1975 = vld [vmem:[#allocation2 + $0x38] sm:$0xff]
        %v1976 = vld [vmem:[#allocation2 + $0x40] sm:$0xff]
        %v1977 = vld [vmem:[#allocation2 + $0x48] sm:$0xff]
        %v1978 = vld [vmem:[#allocation2 + $0x50] sm:$0xff]
        %v1979 = vld [vmem:[#allocation2 + $0x58] sm:$0xff]
        %v1980 = vld [vmem:[#allocation2 + $0x60] sm:$0xff]
        %v1981 = vld [vmem:[#allocation2 + $0x68] sm:$0xff]
        %v1982 = vld [vmem:[#allocation2 + $0x70] sm:$0xff]
        %v1983 = vld [vmem:[#allocation2 + $0x78] sm:$0xff]
        %v1984 = vld [vmem:[#allocation2 + $0x80] sm:$0xff]
        %v1985 = vld [vmem:[#allocation2 + $0x88] sm:$0xff]
        %2003 = vrot.lane.b32.xlu0 %v1969, 125
        %v2004 = vpop.permute.xlu0 %2003
        %2005 = vrot.lane.b32.xlu0 %v1970, 125
        %v2006 = vpop.permute.xlu0 %2005
        %2007 = vrot.lane.b32.xlu0 %v1971, 125
        %v2008 = vpop.permute.xlu0 %2007
        %2009 = vrot.lane.b32.xlu0 %v1972, 125
        %v2010 = vpop.permute.xlu0 %2009
        %2011 = vrot.lane.b32.xlu0 %v1973, 125
        %v2012 = vpop.permute.xlu0 %2011
        %2013 = vrot.lane.b32.xlu0 %v1974, 125
        %v2014 = vpop.permute.xlu0 %2013
        %2015 = vrot.lane.b32.xlu0 %v1975, 125
        %v2016 = vpop.permute.xlu0 %2015
        %2017 = vrot.lane.b32.xlu0 %v1976, 125
        %v2018 = vpop.permute.xlu0 %2017
        %2019 = vrot.lane.b32.xlu0 %v1977, 125
        %v2020 = vpop.permute.xlu0 %2019
        %2021 = vrot.lane.b32.xlu0 %v1978, 125
        %v2022 = vpop.permute.xlu0 %2021
        %2023 = vrot.lane.b32.xlu0 %v1979, 125
        %v2024 = vpop.permute.xlu0 %2023
        %2025 = vrot.lane.b32.xlu0 %v1980, 125
        %v2026 = vpop.permute.xlu0 %2025
        %2027 = vrot.lane.b32.xlu0 %v1981, 125
        %v2028 = vpop.permute.xlu0 %2027
        %2029 = vrot.lane.b32.xlu0 %v1982, 125
        %v2030 = vpop.permute.xlu0 %2029
        %2031 = vrot.lane.b32.xlu0 %v1983, 125
        %v2032 = vpop.permute.xlu0 %2031
        %2033 = vrot.lane.b32.xlu0 %v1984, 125
        %v2034 = vpop.permute.xlu0 %2033
        %2035 = vrot.lane.b32.xlu0 %v1985, 125
        %v2036 = vpop.permute.xlu0 %2035
        %v2037 = vsel %vm1539, %v2004, %v2006
        %v2038 = vsel %vm1539, %v2006, %v2008
        %v2039 = vsel %vm1539, %v2008, %v2010
        %v2040 = vsel %vm1539, %v2010, %v2012
        %v2041 = vsel %vm1539, %v2012, %v2014
        %v2042 = vsel %vm1539, %v2014, %v2016
        %v2043 = vsel %vm1539, %v2016, %v2018
        %v2044 = vsel %vm1539, %v2018, %v2020
        %v2045 = vsel %vm1539, %v2020, %v2022
        %v2046 = vsel %vm1539, %v2022, %v2024
        %v2047 = vsel %vm1539, %v2024, %v2026
        %v2048 = vsel %vm1539, %v2026, %v2028
        %v2049 = vsel %vm1539, %v2028, %v2030
        %v2050 = vsel %vm1539, %v2030, %v2032
        %v2051 = vsel %vm1539, %v2032, %v2034
        %v2052 = vsel %vm1539, %v2034, %v2036
        %2069 = vst [vmem:[#allocation3 + $0x400] sm:$0xff] %v2037
        %2070 = vst [vmem:[#allocation3 + $0x408] sm:$0xff] %v2038
        %2071 = vst [vmem:[#allocation3 + $0x410] sm:$0xff] %v2039
        %2072 = vst [vmem:[#allocation3 + $0x418] sm:$0xff] %v2040
        %2073 = vst [vmem:[#allocation3 + $0x420] sm:$0xff] %v2041
        %2074 = vst [vmem:[#allocation3 + $0x428] sm:$0xff] %v2042
        %2075 = vst [vmem:[#allocation3 + $0x430] sm:$0xff] %v2043
        %2076 = vst [vmem:[#allocation3 + $0x438] sm:$0xff] %v2044
        %2077 = vst [vmem:[#allocation3 + $0x440] sm:$0xff] %v2045
        %2078 = vst [vmem:[#allocation3 + $0x448] sm:$0xff] %v2046
        %2079 = vst [vmem:[#allocation3 + $0x450] sm:$0xff] %v2047
        %2080 = vst [vmem:[#allocation3 + $0x458] sm:$0xff] %v2048
        %2081 = vst [vmem:[#allocation3 + $0x460] sm:$0xff] %v2049
        %2082 = vst [vmem:[#allocation3 + $0x468] sm:$0xff] %v2050
        %2083 = vst [vmem:[#allocation3 + $0x470] sm:$0xff] %v2051
        %2084 = vst [vmem:[#allocation3 + $0x478] sm:$0xff] %v2052
        %v2085 = vld [vmem:[#allocation2 + $0x8] sm:$0xff]
        %v2086 = vld [vmem:[#allocation2 + $0x10] sm:$0xff]
        %v2087 = vld [vmem:[#allocation2 + $0x18] sm:$0xff]
        %v2088 = vld [vmem:[#allocation2 + $0x20] sm:$0xff]
        %v2089 = vld [vmem:[#allocation2 + $0x28] sm:$0xff]
        %v2090 = vld [vmem:[#allocation2 + $0x30] sm:$0xff]
        %v2091 = vld [vmem:[#allocation2 + $0x38] sm:$0xff]
        %v2092 = vld [vmem:[#allocation2 + $0x40] sm:$0xff]
        %v2093 = vld [vmem:[#allocation2 + $0x48] sm:$0xff]
        %v2094 = vld [vmem:[#allocation2 + $0x50] sm:$0xff]
        %v2095 = vld [vmem:[#allocation2 + $0x58] sm:$0xff]
        %v2096 = vld [vmem:[#allocation2 + $0x60] sm:$0xff]
        %v2097 = vld [vmem:[#allocation2 + $0x68] sm:$0xff]
        %v2098 = vld [vmem:[#allocation2 + $0x70] sm:$0xff]
        %v2099 = vld [vmem:[#allocation2 + $0x78] sm:$0xff]
        %v2100 = vld [vmem:[#allocation2 + $0x80] sm:$0xff]
        %v2101 = vld [vmem:[#allocation2 + $0x88] sm:$0xff]
        %2119 = vrot.lane.b32.xlu0 %v2085, 124
        %v2120 = vpop.permute.xlu0 %2119
        %2121 = vrot.lane.b32.xlu0 %v2086, 124
        %v2122 = vpop.permute.xlu0 %2121
        %2123 = vrot.lane.b32.xlu0 %v2087, 124
        %v2124 = vpop.permute.xlu0 %2123
        %2125 = vrot.lane.b32.xlu0 %v2088, 124
        %v2126 = vpop.permute.xlu0 %2125
        %2127 = vrot.lane.b32.xlu0 %v2089, 124
        %v2128 = vpop.permute.xlu0 %2127
        %2129 = vrot.lane.b32.xlu0 %v2090, 124
        %v2130 = vpop.permute.xlu0 %2129
        %2131 = vrot.lane.b32.xlu0 %v2091, 124
        %v2132 = vpop.permute.xlu0 %2131
        %2133 = vrot.lane.b32.xlu0 %v2092, 124
        %v2134 = vpop.permute.xlu0 %2133
        %2135 = vrot.lane.b32.xlu0 %v2093, 124
        %v2136 = vpop.permute.xlu0 %2135
        %2137 = vrot.lane.b32.xlu0 %v2094, 124
        %v2138 = vpop.permute.xlu0 %2137
        %2139 = vrot.lane.b32.xlu0 %v2095, 124
        %v2140 = vpop.permute.xlu0 %2139
        %2141 = vrot.lane.b32.xlu0 %v2096, 124
        %v2142 = vpop.permute.xlu0 %2141
        %2143 = vrot.lane.b32.xlu0 %v2097, 124
        %v2144 = vpop.permute.xlu0 %2143
        %2145 = vrot.lane.b32.xlu0 %v2098, 124
        %v2146 = vpop.permute.xlu0 %2145
        %2147 = vrot.lane.b32.xlu0 %v2099, 124
        %v2148 = vpop.permute.xlu0 %2147
        %2149 = vrot.lane.b32.xlu0 %v2100, 124
        %v2150 = vpop.permute.xlu0 %2149
        %2151 = vrot.lane.b32.xlu0 %v2101, 124
        %v2152 = vpop.permute.xlu0 %2151
        %v2153 = vsel %vm1656, %v2120, %v2122
        %v2154 = vsel %vm1656, %v2122, %v2124
        %v2155 = vsel %vm1656, %v2124, %v2126
        %v2156 = vsel %vm1656, %v2126, %v2128
        %v2157 = vsel %vm1656, %v2128, %v2130
        %v2158 = vsel %vm1656, %v2130, %v2132
        %v2159 = vsel %vm1656, %v2132, %v2134
        %v2160 = vsel %vm1656, %v2134, %v2136
        %v2161 = vsel %vm1656, %v2136, %v2138
        %v2162 = vsel %vm1656, %v2138, %v2140
        %v2163 = vsel %vm1656, %v2140, %v2142
        %v2164 = vsel %vm1656, %v2142, %v2144
        %v2165 = vsel %vm1656, %v2144, %v2146
        %v2166 = vsel %vm1656, %v2146, %v2148
        %v2167 = vsel %vm1656, %v2148, %v2150
        %v2168 = vsel %vm1656, %v2150, %v2152
        %2185 = vst [vmem:[#allocation3 + $0x480] sm:$0xff] %v2153
        %2186 = vst [vmem:[#allocation3 + $0x488] sm:$0xff] %v2154
        %2187 = vst [vmem:[#allocation3 + $0x490] sm:$0xff] %v2155
        %2188 = vst [vmem:[#allocation3 + $0x498] sm:$0xff] %v2156
        %2189 = vst [vmem:[#allocation3 + $0x4a0] sm:$0xff] %v2157
        %2190 = vst [vmem:[#allocation3 + $0x4a8] sm:$0xff] %v2158
        %2191 = vst [vmem:[#allocation3 + $0x4b0] sm:$0xff] %v2159
        %2192 = vst [vmem:[#allocation3 + $0x4b8] sm:$0xff] %v2160
        %2193 = vst [vmem:[#allocation3 + $0x4c0] sm:$0xff] %v2161
        %2194 = vst [vmem:[#allocation3 + $0x4c8] sm:$0xff] %v2162
        %2195 = vst [vmem:[#allocation3 + $0x4d0] sm:$0xff] %v2163
        %2196 = vst [vmem:[#allocation3 + $0x4d8] sm:$0xff] %v2164
        %2197 = vst [vmem:[#allocation3 + $0x4e0] sm:$0xff] %v2165
        %2198 = vst [vmem:[#allocation3 + $0x4e8] sm:$0xff] %v2166
        %2199 = vst [vmem:[#allocation3 + $0x4f0] sm:$0xff] %v2167
        %2200 = vst [vmem:[#allocation3 + $0x4f8] sm:$0xff] %v2168
        %v2201 = vld [vmem:[#allocation2 + $0x10] sm:$0xff]
        %v2202 = vld [vmem:[#allocation2 + $0x18] sm:$0xff]
        %v2203 = vld [vmem:[#allocation2 + $0x20] sm:$0xff]
        %v2204 = vld [vmem:[#allocation2 + $0x28] sm:$0xff]
        %v2205 = vld [vmem:[#allocation2 + $0x30] sm:$0xff]
        %v2206 = vld [vmem:[#allocation2 + $0x38] sm:$0xff]
        %v2207 = vld [vmem:[#allocation2 + $0x40] sm:$0xff]
        %v2208 = vld [vmem:[#allocation2 + $0x48] sm:$0xff]
        %v2209 = vld [vmem:[#allocation2 + $0x50] sm:$0xff]
        %v2210 = vld [vmem:[#allocation2 + $0x58] sm:$0xff]
        %v2211 = vld [vmem:[#allocation2 + $0x60] sm:$0xff]
        %v2212 = vld [vmem:[#allocation2 + $0x68] sm:$0xff]
        %v2213 = vld [vmem:[#allocation2 + $0x70] sm:$0xff]
        %v2214 = vld [vmem:[#allocation2 + $0x78] sm:$0xff]
        %v2215 = vld [vmem:[#allocation2 + $0x80] sm:$0xff]
        %v2216 = vld [vmem:[#allocation2 + $0x88] sm:$0xff]
        %2217 = vst [vmem:[#allocation3 + $0x500] sm:$0xff] %v2201
        %2218 = vst [vmem:[#allocation3 + $0x508] sm:$0xff] %v2202
        %2219 = vst [vmem:[#allocation3 + $0x510] sm:$0xff] %v2203
        %2220 = vst [vmem:[#allocation3 + $0x518] sm:$0xff] %v2204
        %2221 = vst [vmem:[#allocation3 + $0x520] sm:$0xff] %v2205
        %2222 = vst [vmem:[#allocation3 + $0x528] sm:$0xff] %v2206
        %2223 = vst [vmem:[#allocation3 + $0x530] sm:$0xff] %v2207
        %2224 = vst [vmem:[#allocation3 + $0x538] sm:$0xff] %v2208
        %2225 = vst [vmem:[#allocation3 + $0x540] sm:$0xff] %v2209
        %2226 = vst [vmem:[#allocation3 + $0x548] sm:$0xff] %v2210
        %2227 = vst [vmem:[#allocation3 + $0x550] sm:$0xff] %v2211
        %2228 = vst [vmem:[#allocation3 + $0x558] sm:$0xff] %v2212
        %2229 = vst [vmem:[#allocation3 + $0x560] sm:$0xff] %v2213
        %2230 = vst [vmem:[#allocation3 + $0x568] sm:$0xff] %v2214
        %2231 = vst [vmem:[#allocation3 + $0x570] sm:$0xff] %v2215
        %2232 = vst [vmem:[#allocation3 + $0x578] sm:$0xff] %v2216
        %v2233 = vld [vmem:[#allocation2 + $0x10] sm:$0xff]
        %v2234 = vld [vmem:[#allocation2 + $0x18] sm:$0xff]
        %v2235 = vld [vmem:[#allocation2 + $0x20] sm:$0xff]
        %v2236 = vld [vmem:[#allocation2 + $0x28] sm:$0xff]
        %v2237 = vld [vmem:[#allocation2 + $0x30] sm:$0xff]
        %v2238 = vld [vmem:[#allocation2 + $0x38] sm:$0xff]
        %v2239 = vld [vmem:[#allocation2 + $0x40] sm:$0xff]
        %v2240 = vld [vmem:[#allocation2 + $0x48] sm:$0xff]
        %v2241 = vld [vmem:[#allocation2 + $0x50] sm:$0xff]
        %v2242 = vld [vmem:[#allocation2 + $0x58] sm:$0xff]
        %v2243 = vld [vmem:[#allocation2 + $0x60] sm:$0xff]
        %v2244 = vld [vmem:[#allocation2 + $0x68] sm:$0xff]
        %v2245 = vld [vmem:[#allocation2 + $0x70] sm:$0xff]
        %v2246 = vld [vmem:[#allocation2 + $0x78] sm:$0xff]
        %v2247 = vld [vmem:[#allocation2 + $0x80] sm:$0xff]
        %v2248 = vld [vmem:[#allocation2 + $0x88] sm:$0xff]
        %v2249 = vld [vmem:[#allocation2 + $0x90] sm:$0xff]
        %2267 = vrot.lane.b32.xlu0 %v2233, 127
        %v2268 = vpop.permute.xlu0 %2267
        %2269 = vrot.lane.b32.xlu0 %v2234, 127
        %v2270 = vpop.permute.xlu0 %2269
        %2271 = vrot.lane.b32.xlu0 %v2235, 127
        %v2272 = vpop.permute.xlu0 %2271
        %2273 = vrot.lane.b32.xlu0 %v2236, 127
        %v2274 = vpop.permute.xlu0 %2273
        %2275 = vrot.lane.b32.xlu0 %v2237, 127
        %v2276 = vpop.permute.xlu0 %2275
        %2277 = vrot.lane.b32.xlu0 %v2238, 127
        %v2278 = vpop.permute.xlu0 %2277
        %2279 = vrot.lane.b32.xlu0 %v2239, 127
        %v2280 = vpop.permute.xlu0 %2279
        %2281 = vrot.lane.b32.xlu0 %v2240, 127
        %v2282 = vpop.permute.xlu0 %2281
        %2283 = vrot.lane.b32.xlu0 %v2241, 127
        %v2284 = vpop.permute.xlu0 %2283
        %2285 = vrot.lane.b32.xlu0 %v2242, 127
        %v2286 = vpop.permute.xlu0 %2285
        %2287 = vrot.lane.b32.xlu0 %v2243, 127
        %v2288 = vpop.permute.xlu0 %2287
        %2289 = vrot.lane.b32.xlu0 %v2244, 127
        %v2290 = vpop.permute.xlu0 %2289
        %2291 = vrot.lane.b32.xlu0 %v2245, 127
        %v2292 = vpop.permute.xlu0 %2291
        %2293 = vrot.lane.b32.xlu0 %v2246, 127
        %v2294 = vpop.permute.xlu0 %2293
        %2295 = vrot.lane.b32.xlu0 %v2247, 127
        %v2296 = vpop.permute.xlu0 %2295
        %2297 = vrot.lane.b32.xlu0 %v2248, 127
        %v2298 = vpop.permute.xlu0 %2297
        %2299 = vrot.lane.b32.xlu0 %v2249, 127
        %v2300 = vpop.permute.xlu0 %2299
        %v2301 = vsel %vm1305, %v2268, %v2270
        %v2302 = vsel %vm1305, %v2270, %v2272
        %v2303 = vsel %vm1305, %v2272, %v2274
        %v2304 = vsel %vm1305, %v2274, %v2276
        %v2305 = vsel %vm1305, %v2276, %v2278
        %v2306 = vsel %vm1305, %v2278, %v2280
        %v2307 = vsel %vm1305, %v2280, %v2282
        %v2308 = vsel %vm1305, %v2282, %v2284
        %v2309 = vsel %vm1305, %v2284, %v2286
        %v2310 = vsel %vm1305, %v2286, %v2288
        %v2311 = vsel %vm1305, %v2288, %v2290
        %v2312 = vsel %vm1305, %v2290, %v2292
        %v2313 = vsel %vm1305, %v2292, %v2294
        %v2314 = vsel %vm1305, %v2294, %v2296
        %v2315 = vsel %vm1305, %v2296, %v2298
        %v2316 = vsel %vm1305, %v2298, %v2300
        %2333 = vst [vmem:[#allocation3 + $0x580] sm:$0xff] %v2301
        %2334 = vst [vmem:[#allocation3 + $0x588] sm:$0xff] %v2302
        %2335 = vst [vmem:[#allocation3 + $0x590] sm:$0xff] %v2303
        %2336 = vst [vmem:[#allocation3 + $0x598] sm:$0xff] %v2304
        %2337 = vst [vmem:[#allocation3 + $0x5a0] sm:$0xff] %v2305
        %2338 = vst [vmem:[#allocation3 + $0x5a8] sm:$0xff] %v2306
        %2339 = vst [vmem:[#allocation3 + $0x5b0] sm:$0xff] %v2307
        %2340 = vst [vmem:[#allocation3 + $0x5b8] sm:$0xff] %v2308
        %2341 = vst [vmem:[#allocation3 + $0x5c0] sm:$0xff] %v2309
        %2342 = vst [vmem:[#allocation3 + $0x5c8] sm:$0xff] %v2310
        %2343 = vst [vmem:[#allocation3 + $0x5d0] sm:$0xff] %v2311
        %2344 = vst [vmem:[#allocation3 + $0x5d8] sm:$0xff] %v2312
        %2345 = vst [vmem:[#allocation3 + $0x5e0] sm:$0xff] %v2313
        %2346 = vst [vmem:[#allocation3 + $0x5e8] sm:$0xff] %v2314
        %2347 = vst [vmem:[#allocation3 + $0x5f0] sm:$0xff] %v2315
        %2348 = vst [vmem:[#allocation3 + $0x5f8] sm:$0xff] %v2316
        %v2349 = vld [vmem:[#allocation2 + $0x10] sm:$0xff]
        %v2350 = vld [vmem:[#allocation2 + $0x18] sm:$0xff]
        %v2351 = vld [vmem:[#allocation2 + $0x20] sm:$0xff]
        %v2352 = vld [vmem:[#allocation2 + $0x28] sm:$0xff]
        %v2353 = vld [vmem:[#allocation2 + $0x30] sm:$0xff]
        %v2354 = vld [vmem:[#allocation2 + $0x38] sm:$0xff]
        %v2355 = vld [vmem:[#allocation2 + $0x40] sm:$0xff]
        %v2356 = vld [vmem:[#allocation2 + $0x48] sm:$0xff]
        %v2357 = vld [vmem:[#allocation2 + $0x50] sm:$0xff]
        %v2358 = vld [vmem:[#allocation2 + $0x58] sm:$0xff]
        %v2359 = vld [vmem:[#allocation2 + $0x60] sm:$0xff]
        %v2360 = vld [vmem:[#allocation2 + $0x68] sm:$0xff]
        %v2361 = vld [vmem:[#allocation2 + $0x70] sm:$0xff]
        %v2362 = vld [vmem:[#allocation2 + $0x78] sm:$0xff]
        %v2363 = vld [vmem:[#allocation2 + $0x80] sm:$0xff]
        %v2364 = vld [vmem:[#allocation2 + $0x88] sm:$0xff]
        %v2365 = vld [vmem:[#allocation2 + $0x90] sm:$0xff]
        %2383 = vrot.lane.b32.xlu0 %v2349, 126
        %v2384 = vpop.permute.xlu0 %2383
        %2385 = vrot.lane.b32.xlu0 %v2350, 126
        %v2386 = vpop.permute.xlu0 %2385
        %2387 = vrot.lane.b32.xlu0 %v2351, 126
        %v2388 = vpop.permute.xlu0 %2387
        %2389 = vrot.lane.b32.xlu0 %v2352, 126
        %v2390 = vpop.permute.xlu0 %2389
        %2391 = vrot.lane.b32.xlu0 %v2353, 126
        %v2392 = vpop.permute.xlu0 %2391
        %2393 = vrot.lane.b32.xlu0 %v2354, 126
        %v2394 = vpop.permute.xlu0 %2393
        %2395 = vrot.lane.b32.xlu0 %v2355, 126
        %v2396 = vpop.permute.xlu0 %2395
        %2397 = vrot.lane.b32.xlu0 %v2356, 126
        %v2398 = vpop.permute.xlu0 %2397
        %2399 = vrot.lane.b32.xlu0 %v2357, 126
        %v2400 = vpop.permute.xlu0 %2399
        %2401 = vrot.lane.b32.xlu0 %v2358, 126
        %v2402 = vpop.permute.xlu0 %2401
        %2403 = vrot.lane.b32.xlu0 %v2359, 126
        %v2404 = vpop.permute.xlu0 %2403
        %2405 = vrot.lane.b32.xlu0 %v2360, 126
        %v2406 = vpop.permute.xlu0 %2405
        %2407 = vrot.lane.b32.xlu0 %v2361, 126
        %v2408 = vpop.permute.xlu0 %2407
        %2409 = vrot.lane.b32.xlu0 %v2362, 126
        %v2410 = vpop.permute.xlu0 %2409
        %2411 = vrot.lane.b32.xlu0 %v2363, 126
        %v2412 = vpop.permute.xlu0 %2411
        %2413 = vrot.lane.b32.xlu0 %v2364, 126
        %v2414 = vpop.permute.xlu0 %2413
        %2415 = vrot.lane.b32.xlu0 %v2365, 126
        %v2416 = vpop.permute.xlu0 %2415
        %v2417 = vsel %vm1422, %v2384, %v2386
        %v2418 = vsel %vm1422, %v2386, %v2388
        %v2419 = vsel %vm1422, %v2388, %v2390
        %v2420 = vsel %vm1422, %v2390, %v2392
        %v2421 = vsel %vm1422, %v2392, %v2394
        %v2422 = vsel %vm1422, %v2394, %v2396
        %v2423 = vsel %vm1422, %v2396, %v2398
        %v2424 = vsel %vm1422, %v2398, %v2400
        %v2425 = vsel %vm1422, %v2400, %v2402
        %v2426 = vsel %vm1422, %v2402, %v2404
        %v2427 = vsel %vm1422, %v2404, %v2406
        %v2428 = vsel %vm1422, %v2406, %v2408
        %v2429 = vsel %vm1422, %v2408, %v2410
        %v2430 = vsel %vm1422, %v2410, %v2412
        %v2431 = vsel %vm1422, %v2412, %v2414
        %v2432 = vsel %vm1422, %v2414, %v2416
        %2449 = vst [vmem:[#allocation3 + $0x600] sm:$0xff] %v2417
        %2450 = vst [vmem:[#allocation3 + $0x608] sm:$0xff] %v2418
        %2451 = vst [vmem:[#allocation3 + $0x610] sm:$0xff] %v2419
        %2452 = vst [vmem:[#allocation3 + $0x618] sm:$0xff] %v2420
        %2453 = vst [vmem:[#allocation3 + $0x620] sm:$0xff] %v2421
        %2454 = vst [vmem:[#allocation3 + $0x628] sm:$0xff] %v2422
        %2455 = vst [vmem:[#allocation3 + $0x630] sm:$0xff] %v2423
        %2456 = vst [vmem:[#allocation3 + $0x638] sm:$0xff] %v2424
        %2457 = vst [vmem:[#allocation3 + $0x640] sm:$0xff] %v2425
        %2458 = vst [vmem:[#allocation3 + $0x648] sm:$0xff] %v2426
        %2459 = vst [vmem:[#allocation3 + $0x650] sm:$0xff] %v2427
        %2460 = vst [vmem:[#allocation3 + $0x658] sm:$0xff] %v2428
        %2461 = vst [vmem:[#allocation3 + $0x660] sm:$0xff] %v2429
        %2462 = vst [vmem:[#allocation3 + $0x668] sm:$0xff] %v2430
        %2463 = vst [vmem:[#allocation3 + $0x670] sm:$0xff] %v2431
        %2464 = vst [vmem:[#allocation3 + $0x678] sm:$0xff] %v2432
        %v2465 = vld [vmem:[#allocation2 + $0x10] sm:$0xff]
        %v2466 = vld [vmem:[#allocation2 + $0x18] sm:$0xff]
        %v2467 = vld [vmem:[#allocation2 + $0x20] sm:$0xff]
        %v2468 = vld [vmem:[#allocation2 + $0x28] sm:$0xff]
        %v2469 = vld [vmem:[#allocation2 + $0x30] sm:$0xff]
        %v2470 = vld [vmem:[#allocation2 + $0x38] sm:$0xff]
        %v2471 = vld [vmem:[#allocation2 + $0x40] sm:$0xff]
        %v2472 = vld [vmem:[#allocation2 + $0x48] sm:$0xff]
        %v2473 = vld [vmem:[#allocation2 + $0x50] sm:$0xff]
        %v2474 = vld [vmem:[#allocation2 + $0x58] sm:$0xff]
        %v2475 = vld [vmem:[#allocation2 + $0x60] sm:$0xff]
        %v2476 = vld [vmem:[#allocation2 + $0x68] sm:$0xff]
        %v2477 = vld [vmem:[#allocation2 + $0x70] sm:$0xff]
        %v2478 = vld [vmem:[#allocation2 + $0x78] sm:$0xff]
        %v2479 = vld [vmem:[#allocation2 + $0x80] sm:$0xff]
        %v2480 = vld [vmem:[#allocation2 + $0x88] sm:$0xff]
        %v2481 = vld [vmem:[#allocation2 + $0x90] sm:$0xff]
        %2499 = vrot.lane.b32.xlu0 %v2465, 125
        %v2500 = vpop.permute.xlu0 %2499
        %2501 = vrot.lane.b32.xlu0 %v2466, 125
        %v2502 = vpop.permute.xlu0 %2501
        %2503 = vrot.lane.b32.xlu0 %v2467, 125
        %v2504 = vpop.permute.xlu0 %2503
        %2505 = vrot.lane.b32.xlu0 %v2468, 125
        %v2506 = vpop.permute.xlu0 %2505
        %2507 = vrot.lane.b32.xlu0 %v2469, 125
        %v2508 = vpop.permute.xlu0 %2507
        %2509 = vrot.lane.b32.xlu0 %v2470, 125
        %v2510 = vpop.permute.xlu0 %2509
        %2511 = vrot.lane.b32.xlu0 %v2471, 125
        %v2512 = vpop.permute.xlu0 %2511
        %2513 = vrot.lane.b32.xlu0 %v2472, 125
        %v2514 = vpop.permute.xlu0 %2513
        %2515 = vrot.lane.b32.xlu0 %v2473, 125
        %v2516 = vpop.permute.xlu0 %2515
        %2517 = vrot.lane.b32.xlu0 %v2474, 125
        %v2518 = vpop.permute.xlu0 %2517
        %2519 = vrot.lane.b32.xlu0 %v2475, 125
        %v2520 = vpop.permute.xlu0 %2519
        %2521 = vrot.lane.b32.xlu0 %v2476, 125
        %v2522 = vpop.permute.xlu0 %2521
        %2523 = vrot.lane.b32.xlu0 %v2477, 125
        %v2524 = vpop.permute.xlu0 %2523
        %2525 = vrot.lane.b32.xlu0 %v2478, 125
        %v2526 = vpop.permute.xlu0 %2525
        %2527 = vrot.lane.b32.xlu0 %v2479, 125
        %v2528 = vpop.permute.xlu0 %2527
        %2529 = vrot.lane.b32.xlu0 %v2480, 125
        %v2530 = vpop.permute.xlu0 %2529
        %2531 = vrot.lane.b32.xlu0 %v2481, 125
        %v2532 = vpop.permute.xlu0 %2531
        %v2533 = vsel %vm1539, %v2500, %v2502
        %v2534 = vsel %vm1539, %v2502, %v2504
        %v2535 = vsel %vm1539, %v2504, %v2506
        %v2536 = vsel %vm1539, %v2506, %v2508
        %v2537 = vsel %vm1539, %v2508, %v2510
        %v2538 = vsel %vm1539, %v2510, %v2512
        %v2539 = vsel %vm1539, %v2512, %v2514
        %v2540 = vsel %vm1539, %v2514, %v2516
        %v2541 = vsel %vm1539, %v2516, %v2518
        %v2542 = vsel %vm1539, %v2518, %v2520
        %v2543 = vsel %vm1539, %v2520, %v2522
        %v2544 = vsel %vm1539, %v2522, %v2524
        %v2545 = vsel %vm1539, %v2524, %v2526
        %v2546 = vsel %vm1539, %v2526, %v2528
        %v2547 = vsel %vm1539, %v2528, %v2530
        %v2548 = vsel %vm1539, %v2530, %v2532
        %2565 = vst [vmem:[#allocation3 + $0x680] sm:$0xff] %v2533
        %2566 = vst [vmem:[#allocation3 + $0x688] sm:$0xff] %v2534
        %2567 = vst [vmem:[#allocation3 + $0x690] sm:$0xff] %v2535
        %2568 = vst [vmem:[#allocation3 + $0x698] sm:$0xff] %v2536
        %2569 = vst [vmem:[#allocation3 + $0x6a0] sm:$0xff] %v2537
        %2570 = vst [vmem:[#allocation3 + $0x6a8] sm:$0xff] %v2538
        %2571 = vst [vmem:[#allocation3 + $0x6b0] sm:$0xff] %v2539
        %2572 = vst [vmem:[#allocation3 + $0x6b8] sm:$0xff] %v2540
        %2573 = vst [vmem:[#allocation3 + $0x6c0] sm:$0xff] %v2541
        %2574 = vst [vmem:[#allocation3 + $0x6c8] sm:$0xff] %v2542
        %2575 = vst [vmem:[#allocation3 + $0x6d0] sm:$0xff] %v2543
        %2576 = vst [vmem:[#allocation3 + $0x6d8] sm:$0xff] %v2544
        %2577 = vst [vmem:[#allocation3 + $0x6e0] sm:$0xff] %v2545
        %2578 = vst [vmem:[#allocation3 + $0x6e8] sm:$0xff] %v2546
        %2579 = vst [vmem:[#allocation3 + $0x6f0] sm:$0xff] %v2547
        %2580 = vst [vmem:[#allocation3 + $0x6f8] sm:$0xff] %v2548
        %v2581 = vld [vmem:[#allocation2 + $0x10] sm:$0xff]
        %v2582 = vld [vmem:[#allocation2 + $0x18] sm:$0xff]
        %v2583 = vld [vmem:[#allocation2 + $0x20] sm:$0xff]
        %v2584 = vld [vmem:[#allocation2 + $0x28] sm:$0xff]
        %v2585 = vld [vmem:[#allocation2 + $0x30] sm:$0xff]
        %v2586 = vld [vmem:[#allocation2 + $0x38] sm:$0xff]
        %v2587 = vld [vmem:[#allocation2 + $0x40] sm:$0xff]
        %v2588 = vld [vmem:[#allocation2 + $0x48] sm:$0xff]
        %v2589 = vld [vmem:[#allocation2 + $0x50] sm:$0xff]
        %v2590 = vld [vmem:[#allocation2 + $0x58] sm:$0xff]
        %v2591 = vld [vmem:[#allocation2 + $0x60] sm:$0xff]
        %v2592 = vld [vmem:[#allocation2 + $0x68] sm:$0xff]
        %v2593 = vld [vmem:[#allocation2 + $0x70] sm:$0xff]
        %v2594 = vld [vmem:[#allocation2 + $0x78] sm:$0xff]
        %v2595 = vld [vmem:[#allocation2 + $0x80] sm:$0xff]
        %v2596 = vld [vmem:[#allocation2 + $0x88] sm:$0xff]
        %v2597 = vld [vmem:[#allocation2 + $0x90] sm:$0xff]
        %2615 = vrot.lane.b32.xlu0 %v2581, 124
        %v2616 = vpop.permute.xlu0 %2615
        %2617 = vrot.lane.b32.xlu0 %v2582, 124
        %v2618 = vpop.permute.xlu0 %2617
        %2619 = vrot.lane.b32.xlu0 %v2583, 124
        %v2620 = vpop.permute.xlu0 %2619
        %2621 = vrot.lane.b32.xlu0 %v2584, 124
        %v2622 = vpop.permute.xlu0 %2621
        %2623 = vrot.lane.b32.xlu0 %v2585, 124
        %v2624 = vpop.permute.xlu0 %2623
        %2625 = vrot.lane.b32.xlu0 %v2586, 124
        %v2626 = vpop.permute.xlu0 %2625
        %2627 = vrot.lane.b32.xlu0 %v2587, 124
        %v2628 = vpop.permute.xlu0 %2627
        %2629 = vrot.lane.b32.xlu0 %v2588, 124
        %v2630 = vpop.permute.xlu0 %2629
        %2631 = vrot.lane.b32.xlu0 %v2589, 124
        %v2632 = vpop.permute.xlu0 %2631
        %2633 = vrot.lane.b32.xlu0 %v2590, 124
        %v2634 = vpop.permute.xlu0 %2633
        %2635 = vrot.lane.b32.xlu0 %v2591, 124
        %v2636 = vpop.permute.xlu0 %2635
        %2637 = vrot.lane.b32.xlu0 %v2592, 124
        %v2638 = vpop.permute.xlu0 %2637
        %2639 = vrot.lane.b32.xlu0 %v2593, 124
        %v2640 = vpop.permute.xlu0 %2639
        %2641 = vrot.lane.b32.xlu0 %v2594, 124
        %v2642 = vpop.permute.xlu0 %2641
        %2643 = vrot.lane.b32.xlu0 %v2595, 124
        %v2644 = vpop.permute.xlu0 %2643
        %2645 = vrot.lane.b32.xlu0 %v2596, 124
        %v2646 = vpop.permute.xlu0 %2645
        %2647 = vrot.lane.b32.xlu0 %v2597, 124
        %v2648 = vpop.permute.xlu0 %2647
        %v2649 = vsel %vm1656, %v2616, %v2618
        %v2650 = vsel %vm1656, %v2618, %v2620
        %v2651 = vsel %vm1656, %v2620, %v2622
        %v2652 = vsel %vm1656, %v2622, %v2624
        %v2653 = vsel %vm1656, %v2624, %v2626
        %v2654 = vsel %vm1656, %v2626, %v2628
        %v2655 = vsel %vm1656, %v2628, %v2630
        %v2656 = vsel %vm1656, %v2630, %v2632
        %v2657 = vsel %vm1656, %v2632, %v2634
        %v2658 = vsel %vm1656, %v2634, %v2636
        %v2659 = vsel %vm1656, %v2636, %v2638
        %v2660 = vsel %vm1656, %v2638, %v2640
        %v2661 = vsel %vm1656, %v2640, %v2642
        %v2662 = vsel %vm1656, %v2642, %v2644
        %v2663 = vsel %vm1656, %v2644, %v2646
        %v2664 = vsel %vm1656, %v2646, %v2648
        %2681 = vst [vmem:[#allocation3 + $0x700] sm:$0xff] %v2649
        %2682 = vst [vmem:[#allocation3 + $0x708] sm:$0xff] %v2650
        %2683 = vst [vmem:[#allocation3 + $0x710] sm:$0xff] %v2651
        %2684 = vst [vmem:[#allocation3 + $0x718] sm:$0xff] %v2652
        %2685 = vst [vmem:[#allocation3 + $0x720] sm:$0xff] %v2653
        %2686 = vst [vmem:[#allocation3 + $0x728] sm:$0xff] %v2654
        %2687 = vst [vmem:[#allocation3 + $0x730] sm:$0xff] %v2655
        %2688 = vst [vmem:[#allocation3 + $0x738] sm:$0xff] %v2656
        %2689 = vst [vmem:[#allocation3 + $0x740] sm:$0xff] %v2657
        %2690 = vst [vmem:[#allocation3 + $0x748] sm:$0xff] %v2658
        %2691 = vst [vmem:[#allocation3 + $0x750] sm:$0xff] %v2659
        %2692 = vst [vmem:[#allocation3 + $0x758] sm:$0xff] %v2660
        %2693 = vst [vmem:[#allocation3 + $0x760] sm:$0xff] %v2661
        %2694 = vst [vmem:[#allocation3 + $0x768] sm:$0xff] %v2662
        %2695 = vst [vmem:[#allocation3 + $0x770] sm:$0xff] %v2663
        %2696 = vst [vmem:[#allocation3 + $0x778] sm:$0xff] %v2664
        %v2697 = vld [vmem:[#allocation2 + $0x18] sm:$0xff]
        %v2698 = vld [vmem:[#allocation2 + $0x20] sm:$0xff]
        %v2699 = vld [vmem:[#allocation2 + $0x28] sm:$0xff]
        %v2700 = vld [vmem:[#allocation2 + $0x30] sm:$0xff]
        %v2701 = vld [vmem:[#allocation2 + $0x38] sm:$0xff]
        %v2702 = vld [vmem:[#allocation2 + $0x40] sm:$0xff]
        %v2703 = vld [vmem:[#allocation2 + $0x48] sm:$0xff]
        %v2704 = vld [vmem:[#allocation2 + $0x50] sm:$0xff]
        %v2705 = vld [vmem:[#allocation2 + $0x58] sm:$0xff]
        %v2706 = vld [vmem:[#allocation2 + $0x60] sm:$0xff]
        %v2707 = vld [vmem:[#allocation2 + $0x68] sm:$0xff]
        %v2708 = vld [vmem:[#allocation2 + $0x70] sm:$0xff]
        %v2709 = vld [vmem:[#allocation2 + $0x78] sm:$0xff]
        %v2710 = vld [vmem:[#allocation2 + $0x80] sm:$0xff]
        %v2711 = vld [vmem:[#allocation2 + $0x88] sm:$0xff]
        %v2712 = vld [vmem:[#allocation2 + $0x90] sm:$0xff]
        %2713 = vst [vmem:[#allocation3 + $0x780] sm:$0xff] %v2697
        %2714 = vst [vmem:[#allocation3 + $0x788] sm:$0xff] %v2698
        %2715 = vst [vmem:[#allocation3 + $0x790] sm:$0xff] %v2699
        %2716 = vst [vmem:[#allocation3 + $0x798] sm:$0xff] %v2700
        %2717 = vst [vmem:[#allocation3 + $0x7a0] sm:$0xff] %v2701
        %2718 = vst [vmem:[#allocation3 + $0x7a8] sm:$0xff] %v2702
        %2719 = vst [vmem:[#allocation3 + $0x7b0] sm:$0xff] %v2703
        %2720 = vst [vmem:[#allocation3 + $0x7b8] sm:$0xff] %v2704
        %2721 = vst [vmem:[#allocation3 + $0x7c0] sm:$0xff] %v2705
        %2722 = vst [vmem:[#allocation3 + $0x7c8] sm:$0xff] %v2706
        %2723 = vst [vmem:[#allocation3 + $0x7d0] sm:$0xff] %v2707
        %2724 = vst [vmem:[#allocation3 + $0x7d8] sm:$0xff] %v2708
        %2725 = vst [vmem:[#allocation3 + $0x7e0] sm:$0xff] %v2709
        %2726 = vst [vmem:[#allocation3 + $0x7e8] sm:$0xff] %v2710
        %2727 = vst [vmem:[#allocation3 + $0x7f0] sm:$0xff] %v2711
        %2728 = vst [vmem:[#allocation3 + $0x7f8] sm:$0xff] %v2712
        %v2729 = vld [vmem:[#allocation2 + $0x18] sm:$0xff]
        %v2730 = vld [vmem:[#allocation2 + $0x20] sm:$0xff]
        %v2731 = vld [vmem:[#allocation2 + $0x28] sm:$0xff]
        %v2732 = vld [vmem:[#allocation2 + $0x30] sm:$0xff]
        %v2733 = vld [vmem:[#allocation2 + $0x38] sm:$0xff]
        %v2734 = vld [vmem:[#allocation2 + $0x40] sm:$0xff]
        %v2735 = vld [vmem:[#allocation2 + $0x48] sm:$0xff]
        %v2736 = vld [vmem:[#allocation2 + $0x50] sm:$0xff]
        %v2737 = vld [vmem:[#allocation2 + $0x58] sm:$0xff]
        %v2738 = vld [vmem:[#allocation2 + $0x60] sm:$0xff]
        %v2739 = vld [vmem:[#allocation2 + $0x68] sm:$0xff]
        %v2740 = vld [vmem:[#allocation2 + $0x70] sm:$0xff]
        %v2741 = vld [vmem:[#allocation2 + $0x78] sm:$0xff]
        %v2742 = vld [vmem:[#allocation2 + $0x80] sm:$0xff]
        %v2743 = vld [vmem:[#allocation2 + $0x88] sm:$0xff]
        %v2744 = vld [vmem:[#allocation2 + $0x90] sm:$0xff]
        %v2745 = vld [vmem:[#allocation2 + $0x98] sm:$0xff]
        %2763 = vrot.lane.b32.xlu0 %v2729, 127
        %v2764 = vpop.permute.xlu0 %2763
        %2765 = vrot.lane.b32.xlu0 %v2730, 127
        %v2766 = vpop.permute.xlu0 %2765
        %2767 = vrot.lane.b32.xlu0 %v2731, 127
        %v2768 = vpop.permute.xlu0 %2767
        %2769 = vrot.lane.b32.xlu0 %v2732, 127
        %v2770 = vpop.permute.xlu0 %2769
        %2771 = vrot.lane.b32.xlu0 %v2733, 127
        %v2772 = vpop.permute.xlu0 %2771
        %2773 = vrot.lane.b32.xlu0 %v2734, 127
        %v2774 = vpop.permute.xlu0 %2773
        %2775 = vrot.lane.b32.xlu0 %v2735, 127
        %v2776 = vpop.permute.xlu0 %2775
        %2777 = vrot.lane.b32.xlu0 %v2736, 127
        %v2778 = vpop.permute.xlu0 %2777
        %2779 = vrot.lane.b32.xlu0 %v2737, 127
        %v2780 = vpop.permute.xlu0 %2779
        %2781 = vrot.lane.b32.xlu0 %v2738, 127
        %v2782 = vpop.permute.xlu0 %2781
        %2783 = vrot.lane.b32.xlu0 %v2739, 127
        %v2784 = vpop.permute.xlu0 %2783
        %2785 = vrot.lane.b32.xlu0 %v2740, 127
        %v2786 = vpop.permute.xlu0 %2785
        %2787 = vrot.lane.b32.xlu0 %v2741, 127
        %v2788 = vpop.permute.xlu0 %2787
        %2789 = vrot.lane.b32.xlu0 %v2742, 127
        %v2790 = vpop.permute.xlu0 %2789
        %2791 = vrot.lane.b32.xlu0 %v2743, 127
        %v2792 = vpop.permute.xlu0 %2791
        %2793 = vrot.lane.b32.xlu0 %v2744, 127
        %v2794 = vpop.permute.xlu0 %2793
        %2795 = vrot.lane.b32.xlu0 %v2745, 127
        %v2796 = vpop.permute.xlu0 %2795
        %v2797 = vsel %vm1305, %v2764, %v2766
        %v2798 = vsel %vm1305, %v2766, %v2768
        %v2799 = vsel %vm1305, %v2768, %v2770
        %v2800 = vsel %vm1305, %v2770, %v2772
        %v2801 = vsel %vm1305, %v2772, %v2774
        %v2802 = vsel %vm1305, %v2774, %v2776
        %v2803 = vsel %vm1305, %v2776, %v2778
        %v2804 = vsel %vm1305, %v2778, %v2780
        %v2805 = vsel %vm1305, %v2780, %v2782
        %v2806 = vsel %vm1305, %v2782, %v2784
        %v2807 = vsel %vm1305, %v2784, %v2786
        %v2808 = vsel %vm1305, %v2786, %v2788
        %v2809 = vsel %vm1305, %v2788, %v2790
        %v2810 = vsel %vm1305, %v2790, %v2792
        %v2811 = vsel %vm1305, %v2792, %v2794
        %v2812 = vsel %vm1305, %v2794, %v2796
        %2829 = vst [vmem:[#allocation3 + $0x800] sm:$0xff] %v2797
        %2830 = vst [vmem:[#allocation3 + $0x808] sm:$0xff] %v2798
        %2831 = vst [vmem:[#allocation3 + $0x810] sm:$0xff] %v2799
        %2832 = vst [vmem:[#allocation3 + $0x818] sm:$0xff] %v2800
        %2833 = vst [vmem:[#allocation3 + $0x820] sm:$0xff] %v2801
        %2834 = vst [vmem:[#allocation3 + $0x828] sm:$0xff] %v2802
        %2835 = vst [vmem:[#allocation3 + $0x830] sm:$0xff] %v2803
        %2836 = vst [vmem:[#allocation3 + $0x838] sm:$0xff] %v2804
        %2837 = vst [vmem:[#allocation3 + $0x840] sm:$0xff] %v2805
        %2838 = vst [vmem:[#allocation3 + $0x848] sm:$0xff] %v2806
        %2839 = vst [vmem:[#allocation3 + $0x850] sm:$0xff] %v2807
        %2840 = vst [vmem:[#allocation3 + $0x858] sm:$0xff] %v2808
        %2841 = vst [vmem:[#allocation3 + $0x860] sm:$0xff] %v2809
        %2842 = vst [vmem:[#allocation3 + $0x868] sm:$0xff] %v2810
        %2843 = vst [vmem:[#allocation3 + $0x870] sm:$0xff] %v2811
        %2844 = vst [vmem:[#allocation3 + $0x878] sm:$0xff] %v2812
        %v2845 = vld [vmem:[#allocation2 + $0x18] sm:$0xff]
        %v2846 = vld [vmem:[#allocation2 + $0x20] sm:$0xff]
        %v2847 = vld [vmem:[#allocation2 + $0x28] sm:$0xff]
        %v2848 = vld [vmem:[#allocation2 + $0x30] sm:$0xff]
        %v2849 = vld [vmem:[#allocation2 + $0x38] sm:$0xff]
        %v2850 = vld [vmem:[#allocation2 + $0x40] sm:$0xff]
        %v2851 = vld [vmem:[#allocation2 + $0x48] sm:$0xff]
        %v2852 = vld [vmem:[#allocation2 + $0x50] sm:$0xff]
        %v2853 = vld [vmem:[#allocation2 + $0x58] sm:$0xff]
        %v2854 = vld [vmem:[#allocation2 + $0x60] sm:$0xff]
        %v2855 = vld [vmem:[#allocation2 + $0x68] sm:$0xff]
        %v2856 = vld [vmem:[#allocation2 + $0x70] sm:$0xff]
        %v2857 = vld [vmem:[#allocation2 + $0x78] sm:$0xff]
        %v2858 = vld [vmem:[#allocation2 + $0x80] sm:$0xff]
        %v2859 = vld [vmem:[#allocation2 + $0x88] sm:$0xff]
        %v2860 = vld [vmem:[#allocation2 + $0x90] sm:$0xff]
        %v2861 = vld [vmem:[#allocation2 + $0x98] sm:$0xff]
        %2879 = vrot.lane.b32.xlu0 %v2845, 126
        %v2880 = vpop.permute.xlu0 %2879
        %2881 = vrot.lane.b32.xlu0 %v2846, 126
        %v2882 = vpop.permute.xlu0 %2881
        %2883 = vrot.lane.b32.xlu0 %v2847, 126
        %v2884 = vpop.permute.xlu0 %2883
        %2885 = vrot.lane.b32.xlu0 %v2848, 126
        %v2886 = vpop.permute.xlu0 %2885
        %2887 = vrot.lane.b32.xlu0 %v2849, 126
        %v2888 = vpop.permute.xlu0 %2887
        %2889 = vrot.lane.b32.xlu0 %v2850, 126
        %v2890 = vpop.permute.xlu0 %2889
        %2891 = vrot.lane.b32.xlu0 %v2851, 126
        %v2892 = vpop.permute.xlu0 %2891
        %2893 = vrot.lane.b32.xlu0 %v2852, 126
        %v2894 = vpop.permute.xlu0 %2893
        %2895 = vrot.lane.b32.xlu0 %v2853, 126
        %v2896 = vpop.permute.xlu0 %2895
        %2897 = vrot.lane.b32.xlu0 %v2854, 126
        %v2898 = vpop.permute.xlu0 %2897
        %2899 = vrot.lane.b32.xlu0 %v2855, 126
        %v2900 = vpop.permute.xlu0 %2899
        %2901 = vrot.lane.b32.xlu0 %v2856, 126
        %v2902 = vpop.permute.xlu0 %2901
        %2903 = vrot.lane.b32.xlu0 %v2857, 126
        %v2904 = vpop.permute.xlu0 %2903
        %2905 = vrot.lane.b32.xlu0 %v2858, 126
        %v2906 = vpop.permute.xlu0 %2905
        %2907 = vrot.lane.b32.xlu0 %v2859, 126
        %v2908 = vpop.permute.xlu0 %2907
        %2909 = vrot.lane.b32.xlu0 %v2860, 126
        %v2910 = vpop.permute.xlu0 %2909
        %2911 = vrot.lane.b32.xlu0 %v2861, 126
        %v2912 = vpop.permute.xlu0 %2911
        %v2913 = vsel %vm1422, %v2880, %v2882
        %v2914 = vsel %vm1422, %v2882, %v2884
        %v2915 = vsel %vm1422, %v2884, %v2886
        %v2916 = vsel %vm1422, %v2886, %v2888
        %v2917 = vsel %vm1422, %v2888, %v2890
        %v2918 = vsel %vm1422, %v2890, %v2892
        %v2919 = vsel %vm1422, %v2892, %v2894
        %v2920 = vsel %vm1422, %v2894, %v2896
        %v2921 = vsel %vm1422, %v2896, %v2898
        %v2922 = vsel %vm1422, %v2898, %v2900
        %v2923 = vsel %vm1422, %v2900, %v2902
        %v2924 = vsel %vm1422, %v2902, %v2904
        %v2925 = vsel %vm1422, %v2904, %v2906
        %v2926 = vsel %vm1422, %v2906, %v2908
        %v2927 = vsel %vm1422, %v2908, %v2910
        %v2928 = vsel %vm1422, %v2910, %v2912
        %2945 = vst [vmem:[#allocation3 + $0x880] sm:$0xff] %v2913
        %2946 = vst [vmem:[#allocation3 + $0x888] sm:$0xff] %v2914
        %2947 = vst [vmem:[#allocation3 + $0x890] sm:$0xff] %v2915
        %2948 = vst [vmem:[#allocation3 + $0x898] sm:$0xff] %v2916
        %2949 = vst [vmem:[#allocation3 + $0x8a0] sm:$0xff] %v2917
        %2950 = vst [vmem:[#allocation3 + $0x8a8] sm:$0xff] %v2918
        %2951 = vst [vmem:[#allocation3 + $0x8b0] sm:$0xff] %v2919
        %2952 = vst [vmem:[#allocation3 + $0x8b8] sm:$0xff] %v2920
        %2953 = vst [vmem:[#allocation3 + $0x8c0] sm:$0xff] %v2921
        %2954 = vst [vmem:[#allocation3 + $0x8c8] sm:$0xff] %v2922
        %2955 = vst [vmem:[#allocation3 + $0x8d0] sm:$0xff] %v2923
        %2956 = vst [vmem:[#allocation3 + $0x8d8] sm:$0xff] %v2924
        %2957 = vst [vmem:[#allocation3 + $0x8e0] sm:$0xff] %v2925
        %2958 = vst [vmem:[#allocation3 + $0x8e8] sm:$0xff] %v2926
        %2959 = vst [vmem:[#allocation3 + $0x8f0] sm:$0xff] %v2927
        %2960 = vst [vmem:[#allocation3 + $0x8f8] sm:$0xff] %v2928
        %v2961 = vld [vmem:[#allocation2 + $0x18] sm:$0xff]
        %v2962 = vld [vmem:[#allocation2 + $0x20] sm:$0xff]
        %v2963 = vld [vmem:[#allocation2 + $0x28] sm:$0xff]
        %v2964 = vld [vmem:[#allocation2 + $0x30] sm:$0xff]
        %v2965 = vld [vmem:[#allocation2 + $0x38] sm:$0xff]
        %v2966 = vld [vmem:[#allocation2 + $0x40] sm:$0xff]
        %v2967 = vld [vmem:[#allocation2 + $0x48] sm:$0xff]
        %v2968 = vld [vmem:[#allocation2 + $0x50] sm:$0xff]
        %v2969 = vld [vmem:[#allocation2 + $0x58] sm:$0xff]
        %v2970 = vld [vmem:[#allocation2 + $0x60] sm:$0xff]
        %v2971 = vld [vmem:[#allocation2 + $0x68] sm:$0xff]
        %v2972 = vld [vmem:[#allocation2 + $0x70] sm:$0xff]
        %v2973 = vld [vmem:[#allocation2 + $0x78] sm:$0xff]
        %v2974 = vld [vmem:[#allocation2 + $0x80] sm:$0xff]
        %v2975 = vld [vmem:[#allocation2 + $0x88] sm:$0xff]
        %v2976 = vld [vmem:[#allocation2 + $0x90] sm:$0xff]
        %v2977 = vld [vmem:[#allocation2 + $0x98] sm:$0xff]
        %2995 = vrot.lane.b32.xlu0 %v2961, 125
        %v2996 = vpop.permute.xlu0 %2995
        %2997 = vrot.lane.b32.xlu0 %v2962, 125
        %v2998 = vpop.permute.xlu0 %2997
        %2999 = vrot.lane.b32.xlu0 %v2963, 125
        %v3000 = vpop.permute.xlu0 %2999
        %3001 = vrot.lane.b32.xlu0 %v2964, 125
        %v3002 = vpop.permute.xlu0 %3001
        %3003 = vrot.lane.b32.xlu0 %v2965, 125
        %v3004 = vpop.permute.xlu0 %3003
        %3005 = vrot.lane.b32.xlu0 %v2966, 125
        %v3006 = vpop.permute.xlu0 %3005
        %3007 = vrot.lane.b32.xlu0 %v2967, 125
        %v3008 = vpop.permute.xlu0 %3007
        %3009 = vrot.lane.b32.xlu0 %v2968, 125
        %v3010 = vpop.permute.xlu0 %3009
        %3011 = vrot.lane.b32.xlu0 %v2969, 125
        %v3012 = vpop.permute.xlu0 %3011
        %3013 = vrot.lane.b32.xlu0 %v2970, 125
        %v3014 = vpop.permute.xlu0 %3013
        %3015 = vrot.lane.b32.xlu0 %v2971, 125
        %v3016 = vpop.permute.xlu0 %3015
        %3017 = vrot.lane.b32.xlu0 %v2972, 125
        %v3018 = vpop.permute.xlu0 %3017
        %3019 = vrot.lane.b32.xlu0 %v2973, 125
        %v3020 = vpop.permute.xlu0 %3019
        %3021 = vrot.lane.b32.xlu0 %v2974, 125
        %v3022 = vpop.permute.xlu0 %3021
        %3023 = vrot.lane.b32.xlu0 %v2975, 125
        %v3024 = vpop.permute.xlu0 %3023
        %3025 = vrot.lane.b32.xlu0 %v2976, 125
        %v3026 = vpop.permute.xlu0 %3025
        %3027 = vrot.lane.b32.xlu0 %v2977, 125
        %v3028 = vpop.permute.xlu0 %3027
        %v3029 = vsel %vm1539, %v2996, %v2998
        %v3030 = vsel %vm1539, %v2998, %v3000
        %v3031 = vsel %vm1539, %v3000, %v3002
        %v3032 = vsel %vm1539, %v3002, %v3004
        %v3033 = vsel %vm1539, %v3004, %v3006
        %v3034 = vsel %vm1539, %v3006, %v3008
        %v3035 = vsel %vm1539, %v3008, %v3010
        %v3036 = vsel %vm1539, %v3010, %v3012
        %v3037 = vsel %vm1539, %v3012, %v3014
        %v3038 = vsel %vm1539, %v3014, %v3016
        %v3039 = vsel %vm1539, %v3016, %v3018
        %v3040 = vsel %vm1539, %v3018, %v3020
        %v3041 = vsel %vm1539, %v3020, %v3022
        %v3042 = vsel %vm1539, %v3022, %v3024
        %v3043 = vsel %vm1539, %v3024, %v3026
        %v3044 = vsel %vm1539, %v3026, %v3028
        %3061 = vst [vmem:[#allocation3 + $0x900] sm:$0xff] %v3029
        %3062 = vst [vmem:[#allocation3 + $0x908] sm:$0xff] %v3030
        %3063 = vst [vmem:[#allocation3 + $0x910] sm:$0xff] %v3031
        %3064 = vst [vmem:[#allocation3 + $0x918] sm:$0xff] %v3032
        %3065 = vst [vmem:[#allocation3 + $0x920] sm:$0xff] %v3033
        %3066 = vst [vmem:[#allocation3 + $0x928] sm:$0xff] %v3034
        %3067 = vst [vmem:[#allocation3 + $0x930] sm:$0xff] %v3035
        %3068 = vst [vmem:[#allocation3 + $0x938] sm:$0xff] %v3036
        %3069 = vst [vmem:[#allocation3 + $0x940] sm:$0xff] %v3037
        %3070 = vst [vmem:[#allocation3 + $0x948] sm:$0xff] %v3038
        %3071 = vst [vmem:[#allocation3 + $0x950] sm:$0xff] %v3039
        %3072 = vst [vmem:[#allocation3 + $0x958] sm:$0xff] %v3040
        %3073 = vst [vmem:[#allocation3 + $0x960] sm:$0xff] %v3041
        %3074 = vst [vmem:[#allocation3 + $0x968] sm:$0xff] %v3042
        %3075 = vst [vmem:[#allocation3 + $0x970] sm:$0xff] %v3043
        %3076 = vst [vmem:[#allocation3 + $0x978] sm:$0xff] %v3044
        %v3077 = vld [vmem:[#allocation2 + $0x18] sm:$0xff]
        %v3078 = vld [vmem:[#allocation2 + $0x20] sm:$0xff]
        %v3079 = vld [vmem:[#allocation2 + $0x28] sm:$0xff]
        %v3080 = vld [vmem:[#allocation2 + $0x30] sm:$0xff]
        %v3081 = vld [vmem:[#allocation2 + $0x38] sm:$0xff]
        %v3082 = vld [vmem:[#allocation2 + $0x40] sm:$0xff]
        %v3083 = vld [vmem:[#allocation2 + $0x48] sm:$0xff]
        %v3084 = vld [vmem:[#allocation2 + $0x50] sm:$0xff]
        %v3085 = vld [vmem:[#allocation2 + $0x58] sm:$0xff]
        %v3086 = vld [vmem:[#allocation2 + $0x60] sm:$0xff]
        %v3087 = vld [vmem:[#allocation2 + $0x68] sm:$0xff]
        %v3088 = vld [vmem:[#allocation2 + $0x70] sm:$0xff]
        %v3089 = vld [vmem:[#allocation2 + $0x78] sm:$0xff]
        %v3090 = vld [vmem:[#allocation2 + $0x80] sm:$0xff]
        %v3091 = vld [vmem:[#allocation2 + $0x88] sm:$0xff]
        %v3092 = vld [vmem:[#allocation2 + $0x90] sm:$0xff]
        %v3093 = vld [vmem:[#allocation2 + $0x98] sm:$0xff]
        %3111 = vrot.lane.b32.xlu0 %v3077, 124
        %v3112 = vpop.permute.xlu0 %3111
        %3113 = vrot.lane.b32.xlu0 %v3078, 124
        %v3114 = vpop.permute.xlu0 %3113
        %3115 = vrot.lane.b32.xlu0 %v3079, 124
        %v3116 = vpop.permute.xlu0 %3115
        %3117 = vrot.lane.b32.xlu0 %v3080, 124
        %v3118 = vpop.permute.xlu0 %3117
        %3119 = vrot.lane.b32.xlu0 %v3081, 124
        %v3120 = vpop.permute.xlu0 %3119
        %3121 = vrot.lane.b32.xlu0 %v3082, 124
        %v3122 = vpop.permute.xlu0 %3121
        %3123 = vrot.lane.b32.xlu0 %v3083, 124
        %v3124 = vpop.permute.xlu0 %3123
        %3125 = vrot.lane.b32.xlu0 %v3084, 124
        %v3126 = vpop.permute.xlu0 %3125
        %3127 = vrot.lane.b32.xlu0 %v3085, 124
        %v3128 = vpop.permute.xlu0 %3127
        %3129 = vrot.lane.b32.xlu0 %v3086, 124
        %v3130 = vpop.permute.xlu0 %3129
        %3131 = vrot.lane.b32.xlu0 %v3087, 124
        %v3132 = vpop.permute.xlu0 %3131
        %3133 = vrot.lane.b32.xlu0 %v3088, 124
        %v3134 = vpop.permute.xlu0 %3133
        %3135 = vrot.lane.b32.xlu0 %v3089, 124
        %v3136 = vpop.permute.xlu0 %3135
        %3137 = vrot.lane.b32.xlu0 %v3090, 124
        %v3138 = vpop.permute.xlu0 %3137
        %3139 = vrot.lane.b32.xlu0 %v3091, 124
        %v3140 = vpop.permute.xlu0 %3139
        %3141 = vrot.lane.b32.xlu0 %v3092, 124
        %v3142 = vpop.permute.xlu0 %3141
        %3143 = vrot.lane.b32.xlu0 %v3093, 124
        %v3144 = vpop.permute.xlu0 %3143
        %v3145 = vsel %vm1656, %v3112, %v3114
        %v3146 = vsel %vm1656, %v3114, %v3116
        %v3147 = vsel %vm1656, %v3116, %v3118
        %v3148 = vsel %vm1656, %v3118, %v3120
        %v3149 = vsel %vm1656, %v3120, %v3122
        %v3150 = vsel %vm1656, %v3122, %v3124
        %v3151 = vsel %vm1656, %v3124, %v3126
        %v3152 = vsel %vm1656, %v3126, %v3128
        %v3153 = vsel %vm1656, %v3128, %v3130
        %v3154 = vsel %vm1656, %v3130, %v3132
        %v3155 = vsel %vm1656, %v3132, %v3134
        %v3156 = vsel %vm1656, %v3134, %v3136
        %v3157 = vsel %vm1656, %v3136, %v3138
        %v3158 = vsel %vm1656, %v3138, %v3140
        %v3159 = vsel %vm1656, %v3140, %v3142
        %v3160 = vsel %vm1656, %v3142, %v3144
        %3177 = vst [vmem:[#allocation3 + $0x980] sm:$0xff] %v3145
        %3178 = vst [vmem:[#allocation3 + $0x988] sm:$0xff] %v3146
        %3179 = vst [vmem:[#allocation3 + $0x990] sm:$0xff] %v3147
        %3180 = vst [vmem:[#allocation3 + $0x998] sm:$0xff] %v3148
        %3181 = vst [vmem:[#allocation3 + $0x9a0] sm:$0xff] %v3149
        %3182 = vst [vmem:[#allocation3 + $0x9a8] sm:$0xff] %v3150
        %3183 = vst [vmem:[#allocation3 + $0x9b0] sm:$0xff] %v3151
        %3184 = vst [vmem:[#allocation3 + $0x9b8] sm:$0xff] %v3152
        %3185 = vst [vmem:[#allocation3 + $0x9c0] sm:$0xff] %v3153
        %3186 = vst [vmem:[#allocation3 + $0x9c8] sm:$0xff] %v3154
        %3187 = vst [vmem:[#allocation3 + $0x9d0] sm:$0xff] %v3155
        %3188 = vst [vmem:[#allocation3 + $0x9d8] sm:$0xff] %v3156
        %3189 = vst [vmem:[#allocation3 + $0x9e0] sm:$0xff] %v3157
        %3190 = vst [vmem:[#allocation3 + $0x9e8] sm:$0xff] %v3158
        %3191 = vst [vmem:[#allocation3 + $0x9f0] sm:$0xff] %v3159
        %3192 = vst [vmem:[#allocation3 + $0x9f8] sm:$0xff] %v3160
        %v3193 = vld [vmem:[#allocation2 + $0x20] sm:$0xff]
        %v3194 = vld [vmem:[#allocation2 + $0x28] sm:$0xff]
        %v3195 = vld [vmem:[#allocation2 + $0x30] sm:$0xff]
        %v3196 = vld [vmem:[#allocation2 + $0x38] sm:$0xff]
        %v3197 = vld [vmem:[#allocation2 + $0x40] sm:$0xff]
        %v3198 = vld [vmem:[#allocation2 + $0x48] sm:$0xff]
        %v3199 = vld [vmem:[#allocation2 + $0x50] sm:$0xff]
        %v3200 = vld [vmem:[#allocation2 + $0x58] sm:$0xff]
        %v3201 = vld [vmem:[#allocation2 + $0x60] sm:$0xff]
        %v3202 = vld [vmem:[#allocation2 + $0x68] sm:$0xff]
        %v3203 = vld [vmem:[#allocation2 + $0x70] sm:$0xff]
        %v3204 = vld [vmem:[#allocation2 + $0x78] sm:$0xff]
        %v3205 = vld [vmem:[#allocation2 + $0x80] sm:$0xff]
        %v3206 = vld [vmem:[#allocation2 + $0x88] sm:$0xff]
        %v3207 = vld [vmem:[#allocation2 + $0x90] sm:$0xff]
        %v3208 = vld [vmem:[#allocation2 + $0x98] sm:$0xff]
        %3209 = vst [vmem:[#allocation3 + $0xa00] sm:$0xff] %v3193
        %3210 = vst [vmem:[#allocation3 + $0xa08] sm:$0xff] %v3194
        %3211 = vst [vmem:[#allocation3 + $0xa10] sm:$0xff] %v3195
        %3212 = vst [vmem:[#allocation3 + $0xa18] sm:$0xff] %v3196
        %3213 = vst [vmem:[#allocation3 + $0xa20] sm:$0xff] %v3197
        %3214 = vst [vmem:[#allocation3 + $0xa28] sm:$0xff] %v3198
        %3215 = vst [vmem:[#allocation3 + $0xa30] sm:$0xff] %v3199
        %3216 = vst [vmem:[#allocation3 + $0xa38] sm:$0xff] %v3200
        %3217 = vst [vmem:[#allocation3 + $0xa40] sm:$0xff] %v3201
        %3218 = vst [vmem:[#allocation3 + $0xa48] sm:$0xff] %v3202
        %3219 = vst [vmem:[#allocation3 + $0xa50] sm:$0xff] %v3203
        %3220 = vst [vmem:[#allocation3 + $0xa58] sm:$0xff] %v3204
        %3221 = vst [vmem:[#allocation3 + $0xa60] sm:$0xff] %v3205
        %3222 = vst [vmem:[#allocation3 + $0xa68] sm:$0xff] %v3206
        %3223 = vst [vmem:[#allocation3 + $0xa70] sm:$0xff] %v3207
        %3224 = vst [vmem:[#allocation3 + $0xa78] sm:$0xff] %v3208
        %v3225 = vld [vmem:[#allocation2 + $0x20] sm:$0xff]
        %v3226 = vld [vmem:[#allocation2 + $0x28] sm:$0xff]
        %v3227 = vld [vmem:[#allocation2 + $0x30] sm:$0xff]
        %v3228 = vld [vmem:[#allocation2 + $0x38] sm:$0xff]
        %v3229 = vld [vmem:[#allocation2 + $0x40] sm:$0xff]
        %v3230 = vld [vmem:[#allocation2 + $0x48] sm:$0xff]
        %v3231 = vld [vmem:[#allocation2 + $0x50] sm:$0xff]
        %v3232 = vld [vmem:[#allocation2 + $0x58] sm:$0xff]
        %v3233 = vld [vmem:[#allocation2 + $0x60] sm:$0xff]
        %v3234 = vld [vmem:[#allocation2 + $0x68] sm:$0xff]
        %v3235 = vld [vmem:[#allocation2 + $0x70] sm:$0xff]
        %v3236 = vld [vmem:[#allocation2 + $0x78] sm:$0xff]
        %v3237 = vld [vmem:[#allocation2 + $0x80] sm:$0xff]
        %v3238 = vld [vmem:[#allocation2 + $0x88] sm:$0xff]
        %v3239 = vld [vmem:[#allocation2 + $0x90] sm:$0xff]
        %v3240 = vld [vmem:[#allocation2 + $0x98] sm:$0xff]
        %v3241 = vld [vmem:[#allocation2 + $0xa0] sm:$0xff]
        %3259 = vrot.lane.b32.xlu0 %v3225, 127
        %v3260 = vpop.permute.xlu0 %3259
        %3261 = vrot.lane.b32.xlu0 %v3226, 127
        %v3262 = vpop.permute.xlu0 %3261
        %3263 = vrot.lane.b32.xlu0 %v3227, 127
        %v3264 = vpop.permute.xlu0 %3263
        %3265 = vrot.lane.b32.xlu0 %v3228, 127
        %v3266 = vpop.permute.xlu0 %3265
        %3267 = vrot.lane.b32.xlu0 %v3229, 127
        %v3268 = vpop.permute.xlu0 %3267
        %3269 = vrot.lane.b32.xlu0 %v3230, 127
        %v3270 = vpop.permute.xlu0 %3269
        %3271 = vrot.lane.b32.xlu0 %v3231, 127
        %v3272 = vpop.permute.xlu0 %3271
        %3273 = vrot.lane.b32.xlu0 %v3232, 127
        %v3274 = vpop.permute.xlu0 %3273
        %3275 = vrot.lane.b32.xlu0 %v3233, 127
        %v3276 = vpop.permute.xlu0 %3275
        %3277 = vrot.lane.b32.xlu0 %v3234, 127
        %v3278 = vpop.permute.xlu0 %3277
        %3279 = vrot.lane.b32.xlu0 %v3235, 127
        %v3280 = vpop.permute.xlu0 %3279
        %3281 = vrot.lane.b32.xlu0 %v3236, 127
        %v3282 = vpop.permute.xlu0 %3281
        %3283 = vrot.lane.b32.xlu0 %v3237, 127
        %v3284 = vpop.permute.xlu0 %3283
        %3285 = vrot.lane.b32.xlu0 %v3238, 127
        %v3286 = vpop.permute.xlu0 %3285
        %3287 = vrot.lane.b32.xlu0 %v3239, 127
        %v3288 = vpop.permute.xlu0 %3287
        %3289 = vrot.lane.b32.xlu0 %v3240, 127
        %v3290 = vpop.permute.xlu0 %3289
        %3291 = vrot.lane.b32.xlu0 %v3241, 127
        %v3292 = vpop.permute.xlu0 %3291
        %v3293 = vsel %vm1305, %v3260, %v3262
        %v3294 = vsel %vm1305, %v3262, %v3264
        %v3295 = vsel %vm1305, %v3264, %v3266
        %v3296 = vsel %vm1305, %v3266, %v3268
        %v3297 = vsel %vm1305, %v3268, %v3270
        %v3298 = vsel %vm1305, %v3270, %v3272
        %v3299 = vsel %vm1305, %v3272, %v3274
        %v3300 = vsel %vm1305, %v3274, %v3276
        %v3301 = vsel %vm1305, %v3276, %v3278
        %v3302 = vsel %vm1305, %v3278, %v3280
        %v3303 = vsel %vm1305, %v3280, %v3282
        %v3304 = vsel %vm1305, %v3282, %v3284
        %v3305 = vsel %vm1305, %v3284, %v3286
        %v3306 = vsel %vm1305, %v3286, %v3288
        %v3307 = vsel %vm1305, %v3288, %v3290
        %v3308 = vsel %vm1305, %v3290, %v3292
        %3325 = vst [vmem:[#allocation3 + $0xa80] sm:$0xff] %v3293
        %3326 = vst [vmem:[#allocation3 + $0xa88] sm:$0xff] %v3294
        %3327 = vst [vmem:[#allocation3 + $0xa90] sm:$0xff] %v3295
        %3328 = vst [vmem:[#allocation3 + $0xa98] sm:$0xff] %v3296
        %3329 = vst [vmem:[#allocation3 + $0xaa0] sm:$0xff] %v3297
        %3330 = vst [vmem:[#allocation3 + $0xaa8] sm:$0xff] %v3298
        %3331 = vst [vmem:[#allocation3 + $0xab0] sm:$0xff] %v3299
        %3332 = vst [vmem:[#allocation3 + $0xab8] sm:$0xff] %v3300
        %3333 = vst [vmem:[#allocation3 + $0xac0] sm:$0xff] %v3301
        %3334 = vst [vmem:[#allocation3 + $0xac8] sm:$0xff] %v3302
        %3335 = vst [vmem:[#allocation3 + $0xad0] sm:$0xff] %v3303
        %3336 = vst [vmem:[#allocation3 + $0xad8] sm:$0xff] %v3304
        %3337 = vst [vmem:[#allocation3 + $0xae0] sm:$0xff] %v3305
        %3338 = vst [vmem:[#allocation3 + $0xae8] sm:$0xff] %v3306
        %3339 = vst [vmem:[#allocation3 + $0xaf0] sm:$0xff] %v3307
        %3340 = vst [vmem:[#allocation3 + $0xaf8] sm:$0xff] %v3308
        %v3341 = vld [vmem:[#allocation2 + $0x20] sm:$0xff]
        %v3342 = vld [vmem:[#allocation2 + $0x28] sm:$0xff]
        %v3343 = vld [vmem:[#allocation2 + $0x30] sm:$0xff]
        %v3344 = vld [vmem:[#allocation2 + $0x38] sm:$0xff]
        %v3345 = vld [vmem:[#allocation2 + $0x40] sm:$0xff]
        %v3346 = vld [vmem:[#allocation2 + $0x48] sm:$0xff]
        %v3347 = vld [vmem:[#allocation2 + $0x50] sm:$0xff]
        %v3348 = vld [vmem:[#allocation2 + $0x58] sm:$0xff]
        %v3349 = vld [vmem:[#allocation2 + $0x60] sm:$0xff]
        %v3350 = vld [vmem:[#allocation2 + $0x68] sm:$0xff]
        %v3351 = vld [vmem:[#allocation2 + $0x70] sm:$0xff]
        %v3352 = vld [vmem:[#allocation2 + $0x78] sm:$0xff]
        %v3353 = vld [vmem:[#allocation2 + $0x80] sm:$0xff]
        %v3354 = vld [vmem:[#allocation2 + $0x88] sm:$0xff]
        %v3355 = vld [vmem:[#allocation2 + $0x90] sm:$0xff]
        %v3356 = vld [vmem:[#allocation2 + $0x98] sm:$0xff]
        %v3357 = vld [vmem:[#allocation2 + $0xa0] sm:$0xff]
        %3375 = vrot.lane.b32.xlu0 %v3341, 126
        %v3376 = vpop.permute.xlu0 %3375
        %3377 = vrot.lane.b32.xlu0 %v3342, 126
        %v3378 = vpop.permute.xlu0 %3377
        %3379 = vrot.lane.b32.xlu0 %v3343, 126
        %v3380 = vpop.permute.xlu0 %3379
        %3381 = vrot.lane.b32.xlu0 %v3344, 126
        %v3382 = vpop.permute.xlu0 %3381
        %3383 = vrot.lane.b32.xlu0 %v3345, 126
        %v3384 = vpop.permute.xlu0 %3383
        %3385 = vrot.lane.b32.xlu0 %v3346, 126
        %v3386 = vpop.permute.xlu0 %3385
        %3387 = vrot.lane.b32.xlu0 %v3347, 126
        %v3388 = vpop.permute.xlu0 %3387
        %3389 = vrot.lane.b32.xlu0 %v3348, 126
        %v3390 = vpop.permute.xlu0 %3389
        %3391 = vrot.lane.b32.xlu0 %v3349, 126
        %v3392 = vpop.permute.xlu0 %3391
        %3393 = vrot.lane.b32.xlu0 %v3350, 126
        %v3394 = vpop.permute.xlu0 %3393
        %3395 = vrot.lane.b32.xlu0 %v3351, 126
        %v3396 = vpop.permute.xlu0 %3395
        %3397 = vrot.lane.b32.xlu0 %v3352, 126
        %v3398 = vpop.permute.xlu0 %3397
        %3399 = vrot.lane.b32.xlu0 %v3353, 126
        %v3400 = vpop.permute.xlu0 %3399
        %3401 = vrot.lane.b32.xlu0 %v3354, 126
        %v3402 = vpop.permute.xlu0 %3401
        %3403 = vrot.lane.b32.xlu0 %v3355, 126
        %v3404 = vpop.permute.xlu0 %3403
        %3405 = vrot.lane.b32.xlu0 %v3356, 126
        %v3406 = vpop.permute.xlu0 %3405
        %3407 = vrot.lane.b32.xlu0 %v3357, 126
        %v3408 = vpop.permute.xlu0 %3407
        %v3409 = vsel %vm1422, %v3376, %v3378
        %v3410 = vsel %vm1422, %v3378, %v3380
        %v3411 = vsel %vm1422, %v3380, %v3382
        %v3412 = vsel %vm1422, %v3382, %v3384
        %v3413 = vsel %vm1422, %v3384, %v3386
        %v3414 = vsel %vm1422, %v3386, %v3388
        %v3415 = vsel %vm1422, %v3388, %v3390
        %v3416 = vsel %vm1422, %v3390, %v3392
        %v3417 = vsel %vm1422, %v3392, %v3394
        %v3418 = vsel %vm1422, %v3394, %v3396
        %v3419 = vsel %vm1422, %v3396, %v3398
        %v3420 = vsel %vm1422, %v3398, %v3400
        %v3421 = vsel %vm1422, %v3400, %v3402
        %v3422 = vsel %vm1422, %v3402, %v3404
        %v3423 = vsel %vm1422, %v3404, %v3406
        %v3424 = vsel %vm1422, %v3406, %v3408
        %3441 = vst [vmem:[#allocation3 + $0xb00] sm:$0xff] %v3409
        %3442 = vst [vmem:[#allocation3 + $0xb08] sm:$0xff] %v3410
        %3443 = vst [vmem:[#allocation3 + $0xb10] sm:$0xff] %v3411
        %3444 = vst [vmem:[#allocation3 + $0xb18] sm:$0xff] %v3412
        %3445 = vst [vmem:[#allocation3 + $0xb20] sm:$0xff] %v3413
        %3446 = vst [vmem:[#allocation3 + $0xb28] sm:$0xff] %v3414
        %3447 = vst [vmem:[#allocation3 + $0xb30] sm:$0xff] %v3415
        %3448 = vst [vmem:[#allocation3 + $0xb38] sm:$0xff] %v3416
        %3449 = vst [vmem:[#allocation3 + $0xb40] sm:$0xff] %v3417
        %3450 = vst [vmem:[#allocation3 + $0xb48] sm:$0xff] %v3418
        %3451 = vst [vmem:[#allocation3 + $0xb50] sm:$0xff] %v3419
        %3452 = vst [vmem:[#allocation3 + $0xb58] sm:$0xff] %v3420
        %3453 = vst [vmem:[#allocation3 + $0xb60] sm:$0xff] %v3421
        %3454 = vst [vmem:[#allocation3 + $0xb68] sm:$0xff] %v3422
        %3455 = vst [vmem:[#allocation3 + $0xb70] sm:$0xff] %v3423
        %3456 = vst [vmem:[#allocation3 + $0xb78] sm:$0xff] %v3424
        %v3457 = vld [vmem:[#allocation2 + $0x20] sm:$0xff]
        %v3458 = vld [vmem:[#allocation2 + $0x28] sm:$0xff]
        %v3459 = vld [vmem:[#allocation2 + $0x30] sm:$0xff]
        %v3460 = vld [vmem:[#allocation2 + $0x38] sm:$0xff]
        %v3461 = vld [vmem:[#allocation2 + $0x40] sm:$0xff]
        %v3462 = vld [vmem:[#allocation2 + $0x48] sm:$0xff]
        %v3463 = vld [vmem:[#allocation2 + $0x50] sm:$0xff]
        %v3464 = vld [vmem:[#allocation2 + $0x58] sm:$0xff]
        %v3465 = vld [vmem:[#allocation2 + $0x60] sm:$0xff]
        %v3466 = vld [vmem:[#allocation2 + $0x68] sm:$0xff]
        %v3467 = vld [vmem:[#allocation2 + $0x70] sm:$0xff]
        %v3468 = vld [vmem:[#allocation2 + $0x78] sm:$0xff]
        %v3469 = vld [vmem:[#allocation2 + $0x80] sm:$0xff]
        %v3470 = vld [vmem:[#allocation2 + $0x88] sm:$0xff]
        %v3471 = vld [vmem:[#allocation2 + $0x90] sm:$0xff]
        %v3472 = vld [vmem:[#allocation2 + $0x98] sm:$0xff]
        %v3473 = vld [vmem:[#allocation2 + $0xa0] sm:$0xff]
        %3491 = vrot.lane.b32.xlu0 %v3457, 125
        %v3492 = vpop.permute.xlu0 %3491
        %3493 = vrot.lane.b32.xlu0 %v3458, 125
        %v3494 = vpop.permute.xlu0 %3493
        %3495 = vrot.lane.b32.xlu0 %v3459, 125
        %v3496 = vpop.permute.xlu0 %3495
        %3497 = vrot.lane.b32.xlu0 %v3460, 125
        %v3498 = vpop.permute.xlu0 %3497
        %3499 = vrot.lane.b32.xlu0 %v3461, 125
        %v3500 = vpop.permute.xlu0 %3499
        %3501 = vrot.lane.b32.xlu0 %v3462, 125
        %v3502 = vpop.permute.xlu0 %3501
        %3503 = vrot.lane.b32.xlu0 %v3463, 125
        %v3504 = vpop.permute.xlu0 %3503
        %3505 = vrot.lane.b32.xlu0 %v3464, 125
        %v3506 = vpop.permute.xlu0 %3505
        %3507 = vrot.lane.b32.xlu0 %v3465, 125
        %v3508 = vpop.permute.xlu0 %3507
        %3509 = vrot.lane.b32.xlu0 %v3466, 125
        %v3510 = vpop.permute.xlu0 %3509
        %3511 = vrot.lane.b32.xlu0 %v3467, 125
        %v3512 = vpop.permute.xlu0 %3511
        %3513 = vrot.lane.b32.xlu0 %v3468, 125
        %v3514 = vpop.permute.xlu0 %3513
        %3515 = vrot.lane.b32.xlu0 %v3469, 125
        %v3516 = vpop.permute.xlu0 %3515
        %3517 = vrot.lane.b32.xlu0 %v3470, 125
        %v3518 = vpop.permute.xlu0 %3517
        %3519 = vrot.lane.b32.xlu0 %v3471, 125
        %v3520 = vpop.permute.xlu0 %3519
        %3521 = vrot.lane.b32.xlu0 %v3472, 125
        %v3522 = vpop.permute.xlu0 %3521
        %3523 = vrot.lane.b32.xlu0 %v3473, 125
        %v3524 = vpop.permute.xlu0 %3523
        %v3525 = vsel %vm1539, %v3492, %v3494
        %v3526 = vsel %vm1539, %v3494, %v3496
        %v3527 = vsel %vm1539, %v3496, %v3498
        %v3528 = vsel %vm1539, %v3498, %v3500
        %v3529 = vsel %vm1539, %v3500, %v3502
        %v3530 = vsel %vm1539, %v3502, %v3504
        %v3531 = vsel %vm1539, %v3504, %v3506
        %v3532 = vsel %vm1539, %v3506, %v3508
        %v3533 = vsel %vm1539, %v3508, %v3510
        %v3534 = vsel %vm1539, %v3510, %v3512
        %v3535 = vsel %vm1539, %v3512, %v3514
        %v3536 = vsel %vm1539, %v3514, %v3516
        %v3537 = vsel %vm1539, %v3516, %v3518
        %v3538 = vsel %vm1539, %v3518, %v3520
        %v3539 = vsel %vm1539, %v3520, %v3522
        %v3540 = vsel %vm1539, %v3522, %v3524
        %3557 = vst [vmem:[#allocation3 + $0xb80] sm:$0xff] %v3525
        %3558 = vst [vmem:[#allocation3 + $0xb88] sm:$0xff] %v3526
        %3559 = vst [vmem:[#allocation3 + $0xb90] sm:$0xff] %v3527
        %3560 = vst [vmem:[#allocation3 + $0xb98] sm:$0xff] %v3528
        %3561 = vst [vmem:[#allocation3 + $0xba0] sm:$0xff] %v3529
        %3562 = vst [vmem:[#allocation3 + $0xba8] sm:$0xff] %v3530
        %3563 = vst [vmem:[#allocation3 + $0xbb0] sm:$0xff] %v3531
        %3564 = vst [vmem:[#allocation3 + $0xbb8] sm:$0xff] %v3532
        %3565 = vst [vmem:[#allocation3 + $0xbc0] sm:$0xff] %v3533
        %3566 = vst [vmem:[#allocation3 + $0xbc8] sm:$0xff] %v3534
        %3567 = vst [vmem:[#allocation3 + $0xbd0] sm:$0xff] %v3535
        %3568 = vst [vmem:[#allocation3 + $0xbd8] sm:$0xff] %v3536
        %3569 = vst [vmem:[#allocation3 + $0xbe0] sm:$0xff] %v3537
        %3570 = vst [vmem:[#allocation3 + $0xbe8] sm:$0xff] %v3538
        %3571 = vst [vmem:[#allocation3 + $0xbf0] sm:$0xff] %v3539
        %3572 = vst [vmem:[#allocation3 + $0xbf8] sm:$0xff] %v3540
        %v3573 = vld [vmem:[#allocation2 + $0x20] sm:$0xff]
        %v3574 = vld [vmem:[#allocation2 + $0x28] sm:$0xff]
        %v3575 = vld [vmem:[#allocation2 + $0x30] sm:$0xff]
        %v3576 = vld [vmem:[#allocation2 + $0x38] sm:$0xff]
        %v3577 = vld [vmem:[#allocation2 + $0x40] sm:$0xff]
        %v3578 = vld [vmem:[#allocation2 + $0x48] sm:$0xff]
        %v3579 = vld [vmem:[#allocation2 + $0x50] sm:$0xff]
        %v3580 = vld [vmem:[#allocation2 + $0x58] sm:$0xff]
        %v3581 = vld [vmem:[#allocation2 + $0x60] sm:$0xff]
        %v3582 = vld [vmem:[#allocation2 + $0x68] sm:$0xff]
        %v3583 = vld [vmem:[#allocation2 + $0x70] sm:$0xff]
        %v3584 = vld [vmem:[#allocation2 + $0x78] sm:$0xff]
        %v3585 = vld [vmem:[#allocation2 + $0x80] sm:$0xff]
        %v3586 = vld [vmem:[#allocation2 + $0x88] sm:$0xff]
        %v3587 = vld [vmem:[#allocation2 + $0x90] sm:$0xff]
        %v3588 = vld [vmem:[#allocation2 + $0x98] sm:$0xff]
        %v3589 = vld [vmem:[#allocation2 + $0xa0] sm:$0xff]
        %3607 = vrot.lane.b32.xlu0 %v3573, 124
        %v3608 = vpop.permute.xlu0 %3607
        %3609 = vrot.lane.b32.xlu0 %v3574, 124
        %v3610 = vpop.permute.xlu0 %3609
        %3611 = vrot.lane.b32.xlu0 %v3575, 124
        %v3612 = vpop.permute.xlu0 %3611
        %3613 = vrot.lane.b32.xlu0 %v3576, 124
        %v3614 = vpop.permute.xlu0 %3613
        %3615 = vrot.lane.b32.xlu0 %v3577, 124
        %v3616 = vpop.permute.xlu0 %3615
        %3617 = vrot.lane.b32.xlu0 %v3578, 124
        %v3618 = vpop.permute.xlu0 %3617
        %3619 = vrot.lane.b32.xlu0 %v3579, 124
        %v3620 = vpop.permute.xlu0 %3619
        %3621 = vrot.lane.b32.xlu0 %v3580, 124
        %v3622 = vpop.permute.xlu0 %3621
        %3623 = vrot.lane.b32.xlu0 %v3581, 124
        %v3624 = vpop.permute.xlu0 %3623
        %3625 = vrot.lane.b32.xlu0 %v3582, 124
        %v3626 = vpop.permute.xlu0 %3625
        %3627 = vrot.lane.b32.xlu0 %v3583, 124
        %v3628 = vpop.permute.xlu0 %3627
        %3629 = vrot.lane.b32.xlu0 %v3584, 124
        %v3630 = vpop.permute.xlu0 %3629
        %3631 = vrot.lane.b32.xlu0 %v3585, 124
        %v3632 = vpop.permute.xlu0 %3631
        %3633 = vrot.lane.b32.xlu0 %v3586, 124
        %v3634 = vpop.permute.xlu0 %3633
        %3635 = vrot.lane.b32.xlu0 %v3587, 124
        %v3636 = vpop.permute.xlu0 %3635
        %3637 = vrot.lane.b32.xlu0 %v3588, 124
        %v3638 = vpop.permute.xlu0 %3637
        %3639 = vrot.lane.b32.xlu0 %v3589, 124
        %v3640 = vpop.permute.xlu0 %3639
        %v3641 = vsel %vm1656, %v3608, %v3610
        %v3642 = vsel %vm1656, %v3610, %v3612
        %v3643 = vsel %vm1656, %v3612, %v3614
        %v3644 = vsel %vm1656, %v3614, %v3616
        %v3645 = vsel %vm1656, %v3616, %v3618
        %v3646 = vsel %vm1656, %v3618, %v3620
        %v3647 = vsel %vm1656, %v3620, %v3622
        %v3648 = vsel %vm1656, %v3622, %v3624
        %v3649 = vsel %vm1656, %v3624, %v3626
        %v3650 = vsel %vm1656, %v3626, %v3628
        %v3651 = vsel %vm1656, %v3628, %v3630
        %v3652 = vsel %vm1656, %v3630, %v3632
        %v3653 = vsel %vm1656, %v3632, %v3634
        %v3654 = vsel %vm1656, %v3634, %v3636
        %v3655 = vsel %vm1656, %v3636, %v3638
        %v3656 = vsel %vm1656, %v3638, %v3640
        %3673 = vst [vmem:[#allocation3 + $0xc00] sm:$0xff] %v3641
        %3674 = vst [vmem:[#allocation3 + $0xc08] sm:$0xff] %v3642
        %3675 = vst [vmem:[#allocation3 + $0xc10] sm:$0xff] %v3643
        %3676 = vst [vmem:[#allocation3 + $0xc18] sm:$0xff] %v3644
        %3677 = vst [vmem:[#allocation3 + $0xc20] sm:$0xff] %v3645
        %3678 = vst [vmem:[#allocation3 + $0xc28] sm:$0xff] %v3646
        %3679 = vst [vmem:[#allocation3 + $0xc30] sm:$0xff] %v3647
        %3680 = vst [vmem:[#allocation3 + $0xc38] sm:$0xff] %v3648
        %3681 = vst [vmem:[#allocation3 + $0xc40] sm:$0xff] %v3649
        %3682 = vst [vmem:[#allocation3 + $0xc48] sm:$0xff] %v3650
        %3683 = vst [vmem:[#allocation3 + $0xc50] sm:$0xff] %v3651
        %3684 = vst [vmem:[#allocation3 + $0xc58] sm:$0xff] %v3652
        %3685 = vst [vmem:[#allocation3 + $0xc60] sm:$0xff] %v3653
        %3686 = vst [vmem:[#allocation3 + $0xc68] sm:$0xff] %v3654
        %3687 = vst [vmem:[#allocation3 + $0xc70] sm:$0xff] %v3655
        %3688 = vst [vmem:[#allocation3 + $0xc78] sm:$0xff] %v3656
        %v3689 = vld [vmem:[%s5] sm:$0xff]
        %v3690 = vld [vmem:[%s5 + $0x8] sm:$0xff]
        %v3691 = vld [vmem:[%s5 + $0x10] sm:$0xff]
        %v3692 = vld [vmem:[%s5 + $0x18] sm:$0xff]
        %v3693 = vld [vmem:[%s5 + $0x20] sm:$0xff]
        %v3694 = vld [vmem:[%s5 + $0x28] sm:$0xff]
        %v3695 = vld [vmem:[#allocation3] sm:$0xff]
        %v3696 = vld [vmem:[#allocation3 + $0x8] sm:$0xff]
        %v3697 = vld [vmem:[#allocation3 + $0x10] sm:$0xff]
        %v3698 = vld [vmem:[#allocation3 + $0x18] sm:$0xff]
        %v3699 = vld [vmem:[#allocation3 + $0x20] sm:$0xff]
        %v3700 = vld [vmem:[#allocation3 + $0x28] sm:$0xff]
        %v3701 = vld [vmem:[#allocation3 + $0x30] sm:$0xff]
        %v3702 = vld [vmem:[#allocation3 + $0x38] sm:$0xff]
        %v3703 = vld [vmem:[#allocation3 + $0x40] sm:$0xff]
        %v3704 = vld [vmem:[#allocation3 + $0x48] sm:$0xff]
        %v3705 = vld [vmem:[#allocation3 + $0x50] sm:$0xff]
        %v3706 = vld [vmem:[#allocation3 + $0x58] sm:$0xff]
        %v3707 = vld [vmem:[#allocation3 + $0x60] sm:$0xff]
        %v3708 = vld [vmem:[#allocation3 + $0x68] sm:$0xff]
        %v3709 = vld [vmem:[#allocation3 + $0x70] sm:$0xff]
        %v3710 = vld [vmem:[#allocation3 + $0x78] sm:$0xff]
        %v3711 = vld [vmem:[#allocation3 + $0x80] sm:$0xff]
        %v3712 = vld [vmem:[#allocation3 + $0x88] sm:$0xff]
        %v3713 = vld [vmem:[#allocation3 + $0x90] sm:$0xff]
        %v3714 = vld [vmem:[#allocation3 + $0x98] sm:$0xff]
        %v3715 = vld [vmem:[#allocation3 + $0xa0] sm:$0xff]
        %v3716 = vld [vmem:[#allocation3 + $0xa8] sm:$0xff]
        %v3717 = vld [vmem:[#allocation3 + $0xb0] sm:$0xff]
        %v3718 = vld [vmem:[#allocation3 + $0xb8] sm:$0xff]
        %v3719 = vld [vmem:[#allocation3 + $0xc0] sm:$0xff]
        %v3720 = vld [vmem:[#allocation3 + $0xc8] sm:$0xff]
        %v3721 = vld [vmem:[#allocation3 + $0xd0] sm:$0xff]
        %v3722 = vld [vmem:[#allocation3 + $0xd8] sm:$0xff]
        %v3723 = vld [vmem:[#allocation3 + $0xe0] sm:$0xff]
        %v3724 = vld [vmem:[#allocation3 + $0xe8] sm:$0xff]
        %v3725 = vld [vmem:[#allocation3 + $0xf0] sm:$0xff]
        %v3726 = vld [vmem:[#allocation3 + $0xf8] sm:$0xff]
        %v3727 = vld [vmem:[#allocation3 + $0x100] sm:$0xff]
        %v3728 = vld [vmem:[#allocation3 + $0x108] sm:$0xff]
        %v3729 = vld [vmem:[#allocation3 + $0x110] sm:$0xff]
        %v3730 = vld [vmem:[#allocation3 + $0x118] sm:$0xff]
        %v3731 = vld [vmem:[#allocation3 + $0x120] sm:$0xff]
        %v3732 = vld [vmem:[#allocation3 + $0x128] sm:$0xff]
        %v3733 = vld [vmem:[#allocation3 + $0x130] sm:$0xff]
        %v3734 = vld [vmem:[#allocation3 + $0x138] sm:$0xff]
        %v3735 = vld [vmem:[#allocation3 + $0x140] sm:$0xff]
        %v3736 = vld [vmem:[#allocation3 + $0x148] sm:$0xff]
        %v3737 = vld [vmem:[#allocation3 + $0x150] sm:$0xff]
        %v3738 = vld [vmem:[#allocation3 + $0x158] sm:$0xff]
        %v3739 = vld [vmem:[#allocation3 + $0x160] sm:$0xff]
        %v3740 = vld [vmem:[#allocation3 + $0x168] sm:$0xff]
        %v3741 = vld [vmem:[#allocation3 + $0x170] sm:$0xff]
        %v3742 = vld [vmem:[#allocation3 + $0x178] sm:$0xff]
        %v3743 = vld [vmem:[#allocation3 + $0x180] sm:$0xff]
        %v3744 = vld [vmem:[#allocation3 + $0x188] sm:$0xff]
        %v3745 = vld [vmem:[#allocation3 + $0x190] sm:$0xff]
        %v3746 = vld [vmem:[#allocation3 + $0x198] sm:$0xff]
        %v3747 = vld [vmem:[#allocation3 + $0x1a0] sm:$0xff]
        %v3748 = vld [vmem:[#allocation3 + $0x1a8] sm:$0xff]
        %v3749 = vld [vmem:[#allocation3 + $0x1b0] sm:$0xff]
        %v3750 = vld [vmem:[#allocation3 + $0x1b8] sm:$0xff]
        %v3751 = vld [vmem:[#allocation3 + $0x1c0] sm:$0xff]
        %v3752 = vld [vmem:[#allocation3 + $0x1c8] sm:$0xff]
        %v3753 = vld [vmem:[#allocation3 + $0x1d0] sm:$0xff]
        %v3754 = vld [vmem:[#allocation3 + $0x1d8] sm:$0xff]
        %v3755 = vld [vmem:[#allocation3 + $0x1e0] sm:$0xff]
        %v3756 = vld [vmem:[#allocation3 + $0x1e8] sm:$0xff]
        %v3757 = vld [vmem:[#allocation3 + $0x1f0] sm:$0xff]
        %v3758 = vld [vmem:[#allocation3 + $0x1f8] sm:$0xff]
        %v3759 = vld [vmem:[#allocation3 + $0x200] sm:$0xff]
        %v3760 = vld [vmem:[#allocation3 + $0x208] sm:$0xff]
        %v3761 = vld [vmem:[#allocation3 + $0x210] sm:$0xff]
        %v3762 = vld [vmem:[#allocation3 + $0x218] sm:$0xff]
        %v3763 = vld [vmem:[#allocation3 + $0x220] sm:$0xff]
        %v3764 = vld [vmem:[#allocation3 + $0x228] sm:$0xff]
        %v3765 = vld [vmem:[#allocation3 + $0x230] sm:$0xff]
        %v3766 = vld [vmem:[#allocation3 + $0x238] sm:$0xff]
        %v3767 = vld [vmem:[#allocation3 + $0x240] sm:$0xff]
        %v3768 = vld [vmem:[#allocation3 + $0x248] sm:$0xff]
        %v3769 = vld [vmem:[#allocation3 + $0x250] sm:$0xff]
        %v3770 = vld [vmem:[#allocation3 + $0x258] sm:$0xff]
        %v3771 = vld [vmem:[#allocation3 + $0x260] sm:$0xff]
        %v3772 = vld [vmem:[#allocation3 + $0x268] sm:$0xff]
        %v3773 = vld [vmem:[#allocation3 + $0x270] sm:$0xff]
        %v3774 = vld [vmem:[#allocation3 + $0x278] sm:$0xff]
        %v3775 = vld [vmem:[#allocation3 + $0x280] sm:$0xff]
        %v3776 = vld [vmem:[#allocation3 + $0x288] sm:$0xff]
        %v3777 = vld [vmem:[#allocation3 + $0x290] sm:$0xff]
        %v3778 = vld [vmem:[#allocation3 + $0x298] sm:$0xff]
        %v3779 = vld [vmem:[#allocation3 + $0x2a0] sm:$0xff]
        %v3780 = vld [vmem:[#allocation3 + $0x2a8] sm:$0xff]
        %v3781 = vld [vmem:[#allocation3 + $0x2b0] sm:$0xff]
        %v3782 = vld [vmem:[#allocation3 + $0x2b8] sm:$0xff]
        %v3783 = vld [vmem:[#allocation3 + $0x2c0] sm:$0xff]
        %v3784 = vld [vmem:[#allocation3 + $0x2c8] sm:$0xff]
        %v3785 = vld [vmem:[#allocation3 + $0x2d0] sm:$0xff]
        %v3786 = vld [vmem:[#allocation3 + $0x2d8] sm:$0xff]
        %v3787 = vld [vmem:[#allocation3 + $0x2e0] sm:$0xff]
        %v3788 = vld [vmem:[#allocation3 + $0x2e8] sm:$0xff]
        %v3789 = vld [vmem:[#allocation3 + $0x2f0] sm:$0xff]
        %v3790 = vld [vmem:[#allocation3 + $0x2f8] sm:$0xff]
        %v3791 = vld [vmem:[#allocation3 + $0x300] sm:$0xff]
        %v3792 = vld [vmem:[#allocation3 + $0x308] sm:$0xff]
        %v3793 = vld [vmem:[#allocation3 + $0x310] sm:$0xff]
        %v3794 = vld [vmem:[#allocation3 + $0x318] sm:$0xff]
        %v3795 = vld [vmem:[#allocation3 + $0x320] sm:$0xff]
        %v3796 = vld [vmem:[#allocation3 + $0x328] sm:$0xff]
        %v3797 = vld [vmem:[#allocation3 + $0x330] sm:$0xff]
        %v3798 = vld [vmem:[#allocation3 + $0x338] sm:$0xff]
        %v3799 = vld [vmem:[#allocation3 + $0x340] sm:$0xff]
        %v3800 = vld [vmem:[#allocation3 + $0x348] sm:$0xff]
        %v3801 = vld [vmem:[#allocation3 + $0x350] sm:$0xff]
        %v3802 = vld [vmem:[#allocation3 + $0x358] sm:$0xff]
        %v3803 = vld [vmem:[#allocation3 + $0x360] sm:$0xff]
        %v3804 = vld [vmem:[#allocation3 + $0x368] sm:$0xff]
        %v3805 = vld [vmem:[#allocation3 + $0x370] sm:$0xff]
        %v3806 = vld [vmem:[#allocation3 + $0x378] sm:$0xff]
        %v3807 = vld [vmem:[#allocation3 + $0x380] sm:$0xff]
        %v3808 = vld [vmem:[#allocation3 + $0x388] sm:$0xff]
        %v3809 = vld [vmem:[#allocation3 + $0x390] sm:$0xff]
        %v3810 = vld [vmem:[#allocation3 + $0x398] sm:$0xff]
        %v3811 = vld [vmem:[#allocation3 + $0x3a0] sm:$0xff]
        %v3812 = vld [vmem:[#allocation3 + $0x3a8] sm:$0xff]
        %v3813 = vld [vmem:[#allocation3 + $0x3b0] sm:$0xff]
        %v3814 = vld [vmem:[#allocation3 + $0x3b8] sm:$0xff]
        %v3815 = vld [vmem:[#allocation3 + $0x3c0] sm:$0xff]
        %v3816 = vld [vmem:[#allocation3 + $0x3c8] sm:$0xff]
        %v3817 = vld [vmem:[#allocation3 + $0x3d0] sm:$0xff]
        %v3818 = vld [vmem:[#allocation3 + $0x3d8] sm:$0xff]
        %v3819 = vld [vmem:[#allocation3 + $0x3e0] sm:$0xff]
        %v3820 = vld [vmem:[#allocation3 + $0x3e8] sm:$0xff]
        %v3821 = vld [vmem:[#allocation3 + $0x3f0] sm:$0xff]
        %v3822 = vld [vmem:[#allocation3 + $0x3f8] sm:$0xff]
        %v3823 = vld [vmem:[#allocation3 + $0x400] sm:$0xff]
        %v3824 = vld [vmem:[#allocation3 + $0x408] sm:$0xff]
        %v3825 = vld [vmem:[#allocation3 + $0x410] sm:$0xff]
        %v3826 = vld [vmem:[#allocation3 + $0x418] sm:$0xff]
        %v3827 = vld [vmem:[#allocation3 + $0x420] sm:$0xff]
        %v3828 = vld [vmem:[#allocation3 + $0x428] sm:$0xff]
        %v3829 = vld [vmem:[#allocation3 + $0x430] sm:$0xff]
        %v3830 = vld [vmem:[#allocation3 + $0x438] sm:$0xff]
        %v3831 = vld [vmem:[#allocation3 + $0x440] sm:$0xff]
        %v3832 = vld [vmem:[#allocation3 + $0x448] sm:$0xff]
        %v3833 = vld [vmem:[#allocation3 + $0x450] sm:$0xff]
        %v3834 = vld [vmem:[#allocation3 + $0x458] sm:$0xff]
        %v3835 = vld [vmem:[#allocation3 + $0x460] sm:$0xff]
        %v3836 = vld [vmem:[#allocation3 + $0x468] sm:$0xff]
        %v3837 = vld [vmem:[#allocation3 + $0x470] sm:$0xff]
        %v3838 = vld [vmem:[#allocation3 + $0x478] sm:$0xff]
        %v3839 = vld [vmem:[#allocation3 + $0x480] sm:$0xff]
        %v3840 = vld [vmem:[#allocation3 + $0x488] sm:$0xff]
        %v3841 = vld [vmem:[#allocation3 + $0x490] sm:$0xff]
        %v3842 = vld [vmem:[#allocation3 + $0x498] sm:$0xff]
        %v3843 = vld [vmem:[#allocation3 + $0x4a0] sm:$0xff]
        %v3844 = vld [vmem:[#allocation3 + $0x4a8] sm:$0xff]
        %v3845 = vld [vmem:[#allocation3 + $0x4b0] sm:$0xff]
        %v3846 = vld [vmem:[#allocation3 + $0x4b8] sm:$0xff]
        %v3847 = vld [vmem:[#allocation3 + $0x4c0] sm:$0xff]
        %v3848 = vld [vmem:[#allocation3 + $0x4c8] sm:$0xff]
        %v3849 = vld [vmem:[#allocation3 + $0x4d0] sm:$0xff]
        %v3850 = vld [vmem:[#allocation3 + $0x4d8] sm:$0xff]
        %v3851 = vld [vmem:[#allocation3 + $0x4e0] sm:$0xff]
        %v3852 = vld [vmem:[#allocation3 + $0x4e8] sm:$0xff]
        %v3853 = vld [vmem:[#allocation3 + $0x4f0] sm:$0xff]
        %v3854 = vld [vmem:[#allocation3 + $0x4f8] sm:$0xff]
        %v3855 = vld [vmem:[#allocation3 + $0x500] sm:$0xff]
        %v3856 = vld [vmem:[#allocation3 + $0x508] sm:$0xff]
        %v3857 = vld [vmem:[#allocation3 + $0x510] sm:$0xff]
        %v3858 = vld [vmem:[#allocation3 + $0x518] sm:$0xff]
        %v3859 = vld [vmem:[#allocation3 + $0x520] sm:$0xff]
        %v3860 = vld [vmem:[#allocation3 + $0x528] sm:$0xff]
        %v3861 = vld [vmem:[#allocation3 + $0x530] sm:$0xff]
        %v3862 = vld [vmem:[#allocation3 + $0x538] sm:$0xff]
        %v3863 = vld [vmem:[#allocation3 + $0x540] sm:$0xff]
        %v3864 = vld [vmem:[#allocation3 + $0x548] sm:$0xff]
        %v3865 = vld [vmem:[#allocation3 + $0x550] sm:$0xff]
        %v3866 = vld [vmem:[#allocation3 + $0x558] sm:$0xff]
        %v3867 = vld [vmem:[#allocation3 + $0x560] sm:$0xff]
        %v3868 = vld [vmem:[#allocation3 + $0x568] sm:$0xff]
        %v3869 = vld [vmem:[#allocation3 + $0x570] sm:$0xff]
        %v3870 = vld [vmem:[#allocation3 + $0x578] sm:$0xff]
        %v3871 = vld [vmem:[#allocation3 + $0x580] sm:$0xff]
        %v3872 = vld [vmem:[#allocation3 + $0x588] sm:$0xff]
        %v3873 = vld [vmem:[#allocation3 + $0x590] sm:$0xff]
        %v3874 = vld [vmem:[#allocation3 + $0x598] sm:$0xff]
        %v3875 = vld [vmem:[#allocation3 + $0x5a0] sm:$0xff]
        %v3876 = vld [vmem:[#allocation3 + $0x5a8] sm:$0xff]
        %v3877 = vld [vmem:[#allocation3 + $0x5b0] sm:$0xff]
        %v3878 = vld [vmem:[#allocation3 + $0x5b8] sm:$0xff]
        %v3879 = vld [vmem:[#allocation3 + $0x5c0] sm:$0xff]
        %v3880 = vld [vmem:[#allocation3 + $0x5c8] sm:$0xff]
        %v3881 = vld [vmem:[#allocation3 + $0x5d0] sm:$0xff]
        %v3882 = vld [vmem:[#allocation3 + $0x5d8] sm:$0xff]
        %v3883 = vld [vmem:[#allocation3 + $0x5e0] sm:$0xff]
        %v3884 = vld [vmem:[#allocation3 + $0x5e8] sm:$0xff]
        %v3885 = vld [vmem:[#allocation3 + $0x5f0] sm:$0xff]
        %v3886 = vld [vmem:[#allocation3 + $0x5f8] sm:$0xff]
        %v3887 = vld [vmem:[#allocation3 + $0x600] sm:$0xff]
        %v3888 = vld [vmem:[#allocation3 + $0x608] sm:$0xff]
        %v3889 = vld [vmem:[#allocation3 + $0x610] sm:$0xff]
        %v3890 = vld [vmem:[#allocation3 + $0x618] sm:$0xff]
        %v3891 = vld [vmem:[#allocation3 + $0x620] sm:$0xff]
        %v3892 = vld [vmem:[#allocation3 + $0x628] sm:$0xff]
        %v3893 = vld [vmem:[#allocation3 + $0x630] sm:$0xff]
        %v3894 = vld [vmem:[#allocation3 + $0x638] sm:$0xff]
        %v3895 = vld [vmem:[#allocation3 + $0x640] sm:$0xff]
        %v3896 = vld [vmem:[#allocation3 + $0x648] sm:$0xff]
        %v3897 = vld [vmem:[#allocation3 + $0x650] sm:$0xff]
        %v3898 = vld [vmem:[#allocation3 + $0x658] sm:$0xff]
        %v3899 = vld [vmem:[#allocation3 + $0x660] sm:$0xff]
        %v3900 = vld [vmem:[#allocation3 + $0x668] sm:$0xff]
        %v3901 = vld [vmem:[#allocation3 + $0x670] sm:$0xff]
        %v3902 = vld [vmem:[#allocation3 + $0x678] sm:$0xff]
        %v3903 = vld [vmem:[#allocation3 + $0x680] sm:$0xff]
        %v3904 = vld [vmem:[#allocation3 + $0x688] sm:$0xff]
        %v3905 = vld [vmem:[#allocation3 + $0x690] sm:$0xff]
        %v3906 = vld [vmem:[#allocation3 + $0x698] sm:$0xff]
        %v3907 = vld [vmem:[#allocation3 + $0x6a0] sm:$0xff]
        %v3908 = vld [vmem:[#allocation3 + $0x6a8] sm:$0xff]
        %v3909 = vld [vmem:[#allocation3 + $0x6b0] sm:$0xff]
        %v3910 = vld [vmem:[#allocation3 + $0x6b8] sm:$0xff]
        %v3911 = vld [vmem:[#allocation3 + $0x6c0] sm:$0xff]
        %v3912 = vld [vmem:[#allocation3 + $0x6c8] sm:$0xff]
        %v3913 = vld [vmem:[#allocation3 + $0x6d0] sm:$0xff]
        %v3914 = vld [vmem:[#allocation3 + $0x6d8] sm:$0xff]
        %v3915 = vld [vmem:[#allocation3 + $0x6e0] sm:$0xff]
        %v3916 = vld [vmem:[#allocation3 + $0x6e8] sm:$0xff]
        %v3917 = vld [vmem:[#allocation3 + $0x6f0] sm:$0xff]
        %v3918 = vld [vmem:[#allocation3 + $0x6f8] sm:$0xff]
        %v3919 = vld [vmem:[#allocation3 + $0x700] sm:$0xff]
        %v3920 = vld [vmem:[#allocation3 + $0x708] sm:$0xff]
        %v3921 = vld [vmem:[#allocation3 + $0x710] sm:$0xff]
        %v3922 = vld [vmem:[#allocation3 + $0x718] sm:$0xff]
        %v3923 = vld [vmem:[#allocation3 + $0x720] sm:$0xff]
        %v3924 = vld [vmem:[#allocation3 + $0x728] sm:$0xff]
        %v3925 = vld [vmem:[#allocation3 + $0x730] sm:$0xff]
        %v3926 = vld [vmem:[#allocation3 + $0x738] sm:$0xff]
        %v3927 = vld [vmem:[#allocation3 + $0x740] sm:$0xff]
        %v3928 = vld [vmem:[#allocation3 + $0x748] sm:$0xff]
        %v3929 = vld [vmem:[#allocation3 + $0x750] sm:$0xff]
        %v3930 = vld [vmem:[#allocation3 + $0x758] sm:$0xff]
        %v3931 = vld [vmem:[#allocation3 + $0x760] sm:$0xff]
        %v3932 = vld [vmem:[#allocation3 + $0x768] sm:$0xff]
        %v3933 = vld [vmem:[#allocation3 + $0x770] sm:$0xff]
        %v3934 = vld [vmem:[#allocation3 + $0x778] sm:$0xff]
        %v3935 = vld [vmem:[#allocation3 + $0x780] sm:$0xff]
        %v3936 = vld [vmem:[#allocation3 + $0x788] sm:$0xff]
        %v3937 = vld [vmem:[#allocation3 + $0x790] sm:$0xff]
        %v3938 = vld [vmem:[#allocation3 + $0x798] sm:$0xff]
        %v3939 = vld [vmem:[#allocation3 + $0x7a0] sm:$0xff]
        %v3940 = vld [vmem:[#allocation3 + $0x7a8] sm:$0xff]
        %v3941 = vld [vmem:[#allocation3 + $0x7b0] sm:$0xff]
        %v3942 = vld [vmem:[#allocation3 + $0x7b8] sm:$0xff]
        %v3943 = vld [vmem:[#allocation3 + $0x7c0] sm:$0xff]
        %v3944 = vld [vmem:[#allocation3 + $0x7c8] sm:$0xff]
        %v3945 = vld [vmem:[#allocation3 + $0x7d0] sm:$0xff]
        %v3946 = vld [vmem:[#allocation3 + $0x7d8] sm:$0xff]
        %v3947 = vld [vmem:[#allocation3 + $0x7e0] sm:$0xff]
        %v3948 = vld [vmem:[#allocation3 + $0x7e8] sm:$0xff]
        %v3949 = vld [vmem:[#allocation3 + $0x7f0] sm:$0xff]
        %v3950 = vld [vmem:[#allocation3 + $0x7f8] sm:$0xff]
        %v3951 = vld [vmem:[#allocation3 + $0x800] sm:$0xff]
        %v3952 = vld [vmem:[#allocation3 + $0x808] sm:$0xff]
        %v3953 = vld [vmem:[#allocation3 + $0x810] sm:$0xff]
        %v3954 = vld [vmem:[#allocation3 + $0x818] sm:$0xff]
        %v3955 = vld [vmem:[#allocation3 + $0x820] sm:$0xff]
        %v3956 = vld [vmem:[#allocation3 + $0x828] sm:$0xff]
        %v3957 = vld [vmem:[#allocation3 + $0x830] sm:$0xff]
        %v3958 = vld [vmem:[#allocation3 + $0x838] sm:$0xff]
        %v3959 = vld [vmem:[#allocation3 + $0x840] sm:$0xff]
        %v3960 = vld [vmem:[#allocation3 + $0x848] sm:$0xff]
        %v3961 = vld [vmem:[#allocation3 + $0x850] sm:$0xff]
        %v3962 = vld [vmem:[#allocation3 + $0x858] sm:$0xff]
        %v3963 = vld [vmem:[#allocation3 + $0x860] sm:$0xff]
        %v3964 = vld [vmem:[#allocation3 + $0x868] sm:$0xff]
        %v3965 = vld [vmem:[#allocation3 + $0x870] sm:$0xff]
        %v3966 = vld [vmem:[#allocation3 + $0x878] sm:$0xff]
        %v3967 = vld [vmem:[#allocation3 + $0x880] sm:$0xff]
        %v3968 = vld [vmem:[#allocation3 + $0x888] sm:$0xff]
        %v3969 = vld [vmem:[#allocation3 + $0x890] sm:$0xff]
        %v3970 = vld [vmem:[#allocation3 + $0x898] sm:$0xff]
        %v3971 = vld [vmem:[#allocation3 + $0x8a0] sm:$0xff]
        %v3972 = vld [vmem:[#allocation3 + $0x8a8] sm:$0xff]
        %v3973 = vld [vmem:[#allocation3 + $0x8b0] sm:$0xff]
        %v3974 = vld [vmem:[#allocation3 + $0x8b8] sm:$0xff]
        %v3975 = vld [vmem:[#allocation3 + $0x8c0] sm:$0xff]
        %v3976 = vld [vmem:[#allocation3 + $0x8c8] sm:$0xff]
        %v3977 = vld [vmem:[#allocation3 + $0x8d0] sm:$0xff]
        %v3978 = vld [vmem:[#allocation3 + $0x8d8] sm:$0xff]
        %v3979 = vld [vmem:[#allocation3 + $0x8e0] sm:$0xff]
        %v3980 = vld [vmem:[#allocation3 + $0x8e8] sm:$0xff]
        %v3981 = vld [vmem:[#allocation3 + $0x8f0] sm:$0xff]
        %v3982 = vld [vmem:[#allocation3 + $0x8f8] sm:$0xff]
        %v3983 = vld [vmem:[#allocation3 + $0x900] sm:$0xff]
        %v3984 = vld [vmem:[#allocation3 + $0x908] sm:$0xff]
        %v3985 = vld [vmem:[#allocation3 + $0x910] sm:$0xff]
        %v3986 = vld [vmem:[#allocation3 + $0x918] sm:$0xff]
        %v3987 = vld [vmem:[#allocation3 + $0x920] sm:$0xff]
        %v3988 = vld [vmem:[#allocation3 + $0x928] sm:$0xff]
        %v3989 = vld [vmem:[#allocation3 + $0x930] sm:$0xff]
        %v3990 = vld [vmem:[#allocation3 + $0x938] sm:$0xff]
        %v3991 = vld [vmem:[#allocation3 + $0x940] sm:$0xff]
        %v3992 = vld [vmem:[#allocation3 + $0x948] sm:$0xff]
        %v3993 = vld [vmem:[#allocation3 + $0x950] sm:$0xff]
        %v3994 = vld [vmem:[#allocation3 + $0x958] sm:$0xff]
        %v3995 = vld [vmem:[#allocation3 + $0x960] sm:$0xff]
        %v3996 = vld [vmem:[#allocation3 + $0x968] sm:$0xff]
        %v3997 = vld [vmem:[#allocation3 + $0x970] sm:$0xff]
        %v3998 = vld [vmem:[#allocation3 + $0x978] sm:$0xff]
        %v3999 = vld [vmem:[#allocation3 + $0x980] sm:$0xff]
        %v4000 = vld [vmem:[#allocation3 + $0x988] sm:$0xff]
        %v4001 = vld [vmem:[#allocation3 + $0x990] sm:$0xff]
        %v4002 = vld [vmem:[#allocation3 + $0x998] sm:$0xff]
        %v4003 = vld [vmem:[#allocation3 + $0x9a0] sm:$0xff]
        %v4004 = vld [vmem:[#allocation3 + $0x9a8] sm:$0xff]
        %v4005 = vld [vmem:[#allocation3 + $0x9b0] sm:$0xff]
        %v4006 = vld [vmem:[#allocation3 + $0x9b8] sm:$0xff]
        %v4007 = vld [vmem:[#allocation3 + $0x9c0] sm:$0xff]
        %v4008 = vld [vmem:[#allocation3 + $0x9c8] sm:$0xff]
        %v4009 = vld [vmem:[#allocation3 + $0x9d0] sm:$0xff]
        %v4010 = vld [vmem:[#allocation3 + $0x9d8] sm:$0xff]
        %v4011 = vld [vmem:[#allocation3 + $0x9e0] sm:$0xff]
        %v4012 = vld [vmem:[#allocation3 + $0x9e8] sm:$0xff]
        %v4013 = vld [vmem:[#allocation3 + $0x9f0] sm:$0xff]
        %v4014 = vld [vmem:[#allocation3 + $0x9f8] sm:$0xff]
        %v4015 = vld [vmem:[#allocation3 + $0xa00] sm:$0xff]
        %v4016 = vld [vmem:[#allocation3 + $0xa08] sm:$0xff]
        %v4017 = vld [vmem:[#allocation3 + $0xa10] sm:$0xff]
        %v4018 = vld [vmem:[#allocation3 + $0xa18] sm:$0xff]
        %v4019 = vld [vmem:[#allocation3 + $0xa20] sm:$0xff]
        %v4020 = vld [vmem:[#allocation3 + $0xa28] sm:$0xff]
        %v4021 = vld [vmem:[#allocation3 + $0xa30] sm:$0xff]
        %v4022 = vld [vmem:[#allocation3 + $0xa38] sm:$0xff]
        %v4023 = vld [vmem:[#allocation3 + $0xa40] sm:$0xff]
        %v4024 = vld [vmem:[#allocation3 + $0xa48] sm:$0xff]
        %v4025 = vld [vmem:[#allocation3 + $0xa50] sm:$0xff]
        %v4026 = vld [vmem:[#allocation3 + $0xa58] sm:$0xff]
        %v4027 = vld [vmem:[#allocation3 + $0xa60] sm:$0xff]
        %v4028 = vld [vmem:[#allocation3 + $0xa68] sm:$0xff]
        %v4029 = vld [vmem:[#allocation3 + $0xa70] sm:$0xff]
        %v4030 = vld [vmem:[#allocation3 + $0xa78] sm:$0xff]
        %v4031 = vld [vmem:[#allocation3 + $0xa80] sm:$0xff]
        %v4032 = vld [vmem:[#allocation3 + $0xa88] sm:$0xff]
        %v4033 = vld [vmem:[#allocation3 + $0xa90] sm:$0xff]
        %v4034 = vld [vmem:[#allocation3 + $0xa98] sm:$0xff]
        %v4035 = vld [vmem:[#allocation3 + $0xaa0] sm:$0xff]
        %v4036 = vld [vmem:[#allocation3 + $0xaa8] sm:$0xff]
        %v4037 = vld [vmem:[#allocation3 + $0xab0] sm:$0xff]
        %v4038 = vld [vmem:[#allocation3 + $0xab8] sm:$0xff]
        %v4039 = vld [vmem:[#allocation3 + $0xac0] sm:$0xff]
        %v4040 = vld [vmem:[#allocation3 + $0xac8] sm:$0xff]
        %v4041 = vld [vmem:[#allocation3 + $0xad0] sm:$0xff]
        %v4042 = vld [vmem:[#allocation3 + $0xad8] sm:$0xff]
        %v4043 = vld [vmem:[#allocation3 + $0xae0] sm:$0xff]
        %v4044 = vld [vmem:[#allocation3 + $0xae8] sm:$0xff]
        %v4045 = vld [vmem:[#allocation3 + $0xaf0] sm:$0xff]
        %v4046 = vld [vmem:[#allocation3 + $0xaf8] sm:$0xff]
        %v4047 = vld [vmem:[#allocation3 + $0xb00] sm:$0xff]
        %v4048 = vld [vmem:[#allocation3 + $0xb08] sm:$0xff]
        %v4049 = vld [vmem:[#allocation3 + $0xb10] sm:$0xff]
        %v4050 = vld [vmem:[#allocation3 + $0xb18] sm:$0xff]
        %v4051 = vld [vmem:[#allocation3 + $0xb20] sm:$0xff]
        %v4052 = vld [vmem:[#allocation3 + $0xb28] sm:$0xff]
        %v4053 = vld [vmem:[#allocation3 + $0xb30] sm:$0xff]
        %v4054 = vld [vmem:[#allocation3 + $0xb38] sm:$0xff]
        %v4055 = vld [vmem:[#allocation3 + $0xb40] sm:$0xff]
        %v4056 = vld [vmem:[#allocation3 + $0xb48] sm:$0xff]
        %v4057 = vld [vmem:[#allocation3 + $0xb50] sm:$0xff]
        %v4058 = vld [vmem:[#allocation3 + $0xb58] sm:$0xff]
        %v4059 = vld [vmem:[#allocation3 + $0xb60] sm:$0xff]
        %v4060 = vld [vmem:[#allocation3 + $0xb68] sm:$0xff]
        %v4061 = vld [vmem:[#allocation3 + $0xb70] sm:$0xff]
        %v4062 = vld [vmem:[#allocation3 + $0xb78] sm:$0xff]
        %v4063 = vld [vmem:[#allocation3 + $0xb80] sm:$0xff]
        %v4064 = vld [vmem:[#allocation3 + $0xb88] sm:$0xff]
        %v4065 = vld [vmem:[#allocation3 + $0xb90] sm:$0xff]
        %v4066 = vld [vmem:[#allocation3 + $0xb98] sm:$0xff]
        %v4067 = vld [vmem:[#allocation3 + $0xba0] sm:$0xff]
        %v4068 = vld [vmem:[#allocation3 + $0xba8] sm:$0xff]
        %v4069 = vld [vmem:[#allocation3 + $0xbb0] sm:$0xff]
        %v4070 = vld [vmem:[#allocation3 + $0xbb8] sm:$0xff]
        %v4071 = vld [vmem:[#allocation3 + $0xbc0] sm:$0xff]
        %v4072 = vld [vmem:[#allocation3 + $0xbc8] sm:$0xff]
        %v4073 = vld [vmem:[#allocation3 + $0xbd0] sm:$0xff]
        %v4074 = vld [vmem:[#allocation3 + $0xbd8] sm:$0xff]
        %v4075 = vld [vmem:[#allocation3 + $0xbe0] sm:$0xff]
        %v4076 = vld [vmem:[#allocation3 + $0xbe8] sm:$0xff]
        %v4077 = vld [vmem:[#allocation3 + $0xbf0] sm:$0xff]
        %v4078 = vld [vmem:[#allocation3 + $0xbf8] sm:$0xff]
        %v4079 = vld [vmem:[#allocation3 + $0xc00] sm:$0xff]
        %v4080 = vld [vmem:[#allocation3 + $0xc08] sm:$0xff]
        %v4081 = vld [vmem:[#allocation3 + $0xc10] sm:$0xff]
        %v4082 = vld [vmem:[#allocation3 + $0xc18] sm:$0xff]
        %v4083 = vld [vmem:[#allocation3 + $0xc20] sm:$0xff]
        %v4084 = vld [vmem:[#allocation3 + $0xc28] sm:$0xff]
        %v4085 = vld [vmem:[#allocation3 + $0xc30] sm:$0xff]
        %v4086 = vld [vmem:[#allocation3 + $0xc38] sm:$0xff]
        %v4087 = vld [vmem:[#allocation3 + $0xc40] sm:$0xff]
        %v4088 = vld [vmem:[#allocation3 + $0xc48] sm:$0xff]
        %v4089 = vld [vmem:[#allocation3 + $0xc50] sm:$0xff]
        %v4090 = vld [vmem:[#allocation3 + $0xc58] sm:$0xff]
        %v4091 = vld [vmem:[#allocation3 + $0xc60] sm:$0xff]
        %v4092 = vld [vmem:[#allocation3 + $0xc68] sm:$0xff]
        %v4093 = vld [vmem:[#allocation3 + $0xc70] sm:$0xff]
        %v4094 = vld [vmem:[#allocation3 + $0xc78] sm:$0xff]
        %v4101 = vunpack.c.l.b16 %v3689
        %v4102 = vunpack.c.h.b16 %v3689
        %v4103 = vunpack.c.l.b16 %v3690
        %v4104 = vunpack.c.h.b16 %v3690
        %v4105 = vunpack.c.l.b16 %v3691
        %v4106 = vunpack.c.h.b16 %v3691
        %v4107 = vunpack.c.l.b16 %v3692
        %v4108 = vunpack.c.h.b16 %v3692
        %v4109 = vunpack.c.l.b16 %v3693
        %v4110 = vunpack.c.h.b16 %v3693
        %v4111 = vunpack.c.l.b16 %v3694
        %v4112 = vunpack.c.h.b16 %v3694
        %v4113 = vpack.c.b16 %v4105, %v4101
        %v4114 = vpack.c.b16 %v4106, %v4102
        %v4115 = vpack.c.b16 %v4107, %v4103
        %v4116 = vpack.c.b16 %v4108, %v4104
        %v4117 = vpack.c.b16 %v4109, %v4109
        %v4118 = vpack.c.b16 %v4110, %v4110
        %v4119 = vpack.c.b16 %v4111, %v4111
        %v4120 = vpack.c.b16 %v4112, %v4112
        %vm4127 = vcmask 130048
        %v4129 = vsel %vm4127, %v4116, 0
        %v4132 = vsel %vm4127, %v4120, 0
        %4134 = vmatprep.subr.bf16.mxu0 %v3696
        %4135 = vmatpush1.bf16.msra.mxu0 %v3695
        %4136 = vmatprep.subr.bf16.mxu0 %v3712
        %4137 = vmatpush1.bf16.msra.mxu0 %v3711
        %4138 = vmatprep.subr.bf16.mxu0 %v3728
        %4139 = vmatpush1.bf16.msra.mxu0 %v3727
        %4140 = vmatprep.subr.bf16.mxu0 %v3744
        %4141 = vmatpush1.bf16.msra.mxu0 %v3743
        %4142 = vmatprep.subr.bf16.mxu0 %v3760
        %4143 = vmatpush1.bf16.msra.mxu0 %v3759
        %4144 = vmatprep.subr.bf16.mxu0 %v3776
        %4145 = vmatpush1.bf16.msra.mxu0 %v3775
        %4146 = vmatprep.subr.bf16.mxu0 %v3792
        %4147 = vmatpush1.bf16.msra.mxu0 %v3791
        %4148 = vmatprep.subr.bf16.mxu0 %v3808
        %4149 = vmatpush1.bf16.msra.mxu0 %v3807
        %4150 = vmatprep.subr.bf16.mxu0 %v3824
        %4151 = vmatpush1.bf16.msra.mxu0 %v3823
        %4152 = vmatprep.subr.bf16.mxu0 %v3840
        %4153 = vmatpush1.bf16.msra.mxu0 %v3839
        %4154 = vmatprep.subr.bf16.mxu0 %v3856
        %4155 = vmatpush1.bf16.msra.mxu0 %v3855
        %4156 = vmatprep.subr.bf16.mxu0 %v3872
        %4157 = vmatpush1.bf16.msra.mxu0 %v3871
        %4158 = vmatprep.subr.bf16.mxu0 %v3888
        %4159 = vmatpush1.bf16.msra.mxu0 %v3887
        %4160 = vmatprep.subr.bf16.mxu0 %v3904
        %4161 = vmatpush1.bf16.msra.mxu0 %v3903
        %4162 = vmatprep.subr.bf16.mxu0 %v3920
        %4163 = vmatpush1.bf16.msra.mxu0 %v3919
        %4164 = vmatprep.subr.bf16.mxu0 %v3936
        %4165 = vmatpush1.bf16.msra.mxu0 %v3935
        %4166 = vmatprep.mubr.bf16.mxu0 %v4114
        %4167 = vmatmul.mubr.bf16.gmra.mrb[0].mxu0 %v4113
        %v4168 = vpop.f32.mrb[0].mxu0
        %v4169 = vadd.f32 0.0, %v4168
        %v4170 = vpop.f32.mrb[0].mxu0
        %v4171 = vadd.f32 0.0, %v4170
        %v4172 = vpop.f32.mrb[0].mxu0
        %v4173 = vadd.f32 0.0, %v4172
        %v4174 = vpop.f32.mrb[0].mxu0
        %v4175 = vadd.f32 0.0, %v4174
        %4176 = vmatprep.mubr.bf16.mxu0 %v4118
        %4177 = vmatmul.mubr.bf16.gmra.mrb[0].mxu0 %v4117
        %v4178 = vpop.f32.mrb[0].mxu0
        %v4179 = vadd.f32 0.0, %v4178
        %v4180 = vpop.f32.mrb[0].mxu0
        %v4181 = vadd.f32 0.0, %v4180
        %v4182 = vpop.f32.mrb[0].mxu0
        %v4183 = vpop.f32.mrb[0].mxu0
        %4184 = vdwg.mxu0
        %4185 = vmatprep.subr.bf16.mxu0 %v3952
        %4186 = vmatpush1.bf16.msra.mxu0 %v3951
        %4187 = vmatprep.subr.bf16.mxu0 %v3968
        %4188 = vmatpush1.bf16.msra.mxu0 %v3967
        %4189 = vmatprep.subr.bf16.mxu0 %v3984
        %4190 = vmatpush1.bf16.msra.mxu0 %v3983
        %4191 = vmatprep.subr.bf16.mxu0 %v4000
        %4192 = vmatpush1.bf16.msra.mxu0 %v3999
        %4193 = vmatprep.subr.bf16.mxu0 %v4016
        %4194 = vmatpush1.bf16.msra.mxu0 %v4015
        %4195 = vmatprep.subr.bf16.mxu0 %v4032
        %4196 = vmatpush1.bf16.msra.mxu0 %v4031
        %4197 = vmatprep.subr.bf16.mxu0 %v4048
        %4198 = vmatpush1.bf16.msra.mxu0 %v4047
        %4199 = vmatprep.subr.bf16.mxu0 %v4064
        %4200 = vmatpush1.bf16.msra.mxu0 %v4063
        %4201 = vmatprep.subr.bf16.mxu0 %v4080
        %4202 = vmatpush1.bf16.msra.mxu0 %v4079
        %4203 = vmatprep.subr.bf16.mxu0 0
        %4204 = vmatpush1.bf16.msra.mxu0 0
        %4205 = vmatprep.subr.bf16.mxu0 0
        %4206 = vmatpush1.bf16.msra.mxu0 0
        %4207 = vmatprep.subr.bf16.mxu0 0
        %4208 = vmatpush1.bf16.msra.mxu0 0
        %4209 = vmatprep.subr.bf16.mxu0 0
        %4210 = vmatpush1.bf16.msra.mxu0 0
        %4211 = vmatprep.subr.bf16.mxu0 0
        %4212 = vmatpush1.bf16.msra.mxu0 0
        %4213 = vmatprep.subr.bf16.mxu0 0
        %4214 = vmatpush1.bf16.msra.mxu0 0
        %4215 = vmatprep.subr.bf16.mxu0 0
        %4216 = vmatpush1.bf16.msra.mxu0 0
        %4217 = vmatprep.mubr.bf16.mxu0 %v4129
        %4218 = vmatmul.mubr.bf16.gmra.mrb[0].mxu0 %v4115
        %v4219 = vpop.f32.mrb[0].mxu0
        %v4220 = vadd.f32 %v4169, %v4219
        %v4221 = vpop.f32.mrb[0].mxu0
        %v4222 = vadd.f32 %v4171, %v4221
        %v4223 = vpop.f32.mrb[0].mxu0
        %v4224 = vadd.f32 %v4173, %v4223
        %v4225 = vpop.f32.mrb[0].mxu0
        %v4226 = vadd.f32 %v4175, %v4225
        %4227 = vmatprep.mubr.bf16.mxu0 %v4132
        %4228 = vmatmul.mubr.bf16.gmra.mrb[0].mxu0 %v4119
        %v4229 = vpop.f32.mrb[0].mxu0
        %v4230 = vadd.f32 %v4179, %v4229
        %v4231 = vpop.f32.mrb[0].mxu0
        %v4232 = vadd.f32 %v4181, %v4231
        %v4233 = vpop.f32.mrb[0].mxu0
        %v4234 = vpop.f32.mrb[0].mxu0
        %4235 = vdwg.mxu0
        %4236 = vmatprep.subr.bf16.mxu0 %v3698
        %4237 = vmatpush1.bf16.msra.mxu0 %v3697
        %4238 = vmatprep.subr.bf16.mxu0 %v3714
        %4239 = vmatpush1.bf16.msra.mxu0 %v3713
        %4240 = vmatprep.subr.bf16.mxu0 %v3730
        %4241 = vmatpush1.bf16.msra.mxu0 %v3729
        %4242 = vmatprep.subr.bf16.mxu0 %v3746
        %4243 = vmatpush1.bf16.msra.mxu0 %v3745
        %4244 = vmatprep.subr.bf16.mxu0 %v3762
        %4245 = vmatpush1.bf16.msra.mxu0 %v3761
        %4246 = vmatprep.subr.bf16.mxu0 %v3778
        %4247 = vmatpush1.bf16.msra.mxu0 %v3777
        %4248 = vmatprep.subr.bf16.mxu0 %v3794
        %4249 = vmatpush1.bf16.msra.mxu0 %v3793
        %4250 = vmatprep.subr.bf16.mxu0 %v3810
        %4251 = vmatpush1.bf16.msra.mxu0 %v3809
        %4252 = vmatprep.subr.bf16.mxu0 %v3826
        %4253 = vmatpush1.bf16.msra.mxu0 %v3825
        %4254 = vmatprep.subr.bf16.mxu0 %v3842
        %4255 = vmatpush1.bf16.msra.mxu0 %v3841
        %4256 = vmatprep.subr.bf16.mxu0 %v3858
        %4257 = vmatpush1.bf16.msra.mxu0 %v3857
        %4258 = vmatprep.subr.bf16.mxu0 %v3874
        %4259 = vmatpush1.bf16.msra.mxu0 %v3873
        %4260 = vmatprep.subr.bf16.mxu0 %v3890
        %4261 = vmatpush1.bf16.msra.mxu0 %v3889
        %4262 = vmatprep.subr.bf16.mxu0 %v3906
        %4263 = vmatpush1.bf16.msra.mxu0 %v3905
        %4264 = vmatprep.subr.bf16.mxu0 %v3922
        %4265 = vmatpush1.bf16.msra.mxu0 %v3921
        %4266 = vmatprep.subr.bf16.mxu0 %v3938
        %4267 = vmatpush1.bf16.msra.mxu0 %v3937
        %4268 = vmatprep.mubr.bf16.mxu0 %v4114
        %4269 = vmatmul.mubr.bf16.gmra.mrb[0].mxu0 %v4113
        %v4270 = vpop.f32.mrb[0].mxu0
        %v4271 = vadd.f32 0.0, %v4270
        %v4272 = vpop.f32.mrb[0].mxu0
        %v4273 = vadd.f32 0.0, %v4272
        %v4274 = vpop.f32.mrb[0].mxu0
        %v4275 = vadd.f32 0.0, %v4274
        %v4276 = vpop.f32.mrb[0].mxu0
        %v4277 = vadd.f32 0.0, %v4276
        %4278 = vmatprep.mubr.bf16.mxu0 %v4118
        %4279 = vmatmul.mubr.bf16.gmra.mrb[0].mxu0 %v4117
        %v4280 = vpop.f32.mrb[0].mxu0
        %v4281 = vadd.f32 0.0, %v4280
        %v4282 = vpop.f32.mrb[0].mxu0
        %v4283 = vadd.f32 0.0, %v4282
        %v4284 = vpop.f32.mrb[0].mxu0
        %v4285 = vpop.f32.mrb[0].mxu0
        %4286 = vdwg.mxu0
        %4287 = vmatprep.subr.bf16.mxu0 %v3954
        %4288 = vmatpush1.bf16.msra.mxu0 %v3953
        %4289 = vmatprep.subr.bf16.mxu0 %v3970
        %4290 = vmatpush1.bf16.msra.mxu0 %v3969
        %4291 = vmatprep.subr.bf16.mxu0 %v3986
        %4292 = vmatpush1.bf16.msra.mxu0 %v3985
        %4293 = vmatprep.subr.bf16.mxu0 %v4002
        %4294 = vmatpush1.bf16.msra.mxu0 %v4001
        %4295 = vmatprep.subr.bf16.mxu0 %v4018
        %4296 = vmatpush1.bf16.msra.mxu0 %v4017
        %4297 = vmatprep.subr.bf16.mxu0 %v4034
        %4298 = vmatpush1.bf16.msra.mxu0 %v4033
        %4299 = vmatprep.subr.bf16.mxu0 %v4050
        %4300 = vmatpush1.bf16.msra.mxu0 %v4049
        %4301 = vmatprep.subr.bf16.mxu0 %v4066
        %4302 = vmatpush1.bf16.msra.mxu0 %v4065
        %4303 = vmatprep.subr.bf16.mxu0 %v4082
        %4304 = vmatpush1.bf16.msra.mxu0 %v4081
        %4305 = vmatprep.subr.bf16.mxu0 0
        %4306 = vmatpush1.bf16.msra.mxu0 0
        %4307 = vmatprep.subr.bf16.mxu0 0
        %4308 = vmatpush1.bf16.msra.mxu0 0
        %4309 = vmatprep.subr.bf16.mxu0 0
        %4310 = vmatpush1.bf16.msra.mxu0 0
        %4311 = vmatprep.subr.bf16.mxu0 0
        %4312 = vmatpush1.bf16.msra.mxu0 0
        %4313 = vmatprep.subr.bf16.mxu0 0
        %4314 = vmatpush1.bf16.msra.mxu0 0
        %4315 = vmatprep.subr.bf16.mxu0 0
        %4316 = vmatpush1.bf16.msra.mxu0 0
        %4317 = vmatprep.subr.bf16.mxu0 0
        %4318 = vmatpush1.bf16.msra.mxu0 0
        %4319 = vmatprep.mubr.bf16.mxu0 %v4129
        %4320 = vmatmul.mubr.bf16.gmra.mrb[0].mxu0 %v4115
        %v4321 = vpop.f32.mrb[0].mxu0
        %v4322 = vadd.f32 %v4271, %v4321
        %v4323 = vpop.f32.mrb[0].mxu0
        %v4324 = vadd.f32 %v4273, %v4323
        %v4325 = vpop.f32.mrb[0].mxu0
        %v4326 = vadd.f32 %v4275, %v4325
        %v4327 = vpop.f32.mrb[0].mxu0
        %v4328 = vadd.f32 %v4277, %v4327
        %4329 = vmatprep.mubr.bf16.mxu0 %v4132
        %4330 = vmatmul.mubr.bf16.gmra.mrb[0].mxu0 %v4119
        %v4331 = vpop.f32.mrb[0].mxu0
        %v4332 = vadd.f32 %v4281, %v4331
        %v4333 = vpop.f32.mrb[0].mxu0
        %v4334 = vadd.f32 %v4283, %v4333
        %v4335 = vpop.f32.mrb[0].mxu0
        %v4336 = vpop.f32.mrb[0].mxu0
        %4337 = vdwg.mxu0
        %4338 = vmatprep.subr.bf16.mxu0 %v3700
        %4339 = vmatpush1.bf16.msra.mxu0 %v3699
        %4340 = vmatprep.subr.bf16.mxu0 %v3716
        %4341 = vmatpush1.bf16.msra.mxu0 %v3715
        %4342 = vmatprep.subr.bf16.mxu0 %v3732
        %4343 = vmatpush1.bf16.msra.mxu0 %v3731
        %4344 = vmatprep.subr.bf16.mxu0 %v3748
        %4345 = vmatpush1.bf16.msra.mxu0 %v3747
        %4346 = vmatprep.subr.bf16.mxu0 %v3764
        %4347 = vmatpush1.bf16.msra.mxu0 %v3763
        %4348 = vmatprep.subr.bf16.mxu0 %v3780
        %4349 = vmatpush1.bf16.msra.mxu0 %v3779
        %4350 = vmatprep.subr.bf16.mxu0 %v3796
        %4351 = vmatpush1.bf16.msra.mxu0 %v3795
        %4352 = vmatprep.subr.bf16.mxu0 %v3812
        %4353 = vmatpush1.bf16.msra.mxu0 %v3811
        %4354 = vmatprep.subr.bf16.mxu0 %v3828
        %4355 = vmatpush1.bf16.msra.mxu0 %v3827
        %4356 = vmatprep.subr.bf16.mxu0 %v3844
        %4357 = vmatpush1.bf16.msra.mxu0 %v3843
        %4358 = vmatprep.subr.bf16.mxu0 %v3860
        %4359 = vmatpush1.bf16.msra.mxu0 %v3859
        %4360 = vmatprep.subr.bf16.mxu0 %v3876
        %4361 = vmatpush1.bf16.msra.mxu0 %v3875
        %4362 = vmatprep.subr.bf16.mxu0 %v3892
        %4363 = vmatpush1.bf16.msra.mxu0 %v3891
        %4364 = vmatprep.subr.bf16.mxu0 %v3908
        %4365 = vmatpush1.bf16.msra.mxu0 %v3907
        %4366 = vmatprep.subr.bf16.mxu0 %v3924
        %4367 = vmatpush1.bf16.msra.mxu0 %v3923
        %4368 = vmatprep.subr.bf16.mxu0 %v3940
        %4369 = vmatpush1.bf16.msra.mxu0 %v3939
        %4370 = vmatprep.mubr.bf16.mxu0 %v4114
        %4371 = vmatmul.mubr.bf16.gmra.mrb[0].mxu0 %v4113
        %v4372 = vpop.f32.mrb[0].mxu0
        %v4373 = vadd.f32 0.0, %v4372
        %v4374 = vpop.f32.mrb[0].mxu0
        %v4375 = vadd.f32 0.0, %v4374
        %v4376 = vpop.f32.mrb[0].mxu0
        %v4377 = vadd.f32 0.0, %v4376
        %v4378 = vpop.f32.mrb[0].mxu0
        %v4379 = vadd.f32 0.0, %v4378
        %4380 = vmatprep.mubr.bf16.mxu0 %v4118
        %4381 = vmatmul.mubr.bf16.gmra.mrb[0].mxu0 %v4117
        %v4382 = vpop.f32.mrb[0].mxu0
        %v4383 = vadd.f32 0.0, %v4382
        %v4384 = vpop.f32.mrb[0].mxu0
        %v4385 = vadd.f32 0.0, %v4384
        %v4386 = vpop.f32.mrb[0].mxu0
        %v4387 = vpop.f32.mrb[0].mxu0
        %4388 = vdwg.mxu0
        %4389 = vmatprep.subr.bf16.mxu0 %v3956
        %4390 = vmatpush1.bf16.msra.mxu0 %v3955
        %4391 = vmatprep.subr.bf16.mxu0 %v3972
        %4392 = vmatpush1.bf16.msra.mxu0 %v3971
        %4393 = vmatprep.subr.bf16.mxu0 %v3988
        %4394 = vmatpush1.bf16.msra.mxu0 %v3987
        %4395 = vmatprep.subr.bf16.mxu0 %v4004
        %4396 = vmatpush1.bf16.msra.mxu0 %v4003
        %4397 = vmatprep.subr.bf16.mxu0 %v4020
        %4398 = vmatpush1.bf16.msra.mxu0 %v4019
        %4399 = vmatprep.subr.bf16.mxu0 %v4036
        %4400 = vmatpush1.bf16.msra.mxu0 %v4035
        %4401 = vmatprep.subr.bf16.mxu0 %v4052
        %4402 = vmatpush1.bf16.msra.mxu0 %v4051
        %4403 = vmatprep.subr.bf16.mxu0 %v4068
        %4404 = vmatpush1.bf16.msra.mxu0 %v4067
        %4405 = vmatprep.subr.bf16.mxu0 %v4084
        %4406 = vmatpush1.bf16.msra.mxu0 %v4083
        %4407 = vmatprep.subr.bf16.mxu0 0
        %4408 = vmatpush1.bf16.msra.mxu0 0
        %4409 = vmatprep.subr.bf16.mxu0 0
        %4410 = vmatpush1.bf16.msra.mxu0 0
        %4411 = vmatprep.subr.bf16.mxu0 0
        %4412 = vmatpush1.bf16.msra.mxu0 0
        %4413 = vmatprep.subr.bf16.mxu0 0
        %4414 = vmatpush1.bf16.msra.mxu0 0
        %4415 = vmatprep.subr.bf16.mxu0 0
        %4416 = vmatpush1.bf16.msra.mxu0 0
        %4417 = vmatprep.subr.bf16.mxu0 0
        %4418 = vmatpush1.bf16.msra.mxu0 0
        %4419 = vmatprep.subr.bf16.mxu0 0
        %4420 = vmatpush1.bf16.msra.mxu0 0
        %4421 = vmatprep.mubr.bf16.mxu0 %v4129
        %4422 = vmatmul.mubr.bf16.gmra.mrb[0].mxu0 %v4115
        %v4423 = vpop.f32.mrb[0].mxu0
        %v4424 = vadd.f32 %v4373, %v4423
        %v4425 = vpop.f32.mrb[0].mxu0
        %v4426 = vadd.f32 %v4375, %v4425
        %v4427 = vpop.f32.mrb[0].mxu0
        %v4428 = vadd.f32 %v4377, %v4427
        %v4429 = vpop.f32.mrb[0].mxu0
        %v4430 = vadd.f32 %v4379, %v4429
        %4431 = vmatprep.mubr.bf16.mxu0 %v4132
        %4432 = vmatmul.mubr.bf16.gmra.mrb[0].mxu0 %v4119
        %v4433 = vpop.f32.mrb[0].mxu0
        %v4434 = vadd.f32 %v4383, %v4433
        %v4435 = vpop.f32.mrb[0].mxu0
        %v4436 = vadd.f32 %v4385, %v4435
        %v4437 = vpop.f32.mrb[0].mxu0
        %v4438 = vpop.f32.mrb[0].mxu0
        %4439 = vdwg.mxu0
        %4440 = vmatprep.subr.bf16.mxu0 %v3702
        %4441 = vmatpush1.bf16.msra.mxu0 %v3701
        %4442 = vmatprep.subr.bf16.mxu0 %v3718
        %4443 = vmatpush1.bf16.msra.mxu0 %v3717
        %4444 = vmatprep.subr.bf16.mxu0 %v3734
        %4445 = vmatpush1.bf16.msra.mxu0 %v3733
        %4446 = vmatprep.subr.bf16.mxu0 %v3750
        %4447 = vmatpush1.bf16.msra.mxu0 %v3749
        %4448 = vmatprep.subr.bf16.mxu0 %v3766
        %4449 = vmatpush1.bf16.msra.mxu0 %v3765
        %4450 = vmatprep.subr.bf16.mxu0 %v3782
        %4451 = vmatpush1.bf16.msra.mxu0 %v3781
        %4452 = vmatprep.subr.bf16.mxu0 %v3798
        %4453 = vmatpush1.bf16.msra.mxu0 %v3797
        %4454 = vmatprep.subr.bf16.mxu0 %v3814
        %4455 = vmatpush1.bf16.msra.mxu0 %v3813
        %4456 = vmatprep.subr.bf16.mxu0 %v3830
        %4457 = vmatpush1.bf16.msra.mxu0 %v3829
        %4458 = vmatprep.subr.bf16.mxu0 %v3846
        %4459 = vmatpush1.bf16.msra.mxu0 %v3845
        %4460 = vmatprep.subr.bf16.mxu0 %v3862
        %4461 = vmatpush1.bf16.msra.mxu0 %v3861
        %4462 = vmatprep.subr.bf16.mxu0 %v3878
        %4463 = vmatpush1.bf16.msra.mxu0 %v3877
        %4464 = vmatprep.subr.bf16.mxu0 %v3894
        %4465 = vmatpush1.bf16.msra.mxu0 %v3893
        %4466 = vmatprep.subr.bf16.mxu0 %v3910
        %4467 = vmatpush1.bf16.msra.mxu0 %v3909
        %4468 = vmatprep.subr.bf16.mxu0 %v3926
        %4469 = vmatpush1.bf16.msra.mxu0 %v3925
        %4470 = vmatprep.subr.bf16.mxu0 %v3942
        %4471 = vmatpush1.bf16.msra.mxu0 %v3941
        %4472 = vmatprep.mubr.bf16.mxu0 %v4114
        %4473 = vmatmul.mubr.bf16.gmra.mrb[0].mxu0 %v4113
        %v4474 = vpop.f32.mrb[0].mxu0
        %v4475 = vadd.f32 0.0, %v4474
        %v4476 = vpop.f32.mrb[0].mxu0
        %v4477 = vadd.f32 0.0, %v4476
        %v4478 = vpop.f32.mrb[0].mxu0
        %v4479 = vadd.f32 0.0, %v4478
        %v4480 = vpop.f32.mrb[0].mxu0
        %v4481 = vadd.f32 0.0, %v4480
        %4482 = vmatprep.mubr.bf16.mxu0 %v4118
        %4483 = vmatmul.mubr.bf16.gmra.mrb[0].mxu0 %v4117
        %v4484 = vpop.f32.mrb[0].mxu0
        %v4485 = vadd.f32 0.0, %v4484
        %v4486 = vpop.f32.mrb[0].mxu0
        %v4487 = vadd.f32 0.0, %v4486
        %v4488 = vpop.f32.mrb[0].mxu0
        %v4489 = vpop.f32.mrb[0].mxu0
        %4490 = vdwg.mxu0
        %4491 = vmatprep.subr.bf16.mxu0 %v3958
        %4492 = vmatpush1.bf16.msra.mxu0 %v3957
        %4493 = vmatprep.subr.bf16.mxu0 %v3974
        %4494 = vmatpush1.bf16.msra.mxu0 %v3973
        %4495 = vmatprep.subr.bf16.mxu0 %v3990
        %4496 = vmatpush1.bf16.msra.mxu0 %v3989
        %4497 = vmatprep.subr.bf16.mxu0 %v4006
        %4498 = vmatpush1.bf16.msra.mxu0 %v4005
        %4499 = vmatprep.subr.bf16.mxu0 %v4022
        %4500 = vmatpush1.bf16.msra.mxu0 %v4021
        %4501 = vmatprep.subr.bf16.mxu0 %v4038
        %4502 = vmatpush1.bf16.msra.mxu0 %v4037
        %4503 = vmatprep.subr.bf16.mxu0 %v4054
        %4504 = vmatpush1.bf16.msra.mxu0 %v4053
        %4505 = vmatprep.subr.bf16.mxu0 %v4070
        %4506 = vmatpush1.bf16.msra.mxu0 %v4069
        %4507 = vmatprep.subr.bf16.mxu0 %v4086
        %4508 = vmatpush1.bf16.msra.mxu0 %v4085
        %4509 = vmatprep.subr.bf16.mxu0 0
        %4510 = vmatpush1.bf16.msra.mxu0 0
        %4511 = vmatprep.subr.bf16.mxu0 0
        %4512 = vmatpush1.bf16.msra.mxu0 0
        %4513 = vmatprep.subr.bf16.mxu0 0
        %4514 = vmatpush1.bf16.msra.mxu0 0
        %4515 = vmatprep.subr.bf16.mxu0 0
        %4516 = vmatpush1.bf16.msra.mxu0 0
        %4517 = vmatprep.subr.bf16.mxu0 0
        %4518 = vmatpush1.bf16.msra.mxu0 0
        %4519 = vmatprep.subr.bf16.mxu0 0
        %4520 = vmatpush1.bf16.msra.mxu0 0
        %4521 = vmatprep.subr.bf16.mxu0 0
        %4522 = vmatpush1.bf16.msra.mxu0 0
        %4523 = vmatprep.mubr.bf16.mxu0 %v4129
        %4524 = vmatmul.mubr.bf16.gmra.mrb[0].mxu0 %v4115
        %v4525 = vpop.f32.mrb[0].mxu0
        %v4526 = vadd.f32 %v4475, %v4525
        %v4527 = vpop.f32.mrb[0].mxu0
        %v4528 = vadd.f32 %v4477, %v4527
        %v4529 = vpop.f32.mrb[0].mxu0
        %v4530 = vadd.f32 %v4479, %v4529
        %v4531 = vpop.f32.mrb[0].mxu0
        %v4532 = vadd.f32 %v4481, %v4531
        %4533 = vmatprep.mubr.bf16.mxu0 %v4132
        %4534 = vmatmul.mubr.bf16.gmra.mrb[0].mxu0 %v4119
        %v4535 = vpop.f32.mrb[0].mxu0
        %v4536 = vadd.f32 %v4485, %v4535
        %v4537 = vpop.f32.mrb[0].mxu0
        %v4538 = vadd.f32 %v4487, %v4537
        %v4539 = vpop.f32.mrb[0].mxu0
        %v4540 = vpop.f32.mrb[0].mxu0
        %4541 = vdwg.mxu0
        %4542 = vmatprep.subr.bf16.mxu0 %v3704
        %4543 = vmatpush1.bf16.msra.mxu0 %v3703
        %4544 = vmatprep.subr.bf16.mxu0 %v3720
        %4545 = vmatpush1.bf16.msra.mxu0 %v3719
        %4546 = vmatprep.subr.bf16.mxu0 %v3736
        %4547 = vmatpush1.bf16.msra.mxu0 %v3735
        %4548 = vmatprep.subr.bf16.mxu0 %v3752
        %4549 = vmatpush1.bf16.msra.mxu0 %v3751
        %4550 = vmatprep.subr.bf16.mxu0 %v3768
        %4551 = vmatpush1.bf16.msra.mxu0 %v3767
        %4552 = vmatprep.subr.bf16.mxu0 %v3784
        %4553 = vmatpush1.bf16.msra.mxu0 %v3783
        %4554 = vmatprep.subr.bf16.mxu0 %v3800
        %4555 = vmatpush1.bf16.msra.mxu0 %v3799
        %4556 = vmatprep.subr.bf16.mxu0 %v3816
        %4557 = vmatpush1.bf16.msra.mxu0 %v3815
        %4558 = vmatprep.subr.bf16.mxu0 %v3832
        %4559 = vmatpush1.bf16.msra.mxu0 %v3831
        %4560 = vmatprep.subr.bf16.mxu0 %v3848
        %4561 = vmatpush1.bf16.msra.mxu0 %v3847
        %4562 = vmatprep.subr.bf16.mxu0 %v3864
        %4563 = vmatpush1.bf16.msra.mxu0 %v3863
        %4564 = vmatprep.subr.bf16.mxu0 %v3880
        %4565 = vmatpush1.bf16.msra.mxu0 %v3879
        %4566 = vmatprep.subr.bf16.mxu0 %v3896
        %4567 = vmatpush1.bf16.msra.mxu0 %v3895
        %4568 = vmatprep.subr.bf16.mxu0 %v3912
        %4569 = vmatpush1.bf16.msra.mxu0 %v3911
        %4570 = vmatprep.subr.bf16.mxu0 %v3928
        %4571 = vmatpush1.bf16.msra.mxu0 %v3927
        %4572 = vmatprep.subr.bf16.mxu0 %v3944
        %4573 = vmatpush1.bf16.msra.mxu0 %v3943
        %4574 = vmatprep.mubr.bf16.mxu0 %v4114
        %4575 = vmatmul.mubr.bf16.gmra.mrb[0].mxu0 %v4113
        %v4576 = vpop.f32.mrb[0].mxu0
        %v4577 = vadd.f32 0.0, %v4576
        %v4578 = vpop.f32.mrb[0].mxu0
        %v4579 = vadd.f32 0.0, %v4578
        %v4580 = vpop.f32.mrb[0].mxu0
        %v4581 = vadd.f32 0.0, %v4580
        %v4582 = vpop.f32.mrb[0].mxu0
        %v4583 = vadd.f32 0.0, %v4582
        %4584 = vmatprep.mubr.bf16.mxu0 %v4118
        %4585 = vmatmul.mubr.bf16.gmra.mrb[0].mxu0 %v4117
        %v4586 = vpop.f32.mrb[0].mxu0
        %v4587 = vadd.f32 0.0, %v4586
        %v4588 = vpop.f32.mrb[0].mxu0
        %v4589 = vadd.f32 0.0, %v4588
        %v4590 = vpop.f32.mrb[0].mxu0
        %v4591 = vpop.f32.mrb[0].mxu0
        %4592 = vdwg.mxu0
        %4593 = vmatprep.subr.bf16.mxu0 %v3960
        %4594 = vmatpush1.bf16.msra.mxu0 %v3959
        %4595 = vmatprep.subr.bf16.mxu0 %v3976
        %4596 = vmatpush1.bf16.msra.mxu0 %v3975
        %4597 = vmatprep.subr.bf16.mxu0 %v3992
        %4598 = vmatpush1.bf16.msra.mxu0 %v3991
        %4599 = vmatprep.subr.bf16.mxu0 %v4008
        %4600 = vmatpush1.bf16.msra.mxu0 %v4007
        %4601 = vmatprep.subr.bf16.mxu0 %v4024
        %4602 = vmatpush1.bf16.msra.mxu0 %v4023
        %4603 = vmatprep.subr.bf16.mxu0 %v4040
        %4604 = vmatpush1.bf16.msra.mxu0 %v4039
        %4605 = vmatprep.subr.bf16.mxu0 %v4056
        %4606 = vmatpush1.bf16.msra.mxu0 %v4055
        %4607 = vmatprep.subr.bf16.mxu0 %v4072
        %4608 = vmatpush1.bf16.msra.mxu0 %v4071
        %4609 = vmatprep.subr.bf16.mxu0 %v4088
        %4610 = vmatpush1.bf16.msra.mxu0 %v4087
        %4611 = vmatprep.subr.bf16.mxu0 0
        %4612 = vmatpush1.bf16.msra.mxu0 0
        %4613 = vmatprep.subr.bf16.mxu0 0
        %4614 = vmatpush1.bf16.msra.mxu0 0
        %4615 = vmatprep.subr.bf16.mxu0 0
        %4616 = vmatpush1.bf16.msra.mxu0 0
        %4617 = vmatprep.subr.bf16.mxu0 0
        %4618 = vmatpush1.bf16.msra.mxu0 0
        %4619 = vmatprep.subr.bf16.mxu0 0
        %4620 = vmatpush1.bf16.msra.mxu0 0
        %4621 = vmatprep.subr.bf16.mxu0 0
        %4622 = vmatpush1.bf16.msra.mxu0 0
        %4623 = vmatprep.subr.bf16.mxu0 0
        %4624 = vmatpush1.bf16.msra.mxu0 0
        %4625 = vmatprep.mubr.bf16.mxu0 %v4129
        %4626 = vmatmul.mubr.bf16.gmra.mrb[0].mxu0 %v4115
        %v4627 = vpop.f32.mrb[0].mxu0
        %v4628 = vadd.f32 %v4577, %v4627
        %v4629 = vpop.f32.mrb[0].mxu0
        %v4630 = vadd.f32 %v4579, %v4629
        %v4631 = vpop.f32.mrb[0].mxu0
        %v4632 = vadd.f32 %v4581, %v4631
        %v4633 = vpop.f32.mrb[0].mxu0
        %v4634 = vadd.f32 %v4583, %v4633
        %4635 = vmatprep.mubr.bf16.mxu0 %v4132
        %4636 = vmatmul.mubr.bf16.gmra.mrb[0].mxu0 %v4119
        %v4637 = vpop.f32.mrb[0].mxu0
        %v4638 = vadd.f32 %v4587, %v4637
        %v4639 = vpop.f32.mrb[0].mxu0
        %v4640 = vadd.f32 %v4589, %v4639
        %v4641 = vpop.f32.mrb[0].mxu0
        %v4642 = vpop.f32.mrb[0].mxu0
        %4643 = vdwg.mxu0
        %4644 = vmatprep.subr.bf16.mxu0 %v3706
        %4645 = vmatpush1.bf16.msra.mxu0 %v3705
        %4646 = vmatprep.subr.bf16.mxu0 %v3722
        %4647 = vmatpush1.bf16.msra.mxu0 %v3721
        %4648 = vmatprep.subr.bf16.mxu0 %v3738
        %4649 = vmatpush1.bf16.msra.mxu0 %v3737
        %4650 = vmatprep.subr.bf16.mxu0 %v3754
        %4651 = vmatpush1.bf16.msra.mxu0 %v3753
        %4652 = vmatprep.subr.bf16.mxu0 %v3770
        %4653 = vmatpush1.bf16.msra.mxu0 %v3769
        %4654 = vmatprep.subr.bf16.mxu0 %v3786
        %4655 = vmatpush1.bf16.msra.mxu0 %v3785
        %4656 = vmatprep.subr.bf16.mxu0 %v3802
        %4657 = vmatpush1.bf16.msra.mxu0 %v3801
        %4658 = vmatprep.subr.bf16.mxu0 %v3818
        %4659 = vmatpush1.bf16.msra.mxu0 %v3817
        %4660 = vmatprep.subr.bf16.mxu0 %v3834
        %4661 = vmatpush1.bf16.msra.mxu0 %v3833
        %4662 = vmatprep.subr.bf16.mxu0 %v3850
        %4663 = vmatpush1.bf16.msra.mxu0 %v3849
        %4664 = vmatprep.subr.bf16.mxu0 %v3866
        %4665 = vmatpush1.bf16.msra.mxu0 %v3865
        %4666 = vmatprep.subr.bf16.mxu0 %v3882
        %4667 = vmatpush1.bf16.msra.mxu0 %v3881
        %4668 = vmatprep.subr.bf16.mxu0 %v3898
        %4669 = vmatpush1.bf16.msra.mxu0 %v3897
        %4670 = vmatprep.subr.bf16.mxu0 %v3914
        %4671 = vmatpush1.bf16.msra.mxu0 %v3913
        %4672 = vmatprep.subr.bf16.mxu0 %v3930
        %4673 = vmatpush1.bf16.msra.mxu0 %v3929
        %4674 = vmatprep.subr.bf16.mxu0 %v3946
        %4675 = vmatpush1.bf16.msra.mxu0 %v3945
        %4676 = vmatprep.mubr.bf16.mxu0 %v4114
        %4677 = vmatmul.mubr.bf16.gmra.mrb[0].mxu0 %v4113
        %v4678 = vpop.f32.mrb[0].mxu0
        %v4679 = vadd.f32 0.0, %v4678
        %v4680 = vpop.f32.mrb[0].mxu0
        %v4681 = vadd.f32 0.0, %v4680
        %v4682 = vpop.f32.mrb[0].mxu0
        %v4683 = vadd.f32 0.0, %v4682
        %v4684 = vpop.f32.mrb[0].mxu0
        %v4685 = vadd.f32 0.0, %v4684
        %4686 = vmatprep.mubr.bf16.mxu0 %v4118
        %4687 = vmatmul.mubr.bf16.gmra.mrb[0].mxu0 %v4117
        %v4688 = vpop.f32.mrb[0].mxu0
        %v4689 = vadd.f32 0.0, %v4688
        %v4690 = vpop.f32.mrb[0].mxu0
        %v4691 = vadd.f32 0.0, %v4690
        %v4692 = vpop.f32.mrb[0].mxu0
        %v4693 = vpop.f32.mrb[0].mxu0
        %4694 = vdwg.mxu0
        %4695 = vmatprep.subr.bf16.mxu0 %v3962
        %4696 = vmatpush1.bf16.msra.mxu0 %v3961
        %4697 = vmatprep.subr.bf16.mxu0 %v3978
        %4698 = vmatpush1.bf16.msra.mxu0 %v3977
        %4699 = vmatprep.subr.bf16.mxu0 %v3994
        %4700 = vmatpush1.bf16.msra.mxu0 %v3993
        %4701 = vmatprep.subr.bf16.mxu0 %v4010
        %4702 = vmatpush1.bf16.msra.mxu0 %v4009
        %4703 = vmatprep.subr.bf16.mxu0 %v4026
        %4704 = vmatpush1.bf16.msra.mxu0 %v4025
        %4705 = vmatprep.subr.bf16.mxu0 %v4042
        %4706 = vmatpush1.bf16.msra.mxu0 %v4041
        %4707 = vmatprep.subr.bf16.mxu0 %v4058
        %4708 = vmatpush1.bf16.msra.mxu0 %v4057
        %4709 = vmatprep.subr.bf16.mxu0 %v4074
        %4710 = vmatpush1.bf16.msra.mxu0 %v4073
        %4711 = vmatprep.subr.bf16.mxu0 %v4090
        %4712 = vmatpush1.bf16.msra.mxu0 %v4089
        %4713 = vmatprep.subr.bf16.mxu0 0
        %4714 = vmatpush1.bf16.msra.mxu0 0
        %4715 = vmatprep.subr.bf16.mxu0 0
        %4716 = vmatpush1.bf16.msra.mxu0 0
        %4717 = vmatprep.subr.bf16.mxu0 0
        %4718 = vmatpush1.bf16.msra.mxu0 0
        %4719 = vmatprep.subr.bf16.mxu0 0
        %4720 = vmatpush1.bf16.msra.mxu0 0
        %4721 = vmatprep.subr.bf16.mxu0 0
        %4722 = vmatpush1.bf16.msra.mxu0 0
        %4723 = vmatprep.subr.bf16.mxu0 0
        %4724 = vmatpush1.bf16.msra.mxu0 0
        %4725 = vmatprep.subr.bf16.mxu0 0
        %4726 = vmatpush1.bf16.msra.mxu0 0
        %4727 = vmatprep.mubr.bf16.mxu0 %v4129
        %4728 = vmatmul.mubr.bf16.gmra.mrb[0].mxu0 %v4115
        %v4729 = vpop.f32.mrb[0].mxu0
        %v4730 = vadd.f32 %v4679, %v4729
        %v4731 = vpop.f32.mrb[0].mxu0
        %v4732 = vadd.f32 %v4681, %v4731
        %v4733 = vpop.f32.mrb[0].mxu0
        %v4734 = vadd.f32 %v4683, %v4733
        %v4735 = vpop.f32.mrb[0].mxu0
        %v4736 = vadd.f32 %v4685, %v4735
        %4737 = vmatprep.mubr.bf16.mxu0 %v4132
        %4738 = vmatmul.mubr.bf16.gmra.mrb[0].mxu0 %v4119
        %v4739 = vpop.f32.mrb[0].mxu0
        %v4740 = vadd.f32 %v4689, %v4739
        %v4741 = vpop.f32.mrb[0].mxu0
        %v4742 = vadd.f32 %v4691, %v4741
        %v4743 = vpop.f32.mrb[0].mxu0
        %v4744 = vpop.f32.mrb[0].mxu0
        %4745 = vdwg.mxu0
        %4746 = vmatprep.subr.bf16.mxu0 %v3708
        %4747 = vmatpush1.bf16.msra.mxu0 %v3707
        %4748 = vmatprep.subr.bf16.mxu0 %v3724
        %4749 = vmatpush1.bf16.msra.mxu0 %v3723
        %4750 = vmatprep.subr.bf16.mxu0 %v3740
        %4751 = vmatpush1.bf16.msra.mxu0 %v3739
        %4752 = vmatprep.subr.bf16.mxu0 %v3756
        %4753 = vmatpush1.bf16.msra.mxu0 %v3755
        %4754 = vmatprep.subr.bf16.mxu0 %v3772
        %4755 = vmatpush1.bf16.msra.mxu0 %v3771
        %4756 = vmatprep.subr.bf16.mxu0 %v3788
        %4757 = vmatpush1.bf16.msra.mxu0 %v3787
        %4758 = vmatprep.subr.bf16.mxu0 %v3804
        %4759 = vmatpush1.bf16.msra.mxu0 %v3803
        %4760 = vmatprep.subr.bf16.mxu0 %v3820
        %4761 = vmatpush1.bf16.msra.mxu0 %v3819
        %4762 = vmatprep.subr.bf16.mxu0 %v3836
        %4763 = vmatpush1.bf16.msra.mxu0 %v3835
        %4764 = vmatprep.subr.bf16.mxu0 %v3852
        %4765 = vmatpush1.bf16.msra.mxu0 %v3851
        %4766 = vmatprep.subr.bf16.mxu0 %v3868
        %4767 = vmatpush1.bf16.msra.mxu0 %v3867
        %4768 = vmatprep.subr.bf16.mxu0 %v3884
        %4769 = vmatpush1.bf16.msra.mxu0 %v3883
        %4770 = vmatprep.subr.bf16.mxu0 %v3900
        %4771 = vmatpush1.bf16.msra.mxu0 %v3899
        %4772 = vmatprep.subr.bf16.mxu0 %v3916
        %4773 = vmatpush1.bf16.msra.mxu0 %v3915
        %4774 = vmatprep.subr.bf16.mxu0 %v3932
        %4775 = vmatpush1.bf16.msra.mxu0 %v3931
        %4776 = vmatprep.subr.bf16.mxu0 %v3948
        %4777 = vmatpush1.bf16.msra.mxu0 %v3947
        %4778 = vmatprep.mubr.bf16.mxu0 %v4114
        %4779 = vmatmul.mubr.bf16.gmra.mrb[0].mxu0 %v4113
        %v4780 = vpop.f32.mrb[0].mxu0
        %v4781 = vadd.f32 0.0, %v4780
        %v4782 = vpop.f32.mrb[0].mxu0
        %v4783 = vadd.f32 0.0, %v4782
        %v4784 = vpop.f32.mrb[0].mxu0
        %v4785 = vadd.f32 0.0, %v4784
        %v4786 = vpop.f32.mrb[0].mxu0
        %v4787 = vadd.f32 0.0, %v4786
        %4788 = vmatprep.mubr.bf16.mxu0 %v4118
        %4789 = vmatmul.mubr.bf16.gmra.mrb[0].mxu0 %v4117
        %v4790 = vpop.f32.mrb[0].mxu0
        %v4791 = vadd.f32 0.0, %v4790
        %v4792 = vpop.f32.mrb[0].mxu0
        %v4793 = vadd.f32 0.0, %v4792
        %v4794 = vpop.f32.mrb[0].mxu0
        %v4795 = vpop.f32.mrb[0].mxu0
        %4796 = vdwg.mxu0
        %4797 = vmatprep.subr.bf16.mxu0 %v3964
        %4798 = vmatpush1.bf16.msra.mxu0 %v3963
        %4799 = vmatprep.subr.bf16.mxu0 %v3980
        %4800 = vmatpush1.bf16.msra.mxu0 %v3979
        %4801 = vmatprep.subr.bf16.mxu0 %v3996
        %4802 = vmatpush1.bf16.msra.mxu0 %v3995
        %4803 = vmatprep.subr.bf16.mxu0 %v4012
        %4804 = vmatpush1.bf16.msra.mxu0 %v4011
        %4805 = vmatprep.subr.bf16.mxu0 %v4028
        %4806 = vmatpush1.bf16.msra.mxu0 %v4027
        %4807 = vmatprep.subr.bf16.mxu0 %v4044
        %4808 = vmatpush1.bf16.msra.mxu0 %v4043
        %4809 = vmatprep.subr.bf16.mxu0 %v4060
        %4810 = vmatpush1.bf16.msra.mxu0 %v4059
        %4811 = vmatprep.subr.bf16.mxu0 %v4076
        %4812 = vmatpush1.bf16.msra.mxu0 %v4075
        %4813 = vmatprep.subr.bf16.mxu0 %v4092
        %4814 = vmatpush1.bf16.msra.mxu0 %v4091
        %4815 = vmatprep.subr.bf16.mxu0 0
        %4816 = vmatpush1.bf16.msra.mxu0 0
        %4817 = vmatprep.subr.bf16.mxu0 0
        %4818 = vmatpush1.bf16.msra.mxu0 0
        %4819 = vmatprep.subr.bf16.mxu0 0
        %4820 = vmatpush1.bf16.msra.mxu0 0
        %4821 = vmatprep.subr.bf16.mxu0 0
        %4822 = vmatpush1.bf16.msra.mxu0 0
        %4823 = vmatprep.subr.bf16.mxu0 0
        %4824 = vmatpush1.bf16.msra.mxu0 0
        %4825 = vmatprep.subr.bf16.mxu0 0
        %4826 = vmatpush1.bf16.msra.mxu0 0
        %4827 = vmatprep.subr.bf16.mxu0 0
        %4828 = vmatpush1.bf16.msra.mxu0 0
        %4829 = vmatprep.mubr.bf16.mxu0 %v4129
        %4830 = vmatmul.mubr.bf16.gmra.mrb[0].mxu0 %v4115
        %v4831 = vpop.f32.mrb[0].mxu0
        %v4832 = vadd.f32 %v4781, %v4831
        %v4833 = vpop.f32.mrb[0].mxu0
        %v4834 = vadd.f32 %v4783, %v4833
        %v4835 = vpop.f32.mrb[0].mxu0
        %v4836 = vadd.f32 %v4785, %v4835
        %v4837 = vpop.f32.mrb[0].mxu0
        %v4838 = vadd.f32 %v4787, %v4837
        %4839 = vmatprep.mubr.bf16.mxu0 %v4132
        %4840 = vmatmul.mubr.bf16.gmra.mrb[0].mxu0 %v4119
        %v4841 = vpop.f32.mrb[0].mxu0
        %v4842 = vadd.f32 %v4791, %v4841
        %v4843 = vpop.f32.mrb[0].mxu0
        %v4844 = vadd.f32 %v4793, %v4843
        %v4845 = vpop.f32.mrb[0].mxu0
        %v4846 = vpop.f32.mrb[0].mxu0
        %4847 = vdwg.mxu0
        %4848 = vmatprep.subr.bf16.mxu0 %v3710
        %4849 = vmatpush1.bf16.msra.mxu0 %v3709
        %4850 = vmatprep.subr.bf16.mxu0 %v3726
        %4851 = vmatpush1.bf16.msra.mxu0 %v3725
        %4852 = vmatprep.subr.bf16.mxu0 %v3742
        %4853 = vmatpush1.bf16.msra.mxu0 %v3741
        %4854 = vmatprep.subr.bf16.mxu0 %v3758
        %4855 = vmatpush1.bf16.msra.mxu0 %v3757
        %4856 = vmatprep.subr.bf16.mxu0 %v3774
        %4857 = vmatpush1.bf16.msra.mxu0 %v3773
        %4858 = vmatprep.subr.bf16.mxu0 %v3790
        %4859 = vmatpush1.bf16.msra.mxu0 %v3789
        %4860 = vmatprep.subr.bf16.mxu0 %v3806
        %4861 = vmatpush1.bf16.msra.mxu0 %v3805
        %4862 = vmatprep.subr.bf16.mxu0 %v3822
        %4863 = vmatpush1.bf16.msra.mxu0 %v3821
        %4864 = vmatprep.subr.bf16.mxu0 %v3838
        %4865 = vmatpush1.bf16.msra.mxu0 %v3837
        %4866 = vmatprep.subr.bf16.mxu0 %v3854
        %4867 = vmatpush1.bf16.msra.mxu0 %v3853
        %4868 = vmatprep.subr.bf16.mxu0 %v3870
        %4869 = vmatpush1.bf16.msra.mxu0 %v3869
        %4870 = vmatprep.subr.bf16.mxu0 %v3886
        %4871 = vmatpush1.bf16.msra.mxu0 %v3885
        %4872 = vmatprep.subr.bf16.mxu0 %v3902
        %4873 = vmatpush1.bf16.msra.mxu0 %v3901
        %4874 = vmatprep.subr.bf16.mxu0 %v3918
        %4875 = vmatpush1.bf16.msra.mxu0 %v3917
        %4876 = vmatprep.subr.bf16.mxu0 %v3934
        %4877 = vmatpush1.bf16.msra.mxu0 %v3933
        %4878 = vmatprep.subr.bf16.mxu0 %v3950
        %4879 = vmatpush1.bf16.msra.mxu0 %v3949
        %4880 = vmatprep.mubr.bf16.mxu0 %v4114
        %4881 = vmatmul.mubr.bf16.gmra.mrb[0].mxu0 %v4113
        %v4882 = vpop.f32.mrb[0].mxu0
        %v4883 = vadd.f32 0.0, %v4882
        %v4884 = vpop.f32.mrb[0].mxu0
        %v4885 = vadd.f32 0.0, %v4884
        %v4886 = vpop.f32.mrb[0].mxu0
        %v4887 = vadd.f32 0.0, %v4886
        %v4888 = vpop.f32.mrb[0].mxu0
        %v4889 = vadd.f32 0.0, %v4888
        %4890 = vmatprep.mubr.bf16.mxu0 %v4118
        %4891 = vmatmul.mubr.bf16.gmra.mrb[0].mxu0 %v4117
        %v4892 = vpop.f32.mrb[0].mxu0
        %v4893 = vadd.f32 0.0, %v4892
        %v4894 = vpop.f32.mrb[0].mxu0
        %v4895 = vadd.f32 0.0, %v4894
        %v4896 = vpop.f32.mrb[0].mxu0
        %v4897 = vpop.f32.mrb[0].mxu0
        %4898 = vdwg.mxu0
        %4899 = vmatprep.subr.bf16.mxu0 %v3966
        %4900 = vmatpush1.bf16.msra.mxu0 %v3965
        %4901 = vmatprep.subr.bf16.mxu0 %v3982
        %4902 = vmatpush1.bf16.msra.mxu0 %v3981
        %4903 = vmatprep.subr.bf16.mxu0 %v3998
        %4904 = vmatpush1.bf16.msra.mxu0 %v3997
        %4905 = vmatprep.subr.bf16.mxu0 %v4014
        %4906 = vmatpush1.bf16.msra.mxu0 %v4013
        %4907 = vmatprep.subr.bf16.mxu0 %v4030
        %4908 = vmatpush1.bf16.msra.mxu0 %v4029
        %4909 = vmatprep.subr.bf16.mxu0 %v4046
        %4910 = vmatpush1.bf16.msra.mxu0 %v4045
        %4911 = vmatprep.subr.bf16.mxu0 %v4062
        %4912 = vmatpush1.bf16.msra.mxu0 %v4061
        %4913 = vmatprep.subr.bf16.mxu0 %v4078
        %4914 = vmatpush1.bf16.msra.mxu0 %v4077
        %4915 = vmatprep.subr.bf16.mxu0 %v4094
        %4916 = vmatpush1.bf16.msra.mxu0 %v4093
        %4917 = vmatprep.subr.bf16.mxu0 0
        %4918 = vmatpush1.bf16.msra.mxu0 0
        %4919 = vmatprep.subr.bf16.mxu0 0
        %4920 = vmatpush1.bf16.msra.mxu0 0
        %4921 = vmatprep.subr.bf16.mxu0 0
        %4922 = vmatpush1.bf16.msra.mxu0 0
        %4923 = vmatprep.subr.bf16.mxu0 0
        %4924 = vmatpush1.bf16.msra.mxu0 0
        %4925 = vmatprep.subr.bf16.mxu0 0
        %4926 = vmatpush1.bf16.msra.mxu0 0
        %4927 = vmatprep.subr.bf16.mxu0 0
        %4928 = vmatpush1.bf16.msra.mxu0 0
        %4929 = vmatprep.subr.bf16.mxu0 0
        %4930 = vmatpush1.bf16.msra.mxu0 0
        %4931 = vmatprep.mubr.bf16.mxu0 %v4129
        %4932 = vmatmul.mubr.bf16.gmra.mrb[0].mxu0 %v4115
        %v4933 = vpop.f32.mrb[0].mxu0
        %v4934 = vadd.f32 %v4883, %v4933
        %v4935 = vpop.f32.mrb[0].mxu0
        %v4936 = vadd.f32 %v4885, %v4935
        %v4937 = vpop.f32.mrb[0].mxu0
        %v4938 = vadd.f32 %v4887, %v4937
        %v4939 = vpop.f32.mrb[0].mxu0
        %v4940 = vadd.f32 %v4889, %v4939
        %4941 = vmatprep.mubr.bf16.mxu0 %v4132
        %4942 = vmatmul.mubr.bf16.gmra.mrb[0].mxu0 %v4119
        %v4943 = vpop.f32.mrb[0].mxu0
        %v4944 = vadd.f32 %v4893, %v4943
        %v4945 = vpop.f32.mrb[0].mxu0
        %v4946 = vadd.f32 %v4895, %v4945
        %v4947 = vpop.f32.mrb[0].mxu0
        %v4948 = vpop.f32.mrb[0].mxu0
        %4949 = vdwg.mxu0
        %v4950 = vld [vmem:[%s6] sm:$0xff]
        %v4951 = vld [vmem:[%s6 + $0x8] sm:$0xff]
        %v4952 = vld [vmem:[%s6 + $0x10] sm:$0xff]
        %4954 = vset.pattern.permute.xlu0 0
        %4955 = vperm.xlu0 %4954, %v4950
        %v4956 = vpop.permute.xlu0 %4955
        %4959 = vset.pattern.permute.xlu0 0
        %4960 = vperm.xlu0 %4959, %v4951
        %v4961 = vpop.permute.xlu0 %4960
        %4964 = vset.pattern.permute.xlu0 0
        %4965 = vperm.xlu0 %4964, %v4952
        %v4966 = vpop.permute.xlu0 %4965
        %v4968 = vadd.f32 %v4956, %v4220
        %v4969 = vadd.f32 %v4956, %v4222
        %v4970 = vadd.f32 %v4956, %v4322
        %v4971 = vadd.f32 %v4956, %v4324
        %v4972 = vadd.f32 %v4956, %v4424
        %v4973 = vadd.f32 %v4956, %v4426
        %v4974 = vadd.f32 %v4956, %v4526
        %v4975 = vadd.f32 %v4956, %v4528
        %v4976 = vadd.f32 %v4956, %v4628
        %v4977 = vadd.f32 %v4956, %v4630
        %v4978 = vadd.f32 %v4956, %v4730
        %v4979 = vadd.f32 %v4956, %v4732
        %v4980 = vadd.f32 %v4956, %v4832
        %v4981 = vadd.f32 %v4956, %v4834
        %v4982 = vadd.f32 %v4956, %v4934
        %v4983 = vadd.f32 %v4956, %v4936
        %v4984 = vadd.f32 %v4961, %v4224
        %v4985 = vadd.f32 %v4961, %v4226
        %v4986 = vadd.f32 %v4961, %v4326
        %v4987 = vadd.f32 %v4961, %v4328
        %v4988 = vadd.f32 %v4961, %v4428
        %v4989 = vadd.f32 %v4961, %v4430
        %v4990 = vadd.f32 %v4961, %v4530
        %v4991 = vadd.f32 %v4961, %v4532
        %v4992 = vadd.f32 %v4961, %v4632
        %v4993 = vadd.f32 %v4961, %v4634
        %v4994 = vadd.f32 %v4961, %v4734
        %v4995 = vadd.f32 %v4961, %v4736
        %v4996 = vadd.f32 %v4961, %v4836
        %v4997 = vadd.f32 %v4961, %v4838
        %v4998 = vadd.f32 %v4961, %v4938
        %v4999 = vadd.f32 %v4961, %v4940
        %v5000 = vadd.f32 %v4966, %v4230
        %v5001 = vadd.f32 %v4966, %v4232
        %v5002 = vadd.f32 %v4966, %v4332
        %v5003 = vadd.f32 %v4966, %v4334
        %v5004 = vadd.f32 %v4966, %v4434
        %v5005 = vadd.f32 %v4966, %v4436
        %v5006 = vadd.f32 %v4966, %v4536
        %v5007 = vadd.f32 %v4966, %v4538
        %v5008 = vadd.f32 %v4966, %v4638
        %v5009 = vadd.f32 %v4966, %v4640
        %v5010 = vadd.f32 %v4966, %v4740
        %v5011 = vadd.f32 %v4966, %v4742
        %v5012 = vadd.f32 %v4966, %v4842
        %v5013 = vadd.f32 %v4966, %v4844
        %v5014 = vadd.f32 %v4966, %v4944
        %v5015 = vadd.f32 %v4966, %v4946
        %5016 = vst [vmem:[#allocation4] sm:$0xff] %v4968
        %5017 = vst [vmem:[#allocation4 + $0x8] sm:$0xff] %v4969
        %5018 = vst [vmem:[#allocation4 + $0x10] sm:$0xff] %v4970
        %5019 = vst [vmem:[#allocation4 + $0x18] sm:$0xff] %v4971
        %5020 = vst [vmem:[#allocation4 + $0x20] sm:$0xff] %v4972
        %5021 = vst [vmem:[#allocation4 + $0x28] sm:$0xff] %v4973
        %5022 = vst [vmem:[#allocation4 + $0x30] sm:$0xff] %v4974
        %5023 = vst [vmem:[#allocation4 + $0x38] sm:$0xff] %v4975
        %5024 = vst [vmem:[#allocation4 + $0x40] sm:$0xff] %v4976
        %5025 = vst [vmem:[#allocation4 + $0x48] sm:$0xff] %v4977
        %5026 = vst [vmem:[#allocation4 + $0x50] sm:$0xff] %v4978
        %5027 = vst [vmem:[#allocation4 + $0x58] sm:$0xff] %v4979
        %5028 = vst [vmem:[#allocation4 + $0x60] sm:$0xff] %v4980
        %5029 = vst [vmem:[#allocation4 + $0x68] sm:$0xff] %v4981
        %5030 = vst [vmem:[#allocation4 + $0x70] sm:$0xff] %v4982
        %5031 = vst [vmem:[#allocation4 + $0x78] sm:$0xff] %v4983
        %5032 = vst [vmem:[#allocation4 + $0x80] sm:$0xff] %v4984
        %5033 = vst [vmem:[#allocation4 + $0x88] sm:$0xff] %v4985
        %5034 = vst [vmem:[#allocation4 + $0x90] sm:$0xff] %v4986
        %5035 = vst [vmem:[#allocation4 + $0x98] sm:$0xff] %v4987
        %5036 = vst [vmem:[#allocation4 + $0xa0] sm:$0xff] %v4988
        %5037 = vst [vmem:[#allocation4 + $0xa8] sm:$0xff] %v4989
        %5038 = vst [vmem:[#allocation4 + $0xb0] sm:$0xff] %v4990
        %5039 = vst [vmem:[#allocation4 + $0xb8] sm:$0xff] %v4991
        %5040 = vst [vmem:[#allocation4 + $0xc0] sm:$0xff] %v4992
        %5041 = vst [vmem:[#allocation4 + $0xc8] sm:$0xff] %v4993
        %5042 = vst [vmem:[#allocation4 + $0xd0] sm:$0xff] %v4994
        %5043 = vst [vmem:[#allocation4 + $0xd8] sm:$0xff] %v4995
        %5044 = vst [vmem:[#allocation4 + $0xe0] sm:$0xff] %v4996
        %5045 = vst [vmem:[#allocation4 + $0xe8] sm:$0xff] %v4997
        %5046 = vst [vmem:[#allocation4 + $0xf0] sm:$0xff] %v4998
        %5047 = vst [vmem:[#allocation4 + $0xf8] sm:$0xff] %v4999
        %5048 = vst [vmem:[#allocation4 + $0x100] sm:$0xff] %v5000
        %5049 = vst [vmem:[#allocation4 + $0x108] sm:$0xff] %v5001
        %5050 = vst [vmem:[#allocation4 + $0x110] sm:$0xff] %v5002
        %5051 = vst [vmem:[#allocation4 + $0x118] sm:$0xff] %v5003
        %5052 = vst [vmem:[#allocation4 + $0x120] sm:$0xff] %v5004
        %5053 = vst [vmem:[#allocation4 + $0x128] sm:$0xff] %v5005
        %5054 = vst [vmem:[#allocation4 + $0x130] sm:$0xff] %v5006
        %5055 = vst [vmem:[#allocation4 + $0x138] sm:$0xff] %v5007
        %5056 = vst [vmem:[#allocation4 + $0x140] sm:$0xff] %v5008
        %5057 = vst [vmem:[#allocation4 + $0x148] sm:$0xff] %v5009
        %5058 = vst [vmem:[#allocation4 + $0x150] sm:$0xff] %v5010
        %5059 = vst [vmem:[#allocation4 + $0x158] sm:$0xff] %v5011
        %5060 = vst [vmem:[#allocation4 + $0x160] sm:$0xff] %v5012
        %5061 = vst [vmem:[#allocation4 + $0x168] sm:$0xff] %v5013
        %5062 = vst [vmem:[#allocation4 + $0x170] sm:$0xff] %v5014
        %5063 = vst [vmem:[#allocation4 + $0x178] sm:$0xff] %v5015
        %v5064 = vld [vmem:[#allocation4] sm:$0xff]
        %v5065 = vld [vmem:[#allocation4 + $0x8] sm:$0xff]
        %v5066 = vld [vmem:[#allocation4 + $0x10] sm:$0xff]
        %v5067 = vld [vmem:[#allocation4 + $0x18] sm:$0xff]
        %v5068 = vld [vmem:[#allocation4 + $0x20] sm:$0xff]
        %v5069 = vld [vmem:[#allocation4 + $0x28] sm:$0xff]
        %v5070 = vld [vmem:[#allocation4 + $0x30] sm:$0xff]
        %v5071 = vld [vmem:[#allocation4 + $0x38] sm:$0xff]
        %v5072 = vld [vmem:[#allocation4 + $0x40] sm:$0xff]
        %v5073 = vld [vmem:[#allocation4 + $0x48] sm:$0xff]
        %v5074 = vld [vmem:[#allocation4 + $0x50] sm:$0xff]
        %v5075 = vld [vmem:[#allocation4 + $0x58] sm:$0xff]
        %v5076 = vld [vmem:[#allocation4 + $0x60] sm:$0xff]
        %v5077 = vld [vmem:[#allocation4 + $0x68] sm:$0xff]
        %v5078 = vld [vmem:[#allocation4 + $0x70] sm:$0xff]
        %v5079 = vld [vmem:[#allocation4 + $0x78] sm:$0xff]
        %v5080 = vld [vmem:[#allocation4 + $0x80] sm:$0xff]
        %v5081 = vld [vmem:[#allocation4 + $0x88] sm:$0xff]
        %v5082 = vld [vmem:[#allocation4 + $0x90] sm:$0xff]
        %v5083 = vld [vmem:[#allocation4 + $0x98] sm:$0xff]
        %v5084 = vld [vmem:[#allocation4 + $0xa0] sm:$0xff]
        %v5085 = vld [vmem:[#allocation4 + $0xa8] sm:$0xff]
        %v5086 = vld [vmem:[#allocation4 + $0xb0] sm:$0xff]
        %v5087 = vld [vmem:[#allocation4 + $0xb8] sm:$0xff]
        %v5088 = vld [vmem:[#allocation4 + $0xc0] sm:$0xff]
        %v5089 = vld [vmem:[#allocation4 + $0xc8] sm:$0xff]
        %v5090 = vld [vmem:[#allocation4 + $0xd0] sm:$0xff]
        %v5091 = vld [vmem:[#allocation4 + $0xd8] sm:$0xff]
        %v5092 = vld [vmem:[#allocation4 + $0xe0] sm:$0xff]
        %v5093 = vld [vmem:[#allocation4 + $0xe8] sm:$0xff]
        %v5094 = vld [vmem:[#allocation4 + $0xf0] sm:$0xff]
        %v5095 = vld [vmem:[#allocation4 + $0xf8] sm:$0xff]
        %5096 = vst [vmem:[%s521] sm:$0xff] %v5064
        %5097 = vst [vmem:[%s521 + $0x8] sm:$0xff] %v5065
        %5098 = vst [vmem:[%s521 + $0x10] sm:$0xff] %v5066
        %5099 = vst [vmem:[%s521 + $0x18] sm:$0xff] %v5067
        %5100 = vst [vmem:[%s521 + $0x20] sm:$0xff] %v5068
        %5101 = vst [vmem:[%s521 + $0x28] sm:$0xff] %v5069
        %5102 = vst [vmem:[%s521 + $0x30] sm:$0xff] %v5070
        %5103 = vst [vmem:[%s521 + $0x38] sm:$0xff] %v5071
        %5104 = vst [vmem:[%s521 + $0x40] sm:$0xff] %v5072
        %5105 = vst [vmem:[%s521 + $0x48] sm:$0xff] %v5073
        %5106 = vst [vmem:[%s521 + $0x50] sm:$0xff] %v5074
        %5107 = vst [vmem:[%s521 + $0x58] sm:$0xff] %v5075
        %5108 = vst [vmem:[%s521 + $0x60] sm:$0xff] %v5076
        %5109 = vst [vmem:[%s521 + $0x68] sm:$0xff] %v5077
        %5110 = vst [vmem:[%s521 + $0x70] sm:$0xff] %v5078
        %5111 = vst [vmem:[%s521 + $0x78] sm:$0xff] %v5079
        %5112 = vst [vmem:[%s521 + $0x80] sm:$0xff] %v5080
        %5113 = vst [vmem:[%s521 + $0x88] sm:$0xff] %v5081
        %5114 = vst [vmem:[%s521 + $0x90] sm:$0xff] %v5082
        %5115 = vst [vmem:[%s521 + $0x98] sm:$0xff] %v5083
        %5116 = vst [vmem:[%s521 + $0xa0] sm:$0xff] %v5084
        %5117 = vst [vmem:[%s521 + $0xa8] sm:$0xff] %v5085
        %5118 = vst [vmem:[%s521 + $0xb0] sm:$0xff] %v5086
        %5119 = vst [vmem:[%s521 + $0xb8] sm:$0xff] %v5087
        %5120 = vst [vmem:[%s521 + $0xc0] sm:$0xff] %v5088
        %5121 = vst [vmem:[%s521 + $0xc8] sm:$0xff] %v5089
        %5122 = vst [vmem:[%s521 + $0xd0] sm:$0xff] %v5090
        %5123 = vst [vmem:[%s521 + $0xd8] sm:$0xff] %v5091
        %5124 = vst [vmem:[%s521 + $0xe0] sm:$0xff] %v5092
        %5125 = vst [vmem:[%s521 + $0xe8] sm:$0xff] %v5093
        %5126 = vst [vmem:[%s521 + $0xf0] sm:$0xff] %v5094
        %5127 = vst [vmem:[%s521 + $0xf8] sm:$0xff] %v5095
        %v5128 = vld [vmem:[#allocation4 + $0x100] sm:$0x7]
        %v5129 = vld [vmem:[#allocation4 + $0x108] sm:$0x7]
        %v5130 = vld [vmem:[#allocation4 + $0x110] sm:$0x7]
        %v5131 = vld [vmem:[#allocation4 + $0x118] sm:$0x7]
        %v5132 = vld [vmem:[#allocation4 + $0x120] sm:$0x7]
        %v5133 = vld [vmem:[#allocation4 + $0x128] sm:$0x7]
        %v5134 = vld [vmem:[#allocation4 + $0x130] sm:$0x7]
        %v5135 = vld [vmem:[#allocation4 + $0x138] sm:$0x7]
        %v5136 = vld [vmem:[#allocation4 + $0x140] sm:$0x7]
        %v5137 = vld [vmem:[#allocation4 + $0x148] sm:$0x7]
        %v5138 = vld [vmem:[#allocation4 + $0x150] sm:$0x7]
        %v5139 = vld [vmem:[#allocation4 + $0x158] sm:$0x7]
        %v5140 = vld [vmem:[#allocation4 + $0x160] sm:$0x7]
        %v5141 = vld [vmem:[#allocation4 + $0x168] sm:$0x7]
        %v5142 = vld [vmem:[#allocation4 + $0x170] sm:$0x7]
        %v5143 = vld [vmem:[#allocation4 + $0x178] sm:$0x7]
        %v5160 = vcombine.low %v5128, %v5129
        %v5161 = vcombine.low %v5130, %v5131
        %v5162 = vcombine.low %v5132, %v5133
        %v5163 = vcombine.low %v5134, %v5135
        %v5164 = vcombine.low %v5136, %v5137
        %v5165 = vcombine.low %v5138, %v5139
        %v5166 = vcombine.low %v5140, %v5141
        %v5167 = vcombine.low %v5142, %v5143
        %5176 = vst [vmem:[%s531] sm:$0x77] %v5160
        %5177 = vst [vmem:[%s531 + $0x8] sm:$0x77] %v5161
        %5178 = vst [vmem:[%s531 + $0x10] sm:$0x77] %v5162
        %5179 = vst [vmem:[%s531 + $0x18] sm:$0x77] %v5163
        %5180 = vst [vmem:[%s531 + $0x20] sm:$0x77] %v5164
        %5181 = vst [vmem:[%s531 + $0x28] sm:$0x77] %v5165
        %5182 = vst [vmem:[%s531 + $0x30] sm:$0x77] %v5166
        %5183 = vst [vmem:[%s531 + $0x38] sm:$0x77] %v5167
        %s5184 = smul.u32 16, %s25
        %p5185 = scmp.lt.s32.totalorder %s24, 1
        %s5186 = scalar_select %p5185, %s24, 1
        %p5187 = scmp.lt.s32.totalorder %s5184, 15
        %s5188 = scalar_select %p5187, %s5184, 15
        %s5189 = smul.addr %s5186, 32
        %s5190 = sadd.s32 %s5188, %s5189
        %s5191 = smul.addr %s5190, 8
        %s5192 = scalar_lea.vmem %s7, %s5191
        %s5193 = smul.u32 16, %s25
        %p5194 = scmp.lt.s32.totalorder %s24, 1
        %s5195 = scalar_select %p5194, %s24, 1
        %p5196 = scmp.lt.s32.totalorder %s5193, 15
        %s5197 = scalar_select %p5196, %s5193, 15
        %s5198 = smul.addr %s5195, 16
        %s5199 = sadd.s32 %s5197, %s5198
        %s5200 = smul.addr %s5199, 4
        %s5201 = scalar_lea.vmem %s8, %s5200
        // Predicated region
        $region125: #{illumination_estimator.1} parent=115 // pred_check
          %p5202 = pneg %p236
        $region126: #{illumination_estimator.1} parent=115 // pred_check_branch
          %5204 = sbr.rel (%p5202) target = $region128
        $region127: #{illumination_estimator.1} parent=115 // pred_region
          %s5205 = smul.u32 16, %s25
        $region128: #{illumination_estimator.1} parent=115 // pred_fallthru
          _
        // Predicated region
        $region129: #{illumination_estimator.1} parent=115 // pred_check
          %p5206 = pneg %p264
        $region130: #{illumination_estimator.1} parent=115 // pred_check_branch
          %5208 = sbr.rel (%p5206) target = $region132
        $region131: #{illumination_estimator.1} parent=115 // pred_region
          %s5209 = smul.u32 16, %s25
        $region132: #{illumination_estimator.1} parent=115 // pred_fallthru
          _
      $region116: #{illumination_estimator.1} parent=5 // pred_fallthru
        _
      %p5210 = scmp.le.s32.totalorder 2, %s15
      // Predicated region
      $region133: #{illumination_estimator.1} parent=5 // pred_check
        %p5211 = pneg %p5210
      $region134: #{illumination_estimator.1} parent=5 // pred_check_branch
        %5213 = sbr.rel (%p5211) target = $region136
      $region135: #{illumination_estimator.1} parent=5 // pred_region
        %s5214 = ssub.s32 %s15, 2
        // Predicated region
        $region137: #{illumination_estimator.1} parent=135 // pred_check
          %p5215 = pneg %p242
        $region138: #{illumination_estimator.1} parent=135 // pred_check_branch
          %5217 = sbr.rel (%p5215) target = $region140
        $region139: #{illumination_estimator.1} parent=135 // pred_region
          %s5218 = smul.u32 16, %s27
          %p5219 = scmp.lt.s32.totalorder %s26, 1
          %s5220 = scalar_select %p5219, %s26, 1
          %p5221 = scmp.lt.s32.totalorder %s5218, 15
          %s5222 = scalar_select %p5221, %s5218, 15
          %s5223 = smul.addr %s5220, 32
          %s5224 = sadd.s32 %s5222, %s5223
          %s5225 = smul.addr %s5224, 8
          %s5226 = scalar_lea.vmem %s7, %s5225
        $region140: #{illumination_estimator.1} parent=135 // pred_fallthru
          _
        // Predicated region
        $region141: #{illumination_estimator.1} parent=135 // pred_check
          %p5227 = pneg %p270
        $region142: #{illumination_estimator.1} parent=135 // pred_check_branch
          %5229 = sbr.rel (%p5227) target = $region144
        $region143: #{illumination_estimator.1} parent=135 // pred_region
          %s5230 = smul.u32 16, %s27
          %p5231 = scmp.lt.s32.totalorder %s26, 1
          %s5232 = scalar_select %p5231, %s26, 1
          %p5233 = scmp.lt.s32.totalorder %s5230, 15
          %s5234 = scalar_select %p5233, %s5230, 15
          %s5235 = smul.addr %s5232, 16
          %s5236 = sadd.s32 %s5234, %s5235
          %s5237 = smul.addr %s5236, 4
          %s5238 = scalar_lea.vmem %s8, %s5237
        $region144: #{illumination_estimator.1} parent=135 // pred_fallthru
          _
      $region136: #{illumination_estimator.1} parent=5 // pred_fallthru
        _
    $region6: #{illumination_estimator.1} parent=1 // loop_footer
      %s19 = sadd.s32 1, %s15
    $region7: #{illumination_estimator.1} parent=1 // loop_footer_branch
      %14 = sbr.rel target = $region3
    $region8: #{illumination_estimator.1} parent=1 // loop_exit
      _

</llo_original>
